<compile_context>
chip_gen: v6e
topology: v6e:2x2x1
jax: 0.10.0
libtpu: 0.0.40
codegen_flags: <defaults>
</compile_context>

<pallas_src>
import jax
import jax.numpy as jnp
from jax.experimental import pallas as pl
from jax.experimental.pallas import tpu as pltpu

_K = 5            # every layer: kernel_size=5, stride=2, padding=2
_PAD = 2          # zero halo rows kept on each side of every VMEM activation
_NUM_LAYERS = 12
_ENC_NAMES = ("l1", "l2", "l3", "l4", "l5", "l6")
_DEC_NAMES = ("l7", "l8", "l9", "l10", "l11", "l12")


# ----------------------------------------------------------------------------
# In-kernel layer helpers (everything operates on VMEM scratch refs)
# ----------------------------------------------------------------------------
def _conv_layer(src, dst, w_ref, b_ref):
    """Conv1d(k=5, s=2, p=2) + bias + ReLU, fully inside VMEM.

    src: (l_in + 4, c_in) f32 scratch ref, activation at rows [2, l_in + 2).
    dst: (l_in//2 + 4, c_out) f32 scratch ref, written at rows [2, ...).
    w_ref: (5, c_in, c_out) bf16;  b_ref: (1, c_out) f32.
    """
    l_in = src.shape[0] - 2 * _PAD
    l_out = l_in // 2
    acc = b_ref[...]
    for k in range(_K):
        # out[l] += x[2l + k - 2] @ W_k  ->  padded rows k, k+2, ..., k+2(l_out-1)
        xs = src[pl.ds(k, l_out, stride=2), :].astype(jnp.bfloat16)
        acc = acc + jnp.dot(xs, w_ref[k], preferred_element_type=jnp.float32)
    dst[pl.ds(_PAD, l_out), :] = jnp.maximum(acc, 0.0)


def _deconv_layer(parts, dst, w_ref, b_ref):
    """ConvTranspose1d(k=5, s=2, p=2, output_padding=1) + bias + ReLU (polyphase).

    The channel-concatenated input (skip ++ previous decoder output) is never
    materialized: each part multiplies its own slice of the weight rows.
    parts: padded (l_in + 4, c_part) scratch refs, in concat order.
    dst:   (2*l_in + 4, c_out) scratch ref.
    """
    l_in = parts[0].shape[0] - 2 * _PAD
    even = b_ref[...]
    odd = b_ref[...]
    off = 0
    for src in parts:
        c = src.shape[1]
        xm1 = src[pl.ds(_PAD - 1, l_in), :].astype(jnp.bfloat16)   # x[m-1]
        x00 = src[pl.ds(_PAD, l_in), :].astype(jnp.bfloat16)       # x[m]
        xp1 = src[pl.ds(_PAD + 1, l_in), :].astype(jnp.bfloat16)   # x[m+1]
        w0 = w_ref[0, off:off + c, :]
        w1 = w_ref[1, off:off + c, :]
        w2 = w_ref[2, off:off + c, :]
        w3 = w_ref[3, off:off + c, :]
        w4 = w_ref[4, off:off + c, :]
        even = (even
                + jnp.dot(xm1, w4, preferred_element_type=jnp.float32)
                + jnp.dot(x00, w2, preferred_element_type=jnp.float32)
                + jnp.dot(xp1, w0, preferred_element_type=jnp.float32))
        odd = (odd
               + jnp.dot(x00, w3, preferred_element_type=jnp.float32)
               + jnp.dot(xp1, w1, preferred_element_type=jnp.float32))
        off += c
    dst[pl.ds(_PAD, l_in, stride=2), :] = jnp.maximum(even, 0.0)       # out[2m]
    dst[pl.ds(_PAD + 1, l_in, stride=2), :] = jnp.maximum(odd, 0.0)    # out[2m+1]


def _unet_kernel(x_ref, *refs):
    """Entire 12-layer UNet forward for one batch element (one grid step)."""
    nw = 2 * _NUM_LAYERS
    w = refs[0:nw:2]            # (5, c_in, c_out) bf16 weight refs, l1..l12
    b = refs[1:nw:2]            # (1, c_out) f32 bias refs
    o_ref = refs[nw]
    bufs = refs[nw + 1:]
    bx, h1, h2, h3, h4, h5, h6, h7, h8, h9, h10, h11, h12 = bufs

    # Zero every buffer so the 2-row halo around each activation is zero padding.
    for buf in bufs:
        buf[...] = jnp.zeros_like(buf)

    length = x_ref.shape[1]
    c_in = x_ref.shape[2]
    bx[pl.ds(_PAD, length), :] = x_ref[0]

    # -------- encoder: 6 x (Conv1d k5 s2 p2 + ReLU) --------
    _conv_layer(bx, h1, w[0], b[0])
    _conv_layer(h1, h2, w[1], b[1])
    _conv_layer(h2, h3, w[2], b[2])
    _conv_layer(h3, h4, w[3], b[3])
    _conv_layer(h4, h5, w[4], b[4])
    _conv_layer(h5, h6, w[5], b[5])

    # -------- decoder: 6 x (ConvTranspose1d + ReLU); skips via weight-row split --------
    _deconv_layer([h6],      h7,  w[6],  b[6])
    _deconv_layer([h5, h7],  h8,  w[7],  b[7])
    _deconv_layer([h4, h8],  h9,  w[8],  b[8])
    _deconv_layer([h3, h9],  h10, w[9],  b[9])
    _deconv_layer([h2, h10], h11, w[10], b[10])
    _deconv_layer([h1, h11], h12, w[11], b[11])

    # final pad_concat(x, h12): lengths already equal (L % 64 == 0)
    o_ref[0, :, :c_in] = bx[pl.ds(_PAD, length), :]
    o_ref[0, :, c_in:] = h12[pl.ds(_PAD, length), :]


# ----------------------------------------------------------------------------
# Wrapper: parameter re-layout + single pallas_call
# ----------------------------------------------------------------------------
def unet_forward(x, params):
    """x: (B, in_channels, L) NCW  ->  (B, 2*in_channels, L). One fused kernel."""
    B, C, L = x.shape
    # Encoder halves the length 6x and the decoder doubles it back; L % 64 == 0
    # makes every skip length match its decoder length exactly (no pad needed).
    assert L % (2 ** 6) == 0, "UNet Pallas kernel requires length divisible by 64"
    # TODO(synk): the reflect-pad branch of pad_concat (only reached when encoder /
    # decoder lengths mismatch, i.e. L not divisible by 64) is not implemented.

    # Flatten params to [w1, b1, ..., w12, b12] in kernel layout:
    #   weights -> (K, c_in, c_out) bf16 tap stacks, biases -> (1, c_out) f32.
    flat = []
    for name in _ENC_NAMES + _DEC_NAMES:
        wgt, bias = params[name]
        if name in _ENC_NAMES:           # Conv1d weight: (c_out, c_in, K)
            taps = jnp.transpose(wgt, (2, 1, 0))
        else:                            # ConvTranspose1d weight: (c_in, c_out, K)
            taps = jnp.transpose(wgt, (2, 0, 1))
        flat.append(taps.astype(jnp.bfloat16))
        flat.append(bias.reshape(1, -1).astype(jnp.float32))

    # (B, C, L) -> (B, L, C): length on sublanes, channels on lanes.
    x_nlc = jnp.transpose(x, (0, 2, 1))

    # Padded VMEM activation buffers: x, h1..h12 (length + 4 halo rows, channels).
    lens = [L, L // 2, L // 4, L // 8, L // 16, L // 32, L // 64,
            L // 32, L // 16, L // 8, L // 4, L // 2, L]
    chans = [C, C, 2 * C, 2 * C, 4 * C, 4 * C, 8 * C,
             4 * C, 4 * C, 2 * C, 2 * C, C, C]
    scratch = [pltpu.VMEM((l + 2 * _PAD, ch), jnp.float32)
               for l, ch in zip(lens, chans)]

    in_specs = [pl.BlockSpec((1, L, C), lambda bb: (bb, 0, 0))]
    for arr in flat:
        in_specs.append(pl.BlockSpec(arr.shape, lambda bb, nd=arr.ndim: (0,) * nd))

    # Advisory cost estimate (lets XLA schedule around the fused call).
    rows = [L // 2, L // 4, L // 8, L // 16, L // 32, L // 64,      # conv: L_out
            L // 64, L // 32, L // 16, L // 8, L // 4, L // 2]      # deconv: L_in
    cio = [(C, C), (C, 2 * C), (2 * C, 2 * C), (2 * C, 4 * C), (4 * C, 4 * C),
           (4 * C, 8 * C), (8 * C, 4 * C), (8 * C, 4 * C), (8 * C, 2 * C),
           (4 * C, 2 * C), (4 * C, C), (2 * C, C)]
    flops = 2 * B * sum(r * _K * ci * co for r, (ci, co) in zip(rows, cio))
    bytes_accessed = (x.size * 4 + B * L * 2 * C * 4
                      + sum(int(a.size) * a.dtype.itemsize for a in flat))

    out_nlc = pl.pallas_call(
        _unet_kernel,
        out_shape=jax.ShapeDtypeStruct((B, L, 2 * C), jnp.float32),
        grid=(B,),
        in_specs=in_specs,
        out_specs=pl.BlockSpec((1, L, 2 * C), lambda bb: (bb, 0, 0)),
        scratch_shapes=scratch,
        compiler_params=pltpu.CompilerParams(
            dimension_semantics=("parallel",)),   # v7x: one batch element per TC
        cost_estimate=pl.CostEstimate(
            flops=int(flops), transcendentals=0,
            bytes_accessed=int(bytes_accessed)),
    )(x_nlc, *flat)

    return jnp.transpose(out_nlc, (0, 2, 1))


# ----------------------------------------------------------------------------
# Parameter init (PyTorch layouts: Conv1d (C_out,C_in,K), ConvTranspose (C_in,C_out,K))
# ----------------------------------------------------------------------------
def init_unet_params(key, in_channels=8, dtype=jnp.float32):
    C = in_channels
    K = 5
    conv_shapes = {          # Conv1d: (C_out, C_in)
        "l1": (C, C), "l2": (2 * C, C), "l3": (2 * C, 2 * C),
        "l4": (4 * C, 2 * C), "l5": (4 * C, 4 * C), "l6": (8 * C, 4 * C),
    }
    deconv_shapes = {        # ConvTranspose1d: (C_in, C_out)
        "l7": (8 * C, 4 * C), "l8": (8 * C, 4 * C), "l9": (8 * C, 2 * C),
        "l10": (4 * C, 2 * C), "l11": (4 * C, C), "l12": (2 * C, C),
    }
    params = {}
    names = list(conv_shapes) + list(deconv_shapes)
    keys = jax.random.split(key, 2 * len(names))
    for i, name in enumerate(names):
        if name in conv_shapes:
            c_out, c_in = conv_shapes[name]
            wshape = (c_out, c_in, K)
        else:
            c_in, c_out = deconv_shapes[name]
            wshape = (c_in, c_out, K)
        fan_in = c_in * K
        scale = jnp.asarray((2.0 / fan_in) ** 0.5, dtype)
        w = scale * jax.random.normal(keys[2 * i], wshape, dtype)
        b = 0.01 * jax.random.normal(keys[2 * i + 1], (c_out,), dtype)
        params[name] = (w, b)
    return params


if __name__ == "__main__":
    key = jax.random.PRNGKey(0)
    k_param, k_x = jax.random.split(key)

    B, C_IN, L = 2, 8, 64            # 6 halving layers -> L must be a multiple of 64
    params = init_unet_params(k_param, in_channels=C_IN)
    x = jax.random.normal(k_x, (B, C_IN, L), jnp.float32)

    fwd = jax.jit(unet_forward)
    out = jax.block_until_ready(fwd(x, params))

    assert out.shape == (B, 2 * C_IN, L), out.shape
    assert bool(jnp.all(jnp.isfinite(out)))
    print("KERNEL_OK")
</pallas_src>

<mosaic_0001>
module attributes {stable_mosaic.version = 11 : i64} {
  func.func @_unet_kernel(%arg0: i32, %arg1: memref<1x64x8xf32, #tpu.memory_space<vmem>>, %arg2: memref<5x8x8xbf16, #tpu.memory_space<vmem>>, %arg3: memref<1x8xf32, #tpu.memory_space<vmem>>, %arg4: memref<5x8x16xbf16, #tpu.memory_space<vmem>>, %arg5: memref<1x16xf32, #tpu.memory_space<vmem>>, %arg6: memref<5x16x16xbf16, #tpu.memory_space<vmem>>, %arg7: memref<1x16xf32, #tpu.memory_space<vmem>>, %arg8: memref<5x16x32xbf16, #tpu.memory_space<vmem>>, %arg9: memref<1x32xf32, #tpu.memory_space<vmem>>, %arg10: memref<5x32x32xbf16, #tpu.memory_space<vmem>>, %arg11: memref<1x32xf32, #tpu.memory_space<vmem>>, %arg12: memref<5x32x64xbf16, #tpu.memory_space<vmem>>, %arg13: memref<1x64xf32, #tpu.memory_space<vmem>>, %arg14: memref<5x64x32xbf16, #tpu.memory_space<vmem>>, %arg15: memref<1x32xf32, #tpu.memory_space<vmem>>, %arg16: memref<5x64x32xbf16, #tpu.memory_space<vmem>>, %arg17: memref<1x32xf32, #tpu.memory_space<vmem>>, %arg18: memref<5x64x16xbf16, #tpu.memory_space<vmem>>, %arg19: memref<1x16xf32, #tpu.memory_space<vmem>>, %arg20: memref<5x32x16xbf16, #tpu.memory_space<vmem>>, %arg21: memref<1x16xf32, #tpu.memory_space<vmem>>, %arg22: memref<5x32x8xbf16, #tpu.memory_space<vmem>>, %arg23: memref<1x8xf32, #tpu.memory_space<vmem>>, %arg24: memref<5x16x8xbf16, #tpu.memory_space<vmem>>, %arg25: memref<1x8xf32, #tpu.memory_space<vmem>>, %arg26: memref<1x64x16xf32, #tpu.memory_space<vmem>>, %arg27: memref<68x8xf32, #tpu.memory_space<vmem>>, %arg28: memref<36x8xf32, #tpu.memory_space<vmem>>, %arg29: memref<20x16xf32, #tpu.memory_space<vmem>>, %arg30: memref<12x16xf32, #tpu.memory_space<vmem>>, %arg31: memref<8x32xf32, #tpu.memory_space<vmem>>, %arg32: memref<6x32xf32, #tpu.memory_space<vmem>>, %arg33: memref<5x64xf32, #tpu.memory_space<vmem>>, %arg34: memref<6x32xf32, #tpu.memory_space<vmem>>, %arg35: memref<8x32xf32, #tpu.memory_space<vmem>>, %arg36: memref<12x16xf32, #tpu.memory_space<vmem>>, %arg37: memref<20x16xf32, #tpu.memory_space<vmem>>, %arg38: memref<36x8xf32, #tpu.memory_space<vmem>>, %arg39: memref<68x8xf32, #tpu.memory_space<vmem>>) attributes {dimension_semantics = [#tpu.dimension_semantics<parallel>], iteration_bounds = array<i64: 2>, scalar_prefetch = 0 : i64, scratch_operands = 13 : i64, tpu.core_type = #tpu.core_type<tc>, window_params = [{transform_indices = @transform_0, window_bounds = array<i64: 1, 64, 8>}, {pipeline_mode = #tpu.pipeline_mode<synchronous>, transform_indices = @transform_1, window_bounds = array<i64: 5, 8, 8>}, {pipeline_mode = #tpu.pipeline_mode<synchronous>, transform_indices = @transform_2, window_bounds = array<i64: 1, 8>}, {pipeline_mode = #tpu.pipeline_mode<synchronous>, transform_indices = @transform_3, window_bounds = array<i64: 5, 8, 16>}, {pipeline_mode = #tpu.pipeline_mode<synchronous>, transform_indices = @transform_4, window_bounds = array<i64: 1, 16>}, {pipeline_mode = #tpu.pipeline_mode<synchronous>, transform_indices = @transform_5, window_bounds = array<i64: 5, 16, 16>}, {pipeline_mode = #tpu.pipeline_mode<synchronous>, transform_indices = @transform_6, window_bounds = array<i64: 1, 16>}, {pipeline_mode = #tpu.pipeline_mode<synchronous>, transform_indices = @transform_7, window_bounds = array<i64: 5, 16, 32>}, {pipeline_mode = #tpu.pipeline_mode<synchronous>, transform_indices = @transform_8, window_bounds = array<i64: 1, 32>}, {pipeline_mode = #tpu.pipeline_mode<synchronous>, transform_indices = @transform_9, window_bounds = array<i64: 5, 32, 32>}, {pipeline_mode = #tpu.pipeline_mode<synchronous>, transform_indices = @transform_10, window_bounds = array<i64: 1, 32>}, {pipeline_mode = #tpu.pipeline_mode<synchronous>, transform_indices = @transform_11, window_bounds = array<i64: 5, 32, 64>}, {pipeline_mode = #tpu.pipeline_mode<synchronous>, transform_indices = @transform_12, window_bounds = array<i64: 1, 64>}, {pipeline_mode = #tpu.pipeline_mode<synchronous>, transform_indices = @transform_13, window_bounds = array<i64: 5, 64, 32>}, {pipeline_mode = #tpu.pipeline_mode<synchronous>, transform_indices = @transform_14, window_bounds = array<i64: 1, 32>}, {pipeline_mode = #tpu.pipeline_mode<synchronous>, transform_indices = @transform_15, window_bounds = array<i64: 5, 64, 32>}, {pipeline_mode = #tpu.pipeline_mode<synchronous>, transform_indices = @transform_16, window_bounds = array<i64: 1, 32>}, {pipeline_mode = #tpu.pipeline_mode<synchronous>, transform_indices = @transform_17, window_bounds = array<i64: 5, 64, 16>}, {pipeline_mode = #tpu.pipeline_mode<synchronous>, transform_indices = @transform_18, window_bounds = array<i64: 1, 16>}, {pipeline_mode = #tpu.pipeline_mode<synchronous>, transform_indices = @transform_19, window_bounds = array<i64: 5, 32, 16>}, {pipeline_mode = #tpu.pipeline_mode<synchronous>, transform_indices = @transform_20, window_bounds = array<i64: 1, 16>}, {pipeline_mode = #tpu.pipeline_mode<synchronous>, transform_indices = @transform_21, window_bounds = array<i64: 5, 32, 8>}, {pipeline_mode = #tpu.pipeline_mode<synchronous>, transform_indices = @transform_22, window_bounds = array<i64: 1, 8>}, {pipeline_mode = #tpu.pipeline_mode<synchronous>, transform_indices = @transform_23, window_bounds = array<i64: 5, 16, 8>}, {pipeline_mode = #tpu.pipeline_mode<synchronous>, transform_indices = @transform_24, window_bounds = array<i64: 1, 8>}, {transform_indices = @transform_25, window_bounds = array<i64: 1, 64, 16>}]} {
    %cst = arith.constant 0.000000e+00 : f32
    %0 = vector.broadcast %cst : f32 to vector<68x8xf32>
    %c0 = arith.constant 0 : index
    %c0_0 = arith.constant 0 : index
    %1 = vector.load %arg27[%c0, %c0_0] : memref<68x8xf32, #tpu.memory_space<vmem>>, vector<68x8xf32>
    tpu.vector_store %arg27[%c0, %c0_0], %0 {strides = array<i32>} : memref<68x8xf32, #tpu.memory_space<vmem>>, vector<68x8xf32>,
    %cst_1 = arith.constant 0.000000e+00 : f32
    %2 = vector.broadcast %cst_1 : f32 to vector<36x8xf32>
    %c0_2 = arith.constant 0 : index
    %c0_3 = arith.constant 0 : index
    %3 = vector.load %arg28[%c0_2, %c0_3] : memref<36x8xf32, #tpu.memory_space<vmem>>, vector<36x8xf32>
    tpu.vector_store %arg28[%c0_2, %c0_3], %2 {strides = array<i32>} : memref<36x8xf32, #tpu.memory_space<vmem>>, vector<36x8xf32>,
    %cst_4 = arith.constant 0.000000e+00 : f32
    %4 = vector.broadcast %cst_4 : f32 to vector<20x16xf32>
    %c0_5 = arith.constant 0 : index
    %c0_6 = arith.constant 0 : index
    %5 = vector.load %arg29[%c0_5, %c0_6] : memref<20x16xf32, #tpu.memory_space<vmem>>, vector<20x16xf32>
    tpu.vector_store %arg29[%c0_5, %c0_6], %4 {strides = array<i32>} : memref<20x16xf32, #tpu.memory_space<vmem>>, vector<20x16xf32>,
    %cst_7 = arith.constant 0.000000e+00 : f32
    %6 = vector.broadcast %cst_7 : f32 to vector<12x16xf32>
    %c0_8 = arith.constant 0 : index
    %c0_9 = arith.constant 0 : index
    %7 = vector.load %arg30[%c0_8, %c0_9] : memref<12x16xf32, #tpu.memory_space<vmem>>, vector<12x16xf32>
    tpu.vector_store %arg30[%c0_8, %c0_9], %6 {strides = array<i32>} : memref<12x16xf32, #tpu.memory_space<vmem>>, vector<12x16xf32>,
    %cst_10 = arith.constant 0.000000e+00 : f32
    %8 = vector.broadcast %cst_10 : f32 to vector<8x32xf32>
    %c0_11 = arith.constant 0 : index
    %c0_12 = arith.constant 0 : index
    %9 = vector.load %arg31[%c0_11, %c0_12] : memref<8x32xf32, #tpu.memory_space<vmem>>, vector<8x32xf32>
    tpu.vector_store %arg31[%c0_11, %c0_12], %8 {strides = array<i32>} : memref<8x32xf32, #tpu.memory_space<vmem>>, vector<8x32xf32>,
    %cst_13 = arith.constant 0.000000e+00 : f32
    %10 = vector.broadcast %cst_13 : f32 to vector<6x32xf32>
    %c0_14 = arith.constant 0 : index
    %c0_15 = arith.constant 0 : index
    %11 = vector.load %arg32[%c0_14, %c0_15] : memref<6x32xf32, #tpu.memory_space<vmem>>, vector<6x32xf32>
    tpu.vector_store %arg32[%c0_14, %c0_15], %10 {strides = array<i32>} : memref<6x32xf32, #tpu.memory_space<vmem>>, vector<6x32xf32>,
    %cst_16 = arith.constant 0.000000e+00 : f32
    %12 = vector.broadcast %cst_16 : f32 to vector<5x64xf32>
    %c0_17 = arith.constant 0 : index
    %c0_18 = arith.constant 0 : index
    %13 = vector.load %arg33[%c0_17, %c0_18] : memref<5x64xf32, #tpu.memory_space<vmem>>, vector<5x64xf32>
    tpu.vector_store %arg33[%c0_17, %c0_18], %12 {strides = array<i32>} : memref<5x64xf32, #tpu.memory_space<vmem>>, vector<5x64xf32>,
    %cst_19 = arith.constant 0.000000e+00 : f32
    %14 = vector.broadcast %cst_19 : f32 to vector<6x32xf32>
    %c0_20 = arith.constant 0 : index
    %c0_21 = arith.constant 0 : index
    %15 = vector.load %arg34[%c0_20, %c0_21] : memref<6x32xf32, #tpu.memory_space<vmem>>, vector<6x32xf32>
    tpu.vector_store %arg34[%c0_20, %c0_21], %14 {strides = array<i32>} : memref<6x32xf32, #tpu.memory_space<vmem>>, vector<6x32xf32>,
    %cst_22 = arith.constant 0.000000e+00 : f32
    %16 = vector.broadcast %cst_22 : f32 to vector<8x32xf32>
    %c0_23 = arith.constant 0 : index
    %c0_24 = arith.constant 0 : index
    %17 = vector.load %arg35[%c0_23, %c0_24] : memref<8x32xf32, #tpu.memory_space<vmem>>, vector<8x32xf32>
    tpu.vector_store %arg35[%c0_23, %c0_24], %16 {strides = array<i32>} : memref<8x32xf32, #tpu.memory_space<vmem>>, vector<8x32xf32>,
    %cst_25 = arith.constant 0.000000e+00 : f32
    %18 = vector.broadcast %cst_25 : f32 to vector<12x16xf32>
    %c0_26 = arith.constant 0 : index
    %c0_27 = arith.constant 0 : index
    %19 = vector.load %arg36[%c0_26, %c0_27] : memref<12x16xf32, #tpu.memory_space<vmem>>, vector<12x16xf32>
    tpu.vector_store %arg36[%c0_26, %c0_27], %18 {strides = array<i32>} : memref<12x16xf32, #tpu.memory_space<vmem>>, vector<12x16xf32>,
    %cst_28 = arith.constant 0.000000e+00 : f32
    %20 = vector.broadcast %cst_28 : f32 to vector<20x16xf32>
    %c0_29 = arith.constant 0 : index
    %c0_30 = arith.constant 0 : index
    %21 = vector.load %arg37[%c0_29, %c0_30] : memref<20x16xf32, #tpu.memory_space<vmem>>, vector<20x16xf32>
    tpu.vector_store %arg37[%c0_29, %c0_30], %20 {strides = array<i32>} : memref<20x16xf32, #tpu.memory_space<vmem>>, vector<20x16xf32>,
    %cst_31 = arith.constant 0.000000e+00 : f32
    %22 = vector.broadcast %cst_31 : f32 to vector<36x8xf32>
    %c0_32 = arith.constant 0 : index
    %c0_33 = arith.constant 0 : index
    %23 = vector.load %arg38[%c0_32, %c0_33] : memref<36x8xf32, #tpu.memory_space<vmem>>, vector<36x8xf32>
    tpu.vector_store %arg38[%c0_32, %c0_33], %22 {strides = array<i32>} : memref<36x8xf32, #tpu.memory_space<vmem>>, vector<36x8xf32>,
    %cst_34 = arith.constant 0.000000e+00 : f32
    %24 = vector.broadcast %cst_34 : f32 to vector<68x8xf32>
    %c0_35 = arith.constant 0 : index
    %c0_36 = arith.constant 0 : index
    %25 = vector.load %arg39[%c0_35, %c0_36] : memref<68x8xf32, #tpu.memory_space<vmem>>, vector<68x8xf32>
    tpu.vector_store %arg39[%c0_35, %c0_36], %24 {strides = array<i32>} : memref<68x8xf32, #tpu.memory_space<vmem>>, vector<68x8xf32>,
    %c0_37 = arith.constant 0 : index
    %c0_38 = arith.constant 0 : index
    %c0_39 = arith.constant 0 : index
    %26 = vector.load %arg1[%c0_37, %c0_38, %c0_39] : memref<1x64x8xf32, #tpu.memory_space<vmem>>, vector<1x64x8xf32>
    %27 = vector.shape_cast %26 : vector<1x64x8xf32> to vector<64x8xf32>
    %c2 = arith.constant 2 : index
    %c0_40 = arith.constant 0 : index
    %28 = vector.load %arg27[%c2, %c0_40] : memref<68x8xf32, #tpu.memory_space<vmem>>, vector<64x8xf32>
    tpu.vector_store %arg27[%c2, %c0_40], %27 {strides = array<i32>} : memref<68x8xf32, #tpu.memory_space<vmem>>, vector<64x8xf32>,
    %c0_41 = arith.constant 0 : index
    %c0_42 = arith.constant 0 : index
    %29 = vector.load %arg3[%c0_41, %c0_42] : memref<1x8xf32, #tpu.memory_space<vmem>>, vector<1x8xf32>
    %c0_43 = arith.constant 0 : index
    %c0_44 = arith.constant 0 : index
    %30 = tpu.strided_load %arg27[%c0_43, %c0_44] {strides = array<i32: 2, 1>} : memref<68x8xf32, #tpu.memory_space<vmem>>, vector<32x8xf32>
    %31 = arith.truncf %30 : vector<32x8xf32> to vector<32x8xbf16>
    %c0_45 = arith.constant 0 : index
    %c0_46 = arith.constant 0 : index
    %c0_47 = arith.constant 0 : index
    %32 = vector.load %arg2[%c0_45, %c0_46, %c0_47] : memref<5x8x8xbf16, #tpu.memory_space<vmem>>, vector<1x8x8xbf16>
    %33 = vector.shape_cast %32 : vector<1x8x8xbf16> to vector<8x8xbf16>
    %cst_48 = arith.constant dense<0.000000e+00> : vector<32x8xf32>
    %34 = tpu.matmul %31, %33, %cst_48 {dimension_numbers = #tpu.dot_dimension_numbers<[1], [0], [0], [1], [0, 0, 1, 1], [], []>} : vector<32x8xbf16>, vector<8x8xbf16>, vector<32x8xf32> -> vector<32x8xf32>
    %35 = vector.broadcast %29 : vector<1x8xf32> to vector<32x8xf32>
    %36 = arith.addf %35, %34 : vector<32x8xf32>
    %c1 = arith.constant 1 : index
    %c0_49 = arith.constant 0 : index
    %37 = tpu.strided_load %arg27[%c1, %c0_49] {strides = array<i32: 2, 1>} : memref<68x8xf32, #tpu.memory_space<vmem>>, vector<32x8xf32>
    %38 = arith.truncf %37 : vector<32x8xf32> to vector<32x8xbf16>
    %c1_50 = arith.constant 1 : index
    %c0_51 = arith.constant 0 : index
    %c0_52 = arith.constant 0 : index
    %39 = vector.load %arg2[%c1_50, %c0_51, %c0_52] : memref<5x8x8xbf16, #tpu.memory_space<vmem>>, vector<1x8x8xbf16>
    %40 = vector.shape_cast %39 : vector<1x8x8xbf16> to vector<8x8xbf16>
    %cst_53 = arith.constant dense<0.000000e+00> : vector<32x8xf32>
    %41 = tpu.matmul %38, %40, %cst_53 {dimension_numbers = #tpu.dot_dimension_numbers<[1], [0], [0], [1], [0, 0, 1, 1], [], []>} : vector<32x8xbf16>, vector<8x8xbf16>, vector<32x8xf32> -> vector<32x8xf32>
    %42 = arith.addf %36, %41 : vector<32x8xf32>
    %c2_54 = arith.constant 2 : index
    %c0_55 = arith.constant 0 : index
    %43 = tpu.strided_load %arg27[%c2_54, %c0_55] {strides = array<i32: 2, 1>} : memref<68x8xf32, #tpu.memory_space<vmem>>, vector<32x8xf32>
    %44 = arith.truncf %43 : vector<32x8xf32> to vector<32x8xbf16>
    %c2_56 = arith.constant 2 : index
    %c0_57 = arith.constant 0 : index
    %c0_58 = arith.constant 0 : index
    %45 = vector.load %arg2[%c2_56, %c0_57, %c0_58] : memref<5x8x8xbf16, #tpu.memory_space<vmem>>, vector<1x8x8xbf16>
    %46 = vector.shape_cast %45 : vector<1x8x8xbf16> to vector<8x8xbf16>
    %cst_59 = arith.constant dense<0.000000e+00> : vector<32x8xf32>
    %47 = tpu.matmul %44, %46, %cst_59 {dimension_numbers = #tpu.dot_dimension_numbers<[1], [0], [0], [1], [0, 0, 1, 1], [], []>} : vector<32x8xbf16>, vector<8x8xbf16>, vector<32x8xf32> -> vector<32x8xf32>
    %48 = arith.addf %42, %47 : vector<32x8xf32>
    %c3 = arith.constant 3 : index
    %c0_60 = arith.constant 0 : index
    %49 = tpu.strided_load %arg27[%c3, %c0_60] {strides = array<i32: 2, 1>} : memref<68x8xf32, #tpu.memory_space<vmem>>, vector<32x8xf32>
    %50 = arith.truncf %49 : vector<32x8xf32> to vector<32x8xbf16>
    %c3_61 = arith.constant 3 : index
    %c0_62 = arith.constant 0 : index
    %c0_63 = arith.constant 0 : index
    %51 = vector.load %arg2[%c3_61, %c0_62, %c0_63] : memref<5x8x8xbf16, #tpu.memory_space<vmem>>, vector<1x8x8xbf16>
    %52 = vector.shape_cast %51 : vector<1x8x8xbf16> to vector<8x8xbf16>
    %cst_64 = arith.constant dense<0.000000e+00> : vector<32x8xf32>
    %53 = tpu.matmul %50, %52, %cst_64 {dimension_numbers = #tpu.dot_dimension_numbers<[1], [0], [0], [1], [0, 0, 1, 1], [], []>} : vector<32x8xbf16>, vector<8x8xbf16>, vector<32x8xf32> -> vector<32x8xf32>
    %54 = arith.addf %48, %53 : vector<32x8xf32>
    %c4 = arith.constant 4 : index
    %c0_65 = arith.constant 0 : index
    %55 = tpu.strided_load %arg27[%c4, %c0_65] {strides = array<i32: 2, 1>} : memref<68x8xf32, #tpu.memory_space<vmem>>, vector<32x8xf32>
    %56 = arith.truncf %55 : vector<32x8xf32> to vector<32x8xbf16>
    %c4_66 = arith.constant 4 : index
    %c0_67 = arith.constant 0 : index
    %c0_68 = arith.constant 0 : index
    %57 = vector.load %arg2[%c4_66, %c0_67, %c0_68] : memref<5x8x8xbf16, #tpu.memory_space<vmem>>, vector<1x8x8xbf16>
    %58 = vector.shape_cast %57 : vector<1x8x8xbf16> to vector<8x8xbf16>
    %cst_69 = arith.constant dense<0.000000e+00> : vector<32x8xf32>
    %59 = tpu.matmul %56, %58, %cst_69 {dimension_numbers = #tpu.dot_dimension_numbers<[1], [0], [0], [1], [0, 0, 1, 1], [], []>} : vector<32x8xbf16>, vector<8x8xbf16>, vector<32x8xf32> -> vector<32x8xf32>
    %60 = arith.addf %54, %59 : vector<32x8xf32>
    %cst_70 = arith.constant 0.000000e+00 : f32
    %61 = vector.broadcast %cst_70 : f32 to vector<32x8xf32>
    %62 = arith.maximumf %60, %61 : vector<32x8xf32>
    %c2_71 = arith.constant 2 : index
    %c0_72 = arith.constant 0 : index
    %63 = vector.load %arg28[%c2_71, %c0_72] : memref<36x8xf32, #tpu.memory_space<vmem>>, vector<32x8xf32>
    tpu.vector_store %arg28[%c2_71, %c0_72], %62 {strides = array<i32>} : memref<36x8xf32, #tpu.memory_space<vmem>>, vector<32x8xf32>,
    %c0_73 = arith.constant 0 : index
    %c0_74 = arith.constant 0 : index
    %64 = vector.load %arg5[%c0_73, %c0_74] : memref<1x16xf32, #tpu.memory_space<vmem>>, vector<1x16xf32>
    %c0_75 = arith.constant 0 : index
    %c0_76 = arith.constant 0 : index
    %65 = tpu.strided_load %arg28[%c0_75, %c0_76] {strides = array<i32: 2, 1>} : memref<36x8xf32, #tpu.memory_space<vmem>>, vector<16x8xf32>
    %66 = arith.truncf %65 : vector<16x8xf32> to vector<16x8xbf16>
    %c0_77 = arith.constant 0 : index
    %c0_78 = arith.constant 0 : index
    %c0_79 = arith.constant 0 : index
    %67 = vector.load %arg4[%c0_77, %c0_78, %c0_79] : memref<5x8x16xbf16, #tpu.memory_space<vmem>>, vector<1x8x16xbf16>
    %68 = vector.shape_cast %67 : vector<1x8x16xbf16> to vector<8x16xbf16>
    %cst_80 = arith.constant dense<0.000000e+00> : vector<16x16xf32>
    %69 = tpu.matmul %66, %68, %cst_80 {dimension_numbers = #tpu.dot_dimension_numbers<[1], [0], [0], [1], [0, 0, 1, 1], [], []>} : vector<16x8xbf16>, vector<8x16xbf16>, vector<16x16xf32> -> vector<16x16xf32>
    %70 = vector.broadcast %64 : vector<1x16xf32> to vector<16x16xf32>
    %71 = arith.addf %70, %69 : vector<16x16xf32>
    %c1_81 = arith.constant 1 : index
    %c0_82 = arith.constant 0 : index
    %72 = tpu.strided_load %arg28[%c1_81, %c0_82] {strides = array<i32: 2, 1>} : memref<36x8xf32, #tpu.memory_space<vmem>>, vector<16x8xf32>
    %73 = arith.truncf %72 : vector<16x8xf32> to vector<16x8xbf16>
    %c1_83 = arith.constant 1 : index
    %c0_84 = arith.constant 0 : index
    %c0_85 = arith.constant 0 : index
    %74 = vector.load %arg4[%c1_83, %c0_84, %c0_85] : memref<5x8x16xbf16, #tpu.memory_space<vmem>>, vector<1x8x16xbf16>
    %75 = vector.shape_cast %74 : vector<1x8x16xbf16> to vector<8x16xbf16>
    %cst_86 = arith.constant dense<0.000000e+00> : vector<16x16xf32>
    %76 = tpu.matmul %73, %75, %cst_86 {dimension_numbers = #tpu.dot_dimension_numbers<[1], [0], [0], [1], [0, 0, 1, 1], [], []>} : vector<16x8xbf16>, vector<8x16xbf16>, vector<16x16xf32> -> vector<16x16xf32>
    %77 = arith.addf %71, %76 : vector<16x16xf32>
    %c2_87 = arith.constant 2 : index
    %c0_88 = arith.constant 0 : index
    %78 = tpu.strided_load %arg28[%c2_87, %c0_88] {strides = array<i32: 2, 1>} : memref<36x8xf32, #tpu.memory_space<vmem>>, vector<16x8xf32>
    %79 = arith.truncf %78 : vector<16x8xf32> to vector<16x8xbf16>
    %c2_89 = arith.constant 2 : index
    %c0_90 = arith.constant 0 : index
    %c0_91 = arith.constant 0 : index
    %80 = vector.load %arg4[%c2_89, %c0_90, %c0_91] : memref<5x8x16xbf16, #tpu.memory_space<vmem>>, vector<1x8x16xbf16>
    %81 = vector.shape_cast %80 : vector<1x8x16xbf16> to vector<8x16xbf16>
    %cst_92 = arith.constant dense<0.000000e+00> : vector<16x16xf32>
    %82 = tpu.matmul %79, %81, %cst_92 {dimension_numbers = #tpu.dot_dimension_numbers<[1], [0], [0], [1], [0, 0, 1, 1], [], []>} : vector<16x8xbf16>, vector<8x16xbf16>, vector<16x16xf32> -> vector<16x16xf32>
    %83 = arith.addf %77, %82 : vector<16x16xf32>
    %c3_93 = arith.constant 3 : index
    %c0_94 = arith.constant 0 : index
    %84 = tpu.strided_load %arg28[%c3_93, %c0_94] {strides = array<i32: 2, 1>} : memref<36x8xf32, #tpu.memory_space<vmem>>, vector<16x8xf32>
    %85 = arith.truncf %84 : vector<16x8xf32> to vector<16x8xbf16>
    %c3_95 = arith.constant 3 : index
    %c0_96 = arith.constant 0 : index
    %c0_97 = arith.constant 0 : index
    %86 = vector.load %arg4[%c3_95, %c0_96, %c0_97] : memref<5x8x16xbf16, #tpu.memory_space<vmem>>, vector<1x8x16xbf16>
    %87 = vector.shape_cast %86 : vector<1x8x16xbf16> to vector<8x16xbf16>
    %cst_98 = arith.constant dense<0.000000e+00> : vector<16x16xf32>
    %88 = tpu.matmul %85, %87, %cst_98 {dimension_numbers = #tpu.dot_dimension_numbers<[1], [0], [0], [1], [0, 0, 1, 1], [], []>} : vector<16x8xbf16>, vector<8x16xbf16>, vector<16x16xf32> -> vector<16x16xf32>
    %89 = arith.addf %83, %88 : vector<16x16xf32>
    %c4_99 = arith.constant 4 : index
    %c0_100 = arith.constant 0 : index
    %90 = tpu.strided_load %arg28[%c4_99, %c0_100] {strides = array<i32: 2, 1>} : memref<36x8xf32, #tpu.memory_space<vmem>>, vector<16x8xf32>
    %91 = arith.truncf %90 : vector<16x8xf32> to vector<16x8xbf16>
    %c4_101 = arith.constant 4 : index
    %c0_102 = arith.constant 0 : index
    %c0_103 = arith.constant 0 : index
    %92 = vector.load %arg4[%c4_101, %c0_102, %c0_103] : memref<5x8x16xbf16, #tpu.memory_space<vmem>>, vector<1x8x16xbf16>
    %93 = vector.shape_cast %92 : vector<1x8x16xbf16> to vector<8x16xbf16>
    %cst_104 = arith.constant dense<0.000000e+00> : vector<16x16xf32>
    %94 = tpu.matmul %91, %93, %cst_104 {dimension_numbers = #tpu.dot_dimension_numbers<[1], [0], [0], [1], [0, 0, 1, 1], [], []>} : vector<16x8xbf16>, vector<8x16xbf16>, vector<16x16xf32> -> vector<16x16xf32>
    %95 = arith.addf %89, %94 : vector<16x16xf32>
    %cst_105 = arith.constant 0.000000e+00 : f32
    %96 = vector.broadcast %cst_105 : f32 to vector<16x16xf32>
    %97 = arith.maximumf %95, %96 : vector<16x16xf32>
    %c2_106 = arith.constant 2 : index
    %c0_107 = arith.constant 0 : index
    %98 = vector.load %arg29[%c2_106, %c0_107] : memref<20x16xf32, #tpu.memory_space<vmem>>, vector<16x16xf32>
    tpu.vector_store %arg29[%c2_106, %c0_107], %97 {strides = array<i32>} : memref<20x16xf32, #tpu.memory_space<vmem>>, vector<16x16xf32>,
    %c0_108 = arith.constant 0 : index
    %c0_109 = arith.constant 0 : index
    %99 = vector.load %arg7[%c0_108, %c0_109] : memref<1x16xf32, #tpu.memory_space<vmem>>, vector<1x16xf32>
    %c0_110 = arith.constant 0 : index
    %c0_111 = arith.constant 0 : index
    %100 = tpu.strided_load %arg29[%c0_110, %c0_111] {strides = array<i32: 2, 1>} : memref<20x16xf32, #tpu.memory_space<vmem>>, vector<8x16xf32>
    %101 = arith.truncf %100 : vector<8x16xf32> to vector<8x16xbf16>
    %c0_112 = arith.constant 0 : index
    %c0_113 = arith.constant 0 : index
    %c0_114 = arith.constant 0 : index
    %102 = vector.load %arg6[%c0_112, %c0_113, %c0_114] : memref<5x16x16xbf16, #tpu.memory_space<vmem>>, vector<1x16x16xbf16>
    %103 = vector.shape_cast %102 : vector<1x16x16xbf16> to vector<16x16xbf16>
    %cst_115 = arith.constant dense<0.000000e+00> : vector<8x16xf32>
    %104 = tpu.matmul %101, %103, %cst_115 {dimension_numbers = #tpu.dot_dimension_numbers<[1], [0], [0], [1], [0, 0, 1, 1], [], []>} : vector<8x16xbf16>, vector<16x16xbf16>, vector<8x16xf32> -> vector<8x16xf32>
    %105 = vector.broadcast %99 : vector<1x16xf32> to vector<8x16xf32>
    %106 = arith.addf %105, %104 : vector<8x16xf32>
    %c1_116 = arith.constant 1 : index
    %c0_117 = arith.constant 0 : index
    %107 = tpu.strided_load %arg29[%c1_116, %c0_117] {strides = array<i32: 2, 1>} : memref<20x16xf32, #tpu.memory_space<vmem>>, vector<8x16xf32>
    %108 = arith.truncf %107 : vector<8x16xf32> to vector<8x16xbf16>
    %c1_118 = arith.constant 1 : index
    %c0_119 = arith.constant 0 : index
    %c0_120 = arith.constant 0 : index
    %109 = vector.load %arg6[%c1_118, %c0_119, %c0_120] : memref<5x16x16xbf16, #tpu.memory_space<vmem>>, vector<1x16x16xbf16>
    %110 = vector.shape_cast %109 : vector<1x16x16xbf16> to vector<16x16xbf16>
    %cst_121 = arith.constant dense<0.000000e+00> : vector<8x16xf32>
    %111 = tpu.matmul %108, %110, %cst_121 {dimension_numbers = #tpu.dot_dimension_numbers<[1], [0], [0], [1], [0, 0, 1, 1], [], []>} : vector<8x16xbf16>, vector<16x16xbf16>, vector<8x16xf32> -> vector<8x16xf32>
    %112 = arith.addf %106, %111 : vector<8x16xf32>
    %c2_122 = arith.constant 2 : index
    %c0_123 = arith.constant 0 : index
    %113 = tpu.strided_load %arg29[%c2_122, %c0_123] {strides = array<i32: 2, 1>} : memref<20x16xf32, #tpu.memory_space<vmem>>, vector<8x16xf32>
    %114 = arith.truncf %113 : vector<8x16xf32> to vector<8x16xbf16>
    %c2_124 = arith.constant 2 : index
    %c0_125 = arith.constant 0 : index
    %c0_126 = arith.constant 0 : index
    %115 = vector.load %arg6[%c2_124, %c0_125, %c0_126] : memref<5x16x16xbf16, #tpu.memory_space<vmem>>, vector<1x16x16xbf16>
    %116 = vector.shape_cast %115 : vector<1x16x16xbf16> to vector<16x16xbf16>
    %cst_127 = arith.constant dense<0.000000e+00> : vector<8x16xf32>
    %117 = tpu.matmul %114, %116, %cst_127 {dimension_numbers = #tpu.dot_dimension_numbers<[1], [0], [0], [1], [0, 0, 1, 1], [], []>} : vector<8x16xbf16>, vector<16x16xbf16>, vector<8x16xf32> -> vector<8x16xf32>
    %118 = arith.addf %112, %117 : vector<8x16xf32>
    %c3_128 = arith.constant 3 : index
    %c0_129 = arith.constant 0 : index
    %119 = tpu.strided_load %arg29[%c3_128, %c0_129] {strides = array<i32: 2, 1>} : memref<20x16xf32, #tpu.memory_space<vmem>>, vector<8x16xf32>
    %120 = arith.truncf %119 : vector<8x16xf32> to vector<8x16xbf16>
    %c3_130 = arith.constant 3 : index
    %c0_131 = arith.constant 0 : index
    %c0_132 = arith.constant 0 : index
    %121 = vector.load %arg6[%c3_130, %c0_131, %c0_132] : memref<5x16x16xbf16, #tpu.memory_space<vmem>>, vector<1x16x16xbf16>
    %122 = vector.shape_cast %121 : vector<1x16x16xbf16> to vector<16x16xbf16>
    %cst_133 = arith.constant dense<0.000000e+00> : vector<8x16xf32>
    %123 = tpu.matmul %120, %122, %cst_133 {dimension_numbers = #tpu.dot_dimension_numbers<[1], [0], [0], [1], [0, 0, 1, 1], [], []>} : vector<8x16xbf16>, vector<16x16xbf16>, vector<8x16xf32> -> vector<8x16xf32>
    %124 = arith.addf %118, %123 : vector<8x16xf32>
    %c4_134 = arith.constant 4 : index
    %c0_135 = arith.constant 0 : index
    %125 = tpu.strided_load %arg29[%c4_134, %c0_135] {strides = array<i32: 2, 1>} : memref<20x16xf32, #tpu.memory_space<vmem>>, vector<8x16xf32>
    %126 = arith.truncf %125 : vector<8x16xf32> to vector<8x16xbf16>
    %c4_136 = arith.constant 4 : index
    %c0_137 = arith.constant 0 : index
    %c0_138 = arith.constant 0 : index
    %127 = vector.load %arg6[%c4_136, %c0_137, %c0_138] : memref<5x16x16xbf16, #tpu.memory_space<vmem>>, vector<1x16x16xbf16>
    %128 = vector.shape_cast %127 : vector<1x16x16xbf16> to vector<16x16xbf16>
    %cst_139 = arith.constant dense<0.000000e+00> : vector<8x16xf32>
    %129 = tpu.matmul %126, %128, %cst_139 {dimension_numbers = #tpu.dot_dimension_numbers<[1], [0], [0], [1], [0, 0, 1, 1], [], []>} : vector<8x16xbf16>, vector<16x16xbf16>, vector<8x16xf32> -> vector<8x16xf32>
    %130 = arith.addf %124, %129 : vector<8x16xf32>
    %cst_140 = arith.constant 0.000000e+00 : f32
    %131 = vector.broadcast %cst_140 : f32 to vector<8x16xf32>
    %132 = arith.maximumf %130, %131 : vector<8x16xf32>
    %c2_141 = arith.constant 2 : index
    %c0_142 = arith.constant 0 : index
    %133 = vector.load %arg30[%c2_141, %c0_142] : memref<12x16xf32, #tpu.memory_space<vmem>>, vector<8x16xf32>
    tpu.vector_store %arg30[%c2_141, %c0_142], %132 {strides = array<i32>} : memref<12x16xf32, #tpu.memory_space<vmem>>, vector<8x16xf32>,
    %c0_143 = arith.constant 0 : index
    %c0_144 = arith.constant 0 : index
    %134 = vector.load %arg9[%c0_143, %c0_144] : memref<1x32xf32, #tpu.memory_space<vmem>>, vector<1x32xf32>
    %c0_145 = arith.constant 0 : index
    %c0_146 = arith.constant 0 : index
    %135 = tpu.strided_load %arg30[%c0_145, %c0_146] {strides = array<i32: 2, 1>} : memref<12x16xf32, #tpu.memory_space<vmem>>, vector<4x16xf32>
    %136 = arith.truncf %135 : vector<4x16xf32> to vector<4x16xbf16>
    %c0_147 = arith.constant 0 : index
    %c0_148 = arith.constant 0 : index
    %c0_149 = arith.constant 0 : index
    %137 = vector.load %arg8[%c0_147, %c0_148, %c0_149] : memref<5x16x32xbf16, #tpu.memory_space<vmem>>, vector<1x16x32xbf16>
    %138 = vector.shape_cast %137 : vector<1x16x32xbf16> to vector<16x32xbf16>
    %cst_150 = arith.constant dense<0.000000e+00> : vector<4x32xf32>
    %139 = tpu.matmul %136, %138, %cst_150 {dimension_numbers = #tpu.dot_dimension_numbers<[1], [0], [0], [1], [0, 0, 1, 1], [], []>} : vector<4x16xbf16>, vector<16x32xbf16>, vector<4x32xf32> -> vector<4x32xf32>
    %140 = vector.broadcast %134 : vector<1x32xf32> to vector<4x32xf32>
    %141 = arith.addf %140, %139 : vector<4x32xf32>
    %c1_151 = arith.constant 1 : index
    %c0_152 = arith.constant 0 : index
    %142 = tpu.strided_load %arg30[%c1_151, %c0_152] {strides = array<i32: 2, 1>} : memref<12x16xf32, #tpu.memory_space<vmem>>, vector<4x16xf32>
    %143 = arith.truncf %142 : vector<4x16xf32> to vector<4x16xbf16>
    %c1_153 = arith.constant 1 : index
    %c0_154 = arith.constant 0 : index
    %c0_155 = arith.constant 0 : index
    %144 = vector.load %arg8[%c1_153, %c0_154, %c0_155] : memref<5x16x32xbf16, #tpu.memory_space<vmem>>, vector<1x16x32xbf16>
    %145 = vector.shape_cast %144 : vector<1x16x32xbf16> to vector<16x32xbf16>
    %cst_156 = arith.constant dense<0.000000e+00> : vector<4x32xf32>
    %146 = tpu.matmul %143, %145, %cst_156 {dimension_numbers = #tpu.dot_dimension_numbers<[1], [0], [0], [1], [0, 0, 1, 1], [], []>} : vector<4x16xbf16>, vector<16x32xbf16>, vector<4x32xf32> -> vector<4x32xf32>
    %147 = arith.addf %141, %146 : vector<4x32xf32>
    %c2_157 = arith.constant 2 : index
    %c0_158 = arith.constant 0 : index
    %148 = tpu.strided_load %arg30[%c2_157, %c0_158] {strides = array<i32: 2, 1>} : memref<12x16xf32, #tpu.memory_space<vmem>>, vector<4x16xf32>
    %149 = arith.truncf %148 : vector<4x16xf32> to vector<4x16xbf16>
    %c2_159 = arith.constant 2 : index
    %c0_160 = arith.constant 0 : index
    %c0_161 = arith.constant 0 : index
    %150 = vector.load %arg8[%c2_159, %c0_160, %c0_161] : memref<5x16x32xbf16, #tpu.memory_space<vmem>>, vector<1x16x32xbf16>
    %151 = vector.shape_cast %150 : vector<1x16x32xbf16> to vector<16x32xbf16>
    %cst_162 = arith.constant dense<0.000000e+00> : vector<4x32xf32>
    %152 = tpu.matmul %149, %151, %cst_162 {dimension_numbers = #tpu.dot_dimension_numbers<[1], [0], [0], [1], [0, 0, 1, 1], [], []>} : vector<4x16xbf16>, vector<16x32xbf16>, vector<4x32xf32> -> vector<4x32xf32>
    %153 = arith.addf %147, %152 : vector<4x32xf32>
    %c3_163 = arith.constant 3 : index
    %c0_164 = arith.constant 0 : index
    %154 = tpu.strided_load %arg30[%c3_163, %c0_164] {strides = array<i32: 2, 1>} : memref<12x16xf32, #tpu.memory_space<vmem>>, vector<4x16xf32>
    %155 = arith.truncf %154 : vector<4x16xf32> to vector<4x16xbf16>
    %c3_165 = arith.constant 3 : index
    %c0_166 = arith.constant 0 : index
    %c0_167 = arith.constant 0 : index
    %156 = vector.load %arg8[%c3_165, %c0_166, %c0_167] : memref<5x16x32xbf16, #tpu.memory_space<vmem>>, vector<1x16x32xbf16>
    %157 = vector.shape_cast %156 : vector<1x16x32xbf16> to vector<16x32xbf16>
    %cst_168 = arith.constant dense<0.000000e+00> : vector<4x32xf32>
    %158 = tpu.matmul %155, %157, %cst_168 {dimension_numbers = #tpu.dot_dimension_numbers<[1], [0], [0], [1], [0, 0, 1, 1], [], []>} : vector<4x16xbf16>, vector<16x32xbf16>, vector<4x32xf32> -> vector<4x32xf32>
    %159 = arith.addf %153, %158 : vector<4x32xf32>
    %c4_169 = arith.constant 4 : index
    %c0_170 = arith.constant 0 : index
    %160 = tpu.strided_load %arg30[%c4_169, %c0_170] {strides = array<i32: 2, 1>} : memref<12x16xf32, #tpu.memory_space<vmem>>, vector<4x16xf32>
    %161 = arith.truncf %160 : vector<4x16xf32> to vector<4x16xbf16>
    %c4_171 = arith.constant 4 : index
    %c0_172 = arith.constant 0 : index
    %c0_173 = arith.constant 0 : index
    %162 = vector.load %arg8[%c4_171, %c0_172, %c0_173] : memref<5x16x32xbf16, #tpu.memory_space<vmem>>, vector<1x16x32xbf16>
    %163 = vector.shape_cast %162 : vector<1x16x32xbf16> to vector<16x32xbf16>
    %cst_174 = arith.constant dense<0.000000e+00> : vector<4x32xf32>
    %164 = tpu.matmul %161, %163, %cst_174 {dimension_numbers = #tpu.dot_dimension_numbers<[1], [0], [0], [1], [0, 0, 1, 1], [], []>} : vector<4x16xbf16>, vector<16x32xbf16>, vector<4x32xf32> -> vector<4x32xf32>
    %165 = arith.addf %159, %164 : vector<4x32xf32>
    %cst_175 = arith.constant 0.000000e+00 : f32
    %166 = vector.broadcast %cst_175 : f32 to vector<4x32xf32>
    %167 = arith.maximumf %165, %166 : vector<4x32xf32>
    %c2_176 = arith.constant 2 : index
    %c0_177 = arith.constant 0 : index
    %168 = vector.load %arg31[%c2_176, %c0_177] : memref<8x32xf32, #tpu.memory_space<vmem>>, vector<4x32xf32>
    tpu.vector_store %arg31[%c2_176, %c0_177], %167 {strides = array<i32>} : memref<8x32xf32, #tpu.memory_space<vmem>>, vector<4x32xf32>,
    %c0_178 = arith.constant 0 : index
    %c0_179 = arith.constant 0 : index
    %169 = vector.load %arg11[%c0_178, %c0_179] : memref<1x32xf32, #tpu.memory_space<vmem>>, vector<1x32xf32>
    %c0_180 = arith.constant 0 : index
    %c0_181 = arith.constant 0 : index
    %170 = tpu.strided_load %arg31[%c0_180, %c0_181] {strides = array<i32: 2, 1>} : memref<8x32xf32, #tpu.memory_space<vmem>>, vector<2x32xf32>
    %171 = arith.truncf %170 : vector<2x32xf32> to vector<2x32xbf16>
    %c0_182 = arith.constant 0 : index
    %c0_183 = arith.constant 0 : index
    %c0_184 = arith.constant 0 : index
    %172 = vector.load %arg10[%c0_182, %c0_183, %c0_184] : memref<5x32x32xbf16, #tpu.memory_space<vmem>>, vector<1x32x32xbf16>
    %173 = vector.shape_cast %172 : vector<1x32x32xbf16> to vector<32x32xbf16>
    %cst_185 = arith.constant dense<0.000000e+00> : vector<2x32xf32>
    %174 = tpu.matmul %171, %173, %cst_185 {dimension_numbers = #tpu.dot_dimension_numbers<[1], [0], [0], [1], [0, 0, 1, 1], [], []>} : vector<2x32xbf16>, vector<32x32xbf16>, vector<2x32xf32> -> vector<2x32xf32>
    %175 = vector.broadcast %169 : vector<1x32xf32> to vector<2x32xf32>
    %176 = arith.addf %175, %174 : vector<2x32xf32>
    %c1_186 = arith.constant 1 : index
    %c0_187 = arith.constant 0 : index
    %177 = tpu.strided_load %arg31[%c1_186, %c0_187] {strides = array<i32: 2, 1>} : memref<8x32xf32, #tpu.memory_space<vmem>>, vector<2x32xf32>
    %178 = arith.truncf %177 : vector<2x32xf32> to vector<2x32xbf16>
    %c1_188 = arith.constant 1 : index
    %c0_189 = arith.constant 0 : index
    %c0_190 = arith.constant 0 : index
    %179 = vector.load %arg10[%c1_188, %c0_189, %c0_190] : memref<5x32x32xbf16, #tpu.memory_space<vmem>>, vector<1x32x32xbf16>
    %180 = vector.shape_cast %179 : vector<1x32x32xbf16> to vector<32x32xbf16>
    %cst_191 = arith.constant dense<0.000000e+00> : vector<2x32xf32>
    %181 = tpu.matmul %178, %180, %cst_191 {dimension_numbers = #tpu.dot_dimension_numbers<[1], [0], [0], [1], [0, 0, 1, 1], [], []>} : vector<2x32xbf16>, vector<32x32xbf16>, vector<2x32xf32> -> vector<2x32xf32>
    %182 = arith.addf %176, %181 : vector<2x32xf32>
    %c2_192 = arith.constant 2 : index
    %c0_193 = arith.constant 0 : index
    %183 = tpu.strided_load %arg31[%c2_192, %c0_193] {strides = array<i32: 2, 1>} : memref<8x32xf32, #tpu.memory_space<vmem>>, vector<2x32xf32>
    %184 = arith.truncf %183 : vector<2x32xf32> to vector<2x32xbf16>
    %c2_194 = arith.constant 2 : index
    %c0_195 = arith.constant 0 : index
    %c0_196 = arith.constant 0 : index
    %185 = vector.load %arg10[%c2_194, %c0_195, %c0_196] : memref<5x32x32xbf16, #tpu.memory_space<vmem>>, vector<1x32x32xbf16>
    %186 = vector.shape_cast %185 : vector<1x32x32xbf16> to vector<32x32xbf16>
    %cst_197 = arith.constant dense<0.000000e+00> : vector<2x32xf32>
    %187 = tpu.matmul %184, %186, %cst_197 {dimension_numbers = #tpu.dot_dimension_numbers<[1], [0], [0], [1], [0, 0, 1, 1], [], []>} : vector<2x32xbf16>, vector<32x32xbf16>, vector<2x32xf32> -> vector<2x32xf32>
    %188 = arith.addf %182, %187 : vector<2x32xf32>
    %c3_198 = arith.constant 3 : index
    %c0_199 = arith.constant 0 : index
    %189 = tpu.strided_load %arg31[%c3_198, %c0_199] {strides = array<i32: 2, 1>} : memref<8x32xf32, #tpu.memory_space<vmem>>, vector<2x32xf32>
    %190 = arith.truncf %189 : vector<2x32xf32> to vector<2x32xbf16>
    %c3_200 = arith.constant 3 : index
    %c0_201 = arith.constant 0 : index
    %c0_202 = arith.constant 0 : index
    %191 = vector.load %arg10[%c3_200, %c0_201, %c0_202] : memref<5x32x32xbf16, #tpu.memory_space<vmem>>, vector<1x32x32xbf16>
    %192 = vector.shape_cast %191 : vector<1x32x32xbf16> to vector<32x32xbf16>
    %cst_203 = arith.constant dense<0.000000e+00> : vector<2x32xf32>
    %193 = tpu.matmul %190, %192, %cst_203 {dimension_numbers = #tpu.dot_dimension_numbers<[1], [0], [0], [1], [0, 0, 1, 1], [], []>} : vector<2x32xbf16>, vector<32x32xbf16>, vector<2x32xf32> -> vector<2x32xf32>
    %194 = arith.addf %188, %193 : vector<2x32xf32>
    %c4_204 = arith.constant 4 : index
    %c0_205 = arith.constant 0 : index
    %195 = tpu.strided_load %arg31[%c4_204, %c0_205] {strides = array<i32: 2, 1>} : memref<8x32xf32, #tpu.memory_space<vmem>>, vector<2x32xf32>
    %196 = arith.truncf %195 : vector<2x32xf32> to vector<2x32xbf16>
    %c4_206 = arith.constant 4 : index
    %c0_207 = arith.constant 0 : index
    %c0_208 = arith.constant 0 : index
    %197 = vector.load %arg10[%c4_206, %c0_207, %c0_208] : memref<5x32x32xbf16, #tpu.memory_space<vmem>>, vector<1x32x32xbf16>
    %198 = vector.shape_cast %197 : vector<1x32x32xbf16> to vector<32x32xbf16>
    %cst_209 = arith.constant dense<0.000000e+00> : vector<2x32xf32>
    %199 = tpu.matmul %196, %198, %cst_209 {dimension_numbers = #tpu.dot_dimension_numbers<[1], [0], [0], [1], [0, 0, 1, 1], [], []>} : vector<2x32xbf16>, vector<32x32xbf16>, vector<2x32xf32> -> vector<2x32xf32>
    %200 = arith.addf %194, %199 : vector<2x32xf32>
    %cst_210 = arith.constant 0.000000e+00 : f32
    %201 = vector.broadcast %cst_210 : f32 to vector<2x32xf32>
    %202 = arith.maximumf %200, %201 : vector<2x32xf32>
    %c2_211 = arith.constant 2 : index
    %c0_212 = arith.constant 0 : index
    %203 = vector.load %arg32[%c2_211, %c0_212] : memref<6x32xf32, #tpu.memory_space<vmem>>, vector<2x32xf32>
    tpu.vector_store %arg32[%c2_211, %c0_212], %202 {strides = array<i32>} : memref<6x32xf32, #tpu.memory_space<vmem>>, vector<2x32xf32>,
    %c0_213 = arith.constant 0 : index
    %c0_214 = arith.constant 0 : index
    %204 = vector.load %arg13[%c0_213, %c0_214] : memref<1x64xf32, #tpu.memory_space<vmem>>, vector<1x64xf32>
    %c0_215 = arith.constant 0 : index
    %c0_216 = arith.constant 0 : index
    %205 = tpu.strided_load %arg32[%c0_215, %c0_216] {strides = array<i32: 2, 1>} : memref<6x32xf32, #tpu.memory_space<vmem>>, vector<1x32xf32>
    %206 = arith.truncf %205 : vector<1x32xf32> to vector<1x32xbf16>
    %c0_217 = arith.constant 0 : index
    %c0_218 = arith.constant 0 : index
    %c0_219 = arith.constant 0 : index
    %207 = vector.load %arg12[%c0_217, %c0_218, %c0_219] : memref<5x32x64xbf16, #tpu.memory_space<vmem>>, vector<1x32x64xbf16>
    %208 = vector.shape_cast %207 : vector<1x32x64xbf16> to vector<32x64xbf16>
    %cst_220 = arith.constant dense<0.000000e+00> : vector<1x64xf32>
    %209 = tpu.matmul %206, %208, %cst_220 {dimension_numbers = #tpu.dot_dimension_numbers<[1], [0], [0], [1], [0, 0, 1, 1], [], []>} : vector<1x32xbf16>, vector<32x64xbf16>, vector<1x64xf32> -> vector<1x64xf32>
    %210 = arith.addf %204, %209 : vector<1x64xf32>
    %c1_221 = arith.constant 1 : index
    %c0_222 = arith.constant 0 : index
    %211 = tpu.strided_load %arg32[%c1_221, %c0_222] {strides = array<i32: 2, 1>} : memref<6x32xf32, #tpu.memory_space<vmem>>, vector<1x32xf32>
    %212 = arith.truncf %211 : vector<1x32xf32> to vector<1x32xbf16>
    %c1_223 = arith.constant 1 : index
    %c0_224 = arith.constant 0 : index
    %c0_225 = arith.constant 0 : index
    %213 = vector.load %arg12[%c1_223, %c0_224, %c0_225] : memref<5x32x64xbf16, #tpu.memory_space<vmem>>, vector<1x32x64xbf16>
    %214 = vector.shape_cast %213 : vector<1x32x64xbf16> to vector<32x64xbf16>
    %cst_226 = arith.constant dense<0.000000e+00> : vector<1x64xf32>
    %215 = tpu.matmul %212, %214, %cst_226 {dimension_numbers = #tpu.dot_dimension_numbers<[1], [0], [0], [1], [0, 0, 1, 1], [], []>} : vector<1x32xbf16>, vector<32x64xbf16>, vector<1x64xf32> -> vector<1x64xf32>
    %216 = arith.addf %210, %215 : vector<1x64xf32>
    %c2_227 = arith.constant 2 : index
    %c0_228 = arith.constant 0 : index
    %217 = tpu.strided_load %arg32[%c2_227, %c0_228] {strides = array<i32: 2, 1>} : memref<6x32xf32, #tpu.memory_space<vmem>>, vector<1x32xf32>
    %218 = arith.truncf %217 : vector<1x32xf32> to vector<1x32xbf16>
    %c2_229 = arith.constant 2 : index
    %c0_230 = arith.constant 0 : index
    %c0_231 = arith.constant 0 : index
    %219 = vector.load %arg12[%c2_229, %c0_230, %c0_231] : memref<5x32x64xbf16, #tpu.memory_space<vmem>>, vector<1x32x64xbf16>
    %220 = vector.shape_cast %219 : vector<1x32x64xbf16> to vector<32x64xbf16>
    %cst_232 = arith.constant dense<0.000000e+00> : vector<1x64xf32>
    %221 = tpu.matmul %218, %220, %cst_232 {dimension_numbers = #tpu.dot_dimension_numbers<[1], [0], [0], [1], [0, 0, 1, 1], [], []>} : vector<1x32xbf16>, vector<32x64xbf16>, vector<1x64xf32> -> vector<1x64xf32>
    %222 = arith.addf %216, %221 : vector<1x64xf32>
    %c3_233 = arith.constant 3 : index
    %c0_234 = arith.constant 0 : index
    %223 = tpu.strided_load %arg32[%c3_233, %c0_234] {strides = array<i32: 2, 1>} : memref<6x32xf32, #tpu.memory_space<vmem>>, vector<1x32xf32>
    %224 = arith.truncf %223 : vector<1x32xf32> to vector<1x32xbf16>
    %c3_235 = arith.constant 3 : index
    %c0_236 = arith.constant 0 : index
    %c0_237 = arith.constant 0 : index
    %225 = vector.load %arg12[%c3_235, %c0_236, %c0_237] : memref<5x32x64xbf16, #tpu.memory_space<vmem>>, vector<1x32x64xbf16>
    %226 = vector.shape_cast %225 : vector<1x32x64xbf16> to vector<32x64xbf16>
    %cst_238 = arith.constant dense<0.000000e+00> : vector<1x64xf32>
    %227 = tpu.matmul %224, %226, %cst_238 {dimension_numbers = #tpu.dot_dimension_numbers<[1], [0], [0], [1], [0, 0, 1, 1], [], []>} : vector<1x32xbf16>, vector<32x64xbf16>, vector<1x64xf32> -> vector<1x64xf32>
    %228 = arith.addf %222, %227 : vector<1x64xf32>
    %c4_239 = arith.constant 4 : index
    %c0_240 = arith.constant 0 : index
    %229 = tpu.strided_load %arg32[%c4_239, %c0_240] {strides = array<i32: 2, 1>} : memref<6x32xf32, #tpu.memory_space<vmem>>, vector<1x32xf32>
    %230 = arith.truncf %229 : vector<1x32xf32> to vector<1x32xbf16>
    %c4_241 = arith.constant 4 : index
    %c0_242 = arith.constant 0 : index
    %c0_243 = arith.constant 0 : index
    %231 = vector.load %arg12[%c4_241, %c0_242, %c0_243] : memref<5x32x64xbf16, #tpu.memory_space<vmem>>, vector<1x32x64xbf16>
    %232 = vector.shape_cast %231 : vector<1x32x64xbf16> to vector<32x64xbf16>
    %cst_244 = arith.constant dense<0.000000e+00> : vector<1x64xf32>
    %233 = tpu.matmul %230, %232, %cst_244 {dimension_numbers = #tpu.dot_dimension_numbers<[1], [0], [0], [1], [0, 0, 1, 1], [], []>} : vector<1x32xbf16>, vector<32x64xbf16>, vector<1x64xf32> -> vector<1x64xf32>
    %234 = arith.addf %228, %233 : vector<1x64xf32>
    %cst_245 = arith.constant 0.000000e+00 : f32
    %235 = vector.broadcast %cst_245 : f32 to vector<1x64xf32>
    %236 = arith.maximumf %234, %235 : vector<1x64xf32>
    %c2_246 = arith.constant 2 : index
    %c0_247 = arith.constant 0 : index
    %237 = vector.load %arg33[%c2_246, %c0_247] : memref<5x64xf32, #tpu.memory_space<vmem>>, vector<1x64xf32>
    tpu.vector_store %arg33[%c2_246, %c0_247], %236 {strides = array<i32>} : memref<5x64xf32, #tpu.memory_space<vmem>>, vector<1x64xf32>,
    %c0_248 = arith.constant 0 : index
    %c0_249 = arith.constant 0 : index
    %238 = vector.load %arg15[%c0_248, %c0_249] : memref<1x32xf32, #tpu.memory_space<vmem>>, vector<1x32xf32>
    %c0_250 = arith.constant 0 : index
    %c0_251 = arith.constant 0 : index
    %239 = vector.load %arg15[%c0_250, %c0_251] : memref<1x32xf32, #tpu.memory_space<vmem>>, vector<1x32xf32>
    %c1_252 = arith.constant 1 : index
    %c0_253 = arith.constant 0 : index
    %240 = vector.load %arg33[%c1_252, %c0_253] : memref<5x64xf32, #tpu.memory_space<vmem>>, vector<1x64xf32>
    %241 = arith.truncf %240 : vector<1x64xf32> to vector<1x64xbf16>
    %c2_254 = arith.constant 2 : index
    %c0_255 = arith.constant 0 : index
    %242 = vector.load %arg33[%c2_254, %c0_255] : memref<5x64xf32, #tpu.memory_space<vmem>>, vector<1x64xf32>
    %243 = arith.truncf %242 : vector<1x64xf32> to vector<1x64xbf16>
    %c3_256 = arith.constant 3 : index
    %c0_257 = arith.constant 0 : index
    %244 = vector.load %arg33[%c3_256, %c0_257] : memref<5x64xf32, #tpu.memory_space<vmem>>, vector<1x64xf32>
    %245 = arith.truncf %244 : vector<1x64xf32> to vector<1x64xbf16>
    %c0_258 = arith.constant 0 : index
    %c0_259 = arith.constant 0 : index
    %c0_260 = arith.constant 0 : index
    %246 = vector.load %arg14[%c0_258, %c0_259, %c0_260] : memref<5x64x32xbf16, #tpu.memory_space<vmem>>, vector<1x64x32xbf16>
    %247 = vector.shape_cast %246 : vector<1x64x32xbf16> to vector<64x32xbf16>
    %c1_261 = arith.constant 1 : index
    %c0_262 = arith.constant 0 : index
    %c0_263 = arith.constant 0 : index
    %248 = vector.load %arg14[%c1_261, %c0_262, %c0_263] : memref<5x64x32xbf16, #tpu.memory_space<vmem>>, vector<1x64x32xbf16>
    %249 = vector.shape_cast %248 : vector<1x64x32xbf16> to vector<64x32xbf16>
    %c2_264 = arith.constant 2 : index
    %c0_265 = arith.constant 0 : index
    %c0_266 = arith.constant 0 : index
    %250 = vector.load %arg14[%c2_264, %c0_265, %c0_266] : memref<5x64x32xbf16, #tpu.memory_space<vmem>>, vector<1x64x32xbf16>
    %251 = vector.shape_cast %250 : vector<1x64x32xbf16> to vector<64x32xbf16>
    %c3_267 = arith.constant 3 : index
    %c0_268 = arith.constant 0 : index
    %c0_269 = arith.constant 0 : index
    %252 = vector.load %arg14[%c3_267, %c0_268, %c0_269] : memref<5x64x32xbf16, #tpu.memory_space<vmem>>, vector<1x64x32xbf16>
    %253 = vector.shape_cast %252 : vector<1x64x32xbf16> to vector<64x32xbf16>
    %c4_270 = arith.constant 4 : index
    %c0_271 = arith.constant 0 : index
    %c0_272 = arith.constant 0 : index
    %254 = vector.load %arg14[%c4_270, %c0_271, %c0_272] : memref<5x64x32xbf16, #tpu.memory_space<vmem>>, vector<1x64x32xbf16>
    %255 = vector.shape_cast %254 : vector<1x64x32xbf16> to vector<64x32xbf16>
    %cst_273 = arith.constant dense<0.000000e+00> : vector<1x32xf32>
    %256 = tpu.matmul %241, %255, %cst_273 {dimension_numbers = #tpu.dot_dimension_numbers<[1], [0], [0], [1], [0, 0, 1, 1], [], []>} : vector<1x64xbf16>, vector<64x32xbf16>, vector<1x32xf32> -> vector<1x32xf32>
    %257 = arith.addf %238, %256 : vector<1x32xf32>
    %cst_274 = arith.constant dense<0.000000e+00> : vector<1x32xf32>
    %258 = tpu.matmul %243, %251, %cst_274 {dimension_numbers = #tpu.dot_dimension_numbers<[1], [0], [0], [1], [0, 0, 1, 1], [], []>} : vector<1x64xbf16>, vector<64x32xbf16>, vector<1x32xf32> -> vector<1x32xf32>
    %259 = arith.addf %257, %258 : vector<1x32xf32>
    %cst_275 = arith.constant dense<0.000000e+00> : vector<1x32xf32>
    %260 = tpu.matmul %245, %247, %cst_275 {dimension_numbers = #tpu.dot_dimension_numbers<[1], [0], [0], [1], [0, 0, 1, 1], [], []>} : vector<1x64xbf16>, vector<64x32xbf16>, vector<1x32xf32> -> vector<1x32xf32>
    %261 = arith.addf %259, %260 : vector<1x32xf32>
    %cst_276 = arith.constant dense<0.000000e+00> : vector<1x32xf32>
    %262 = tpu.matmul %243, %253, %cst_276 {dimension_numbers = #tpu.dot_dimension_numbers<[1], [0], [0], [1], [0, 0, 1, 1], [], []>} : vector<1x64xbf16>, vector<64x32xbf16>, vector<1x32xf32> -> vector<1x32xf32>
    %263 = arith.addf %239, %262 : vector<1x32xf32>
    %cst_277 = arith.constant dense<0.000000e+00> : vector<1x32xf32>
    %264 = tpu.matmul %245, %249, %cst_277 {dimension_numbers = #tpu.dot_dimension_numbers<[1], [0], [0], [1], [0, 0, 1, 1], [], []>} : vector<1x64xbf16>, vector<64x32xbf16>, vector<1x32xf32> -> vector<1x32xf32>
    %265 = arith.addf %263, %264 : vector<1x32xf32>
    %cst_278 = arith.constant 0.000000e+00 : f32
    %266 = vector.broadcast %cst_278 : f32 to vector<1x32xf32>
    %267 = arith.maximumf %261, %266 : vector<1x32xf32>
    %c2_279 = arith.constant 2 : index
    %c0_280 = arith.constant 0 : index
    %268 = tpu.strided_load %arg34[%c2_279, %c0_280] {strides = array<i32: 2, 1>} : memref<6x32xf32, #tpu.memory_space<vmem>>, vector<1x32xf32>
    tpu.strided_store %arg34[%c2_279, %c0_280], %267 {strides = array<i32: 2, 1>} : memref<6x32xf32, #tpu.memory_space<vmem>>, vector<1x32xf32>
    %cst_281 = arith.constant 0.000000e+00 : f32
    %269 = vector.broadcast %cst_281 : f32 to vector<1x32xf32>
    %270 = arith.maximumf %265, %269 : vector<1x32xf32>
    %c3_282 = arith.constant 3 : index
    %c0_283 = arith.constant 0 : index
    %271 = tpu.strided_load %arg34[%c3_282, %c0_283] {strides = array<i32: 2, 1>} : memref<6x32xf32, #tpu.memory_space<vmem>>, vector<1x32xf32>
    tpu.strided_store %arg34[%c3_282, %c0_283], %270 {strides = array<i32: 2, 1>} : memref<6x32xf32, #tpu.memory_space<vmem>>, vector<1x32xf32>
    %c0_284 = arith.constant 0 : index
    %c0_285 = arith.constant 0 : index
    %272 = vector.load %arg17[%c0_284, %c0_285] : memref<1x32xf32, #tpu.memory_space<vmem>>, vector<1x32xf32>
    %c0_286 = arith.constant 0 : index
    %c0_287 = arith.constant 0 : index
    %273 = vector.load %arg17[%c0_286, %c0_287] : memref<1x32xf32, #tpu.memory_space<vmem>>, vector<1x32xf32>
    %c1_288 = arith.constant 1 : index
    %c0_289 = arith.constant 0 : index
    %274 = vector.load %arg32[%c1_288, %c0_289] : memref<6x32xf32, #tpu.memory_space<vmem>>, vector<2x32xf32>
    %275 = arith.truncf %274 : vector<2x32xf32> to vector<2x32xbf16>
    %c2_290 = arith.constant 2 : index
    %c0_291 = arith.constant 0 : index
    %276 = vector.load %arg32[%c2_290, %c0_291] : memref<6x32xf32, #tpu.memory_space<vmem>>, vector<2x32xf32>
    %277 = arith.truncf %276 : vector<2x32xf32> to vector<2x32xbf16>
    %c3_292 = arith.constant 3 : index
    %c0_293 = arith.constant 0 : index
    %278 = vector.load %arg32[%c3_292, %c0_293] : memref<6x32xf32, #tpu.memory_space<vmem>>, vector<2x32xf32>
    %279 = arith.truncf %278 : vector<2x32xf32> to vector<2x32xbf16>
    %c0_294 = arith.constant 0 : index
    %c0_295 = arith.constant 0 : index
    %c0_296 = arith.constant 0 : index
    %280 = vector.load %arg16[%c0_294, %c0_295, %c0_296] : memref<5x64x32xbf16, #tpu.memory_space<vmem>>, vector<1x32x32xbf16>
    %281 = vector.shape_cast %280 : vector<1x32x32xbf16> to vector<32x32xbf16>
    %c1_297 = arith.constant 1 : index
    %c0_298 = arith.constant 0 : index
    %c0_299 = arith.constant 0 : index
    %282 = vector.load %arg16[%c1_297, %c0_298, %c0_299] : memref<5x64x32xbf16, #tpu.memory_space<vmem>>, vector<1x32x32xbf16>
    %283 = vector.shape_cast %282 : vector<1x32x32xbf16> to vector<32x32xbf16>
    %c2_300 = arith.constant 2 : index
    %c0_301 = arith.constant 0 : index
    %c0_302 = arith.constant 0 : index
    %284 = vector.load %arg16[%c2_300, %c0_301, %c0_302] : memref<5x64x32xbf16, #tpu.memory_space<vmem>>, vector<1x32x32xbf16>
    %285 = vector.shape_cast %284 : vector<1x32x32xbf16> to vector<32x32xbf16>
    %c3_303 = arith.constant 3 : index
    %c0_304 = arith.constant 0 : index
    %c0_305 = arith.constant 0 : index
    %286 = vector.load %arg16[%c3_303, %c0_304, %c0_305] : memref<5x64x32xbf16, #tpu.memory_space<vmem>>, vector<1x32x32xbf16>
    %287 = vector.shape_cast %286 : vector<1x32x32xbf16> to vector<32x32xbf16>
    %c4_306 = arith.constant 4 : index
    %c0_307 = arith.constant 0 : index
    %c0_308 = arith.constant 0 : index
    %288 = vector.load %arg16[%c4_306, %c0_307, %c0_308] : memref<5x64x32xbf16, #tpu.memory_space<vmem>>, vector<1x32x32xbf16>
    %289 = vector.shape_cast %288 : vector<1x32x32xbf16> to vector<32x32xbf16>
    %cst_309 = arith.constant dense<0.000000e+00> : vector<2x32xf32>
    %290 = tpu.matmul %275, %289, %cst_309 {dimension_numbers = #tpu.dot_dimension_numbers<[1], [0], [0], [1], [0, 0, 1, 1], [], []>} : vector<2x32xbf16>, vector<32x32xbf16>, vector<2x32xf32> -> vector<2x32xf32>
    %291 = vector.broadcast %272 : vector<1x32xf32> to vector<2x32xf32>
    %292 = arith.addf %291, %290 : vector<2x32xf32>
    %cst_310 = arith.constant dense<0.000000e+00> : vector<2x32xf32>
    %293 = tpu.matmul %277, %285, %cst_310 {dimension_numbers = #tpu.dot_dimension_numbers<[1], [0], [0], [1], [0, 0, 1, 1], [], []>} : vector<2x32xbf16>, vector<32x32xbf16>, vector<2x32xf32> -> vector<2x32xf32>
    %294 = arith.addf %292, %293 : vector<2x32xf32>
    %cst_311 = arith.constant dense<0.000000e+00> : vector<2x32xf32>
    %295 = tpu.matmul %279, %281, %cst_311 {dimension_numbers = #tpu.dot_dimension_numbers<[1], [0], [0], [1], [0, 0, 1, 1], [], []>} : vector<2x32xbf16>, vector<32x32xbf16>, vector<2x32xf32> -> vector<2x32xf32>
    %296 = arith.addf %294, %295 : vector<2x32xf32>
    %cst_312 = arith.constant dense<0.000000e+00> : vector<2x32xf32>
    %297 = tpu.matmul %277, %287, %cst_312 {dimension_numbers = #tpu.dot_dimension_numbers<[1], [0], [0], [1], [0, 0, 1, 1], [], []>} : vector<2x32xbf16>, vector<32x32xbf16>, vector<2x32xf32> -> vector<2x32xf32>
    %298 = vector.broadcast %273 : vector<1x32xf32> to vector<2x32xf32>
    %299 = arith.addf %298, %297 : vector<2x32xf32>
    %cst_313 = arith.constant dense<0.000000e+00> : vector<2x32xf32>
    %300 = tpu.matmul %279, %283, %cst_313 {dimension_numbers = #tpu.dot_dimension_numbers<[1], [0], [0], [1], [0, 0, 1, 1], [], []>} : vector<2x32xbf16>, vector<32x32xbf16>, vector<2x32xf32> -> vector<2x32xf32>
    %301 = arith.addf %299, %300 : vector<2x32xf32>
    %c1_314 = arith.constant 1 : index
    %c0_315 = arith.constant 0 : index
    %302 = vector.load %arg34[%c1_314, %c0_315] : memref<6x32xf32, #tpu.memory_space<vmem>>, vector<2x32xf32>
    %303 = arith.truncf %302 : vector<2x32xf32> to vector<2x32xbf16>
    %c2_316 = arith.constant 2 : index
    %c0_317 = arith.constant 0 : index
    %304 = vector.load %arg34[%c2_316, %c0_317] : memref<6x32xf32, #tpu.memory_space<vmem>>, vector<2x32xf32>
    %305 = arith.truncf %304 : vector<2x32xf32> to vector<2x32xbf16>
    %c3_318 = arith.constant 3 : index
    %c0_319 = arith.constant 0 : index
    %306 = vector.load %arg34[%c3_318, %c0_319] : memref<6x32xf32, #tpu.memory_space<vmem>>, vector<2x32xf32>
    %307 = arith.truncf %306 : vector<2x32xf32> to vector<2x32xbf16>
    %c0_320 = arith.constant 0 : index
    %c32 = arith.constant 32 : index
    %c0_321 = arith.constant 0 : index
    %308 = vector.load %arg16[%c0_320, %c32, %c0_321] : memref<5x64x32xbf16, #tpu.memory_space<vmem>>, vector<1x32x32xbf16>
    %309 = vector.shape_cast %308 : vector<1x32x32xbf16> to vector<32x32xbf16>
    %c1_322 = arith.constant 1 : index
    %c32_323 = arith.constant 32 : index
    %c0_324 = arith.constant 0 : index
    %310 = vector.load %arg16[%c1_322, %c32_323, %c0_324] : memref<5x64x32xbf16, #tpu.memory_space<vmem>>, vector<1x32x32xbf16>
    %311 = vector.shape_cast %310 : vector<1x32x32xbf16> to vector<32x32xbf16>
    %c2_325 = arith.constant 2 : index
    %c32_326 = arith.constant 32 : index
    %c0_327 = arith.constant 0 : index
    %312 = vector.load %arg16[%c2_325, %c32_326, %c0_327] : memref<5x64x32xbf16, #tpu.memory_space<vmem>>, vector<1x32x32xbf16>
    %313 = vector.shape_cast %312 : vector<1x32x32xbf16> to vector<32x32xbf16>
    %c3_328 = arith.constant 3 : index
    %c32_329 = arith.constant 32 : index
    %c0_330 = arith.constant 0 : index
    %314 = vector.load %arg16[%c3_328, %c32_329, %c0_330] : memref<5x64x32xbf16, #tpu.memory_space<vmem>>, vector<1x32x32xbf16>
    %315 = vector.shape_cast %314 : vector<1x32x32xbf16> to vector<32x32xbf16>
    %c4_331 = arith.constant 4 : index
    %c32_332 = arith.constant 32 : index
    %c0_333 = arith.constant 0 : index
    %316 = vector.load %arg16[%c4_331, %c32_332, %c0_333] : memref<5x64x32xbf16, #tpu.memory_space<vmem>>, vector<1x32x32xbf16>
    %317 = vector.shape_cast %316 : vector<1x32x32xbf16> to vector<32x32xbf16>
    %cst_334 = arith.constant dense<0.000000e+00> : vector<2x32xf32>
    %318 = tpu.matmul %303, %317, %cst_334 {dimension_numbers = #tpu.dot_dimension_numbers<[1], [0], [0], [1], [0, 0, 1, 1], [], []>} : vector<2x32xbf16>, vector<32x32xbf16>, vector<2x32xf32> -> vector<2x32xf32>
    %319 = arith.addf %296, %318 : vector<2x32xf32>
    %cst_335 = arith.constant dense<0.000000e+00> : vector<2x32xf32>
    %320 = tpu.matmul %305, %313, %cst_335 {dimension_numbers = #tpu.dot_dimension_numbers<[1], [0], [0], [1], [0, 0, 1, 1], [], []>} : vector<2x32xbf16>, vector<32x32xbf16>, vector<2x32xf32> -> vector<2x32xf32>
    %321 = arith.addf %319, %320 : vector<2x32xf32>
    %cst_336 = arith.constant dense<0.000000e+00> : vector<2x32xf32>
    %322 = tpu.matmul %307, %309, %cst_336 {dimension_numbers = #tpu.dot_dimension_numbers<[1], [0], [0], [1], [0, 0, 1, 1], [], []>} : vector<2x32xbf16>, vector<32x32xbf16>, vector<2x32xf32> -> vector<2x32xf32>
    %323 = arith.addf %321, %322 : vector<2x32xf32>
    %cst_337 = arith.constant dense<0.000000e+00> : vector<2x32xf32>
    %324 = tpu.matmul %305, %315, %cst_337 {dimension_numbers = #tpu.dot_dimension_numbers<[1], [0], [0], [1], [0, 0, 1, 1], [], []>} : vector<2x32xbf16>, vector<32x32xbf16>, vector<2x32xf32> -> vector<2x32xf32>
    %325 = arith.addf %301, %324 : vector<2x32xf32>
    %cst_338 = arith.constant dense<0.000000e+00> : vector<2x32xf32>
    %326 = tpu.matmul %307, %311, %cst_338 {dimension_numbers = #tpu.dot_dimension_numbers<[1], [0], [0], [1], [0, 0, 1, 1], [], []>} : vector<2x32xbf16>, vector<32x32xbf16>, vector<2x32xf32> -> vector<2x32xf32>
    %327 = arith.addf %325, %326 : vector<2x32xf32>
    %cst_339 = arith.constant 0.000000e+00 : f32
    %328 = vector.broadcast %cst_339 : f32 to vector<2x32xf32>
    %329 = arith.maximumf %323, %328 : vector<2x32xf32>
    %c2_340 = arith.constant 2 : index
    %c0_341 = arith.constant 0 : index
    %330 = tpu.strided_load %arg35[%c2_340, %c0_341] {strides = array<i32: 2, 1>} : memref<8x32xf32, #tpu.memory_space<vmem>>, vector<2x32xf32>
    tpu.strided_store %arg35[%c2_340, %c0_341], %329 {strides = array<i32: 2, 1>} : memref<8x32xf32, #tpu.memory_space<vmem>>, vector<2x32xf32>
    %cst_342 = arith.constant 0.000000e+00 : f32
    %331 = vector.broadcast %cst_342 : f32 to vector<2x32xf32>
    %332 = arith.maximumf %327, %331 : vector<2x32xf32>
    %c3_343 = arith.constant 3 : index
    %c0_344 = arith.constant 0 : index
    %333 = tpu.strided_load %arg35[%c3_343, %c0_344] {strides = array<i32: 2, 1>} : memref<8x32xf32, #tpu.memory_space<vmem>>, vector<2x32xf32>
    tpu.strided_store %arg35[%c3_343, %c0_344], %332 {strides = array<i32: 2, 1>} : memref<8x32xf32, #tpu.memory_space<vmem>>, vector<2x32xf32>
    %c0_345 = arith.constant 0 : index
    %c0_346 = arith.constant 0 : index
    %334 = vector.load %arg19[%c0_345, %c0_346] : memref<1x16xf32, #tpu.memory_space<vmem>>, vector<1x16xf32>
    %c0_347 = arith.constant 0 : index
    %c0_348 = arith.constant 0 : index
    %335 = vector.load %arg19[%c0_347, %c0_348] : memref<1x16xf32, #tpu.memory_space<vmem>>, vector<1x16xf32>
    %c1_349 = arith.constant 1 : index
    %c0_350 = arith.constant 0 : index
    %336 = vector.load %arg31[%c1_349, %c0_350] : memref<8x32xf32, #tpu.memory_space<vmem>>, vector<4x32xf32>
    %337 = arith.truncf %336 : vector<4x32xf32> to vector<4x32xbf16>
    %c2_351 = arith.constant 2 : index
    %c0_352 = arith.constant 0 : index
    %338 = vector.load %arg31[%c2_351, %c0_352] : memref<8x32xf32, #tpu.memory_space<vmem>>, vector<4x32xf32>
    %339 = arith.truncf %338 : vector<4x32xf32> to vector<4x32xbf16>
    %c3_353 = arith.constant 3 : index
    %c0_354 = arith.constant 0 : index
    %340 = vector.load %arg31[%c3_353, %c0_354] : memref<8x32xf32, #tpu.memory_space<vmem>>, vector<4x32xf32>
    %341 = arith.truncf %340 : vector<4x32xf32> to vector<4x32xbf16>
    %c0_355 = arith.constant 0 : index
    %c0_356 = arith.constant 0 : index
    %c0_357 = arith.constant 0 : index
    %342 = vector.load %arg18[%c0_355, %c0_356, %c0_357] : memref<5x64x16xbf16, #tpu.memory_space<vmem>>, vector<1x32x16xbf16>
    %343 = vector.shape_cast %342 : vector<1x32x16xbf16> to vector<32x16xbf16>
    %c1_358 = arith.constant 1 : index
    %c0_359 = arith.constant 0 : index
    %c0_360 = arith.constant 0 : index
    %344 = vector.load %arg18[%c1_358, %c0_359, %c0_360] : memref<5x64x16xbf16, #tpu.memory_space<vmem>>, vector<1x32x16xbf16>
    %345 = vector.shape_cast %344 : vector<1x32x16xbf16> to vector<32x16xbf16>
    %c2_361 = arith.constant 2 : index
    %c0_362 = arith.constant 0 : index
    %c0_363 = arith.constant 0 : index
    %346 = vector.load %arg18[%c2_361, %c0_362, %c0_363] : memref<5x64x16xbf16, #tpu.memory_space<vmem>>, vector<1x32x16xbf16>
    %347 = vector.shape_cast %346 : vector<1x32x16xbf16> to vector<32x16xbf16>
    %c3_364 = arith.constant 3 : index
    %c0_365 = arith.constant 0 : index
    %c0_366 = arith.constant 0 : index
    %348 = vector.load %arg18[%c3_364, %c0_365, %c0_366] : memref<5x64x16xbf16, #tpu.memory_space<vmem>>, vector<1x32x16xbf16>
    %349 = vector.shape_cast %348 : vector<1x32x16xbf16> to vector<32x16xbf16>
    %c4_367 = arith.constant 4 : index
    %c0_368 = arith.constant 0 : index
    %c0_369 = arith.constant 0 : index
    %350 = vector.load %arg18[%c4_367, %c0_368, %c0_369] : memref<5x64x16xbf16, #tpu.memory_space<vmem>>, vector<1x32x16xbf16>
    %351 = vector.shape_cast %350 : vector<1x32x16xbf16> to vector<32x16xbf16>
    %cst_370 = arith.constant dense<0.000000e+00> : vector<4x16xf32>
    %352 = tpu.matmul %337, %351, %cst_370 {dimension_numbers = #tpu.dot_dimension_numbers<[1], [0], [0], [1], [0, 0, 1, 1], [], []>} : vector<4x32xbf16>, vector<32x16xbf16>, vector<4x16xf32> -> vector<4x16xf32>
    %353 = vector.broadcast %334 : vector<1x16xf32> to vector<4x16xf32>
    %354 = arith.addf %353, %352 : vector<4x16xf32>
    %cst_371 = arith.constant dense<0.000000e+00> : vector<4x16xf32>
    %355 = tpu.matmul %339, %347, %cst_371 {dimension_numbers = #tpu.dot_dimension_numbers<[1], [0], [0], [1], [0, 0, 1, 1], [], []>} : vector<4x32xbf16>, vector<32x16xbf16>, vector<4x16xf32> -> vector<4x16xf32>
    %356 = arith.addf %354, %355 : vector<4x16xf32>
    %cst_372 = arith.constant dense<0.000000e+00> : vector<4x16xf32>
    %357 = tpu.matmul %341, %343, %cst_372 {dimension_numbers = #tpu.dot_dimension_numbers<[1], [0], [0], [1], [0, 0, 1, 1], [], []>} : vector<4x32xbf16>, vector<32x16xbf16>, vector<4x16xf32> -> vector<4x16xf32>
    %358 = arith.addf %356, %357 : vector<4x16xf32>
    %cst_373 = arith.constant dense<0.000000e+00> : vector<4x16xf32>
    %359 = tpu.matmul %339, %349, %cst_373 {dimension_numbers = #tpu.dot_dimension_numbers<[1], [0], [0], [1], [0, 0, 1, 1], [], []>} : vector<4x32xbf16>, vector<32x16xbf16>, vector<4x16xf32> -> vector<4x16xf32>
    %360 = vector.broadcast %335 : vector<1x16xf32> to vector<4x16xf32>
    %361 = arith.addf %360, %359 : vector<4x16xf32>
    %cst_374 = arith.constant dense<0.000000e+00> : vector<4x16xf32>
    %362 = tpu.matmul %341, %345, %cst_374 {dimension_numbers = #tpu.dot_dimension_numbers<[1], [0], [0], [1], [0, 0, 1, 1], [], []>} : vector<4x32xbf16>, vector<32x16xbf16>, vector<4x16xf32> -> vector<4x16xf32>
    %363 = arith.addf %361, %362 : vector<4x16xf32>
    %c1_375 = arith.constant 1 : index
    %c0_376 = arith.constant 0 : index
    %364 = vector.load %arg35[%c1_375, %c0_376] : memref<8x32xf32, #tpu.memory_space<vmem>>, vector<4x32xf32>
    %365 = arith.truncf %364 : vector<4x32xf32> to vector<4x32xbf16>
    %c2_377 = arith.constant 2 : index
    %c0_378 = arith.constant 0 : index
    %366 = vector.load %arg35[%c2_377, %c0_378] : memref<8x32xf32, #tpu.memory_space<vmem>>, vector<4x32xf32>
    %367 = arith.truncf %366 : vector<4x32xf32> to vector<4x32xbf16>
    %c3_379 = arith.constant 3 : index
    %c0_380 = arith.constant 0 : index
    %368 = vector.load %arg35[%c3_379, %c0_380] : memref<8x32xf32, #tpu.memory_space<vmem>>, vector<4x32xf32>
    %369 = arith.truncf %368 : vector<4x32xf32> to vector<4x32xbf16>
    %c0_381 = arith.constant 0 : index
    %c32_382 = arith.constant 32 : index
    %c0_383 = arith.constant 0 : index
    %370 = vector.load %arg18[%c0_381, %c32_382, %c0_383] : memref<5x64x16xbf16, #tpu.memory_space<vmem>>, vector<1x32x16xbf16>
    %371 = vector.shape_cast %370 : vector<1x32x16xbf16> to vector<32x16xbf16>
    %c1_384 = arith.constant 1 : index
    %c32_385 = arith.constant 32 : index
    %c0_386 = arith.constant 0 : index
    %372 = vector.load %arg18[%c1_384, %c32_385, %c0_386] : memref<5x64x16xbf16, #tpu.memory_space<vmem>>, vector<1x32x16xbf16>
    %373 = vector.shape_cast %372 : vector<1x32x16xbf16> to vector<32x16xbf16>
    %c2_387 = arith.constant 2 : index
    %c32_388 = arith.constant 32 : index
    %c0_389 = arith.constant 0 : index
    %374 = vector.load %arg18[%c2_387, %c32_388, %c0_389] : memref<5x64x16xbf16, #tpu.memory_space<vmem>>, vector<1x32x16xbf16>
    %375 = vector.shape_cast %374 : vector<1x32x16xbf16> to vector<32x16xbf16>
    %c3_390 = arith.constant 3 : index
    %c32_391 = arith.constant 32 : index
    %c0_392 = arith.constant 0 : index
    %376 = vector.load %arg18[%c3_390, %c32_391, %c0_392] : memref<5x64x16xbf16, #tpu.memory_space<vmem>>, vector<1x32x16xbf16>
    %377 = vector.shape_cast %376 : vector<1x32x16xbf16> to vector<32x16xbf16>
    %c4_393 = arith.constant 4 : index
    %c32_394 = arith.constant 32 : index
    %c0_395 = arith.constant 0 : index
    %378 = vector.load %arg18[%c4_393, %c32_394, %c0_395] : memref<5x64x16xbf16, #tpu.memory_space<vmem>>, vector<1x32x16xbf16>
    %379 = vector.shape_cast %378 : vector<1x32x16xbf16> to vector<32x16xbf16>
    %cst_396 = arith.constant dense<0.000000e+00> : vector<4x16xf32>
    %380 = tpu.matmul %365, %379, %cst_396 {dimension_numbers = #tpu.dot_dimension_numbers<[1], [0], [0], [1], [0, 0, 1, 1], [], []>} : vector<4x32xbf16>, vector<32x16xbf16>, vector<4x16xf32> -> vector<4x16xf32>
    %381 = arith.addf %358, %380 : vector<4x16xf32>
    %cst_397 = arith.constant dense<0.000000e+00> : vector<4x16xf32>
    %382 = tpu.matmul %367, %375, %cst_397 {dimension_numbers = #tpu.dot_dimension_numbers<[1], [0], [0], [1], [0, 0, 1, 1], [], []>} : vector<4x32xbf16>, vector<32x16xbf16>, vector<4x16xf32> -> vector<4x16xf32>
    %383 = arith.addf %381, %382 : vector<4x16xf32>
    %cst_398 = arith.constant dense<0.000000e+00> : vector<4x16xf32>
    %384 = tpu.matmul %369, %371, %cst_398 {dimension_numbers = #tpu.dot_dimension_numbers<[1], [0], [0], [1], [0, 0, 1, 1], [], []>} : vector<4x32xbf16>, vector<32x16xbf16>, vector<4x16xf32> -> vector<4x16xf32>
    %385 = arith.addf %383, %384 : vector<4x16xf32>
    %cst_399 = arith.constant dense<0.000000e+00> : vector<4x16xf32>
    %386 = tpu.matmul %367, %377, %cst_399 {dimension_numbers = #tpu.dot_dimension_numbers<[1], [0], [0], [1], [0, 0, 1, 1], [], []>} : vector<4x32xbf16>, vector<32x16xbf16>, vector<4x16xf32> -> vector<4x16xf32>
    %387 = arith.addf %363, %386 : vector<4x16xf32>
    %cst_400 = arith.constant dense<0.000000e+00> : vector<4x16xf32>
    %388 = tpu.matmul %369, %373, %cst_400 {dimension_numbers = #tpu.dot_dimension_numbers<[1], [0], [0], [1], [0, 0, 1, 1], [], []>} : vector<4x32xbf16>, vector<32x16xbf16>, vector<4x16xf32> -> vector<4x16xf32>
    %389 = arith.addf %387, %388 : vector<4x16xf32>
    %cst_401 = arith.constant 0.000000e+00 : f32
    %390 = vector.broadcast %cst_401 : f32 to vector<4x16xf32>
    %391 = arith.maximumf %385, %390 : vector<4x16xf32>
    %c2_402 = arith.constant 2 : index
    %c0_403 = arith.constant 0 : index
    %392 = tpu.strided_load %arg36[%c2_402, %c0_403] {strides = array<i32: 2, 1>} : memref<12x16xf32, #tpu.memory_space<vmem>>, vector<4x16xf32>
    tpu.strided_store %arg36[%c2_402, %c0_403], %391 {strides = array<i32: 2, 1>} : memref<12x16xf32, #tpu.memory_space<vmem>>, vector<4x16xf32>
    %cst_404 = arith.constant 0.000000e+00 : f32
    %393 = vector.broadcast %cst_404 : f32 to vector<4x16xf32>
    %394 = arith.maximumf %389, %393 : vector<4x16xf32>
    %c3_405 = arith.constant 3 : index
    %c0_406 = arith.constant 0 : index
    %395 = tpu.strided_load %arg36[%c3_405, %c0_406] {strides = array<i32: 2, 1>} : memref<12x16xf32, #tpu.memory_space<vmem>>, vector<4x16xf32>
    tpu.strided_store %arg36[%c3_405, %c0_406], %394 {strides = array<i32: 2, 1>} : memref<12x16xf32, #tpu.memory_space<vmem>>, vector<4x16xf32>
    %c0_407 = arith.constant 0 : index
    %c0_408 = arith.constant 0 : index
    %396 = vector.load %arg21[%c0_407, %c0_408] : memref<1x16xf32, #tpu.memory_space<vmem>>, vector<1x16xf32>
    %c0_409 = arith.constant 0 : index
    %c0_410 = arith.constant 0 : index
    %397 = vector.load %arg21[%c0_409, %c0_410] : memref<1x16xf32, #tpu.memory_space<vmem>>, vector<1x16xf32>
    %c1_411 = arith.constant 1 : index
    %c0_412 = arith.constant 0 : index
    %398 = vector.load %arg30[%c1_411, %c0_412] : memref<12x16xf32, #tpu.memory_space<vmem>>, vector<8x16xf32>
    %399 = arith.truncf %398 : vector<8x16xf32> to vector<8x16xbf16>
    %c2_413 = arith.constant 2 : index
    %c0_414 = arith.constant 0 : index
    %400 = vector.load %arg30[%c2_413, %c0_414] : memref<12x16xf32, #tpu.memory_space<vmem>>, vector<8x16xf32>
    %401 = arith.truncf %400 : vector<8x16xf32> to vector<8x16xbf16>
    %c3_415 = arith.constant 3 : index
    %c0_416 = arith.constant 0 : index
    %402 = vector.load %arg30[%c3_415, %c0_416] : memref<12x16xf32, #tpu.memory_space<vmem>>, vector<8x16xf32>
    %403 = arith.truncf %402 : vector<8x16xf32> to vector<8x16xbf16>
    %c0_417 = arith.constant 0 : index
    %c0_418 = arith.constant 0 : index
    %c0_419 = arith.constant 0 : index
    %404 = vector.load %arg20[%c0_417, %c0_418, %c0_419] : memref<5x32x16xbf16, #tpu.memory_space<vmem>>, vector<1x16x16xbf16>
    %405 = vector.shape_cast %404 : vector<1x16x16xbf16> to vector<16x16xbf16>
    %c1_420 = arith.constant 1 : index
    %c0_421 = arith.constant 0 : index
    %c0_422 = arith.constant 0 : index
    %406 = vector.load %arg20[%c1_420, %c0_421, %c0_422] : memref<5x32x16xbf16, #tpu.memory_space<vmem>>, vector<1x16x16xbf16>
    %407 = vector.shape_cast %406 : vector<1x16x16xbf16> to vector<16x16xbf16>
    %c2_423 = arith.constant 2 : index
    %c0_424 = arith.constant 0 : index
    %c0_425 = arith.constant 0 : index
    %408 = vector.load %arg20[%c2_423, %c0_424, %c0_425] : memref<5x32x16xbf16, #tpu.memory_space<vmem>>, vector<1x16x16xbf16>
    %409 = vector.shape_cast %408 : vector<1x16x16xbf16> to vector<16x16xbf16>
    %c3_426 = arith.constant 3 : index
    %c0_427 = arith.constant 0 : index
    %c0_428 = arith.constant 0 : index
    %410 = vector.load %arg20[%c3_426, %c0_427, %c0_428] : memref<5x32x16xbf16, #tpu.memory_space<vmem>>, vector<1x16x16xbf16>
    %411 = vector.shape_cast %410 : vector<1x16x16xbf16> to vector<16x16xbf16>
    %c4_429 = arith.constant 4 : index
    %c0_430 = arith.constant 0 : index
    %c0_431 = arith.constant 0 : index
    %412 = vector.load %arg20[%c4_429, %c0_430, %c0_431] : memref<5x32x16xbf16, #tpu.memory_space<vmem>>, vector<1x16x16xbf16>
    %413 = vector.shape_cast %412 : vector<1x16x16xbf16> to vector<16x16xbf16>
    %cst_432 = arith.constant dense<0.000000e+00> : vector<8x16xf32>
    %414 = tpu.matmul %399, %413, %cst_432 {dimension_numbers = #tpu.dot_dimension_numbers<[1], [0], [0], [1], [0, 0, 1, 1], [], []>} : vector<8x16xbf16>, vector<16x16xbf16>, vector<8x16xf32> -> vector<8x16xf32>
    %415 = vector.broadcast %396 : vector<1x16xf32> to vector<8x16xf32>
    %416 = arith.addf %415, %414 : vector<8x16xf32>
    %cst_433 = arith.constant dense<0.000000e+00> : vector<8x16xf32>
    %417 = tpu.matmul %401, %409, %cst_433 {dimension_numbers = #tpu.dot_dimension_numbers<[1], [0], [0], [1], [0, 0, 1, 1], [], []>} : vector<8x16xbf16>, vector<16x16xbf16>, vector<8x16xf32> -> vector<8x16xf32>
    %418 = arith.addf %416, %417 : vector<8x16xf32>
    %cst_434 = arith.constant dense<0.000000e+00> : vector<8x16xf32>
    %419 = tpu.matmul %403, %405, %cst_434 {dimension_numbers = #tpu.dot_dimension_numbers<[1], [0], [0], [1], [0, 0, 1, 1], [], []>} : vector<8x16xbf16>, vector<16x16xbf16>, vector<8x16xf32> -> vector<8x16xf32>
    %420 = arith.addf %418, %419 : vector<8x16xf32>
    %cst_435 = arith.constant dense<0.000000e+00> : vector<8x16xf32>
    %421 = tpu.matmul %401, %411, %cst_435 {dimension_numbers = #tpu.dot_dimension_numbers<[1], [0], [0], [1], [0, 0, 1, 1], [], []>} : vector<8x16xbf16>, vector<16x16xbf16>, vector<8x16xf32> -> vector<8x16xf32>
    %422 = vector.broadcast %397 : vector<1x16xf32> to vector<8x16xf32>
    %423 = arith.addf %422, %421 : vector<8x16xf32>
    %cst_436 = arith.constant dense<0.000000e+00> : vector<8x16xf32>
    %424 = tpu.matmul %403, %407, %cst_436 {dimension_numbers = #tpu.dot_dimension_numbers<[1], [0], [0], [1], [0, 0, 1, 1], [], []>} : vector<8x16xbf16>, vector<16x16xbf16>, vector<8x16xf32> -> vector<8x16xf32>
    %425 = arith.addf %423, %424 : vector<8x16xf32>
    %c1_437 = arith.constant 1 : index
    %c0_438 = arith.constant 0 : index
    %426 = vector.load %arg36[%c1_437, %c0_438] : memref<12x16xf32, #tpu.memory_space<vmem>>, vector<8x16xf32>
    %427 = arith.truncf %426 : vector<8x16xf32> to vector<8x16xbf16>
    %c2_439 = arith.constant 2 : index
    %c0_440 = arith.constant 0 : index
    %428 = vector.load %arg36[%c2_439, %c0_440] : memref<12x16xf32, #tpu.memory_space<vmem>>, vector<8x16xf32>
    %429 = arith.truncf %428 : vector<8x16xf32> to vector<8x16xbf16>
    %c3_441 = arith.constant 3 : index
    %c0_442 = arith.constant 0 : index
    %430 = vector.load %arg36[%c3_441, %c0_442] : memref<12x16xf32, #tpu.memory_space<vmem>>, vector<8x16xf32>
    %431 = arith.truncf %430 : vector<8x16xf32> to vector<8x16xbf16>
    %c0_443 = arith.constant 0 : index
    %c16 = arith.constant 16 : index
    %c0_444 = arith.constant 0 : index
    %432 = vector.load %arg20[%c0_443, %c16, %c0_444] : memref<5x32x16xbf16, #tpu.memory_space<vmem>>, vector<1x16x16xbf16>
    %433 = vector.shape_cast %432 : vector<1x16x16xbf16> to vector<16x16xbf16>
    %c1_445 = arith.constant 1 : index
    %c16_446 = arith.constant 16 : index
    %c0_447 = arith.constant 0 : index
    %434 = vector.load %arg20[%c1_445, %c16_446, %c0_447] : memref<5x32x16xbf16, #tpu.memory_space<vmem>>, vector<1x16x16xbf16>
    %435 = vector.shape_cast %434 : vector<1x16x16xbf16> to vector<16x16xbf16>
    %c2_448 = arith.constant 2 : index
    %c16_449 = arith.constant 16 : index
    %c0_450 = arith.constant 0 : index
    %436 = vector.load %arg20[%c2_448, %c16_449, %c0_450] : memref<5x32x16xbf16, #tpu.memory_space<vmem>>, vector<1x16x16xbf16>
    %437 = vector.shape_cast %436 : vector<1x16x16xbf16> to vector<16x16xbf16>
    %c3_451 = arith.constant 3 : index
    %c16_452 = arith.constant 16 : index
    %c0_453 = arith.constant 0 : index
    %438 = vector.load %arg20[%c3_451, %c16_452, %c0_453] : memref<5x32x16xbf16, #tpu.memory_space<vmem>>, vector<1x16x16xbf16>
    %439 = vector.shape_cast %438 : vector<1x16x16xbf16> to vector<16x16xbf16>
    %c4_454 = arith.constant 4 : index
    %c16_455 = arith.constant 16 : index
    %c0_456 = arith.constant 0 : index
    %440 = vector.load %arg20[%c4_454, %c16_455, %c0_456] : memref<5x32x16xbf16, #tpu.memory_space<vmem>>, vector<1x16x16xbf16>
    %441 = vector.shape_cast %440 : vector<1x16x16xbf16> to vector<16x16xbf16>
    %cst_457 = arith.constant dense<0.000000e+00> : vector<8x16xf32>
    %442 = tpu.matmul %427, %441, %cst_457 {dimension_numbers = #tpu.dot_dimension_numbers<[1], [0], [0], [1], [0, 0, 1, 1], [], []>} : vector<8x16xbf16>, vector<16x16xbf16>, vector<8x16xf32> -> vector<8x16xf32>
    %443 = arith.addf %420, %442 : vector<8x16xf32>
    %cst_458 = arith.constant dense<0.000000e+00> : vector<8x16xf32>
    %444 = tpu.matmul %429, %437, %cst_458 {dimension_numbers = #tpu.dot_dimension_numbers<[1], [0], [0], [1], [0, 0, 1, 1], [], []>} : vector<8x16xbf16>, vector<16x16xbf16>, vector<8x16xf32> -> vector<8x16xf32>
    %445 = arith.addf %443, %444 : vector<8x16xf32>
    %cst_459 = arith.constant dense<0.000000e+00> : vector<8x16xf32>
    %446 = tpu.matmul %431, %433, %cst_459 {dimension_numbers = #tpu.dot_dimension_numbers<[1], [0], [0], [1], [0, 0, 1, 1], [], []>} : vector<8x16xbf16>, vector<16x16xbf16>, vector<8x16xf32> -> vector<8x16xf32>
    %447 = arith.addf %445, %446 : vector<8x16xf32>
    %cst_460 = arith.constant dense<0.000000e+00> : vector<8x16xf32>
    %448 = tpu.matmul %429, %439, %cst_460 {dimension_numbers = #tpu.dot_dimension_numbers<[1], [0], [0], [1], [0, 0, 1, 1], [], []>} : vector<8x16xbf16>, vector<16x16xbf16>, vector<8x16xf32> -> vector<8x16xf32>
    %449 = arith.addf %425, %448 : vector<8x16xf32>
    %cst_461 = arith.constant dense<0.000000e+00> : vector<8x16xf32>
    %450 = tpu.matmul %431, %435, %cst_461 {dimension_numbers = #tpu.dot_dimension_numbers<[1], [0], [0], [1], [0, 0, 1, 1], [], []>} : vector<8x16xbf16>, vector<16x16xbf16>, vector<8x16xf32> -> vector<8x16xf32>
    %451 = arith.addf %449, %450 : vector<8x16xf32>
    %cst_462 = arith.constant 0.000000e+00 : f32
    %452 = vector.broadcast %cst_462 : f32 to vector<8x16xf32>
    %453 = arith.maximumf %447, %452 : vector<8x16xf32>
    %c2_463 = arith.constant 2 : index
    %c0_464 = arith.constant 0 : index
    %454 = tpu.strided_load %arg37[%c2_463, %c0_464] {strides = array<i32: 2, 1>} : memref<20x16xf32, #tpu.memory_space<vmem>>, vector<8x16xf32>
    tpu.strided_store %arg37[%c2_463, %c0_464], %453 {strides = array<i32: 2, 1>} : memref<20x16xf32, #tpu.memory_space<vmem>>, vector<8x16xf32>
    %cst_465 = arith.constant 0.000000e+00 : f32
    %455 = vector.broadcast %cst_465 : f32 to vector<8x16xf32>
    %456 = arith.maximumf %451, %455 : vector<8x16xf32>
    %c3_466 = arith.constant 3 : index
    %c0_467 = arith.constant 0 : index
    %457 = tpu.strided_load %arg37[%c3_466, %c0_467] {strides = array<i32: 2, 1>} : memref<20x16xf32, #tpu.memory_space<vmem>>, vector<8x16xf32>
    tpu.strided_store %arg37[%c3_466, %c0_467], %456 {strides = array<i32: 2, 1>} : memref<20x16xf32, #tpu.memory_space<vmem>>, vector<8x16xf32>
    %c0_468 = arith.constant 0 : index
    %c0_469 = arith.constant 0 : index
    %458 = vector.load %arg23[%c0_468, %c0_469] : memref<1x8xf32, #tpu.memory_space<vmem>>, vector<1x8xf32>
    %c0_470 = arith.constant 0 : index
    %c0_471 = arith.constant 0 : index
    %459 = vector.load %arg23[%c0_470, %c0_471] : memref<1x8xf32, #tpu.memory_space<vmem>>, vector<1x8xf32>
    %c1_472 = arith.constant 1 : index
    %c0_473 = arith.constant 0 : index
    %460 = vector.load %arg29[%c1_472, %c0_473] : memref<20x16xf32, #tpu.memory_space<vmem>>, vector<16x16xf32>
    %461 = arith.truncf %460 : vector<16x16xf32> to vector<16x16xbf16>
    %c2_474 = arith.constant 2 : index
    %c0_475 = arith.constant 0 : index
    %462 = vector.load %arg29[%c2_474, %c0_475] : memref<20x16xf32, #tpu.memory_space<vmem>>, vector<16x16xf32>
    %463 = arith.truncf %462 : vector<16x16xf32> to vector<16x16xbf16>
    %c3_476 = arith.constant 3 : index
    %c0_477 = arith.constant 0 : index
    %464 = vector.load %arg29[%c3_476, %c0_477] : memref<20x16xf32, #tpu.memory_space<vmem>>, vector<16x16xf32>
    %465 = arith.truncf %464 : vector<16x16xf32> to vector<16x16xbf16>
    %c0_478 = arith.constant 0 : index
    %c0_479 = arith.constant 0 : index
    %c0_480 = arith.constant 0 : index
    %466 = vector.load %arg22[%c0_478, %c0_479, %c0_480] : memref<5x32x8xbf16, #tpu.memory_space<vmem>>, vector<1x16x8xbf16>
    %467 = vector.shape_cast %466 : vector<1x16x8xbf16> to vector<16x8xbf16>
    %c1_481 = arith.constant 1 : index
    %c0_482 = arith.constant 0 : index
    %c0_483 = arith.constant 0 : index
    %468 = vector.load %arg22[%c1_481, %c0_482, %c0_483] : memref<5x32x8xbf16, #tpu.memory_space<vmem>>, vector<1x16x8xbf16>
    %469 = vector.shape_cast %468 : vector<1x16x8xbf16> to vector<16x8xbf16>
    %c2_484 = arith.constant 2 : index
    %c0_485 = arith.constant 0 : index
    %c0_486 = arith.constant 0 : index
    %470 = vector.load %arg22[%c2_484, %c0_485, %c0_486] : memref<5x32x8xbf16, #tpu.memory_space<vmem>>, vector<1x16x8xbf16>
    %471 = vector.shape_cast %470 : vector<1x16x8xbf16> to vector<16x8xbf16>
    %c3_487 = arith.constant 3 : index
    %c0_488 = arith.constant 0 : index
    %c0_489 = arith.constant 0 : index
    %472 = vector.load %arg22[%c3_487, %c0_488, %c0_489] : memref<5x32x8xbf16, #tpu.memory_space<vmem>>, vector<1x16x8xbf16>
    %473 = vector.shape_cast %472 : vector<1x16x8xbf16> to vector<16x8xbf16>
    %c4_490 = arith.constant 4 : index
    %c0_491 = arith.constant 0 : index
    %c0_492 = arith.constant 0 : index
    %474 = vector.load %arg22[%c4_490, %c0_491, %c0_492] : memref<5x32x8xbf16, #tpu.memory_space<vmem>>, vector<1x16x8xbf16>
    %475 = vector.shape_cast %474 : vector<1x16x8xbf16> to vector<16x8xbf16>
    %cst_493 = arith.constant dense<0.000000e+00> : vector<16x8xf32>
    %476 = tpu.matmul %461, %475, %cst_493 {dimension_numbers = #tpu.dot_dimension_numbers<[1], [0], [0], [1], [0, 0, 1, 1], [], []>} : vector<16x16xbf16>, vector<16x8xbf16>, vector<16x8xf32> -> vector<16x8xf32>
    %477 = vector.broadcast %458 : vector<1x8xf32> to vector<16x8xf32>
    %478 = arith.addf %477, %476 : vector<16x8xf32>
    %cst_494 = arith.constant dense<0.000000e+00> : vector<16x8xf32>
    %479 = tpu.matmul %463, %471, %cst_494 {dimension_numbers = #tpu.dot_dimension_numbers<[1], [0], [0], [1], [0, 0, 1, 1], [], []>} : vector<16x16xbf16>, vector<16x8xbf16>, vector<16x8xf32> -> vector<16x8xf32>
    %480 = arith.addf %478, %479 : vector<16x8xf32>
    %cst_495 = arith.constant dense<0.000000e+00> : vector<16x8xf32>
    %481 = tpu.matmul %465, %467, %cst_495 {dimension_numbers = #tpu.dot_dimension_numbers<[1], [0], [0], [1], [0, 0, 1, 1], [], []>} : vector<16x16xbf16>, vector<16x8xbf16>, vector<16x8xf32> -> vector<16x8xf32>
    %482 = arith.addf %480, %481 : vector<16x8xf32>
    %cst_496 = arith.constant dense<0.000000e+00> : vector<16x8xf32>
    %483 = tpu.matmul %463, %473, %cst_496 {dimension_numbers = #tpu.dot_dimension_numbers<[1], [0], [0], [1], [0, 0, 1, 1], [], []>} : vector<16x16xbf16>, vector<16x8xbf16>, vector<16x8xf32> -> vector<16x8xf32>
    %484 = vector.broadcast %459 : vector<1x8xf32> to vector<16x8xf32>
    %485 = arith.addf %484, %483 : vector<16x8xf32>
    %cst_497 = arith.constant dense<0.000000e+00> : vector<16x8xf32>
    %486 = tpu.matmul %465, %469, %cst_497 {dimension_numbers = #tpu.dot_dimension_numbers<[1], [0], [0], [1], [0, 0, 1, 1], [], []>} : vector<16x16xbf16>, vector<16x8xbf16>, vector<16x8xf32> -> vector<16x8xf32>
    %487 = arith.addf %485, %486 : vector<16x8xf32>
    %c1_498 = arith.constant 1 : index
    %c0_499 = arith.constant 0 : index
    %488 = vector.load %arg37[%c1_498, %c0_499] : memref<20x16xf32, #tpu.memory_space<vmem>>, vector<16x16xf32>
    %489 = arith.truncf %488 : vector<16x16xf32> to vector<16x16xbf16>
    %c2_500 = arith.constant 2 : index
    %c0_501 = arith.constant 0 : index
    %490 = vector.load %arg37[%c2_500, %c0_501] : memref<20x16xf32, #tpu.memory_space<vmem>>, vector<16x16xf32>
    %491 = arith.truncf %490 : vector<16x16xf32> to vector<16x16xbf16>
    %c3_502 = arith.constant 3 : index
    %c0_503 = arith.constant 0 : index
    %492 = vector.load %arg37[%c3_502, %c0_503] : memref<20x16xf32, #tpu.memory_space<vmem>>, vector<16x16xf32>
    %493 = arith.truncf %492 : vector<16x16xf32> to vector<16x16xbf16>
    %c0_504 = arith.constant 0 : index
    %c16_505 = arith.constant 16 : index
    %c0_506 = arith.constant 0 : index
    %494 = vector.load %arg22[%c0_504, %c16_505, %c0_506] : memref<5x32x8xbf16, #tpu.memory_space<vmem>>, vector<1x16x8xbf16>
    %495 = vector.shape_cast %494 : vector<1x16x8xbf16> to vector<16x8xbf16>
    %c1_507 = arith.constant 1 : index
    %c16_508 = arith.constant 16 : index
    %c0_509 = arith.constant 0 : index
    %496 = vector.load %arg22[%c1_507, %c16_508, %c0_509] : memref<5x32x8xbf16, #tpu.memory_space<vmem>>, vector<1x16x8xbf16>
    %497 = vector.shape_cast %496 : vector<1x16x8xbf16> to vector<16x8xbf16>
    %c2_510 = arith.constant 2 : index
    %c16_511 = arith.constant 16 : index
    %c0_512 = arith.constant 0 : index
    %498 = vector.load %arg22[%c2_510, %c16_511, %c0_512] : memref<5x32x8xbf16, #tpu.memory_space<vmem>>, vector<1x16x8xbf16>
    %499 = vector.shape_cast %498 : vector<1x16x8xbf16> to vector<16x8xbf16>
    %c3_513 = arith.constant 3 : index
    %c16_514 = arith.constant 16 : index
    %c0_515 = arith.constant 0 : index
    %500 = vector.load %arg22[%c3_513, %c16_514, %c0_515] : memref<5x32x8xbf16, #tpu.memory_space<vmem>>, vector<1x16x8xbf16>
    %501 = vector.shape_cast %500 : vector<1x16x8xbf16> to vector<16x8xbf16>
    %c4_516 = arith.constant 4 : index
    %c16_517 = arith.constant 16 : index
    %c0_518 = arith.constant 0 : index
    %502 = vector.load %arg22[%c4_516, %c16_517, %c0_518] : memref<5x32x8xbf16, #tpu.memory_space<vmem>>, vector<1x16x8xbf16>
    %503 = vector.shape_cast %502 : vector<1x16x8xbf16> to vector<16x8xbf16>
    %cst_519 = arith.constant dense<0.000000e+00> : vector<16x8xf32>
    %504 = tpu.matmul %489, %503, %cst_519 {dimension_numbers = #tpu.dot_dimension_numbers<[1], [0], [0], [1], [0, 0, 1, 1], [], []>} : vector<16x16xbf16>, vector<16x8xbf16>, vector<16x8xf32> -> vector<16x8xf32>
    %505 = arith.addf %482, %504 : vector<16x8xf32>
    %cst_520 = arith.constant dense<0.000000e+00> : vector<16x8xf32>
    %506 = tpu.matmul %491, %499, %cst_520 {dimension_numbers = #tpu.dot_dimension_numbers<[1], [0], [0], [1], [0, 0, 1, 1], [], []>} : vector<16x16xbf16>, vector<16x8xbf16>, vector<16x8xf32> -> vector<16x8xf32>
    %507 = arith.addf %505, %506 : vector<16x8xf32>
    %cst_521 = arith.constant dense<0.000000e+00> : vector<16x8xf32>
    %508 = tpu.matmul %493, %495, %cst_521 {dimension_numbers = #tpu.dot_dimension_numbers<[1], [0], [0], [1], [0, 0, 1, 1], [], []>} : vector<16x16xbf16>, vector<16x8xbf16>, vector<16x8xf32> -> vector<16x8xf32>
    %509 = arith.addf %507, %508 : vector<16x8xf32>
    %cst_522 = arith.constant dense<0.000000e+00> : vector<16x8xf32>
    %510 = tpu.matmul %491, %501, %cst_522 {dimension_numbers = #tpu.dot_dimension_numbers<[1], [0], [0], [1], [0, 0, 1, 1], [], []>} : vector<16x16xbf16>, vector<16x8xbf16>, vector<16x8xf32> -> vector<16x8xf32>
    %511 = arith.addf %487, %510 : vector<16x8xf32>
    %cst_523 = arith.constant dense<0.000000e+00> : vector<16x8xf32>
    %512 = tpu.matmul %493, %497, %cst_523 {dimension_numbers = #tpu.dot_dimension_numbers<[1], [0], [0], [1], [0, 0, 1, 1], [], []>} : vector<16x16xbf16>, vector<16x8xbf16>, vector<16x8xf32> -> vector<16x8xf32>
    %513 = arith.addf %511, %512 : vector<16x8xf32>
    %cst_524 = arith.constant 0.000000e+00 : f32
    %514 = vector.broadcast %cst_524 : f32 to vector<16x8xf32>
    %515 = arith.maximumf %509, %514 : vector<16x8xf32>
    %c2_525 = arith.constant 2 : index
    %c0_526 = arith.constant 0 : index
    %516 = tpu.strided_load %arg38[%c2_525, %c0_526] {strides = array<i32: 2, 1>} : memref<36x8xf32, #tpu.memory_space<vmem>>, vector<16x8xf32>
    tpu.strided_store %arg38[%c2_525, %c0_526], %515 {strides = array<i32: 2, 1>} : memref<36x8xf32, #tpu.memory_space<vmem>>, vector<16x8xf32>
    %cst_527 = arith.constant 0.000000e+00 : f32
    %517 = vector.broadcast %cst_527 : f32 to vector<16x8xf32>
    %518 = arith.maximumf %513, %517 : vector<16x8xf32>
    %c3_528 = arith.constant 3 : index
    %c0_529 = arith.constant 0 : index
    %519 = tpu.strided_load %arg38[%c3_528, %c0_529] {strides = array<i32: 2, 1>} : memref<36x8xf32, #tpu.memory_space<vmem>>, vector<16x8xf32>
    tpu.strided_store %arg38[%c3_528, %c0_529], %518 {strides = array<i32: 2, 1>} : memref<36x8xf32, #tpu.memory_space<vmem>>, vector<16x8xf32>
    %c0_530 = arith.constant 0 : index
    %c0_531 = arith.constant 0 : index
    %520 = vector.load %arg25[%c0_530, %c0_531] : memref<1x8xf32, #tpu.memory_space<vmem>>, vector<1x8xf32>
    %c0_532 = arith.constant 0 : index
    %c0_533 = arith.constant 0 : index
    %521 = vector.load %arg25[%c0_532, %c0_533] : memref<1x8xf32, #tpu.memory_space<vmem>>, vector<1x8xf32>
    %c1_534 = arith.constant 1 : index
    %c0_535 = arith.constant 0 : index
    %522 = vector.load %arg28[%c1_534, %c0_535] : memref<36x8xf32, #tpu.memory_space<vmem>>, vector<32x8xf32>
    %523 = arith.truncf %522 : vector<32x8xf32> to vector<32x8xbf16>
    %c2_536 = arith.constant 2 : index
    %c0_537 = arith.constant 0 : index
    %524 = vector.load %arg28[%c2_536, %c0_537] : memref<36x8xf32, #tpu.memory_space<vmem>>, vector<32x8xf32>
    %525 = arith.truncf %524 : vector<32x8xf32> to vector<32x8xbf16>
    %c3_538 = arith.constant 3 : index
    %c0_539 = arith.constant 0 : index
    %526 = vector.load %arg28[%c3_538, %c0_539] : memref<36x8xf32, #tpu.memory_space<vmem>>, vector<32x8xf32>
    %527 = arith.truncf %526 : vector<32x8xf32> to vector<32x8xbf16>
    %c0_540 = arith.constant 0 : index
    %c0_541 = arith.constant 0 : index
    %c0_542 = arith.constant 0 : index
    %528 = vector.load %arg24[%c0_540, %c0_541, %c0_542] : memref<5x16x8xbf16, #tpu.memory_space<vmem>>, vector<1x8x8xbf16>
    %529 = vector.shape_cast %528 : vector<1x8x8xbf16> to vector<8x8xbf16>
    %c1_543 = arith.constant 1 : index
    %c0_544 = arith.constant 0 : index
    %c0_545 = arith.constant 0 : index
    %530 = vector.load %arg24[%c1_543, %c0_544, %c0_545] : memref<5x16x8xbf16, #tpu.memory_space<vmem>>, vector<1x8x8xbf16>
    %531 = vector.shape_cast %530 : vector<1x8x8xbf16> to vector<8x8xbf16>
    %c2_546 = arith.constant 2 : index
    %c0_547 = arith.constant 0 : index
    %c0_548 = arith.constant 0 : index
    %532 = vector.load %arg24[%c2_546, %c0_547, %c0_548] : memref<5x16x8xbf16, #tpu.memory_space<vmem>>, vector<1x8x8xbf16>
    %533 = vector.shape_cast %532 : vector<1x8x8xbf16> to vector<8x8xbf16>
    %c3_549 = arith.constant 3 : index
    %c0_550 = arith.constant 0 : index
    %c0_551 = arith.constant 0 : index
    %534 = vector.load %arg24[%c3_549, %c0_550, %c0_551] : memref<5x16x8xbf16, #tpu.memory_space<vmem>>, vector<1x8x8xbf16>
    %535 = vector.shape_cast %534 : vector<1x8x8xbf16> to vector<8x8xbf16>
    %c4_552 = arith.constant 4 : index
    %c0_553 = arith.constant 0 : index
    %c0_554 = arith.constant 0 : index
    %536 = vector.load %arg24[%c4_552, %c0_553, %c0_554] : memref<5x16x8xbf16, #tpu.memory_space<vmem>>, vector<1x8x8xbf16>
    %537 = vector.shape_cast %536 : vector<1x8x8xbf16> to vector<8x8xbf16>
    %cst_555 = arith.constant dense<0.000000e+00> : vector<32x8xf32>
    %538 = tpu.matmul %523, %537, %cst_555 {dimension_numbers = #tpu.dot_dimension_numbers<[1], [0], [0], [1], [0, 0, 1, 1], [], []>} : vector<32x8xbf16>, vector<8x8xbf16>, vector<32x8xf32> -> vector<32x8xf32>
    %539 = vector.broadcast %520 : vector<1x8xf32> to vector<32x8xf32>
    %540 = arith.addf %539, %538 : vector<32x8xf32>
    %cst_556 = arith.constant dense<0.000000e+00> : vector<32x8xf32>
    %541 = tpu.matmul %525, %533, %cst_556 {dimension_numbers = #tpu.dot_dimension_numbers<[1], [0], [0], [1], [0, 0, 1, 1], [], []>} : vector<32x8xbf16>, vector<8x8xbf16>, vector<32x8xf32> -> vector<32x8xf32>
    %542 = arith.addf %540, %541 : vector<32x8xf32>
    %cst_557 = arith.constant dense<0.000000e+00> : vector<32x8xf32>
    %543 = tpu.matmul %527, %529, %cst_557 {dimension_numbers = #tpu.dot_dimension_numbers<[1], [0], [0], [1], [0, 0, 1, 1], [], []>} : vector<32x8xbf16>, vector<8x8xbf16>, vector<32x8xf32> -> vector<32x8xf32>
    %544 = arith.addf %542, %543 : vector<32x8xf32>
    %cst_558 = arith.constant dense<0.000000e+00> : vector<32x8xf32>
    %545 = tpu.matmul %525, %535, %cst_558 {dimension_numbers = #tpu.dot_dimension_numbers<[1], [0], [0], [1], [0, 0, 1, 1], [], []>} : vector<32x8xbf16>, vector<8x8xbf16>, vector<32x8xf32> -> vector<32x8xf32>
    %546 = vector.broadcast %521 : vector<1x8xf32> to vector<32x8xf32>
    %547 = arith.addf %546, %545 : vector<32x8xf32>
    %cst_559 = arith.constant dense<0.000000e+00> : vector<32x8xf32>
    %548 = tpu.matmul %527, %531, %cst_559 {dimension_numbers = #tpu.dot_dimension_numbers<[1], [0], [0], [1], [0, 0, 1, 1], [], []>} : vector<32x8xbf16>, vector<8x8xbf16>, vector<32x8xf32> -> vector<32x8xf32>
    %549 = arith.addf %547, %548 : vector<32x8xf32>
    %c1_560 = arith.constant 1 : index
    %c0_561 = arith.constant 0 : index
    %550 = vector.load %arg38[%c1_560, %c0_561] : memref<36x8xf32, #tpu.memory_space<vmem>>, vector<32x8xf32>
    %551 = arith.truncf %550 : vector<32x8xf32> to vector<32x8xbf16>
    %c2_562 = arith.constant 2 : index
    %c0_563 = arith.constant 0 : index
    %552 = vector.load %arg38[%c2_562, %c0_563] : memref<36x8xf32, #tpu.memory_space<vmem>>, vector<32x8xf32>
    %553 = arith.truncf %552 : vector<32x8xf32> to vector<32x8xbf16>
    %c3_564 = arith.constant 3 : index
    %c0_565 = arith.constant 0 : index
    %554 = vector.load %arg38[%c3_564, %c0_565] : memref<36x8xf32, #tpu.memory_space<vmem>>, vector<32x8xf32>
    %555 = arith.truncf %554 : vector<32x8xf32> to vector<32x8xbf16>
    %c0_566 = arith.constant 0 : index
    %c8 = arith.constant 8 : index
    %c0_567 = arith.constant 0 : index
    %556 = vector.load %arg24[%c0_566, %c8, %c0_567] : memref<5x16x8xbf16, #tpu.memory_space<vmem>>, vector<1x8x8xbf16>
    %557 = vector.shape_cast %556 : vector<1x8x8xbf16> to vector<8x8xbf16>
    %c1_568 = arith.constant 1 : index
    %c8_569 = arith.constant 8 : index
    %c0_570 = arith.constant 0 : index
    %558 = vector.load %arg24[%c1_568, %c8_569, %c0_570] : memref<5x16x8xbf16, #tpu.memory_space<vmem>>, vector<1x8x8xbf16>
    %559 = vector.shape_cast %558 : vector<1x8x8xbf16> to vector<8x8xbf16>
    %c2_571 = arith.constant 2 : index
    %c8_572 = arith.constant 8 : index
    %c0_573 = arith.constant 0 : index
    %560 = vector.load %arg24[%c2_571, %c8_572, %c0_573] : memref<5x16x8xbf16, #tpu.memory_space<vmem>>, vector<1x8x8xbf16>
    %561 = vector.shape_cast %560 : vector<1x8x8xbf16> to vector<8x8xbf16>
    %c3_574 = arith.constant 3 : index
    %c8_575 = arith.constant 8 : index
    %c0_576 = arith.constant 0 : index
    %562 = vector.load %arg24[%c3_574, %c8_575, %c0_576] : memref<5x16x8xbf16, #tpu.memory_space<vmem>>, vector<1x8x8xbf16>
    %563 = vector.shape_cast %562 : vector<1x8x8xbf16> to vector<8x8xbf16>
    %c4_577 = arith.constant 4 : index
    %c8_578 = arith.constant 8 : index
    %c0_579 = arith.constant 0 : index
    %564 = vector.load %arg24[%c4_577, %c8_578, %c0_579] : memref<5x16x8xbf16, #tpu.memory_space<vmem>>, vector<1x8x8xbf16>
    %565 = vector.shape_cast %564 : vector<1x8x8xbf16> to vector<8x8xbf16>
    %cst_580 = arith.constant dense<0.000000e+00> : vector<32x8xf32>
    %566 = tpu.matmul %551, %565, %cst_580 {dimension_numbers = #tpu.dot_dimension_numbers<[1], [0], [0], [1], [0, 0, 1, 1], [], []>} : vector<32x8xbf16>, vector<8x8xbf16>, vector<32x8xf32> -> vector<32x8xf32>
    %567 = arith.addf %544, %566 : vector<32x8xf32>
    %cst_581 = arith.constant dense<0.000000e+00> : vector<32x8xf32>
    %568 = tpu.matmul %553, %561, %cst_581 {dimension_numbers = #tpu.dot_dimension_numbers<[1], [0], [0], [1], [0, 0, 1, 1], [], []>} : vector<32x8xbf16>, vector<8x8xbf16>, vector<32x8xf32> -> vector<32x8xf32>
    %569 = arith.addf %567, %568 : vector<32x8xf32>
    %cst_582 = arith.constant dense<0.000000e+00> : vector<32x8xf32>
    %570 = tpu.matmul %555, %557, %cst_582 {dimension_numbers = #tpu.dot_dimension_numbers<[1], [0], [0], [1], [0, 0, 1, 1], [], []>} : vector<32x8xbf16>, vector<8x8xbf16>, vector<32x8xf32> -> vector<32x8xf32>
    %571 = arith.addf %569, %570 : vector<32x8xf32>
    %cst_583 = arith.constant dense<0.000000e+00> : vector<32x8xf32>
    %572 = tpu.matmul %553, %563, %cst_583 {dimension_numbers = #tpu.dot_dimension_numbers<[1], [0], [0], [1], [0, 0, 1, 1], [], []>} : vector<32x8xbf16>, vector<8x8xbf16>, vector<32x8xf32> -> vector<32x8xf32>
    %573 = arith.addf %549, %572 : vector<32x8xf32>
    %cst_584 = arith.constant dense<0.000000e+00> : vector<32x8xf32>
    %574 = tpu.matmul %555, %559, %cst_584 {dimension_numbers = #tpu.dot_dimension_numbers<[1], [0], [0], [1], [0, 0, 1, 1], [], []>} : vector<32x8xbf16>, vector<8x8xbf16>, vector<32x8xf32> -> vector<32x8xf32>
    %575 = arith.addf %573, %574 : vector<32x8xf32>
    %cst_585 = arith.constant 0.000000e+00 : f32
    %576 = vector.broadcast %cst_585 : f32 to vector<32x8xf32>
    %577 = arith.maximumf %571, %576 : vector<32x8xf32>
    %c2_586 = arith.constant 2 : index
    %c0_587 = arith.constant 0 : index
    %578 = tpu.strided_load %arg39[%c2_586, %c0_587] {strides = array<i32: 2, 1>} : memref<68x8xf32, #tpu.memory_space<vmem>>, vector<32x8xf32>
    tpu.strided_store %arg39[%c2_586, %c0_587], %577 {strides = array<i32: 2, 1>} : memref<68x8xf32, #tpu.memory_space<vmem>>, vector<32x8xf32>
    %cst_588 = arith.constant 0.000000e+00 : f32
    %579 = vector.broadcast %cst_588 : f32 to vector<32x8xf32>
    %580 = arith.maximumf %575, %579 : vector<32x8xf32>
    %c3_589 = arith.constant 3 : index
    %c0_590 = arith.constant 0 : index
    %581 = tpu.strided_load %arg39[%c3_589, %c0_590] {strides = array<i32: 2, 1>} : memref<68x8xf32, #tpu.memory_space<vmem>>, vector<32x8xf32>
    tpu.strided_store %arg39[%c3_589, %c0_590], %580 {strides = array<i32: 2, 1>} : memref<68x8xf32, #tpu.memory_space<vmem>>, vector<32x8xf32>
    %c2_591 = arith.constant 2 : index
    %c0_592 = arith.constant 0 : index
    %582 = vector.load %arg27[%c2_591, %c0_592] : memref<68x8xf32, #tpu.memory_space<vmem>>, vector<64x8xf32>
    %c0_593 = arith.constant 0 : index
    %c0_594 = arith.constant 0 : index
    %c0_595 = arith.constant 0 : index
    %583 = vector.load %arg26[%c0_593, %c0_594, %c0_595] : memref<1x64x16xf32, #tpu.memory_space<vmem>>, vector<1x64x8xf32>
    %584 = vector.shape_cast %583 : vector<1x64x8xf32> to vector<64x8xf32>
    %585 = vector.shape_cast %582 : vector<64x8xf32> to vector<1x64x8xf32>
    tpu.vector_store %arg26[%c0_593, %c0_594, %c0_595], %585 {strides = array<i32>} : memref<1x64x16xf32, #tpu.memory_space<vmem>>, vector<1x64x8xf32>,
    %c2_596 = arith.constant 2 : index
    %c0_597 = arith.constant 0 : index
    %586 = vector.load %arg39[%c2_596, %c0_597] : memref<68x8xf32, #tpu.memory_space<vmem>>, vector<64x8xf32>
    %c0_598 = arith.constant 0 : index
    %c0_599 = arith.constant 0 : index
    %c8_600 = arith.constant 8 : index
    %587 = vector.load %arg26[%c0_598, %c0_599, %c8_600] : memref<1x64x16xf32, #tpu.memory_space<vmem>>, vector<1x64x8xf32>
    %588 = vector.shape_cast %587 : vector<1x64x8xf32> to vector<64x8xf32>
    %589 = vector.shape_cast %586 : vector<64x8xf32> to vector<1x64x8xf32>
    tpu.vector_store %arg26[%c0_598, %c0_599, %c8_600], %589 {strides = array<i32>} : memref<1x64x16xf32, #tpu.memory_space<vmem>>, vector<1x64x8xf32>,
    return
  }
  func.func @transform_0(%arg0: i32) -> (i32, i32, i32) {
    %c0_i32 = arith.constant 0 : i32
    %c0_i32_0 = arith.constant 0 : i32
    %c0_i32_1 = arith.constant 0 : i32
    return %arg0, %c0_i32, %c0_i32_0 : i32, i32, i32
  }
  func.func @transform_1(%arg0: i32) -> (i32, i32, i32) {
    %c0_i32 = arith.constant 0 : i32
    %c0_i32_0 = arith.constant 0 : i32
    %c0_i32_1 = arith.constant 0 : i32
    %c0_i32_2 = arith.constant 0 : i32
    return %c0_i32, %c0_i32_0, %c0_i32_1 : i32, i32, i32
  }
  func.func @transform_2(%arg0: i32) -> (i32, i32) {
    %c0_i32 = arith.constant 0 : i32
    %c0_i32_0 = arith.constant 0 : i32
    %c0_i32_1 = arith.constant 0 : i32
    return %c0_i32, %c0_i32_0 : i32, i32
  }
  func.func @transform_3(%arg0: i32) -> (i32, i32, i32) {
    %c0_i32 = arith.constant 0 : i32
    %c0_i32_0 = arith.constant 0 : i32
    %c0_i32_1 = arith.constant 0 : i32
    %c0_i32_2 = arith.constant 0 : i32
    return %c0_i32, %c0_i32_0, %c0_i32_1 : i32, i32, i32
  }
  func.func @transform_4(%arg0: i32) -> (i32, i32) {
    %c0_i32 = arith.constant 0 : i32
    %c0_i32_0 = arith.constant 0 : i32
    %c0_i32_1 = arith.constant 0 : i32
    return %c0_i32, %c0_i32_0 : i32, i32
  }
  func.func @transform_5(%arg0: i32) -> (i32, i32, i32) {
    %c0_i32 = arith.constant 0 : i32
    %c0_i32_0 = arith.constant 0 : i32
    %c0_i32_1 = arith.constant 0 : i32
    %c0_i32_2 = arith.constant 0 : i32
    return %c0_i32, %c0_i32_0, %c0_i32_1 : i32, i32, i32
  }
  func.func @transform_6(%arg0: i32) -> (i32, i32) {
    %c0_i32 = arith.constant 0 : i32
    %c0_i32_0 = arith.constant 0 : i32
    %c0_i32_1 = arith.constant 0 : i32
    return %c0_i32, %c0_i32_0 : i32, i32
  }
  func.func @transform_7(%arg0: i32) -> (i32, i32, i32) {
    %c0_i32 = arith.constant 0 : i32
    %c0_i32_0 = arith.constant 0 : i32
    %c0_i32_1 = arith.constant 0 : i32
    %c0_i32_2 = arith.constant 0 : i32
    return %c0_i32, %c0_i32_0, %c0_i32_1 : i32, i32, i32
  }
  func.func @transform_8(%arg0: i32) -> (i32, i32) {
    %c0_i32 = arith.constant 0 : i32
    %c0_i32_0 = arith.constant 0 : i32
    %c0_i32_1 = arith.constant 0 : i32
    return %c0_i32, %c0_i32_0 : i32, i32
  }
  func.func @transform_9(%arg0: i32) -> (i32, i32, i32) {
    %c0_i32 = arith.constant 0 : i32
    %c0_i32_0 = arith.constant 0 : i32
    %c0_i32_1 = arith.constant 0 : i32
    %c0_i32_2 = arith.constant 0 : i32
    return %c0_i32, %c0_i32_0, %c0_i32_1 : i32, i32, i32
  }
  func.func @transform_10(%arg0: i32) -> (i32, i32) {
    %c0_i32 = arith.constant 0 : i32
    %c0_i32_0 = arith.constant 0 : i32
    %c0_i32_1 = arith.constant 0 : i32
    return %c0_i32, %c0_i32_0 : i32, i32
  }
  func.func @transform_11(%arg0: i32) -> (i32, i32, i32) {
    %c0_i32 = arith.constant 0 : i32
    %c0_i32_0 = arith.constant 0 : i32
    %c0_i32_1 = arith.constant 0 : i32
    %c0_i32_2 = arith.constant 0 : i32
    return %c0_i32, %c0_i32_0, %c0_i32_1 : i32, i32, i32
  }
  func.func @transform_12(%arg0: i32) -> (i32, i32) {
    %c0_i32 = arith.constant 0 : i32
    %c0_i32_0 = arith.constant 0 : i32
    %c0_i32_1 = arith.constant 0 : i32
    return %c0_i32, %c0_i32_0 : i32, i32
  }
  func.func @transform_13(%arg0: i32) -> (i32, i32, i32) {
    %c0_i32 = arith.constant 0 : i32
    %c0_i32_0 = arith.constant 0 : i32
    %c0_i32_1 = arith.constant 0 : i32
    %c0_i32_2 = arith.constant 0 : i32
    return %c0_i32, %c0_i32_0, %c0_i32_1 : i32, i32, i32
  }
  func.func @transform_14(%arg0: i32) -> (i32, i32) {
    %c0_i32 = arith.constant 0 : i32
    %c0_i32_0 = arith.constant 0 : i32
    %c0_i32_1 = arith.constant 0 : i32
    return %c0_i32, %c0_i32_0 : i32, i32
  }
  func.func @transform_15(%arg0: i32) -> (i32, i32, i32) {
    %c0_i32 = arith.constant 0 : i32
    %c0_i32_0 = arith.constant 0 : i32
    %c0_i32_1 = arith.constant 0 : i32
    %c0_i32_2 = arith.constant 0 : i32
    return %c0_i32, %c0_i32_0, %c0_i32_1 : i32, i32, i32
  }
  func.func @transform_16(%arg0: i32) -> (i32, i32) {
    %c0_i32 = arith.constant 0 : i32
    %c0_i32_0 = arith.constant 0 : i32
    %c0_i32_1 = arith.constant 0 : i32
    return %c0_i32, %c0_i32_0 : i32, i32
  }
  func.func @transform_17(%arg0: i32) -> (i32, i32, i32) {
    %c0_i32 = arith.constant 0 : i32
    %c0_i32_0 = arith.constant 0 : i32
    %c0_i32_1 = arith.constant 0 : i32
    %c0_i32_2 = arith.constant 0 : i32
    return %c0_i32, %c0_i32_0, %c0_i32_1 : i32, i32, i32
  }
  func.func @transform_18(%arg0: i32) -> (i32, i32) {
    %c0_i32 = arith.constant 0 : i32
    %c0_i32_0 = arith.constant 0 : i32
    %c0_i32_1 = arith.constant 0 : i32
    return %c0_i32, %c0_i32_0 : i32, i32
  }
  func.func @transform_19(%arg0: i32) -> (i32, i32, i32) {
    %c0_i32 = arith.constant 0 : i32
    %c0_i32_0 = arith.constant 0 : i32
    %c0_i32_1 = arith.constant 0 : i32
    %c0_i32_2 = arith.constant 0 : i32
    return %c0_i32, %c0_i32_0, %c0_i32_1 : i32, i32, i32
  }
  func.func @transform_20(%arg0: i32) -> (i32, i32) {
    %c0_i32 = arith.constant 0 : i32
    %c0_i32_0 = arith.constant 0 : i32
    %c0_i32_1 = arith.constant 0 : i32
    return %c0_i32, %c0_i32_0 : i32, i32
  }
  func.func @transform_21(%arg0: i32) -> (i32, i32, i32) {
    %c0_i32 = arith.constant 0 : i32
    %c0_i32_0 = arith.constant 0 : i32
    %c0_i32_1 = arith.constant 0 : i32
    %c0_i32_2 = arith.constant 0 : i32
    return %c0_i32, %c0_i32_0, %c0_i32_1 : i32, i32, i32
  }
  func.func @transform_22(%arg0: i32) -> (i32, i32) {
    %c0_i32 = arith.constant 0 : i32
    %c0_i32_0 = arith.constant 0 : i32
    %c0_i32_1 = arith.constant 0 : i32
    return %c0_i32, %c0_i32_0 : i32, i32
  }
  func.func @transform_23(%arg0: i32) -> (i32, i32, i32) {
    %c0_i32 = arith.constant 0 : i32
    %c0_i32_0 = arith.constant 0 : i32
    %c0_i32_1 = arith.constant 0 : i32
    %c0_i32_2 = arith.constant 0 : i32
    return %c0_i32, %c0_i32_0, %c0_i32_1 : i32, i32, i32
  }
  func.func @transform_24(%arg0: i32) -> (i32, i32) {
    %c0_i32 = arith.constant 0 : i32
    %c0_i32_0 = arith.constant 0 : i32
    %c0_i32_1 = arith.constant 0 : i32
    return %c0_i32, %c0_i32_0 : i32, i32
  }
  func.func @transform_25(%arg0: i32) -> (i32, i32, i32) {
    %c0_i32 = arith.constant 0 : i32
    %c0_i32_0 = arith.constant 0 : i32
    %c0_i32_1 = arith.constant 0 : i32
    return %arg0, %c0_i32, %c0_i32_0 : i32, i32, i32
  }
}

</mosaic_0001>

<llo_original>
// kernel: unet_forward.1
$region0: #{unet_forward.1}
  #allocation0 [shape = 'u32[]', space=smem, size = 0x4, offset = 0x4, fixed_abs, tag = 'smem constant byte address 0x4 - core index']
  #allocation1 [shape = 'u32[144,128]{1,0:T(1,128)}', space=vmem, size = 0x12000, scoped, tag = 'internal scratch']
  #allocation2 [shape = 'f32[68,8]{1,0:T(8,128)}', space=vmem, size = 0x9000, scoped, tag = 'scratch operand']
  #allocation3 [shape = 'f32[36,8]{1,0:T(8,128)}', space=vmem, size = 0x5000, scoped, tag = 'scratch operand']
  #allocation4 [shape = 'f32[20,16]{1,0:T(8,128)}', space=vmem, size = 0x3000, scoped, tag = 'scratch operand']
  #allocation5 [shape = 'f32[12,16]{1,0:T(8,128)}', space=vmem, size = 0x2000, scoped, tag = 'scratch operand']
  #allocation6 [shape = 'f32[8,32]{1,0:T(8,128)}', space=vmem, size = 0x1000, scoped, tag = 'scratch operand']
  #allocation7 [shape = 'f32[6,32]{1,0:T(8,128)}', space=vmem, size = 0x1000, scoped, tag = 'scratch operand']
  #allocation8 [shape = 'f32[5,64]{1,0:T(8,128)}', space=vmem, size = 0x1000, scoped, tag = 'scratch operand']
  #allocation9 [shape = 'f32[6,32]{1,0:T(8,128)}', space=vmem, size = 0x1000, scoped, tag = 'scratch operand']
  #allocation10 [shape = 'f32[8,32]{1,0:T(8,128)}', space=vmem, size = 0x1000, scoped, tag = 'scratch operand']
  #allocation11 [shape = 'f32[12,16]{1,0:T(8,128)}', space=vmem, size = 0x2000, scoped, tag = 'scratch operand']
  #allocation12 [shape = 'f32[20,16]{1,0:T(8,128)}', space=vmem, size = 0x3000, scoped, tag = 'scratch operand']
  #allocation13 [shape = 'f32[36,8]{1,0:T(8,128)}', space=vmem, size = 0x5000, scoped, tag = 'scratch operand']
  #allocation14 [shape = 'f32[68,8]{1,0:T(8,128)}', space=vmem, size = 0x9000, scoped, tag = 'scratch operand']
  %s0 = inlined_call_operand.vmem [shape: f32[2,64,8], index: 0, kind: input, shape index: {}]
  %s1 = inlined_call_operand.vmem [shape: bf16[5,8,8], index: 1, kind: input, shape index: {}]
  %s2 = inlined_call_operand.vmem [shape: f32[1,8], index: 2, kind: input, shape index: {}]
  %s3 = inlined_call_operand.vmem [shape: bf16[5,8,16], index: 3, kind: input, shape index: {}]
  %s4 = inlined_call_operand.vmem [shape: f32[1,16], index: 4, kind: input, shape index: {}]
  %s5 = inlined_call_operand.vmem [shape: bf16[5,16,16], index: 5, kind: input, shape index: {}]
  %s6 = inlined_call_operand.vmem [shape: f32[1,16], index: 6, kind: input, shape index: {}]
  %s7 = inlined_call_operand.vmem [shape: bf16[5,16,32], index: 7, kind: input, shape index: {}]
  %s8 = inlined_call_operand.vmem [shape: f32[1,32], index: 8, kind: input, shape index: {}]
  %s9 = inlined_call_operand.vmem [shape: bf16[5,32,32], index: 9, kind: input, shape index: {}]
  %s10 = inlined_call_operand.vmem [shape: f32[1,32], index: 10, kind: input, shape index: {}]
  %s11 = inlined_call_operand.vmem [shape: bf16[5,32,64], index: 11, kind: input, shape index: {}]
  %s12 = inlined_call_operand.vmem [shape: f32[1,64], index: 12, kind: input, shape index: {}]
  %s13 = inlined_call_operand.vmem [shape: bf16[5,64,32], index: 13, kind: input, shape index: {}]
  %s14 = inlined_call_operand.vmem [shape: f32[1,32], index: 14, kind: input, shape index: {}]
  %s15 = inlined_call_operand.vmem [shape: bf16[5,64,32], index: 15, kind: input, shape index: {}]
  %s16 = inlined_call_operand.vmem [shape: f32[1,32], index: 16, kind: input, shape index: {}]
  %s17 = inlined_call_operand.vmem [shape: bf16[5,64,16], index: 17, kind: input, shape index: {}]
  %s18 = inlined_call_operand.vmem [shape: f32[1,16], index: 18, kind: input, shape index: {}]
  %s19 = inlined_call_operand.vmem [shape: bf16[5,32,16], index: 19, kind: input, shape index: {}]
  %s20 = inlined_call_operand.vmem [shape: f32[1,16], index: 20, kind: input, shape index: {}]
  %s21 = inlined_call_operand.vmem [shape: bf16[5,32,8], index: 21, kind: input, shape index: {}]
  %s22 = inlined_call_operand.vmem [shape: f32[1,8], index: 22, kind: input, shape index: {}]
  %s23 = inlined_call_operand.vmem [shape: bf16[5,16,8], index: 23, kind: input, shape index: {}]
  %s24 = inlined_call_operand.vmem [shape: f32[1,8], index: 24, kind: input, shape index: {}]
  %s25 = inlined_call_operand.vmem [shape: f32[2,64,16], index: 25, kind: output, shape index: {}]
  %s26 = sld [smem:[#allocation0]]
  $region133: #{unet_forward.1} parent=0
    _
  %s28 = ssub.s32 1, %s26
  %s29 = scalar_select 0, %s28, %s26
  loop: start=0, step=1, limit=4
  $region2: #{unet_forward.1} parent=0 // loop_pre_header
    _
  $region3: #{unet_forward.1} parent=0 // loop_header
    %s31 = sphi 0, %s35
    %p32 = scmp.ge.s32.totalorder %s31, 4
    %s41 = sphi 0, %s43
    %s44 = sphi 0, %s41
    %s45 = sphi 0, %s44
    %s61 = sphi 0, %s45
    %s65 = sphi 0, %s65
    %s67 = sphi 0, %s65
    %s68 = sphi 0, %s67
    %s82 = sphi 0, %s68
    %s86 = sphi 0, %s86
    %s88 = sphi 0, %s86
    %s89 = sphi 0, %s88
    %s103 = sphi 0, %s89
    %s107 = sphi 0, %s107
    %s109 = sphi 0, %s107
    %s110 = sphi 0, %s109
    %s124 = sphi 0, %s110
    %s128 = sphi 0, %s128
    %s130 = sphi 0, %s128
    %s131 = sphi 0, %s130
    %s145 = sphi 0, %s131
    %s149 = sphi 0, %s149
    %s151 = sphi 0, %s149
    %s152 = sphi 0, %s151
    %s166 = sphi 0, %s152
    %s170 = sphi 0, %s170
    %s172 = sphi 0, %s170
    %s173 = sphi 0, %s172
    %s187 = sphi 0, %s173
    %s191 = sphi 0, %s191
    %s193 = sphi 0, %s191
    %s194 = sphi 0, %s193
    %s208 = sphi 0, %s194
    %s212 = sphi 0, %s212
    %s214 = sphi 0, %s212
    %s215 = sphi 0, %s214
    %s229 = sphi 0, %s215
    %s233 = sphi 0, %s233
    %s235 = sphi 0, %s233
    %s236 = sphi 0, %s235
    %s250 = sphi 0, %s236
    %s254 = sphi 0, %s254
    %s256 = sphi 0, %s254
    %s257 = sphi 0, %s256
    %s271 = sphi 0, %s257
    %s275 = sphi 0, %s275
    %s277 = sphi 0, %s275
    %s278 = sphi 0, %s277
    %s292 = sphi 0, %s278
    %s296 = sphi 0, %s296
    %s298 = sphi 0, %s296
    %s299 = sphi 0, %s298
    %s313 = sphi 0, %s299
    %s317 = sphi 0, %s317
    %s319 = sphi 0, %s317
    %s320 = sphi 0, %s319
    %s334 = sphi 0, %s320
    %s338 = sphi 0, %s338
    %s340 = sphi 0, %s338
    %s341 = sphi 0, %s340
    %s355 = sphi 0, %s341
    %s359 = sphi 0, %s359
    %s361 = sphi 0, %s359
    %s362 = sphi 0, %s361
    %s376 = sphi 0, %s362
    %s380 = sphi 0, %s380
    %s382 = sphi 0, %s380
    %s383 = sphi 0, %s382
    %s397 = sphi 0, %s383
    %s401 = sphi 0, %s401
    %s403 = sphi 0, %s401
    %s404 = sphi 0, %s403
    %s418 = sphi 0, %s404
    %s422 = sphi 0, %s422
    %s424 = sphi 0, %s422
    %s425 = sphi 0, %s424
    %s439 = sphi 0, %s425
    %s443 = sphi 0, %s443
    %s445 = sphi 0, %s443
    %s446 = sphi 0, %s445
    %s460 = sphi 0, %s446
    %s464 = sphi 0, %s464
    %s466 = sphi 0, %s464
    %s467 = sphi 0, %s466
    %s481 = sphi 0, %s467
    %s485 = sphi 0, %s485
    %s487 = sphi 0, %s485
    %s488 = sphi 0, %s487
    %s502 = sphi 0, %s488
    %s506 = sphi 0, %s506
    %s508 = sphi 0, %s506
    %s509 = sphi 0, %s508
    %s523 = sphi 0, %s509
    %s527 = sphi 0, %s527
    %s529 = sphi 0, %s527
    %s530 = sphi 0, %s529
    %s544 = sphi 0, %s530
    %s548 = sphi 0, %s548
    %s550 = sphi 0, %s548
    %s551 = sphi 0, %s550
    %s565 = sphi 0, %s551
    %s571 = sphi 0, %s573
    %s574 = sphi 0, %s571
    %s575 = sphi 0, %s574
    %s591 = sphi 0, %s575
  $region4: #{unet_forward.1} parent=0 // loop_header_branch
    %34 = sbr.rel (%p32) target = $region8
  $region5: #{unet_forward.1} parent=0 // loop_body
    %s36 = ssub.s32 %s31, 1
    %s37 = ssub.s32 %s31, 2
    %s38 = sadd.s32 %s31, 1
    %s39 = ssub.s32 %s31, %s38
    %p40 = scmp.eq.s32.totalorder %s39, 0
    %s42 = sadd.s32 %s41, 1
    %s43 = scalar_select %p40, %s41, %s42
    %p46 = pneg %p40
    %p47 = scmp.eq.s32.totalorder %s31, 1
    %p48 = por %p46, %p47
    %p49 = scmp.ne.s32.totalorder %s41, %s44
    %p50 = scmp.eq.s32.totalorder %s31, 0
    %p51 = por %p49, %p50
    %p52 = scmp.ne.s32.totalorder %s41, %s44
    %p53 = scmp.eq.s32.totalorder %s36, 1
    %p54 = por %p52, %p53
    %p55 = scmp.ne.s32.totalorder %s44, %s45
    %p56 = scmp.eq.s32.totalorder %s36, 0
    %p57 = por %p55, %p56
    %p58 = scmp.ne.s32.totalorder %s44, %s45
    %p59 = scmp.eq.s32.totalorder %s37, 1
    %p60 = por %p58, %p59
    %p62 = scmp.ne.s32.totalorder %s45, %s61
    %p63 = scmp.eq.s32.totalorder %s37, 0
    %p64 = por %p62, %p63
    %s66 = sadd.s32 %s65, 1
    %p69 = scmp.eq.s32.totalorder %s31, 1
    %p70 = scmp.ne.s32.totalorder %s65, %s67
    %p71 = scmp.eq.s32.totalorder %s31, 0
    %p72 = por %p70, %p71
    %p73 = scmp.ne.s32.totalorder %s65, %s67
    %p74 = scmp.eq.s32.totalorder %s36, 1
    %p75 = por %p73, %p74
    %p76 = scmp.ne.s32.totalorder %s67, %s68
    %p77 = scmp.eq.s32.totalorder %s36, 0
    %p78 = por %p76, %p77
    %p79 = scmp.ne.s32.totalorder %s67, %s68
    %p80 = scmp.eq.s32.totalorder %s37, 1
    %p81 = por %p79, %p80
    %p83 = scmp.ne.s32.totalorder %s68, %s82
    %p84 = scmp.eq.s32.totalorder %s37, 0
    %p85 = por %p83, %p84
    %s87 = sadd.s32 %s86, 1
    %p90 = scmp.eq.s32.totalorder %s31, 1
    %p91 = scmp.ne.s32.totalorder %s86, %s88
    %p92 = scmp.eq.s32.totalorder %s31, 0
    %p93 = por %p91, %p92
    %p94 = scmp.ne.s32.totalorder %s86, %s88
    %p95 = scmp.eq.s32.totalorder %s36, 1
    %p96 = por %p94, %p95
    %p97 = scmp.ne.s32.totalorder %s88, %s89
    %p98 = scmp.eq.s32.totalorder %s36, 0
    %p99 = por %p97, %p98
    %p100 = scmp.ne.s32.totalorder %s88, %s89
    %p101 = scmp.eq.s32.totalorder %s37, 1
    %p102 = por %p100, %p101
    %p104 = scmp.ne.s32.totalorder %s89, %s103
    %p105 = scmp.eq.s32.totalorder %s37, 0
    %p106 = por %p104, %p105
    %s108 = sadd.s32 %s107, 1
    %p111 = scmp.eq.s32.totalorder %s31, 1
    %p112 = scmp.ne.s32.totalorder %s107, %s109
    %p113 = scmp.eq.s32.totalorder %s31, 0
    %p114 = por %p112, %p113
    %p115 = scmp.ne.s32.totalorder %s107, %s109
    %p116 = scmp.eq.s32.totalorder %s36, 1
    %p117 = por %p115, %p116
    %p118 = scmp.ne.s32.totalorder %s109, %s110
    %p119 = scmp.eq.s32.totalorder %s36, 0
    %p120 = por %p118, %p119
    %p121 = scmp.ne.s32.totalorder %s109, %s110
    %p122 = scmp.eq.s32.totalorder %s37, 1
    %p123 = por %p121, %p122
    %p125 = scmp.ne.s32.totalorder %s110, %s124
    %p126 = scmp.eq.s32.totalorder %s37, 0
    %p127 = por %p125, %p126
    %s129 = sadd.s32 %s128, 1
    %p132 = scmp.eq.s32.totalorder %s31, 1
    %p133 = scmp.ne.s32.totalorder %s128, %s130
    %p134 = scmp.eq.s32.totalorder %s31, 0
    %p135 = por %p133, %p134
    %p136 = scmp.ne.s32.totalorder %s128, %s130
    %p137 = scmp.eq.s32.totalorder %s36, 1
    %p138 = por %p136, %p137
    %p139 = scmp.ne.s32.totalorder %s130, %s131
    %p140 = scmp.eq.s32.totalorder %s36, 0
    %p141 = por %p139, %p140
    %p142 = scmp.ne.s32.totalorder %s130, %s131
    %p143 = scmp.eq.s32.totalorder %s37, 1
    %p144 = por %p142, %p143
    %p146 = scmp.ne.s32.totalorder %s131, %s145
    %p147 = scmp.eq.s32.totalorder %s37, 0
    %p148 = por %p146, %p147
    %s150 = sadd.s32 %s149, 1
    %p153 = scmp.eq.s32.totalorder %s31, 1
    %p154 = scmp.ne.s32.totalorder %s149, %s151
    %p155 = scmp.eq.s32.totalorder %s31, 0
    %p156 = por %p154, %p155
    %p157 = scmp.ne.s32.totalorder %s149, %s151
    %p158 = scmp.eq.s32.totalorder %s36, 1
    %p159 = por %p157, %p158
    %p160 = scmp.ne.s32.totalorder %s151, %s152
    %p161 = scmp.eq.s32.totalorder %s36, 0
    %p162 = por %p160, %p161
    %p163 = scmp.ne.s32.totalorder %s151, %s152
    %p164 = scmp.eq.s32.totalorder %s37, 1
    %p165 = por %p163, %p164
    %p167 = scmp.ne.s32.totalorder %s152, %s166
    %p168 = scmp.eq.s32.totalorder %s37, 0
    %p169 = por %p167, %p168
    %s171 = sadd.s32 %s170, 1
    %p174 = scmp.eq.s32.totalorder %s31, 1
    %p175 = scmp.ne.s32.totalorder %s170, %s172
    %p176 = scmp.eq.s32.totalorder %s31, 0
    %p177 = por %p175, %p176
    %p178 = scmp.ne.s32.totalorder %s170, %s172
    %p179 = scmp.eq.s32.totalorder %s36, 1
    %p180 = por %p178, %p179
    %p181 = scmp.ne.s32.totalorder %s172, %s173
    %p182 = scmp.eq.s32.totalorder %s36, 0
    %p183 = por %p181, %p182
    %p184 = scmp.ne.s32.totalorder %s172, %s173
    %p185 = scmp.eq.s32.totalorder %s37, 1
    %p186 = por %p184, %p185
    %p188 = scmp.ne.s32.totalorder %s173, %s187
    %p189 = scmp.eq.s32.totalorder %s37, 0
    %p190 = por %p188, %p189
    %s192 = sadd.s32 %s191, 1
    %p195 = scmp.eq.s32.totalorder %s31, 1
    %p196 = scmp.ne.s32.totalorder %s191, %s193
    %p197 = scmp.eq.s32.totalorder %s31, 0
    %p198 = por %p196, %p197
    %p199 = scmp.ne.s32.totalorder %s191, %s193
    %p200 = scmp.eq.s32.totalorder %s36, 1
    %p201 = por %p199, %p200
    %p202 = scmp.ne.s32.totalorder %s193, %s194
    %p203 = scmp.eq.s32.totalorder %s36, 0
    %p204 = por %p202, %p203
    %p205 = scmp.ne.s32.totalorder %s193, %s194
    %p206 = scmp.eq.s32.totalorder %s37, 1
    %p207 = por %p205, %p206
    %p209 = scmp.ne.s32.totalorder %s194, %s208
    %p210 = scmp.eq.s32.totalorder %s37, 0
    %p211 = por %p209, %p210
    %s213 = sadd.s32 %s212, 1
    %p216 = scmp.eq.s32.totalorder %s31, 1
    %p217 = scmp.ne.s32.totalorder %s212, %s214
    %p218 = scmp.eq.s32.totalorder %s31, 0
    %p219 = por %p217, %p218
    %p220 = scmp.ne.s32.totalorder %s212, %s214
    %p221 = scmp.eq.s32.totalorder %s36, 1
    %p222 = por %p220, %p221
    %p223 = scmp.ne.s32.totalorder %s214, %s215
    %p224 = scmp.eq.s32.totalorder %s36, 0
    %p225 = por %p223, %p224
    %p226 = scmp.ne.s32.totalorder %s214, %s215
    %p227 = scmp.eq.s32.totalorder %s37, 1
    %p228 = por %p226, %p227
    %p230 = scmp.ne.s32.totalorder %s215, %s229
    %p231 = scmp.eq.s32.totalorder %s37, 0
    %p232 = por %p230, %p231
    %s234 = sadd.s32 %s233, 1
    %p237 = scmp.eq.s32.totalorder %s31, 1
    %p238 = scmp.ne.s32.totalorder %s233, %s235
    %p239 = scmp.eq.s32.totalorder %s31, 0
    %p240 = por %p238, %p239
    %p241 = scmp.ne.s32.totalorder %s233, %s235
    %p242 = scmp.eq.s32.totalorder %s36, 1
    %p243 = por %p241, %p242
    %p244 = scmp.ne.s32.totalorder %s235, %s236
    %p245 = scmp.eq.s32.totalorder %s36, 0
    %p246 = por %p244, %p245
    %p247 = scmp.ne.s32.totalorder %s235, %s236
    %p248 = scmp.eq.s32.totalorder %s37, 1
    %p249 = por %p247, %p248
    %p251 = scmp.ne.s32.totalorder %s236, %s250
    %p252 = scmp.eq.s32.totalorder %s37, 0
    %p253 = por %p251, %p252
    %s255 = sadd.s32 %s254, 1
    %p258 = scmp.eq.s32.totalorder %s31, 1
    %p259 = scmp.ne.s32.totalorder %s254, %s256
    %p260 = scmp.eq.s32.totalorder %s31, 0
    %p261 = por %p259, %p260
    %p262 = scmp.ne.s32.totalorder %s254, %s256
    %p263 = scmp.eq.s32.totalorder %s36, 1
    %p264 = por %p262, %p263
    %p265 = scmp.ne.s32.totalorder %s256, %s257
    %p266 = scmp.eq.s32.totalorder %s36, 0
    %p267 = por %p265, %p266
    %p268 = scmp.ne.s32.totalorder %s256, %s257
    %p269 = scmp.eq.s32.totalorder %s37, 1
    %p270 = por %p268, %p269
    %p272 = scmp.ne.s32.totalorder %s257, %s271
    %p273 = scmp.eq.s32.totalorder %s37, 0
    %p274 = por %p272, %p273
    %s276 = sadd.s32 %s275, 1
    %p279 = scmp.eq.s32.totalorder %s31, 1
    %p280 = scmp.ne.s32.totalorder %s275, %s277
    %p281 = scmp.eq.s32.totalorder %s31, 0
    %p282 = por %p280, %p281
    %p283 = scmp.ne.s32.totalorder %s275, %s277
    %p284 = scmp.eq.s32.totalorder %s36, 1
    %p285 = por %p283, %p284
    %p286 = scmp.ne.s32.totalorder %s277, %s278
    %p287 = scmp.eq.s32.totalorder %s36, 0
    %p288 = por %p286, %p287
    %p289 = scmp.ne.s32.totalorder %s277, %s278
    %p290 = scmp.eq.s32.totalorder %s37, 1
    %p291 = por %p289, %p290
    %p293 = scmp.ne.s32.totalorder %s278, %s292
    %p294 = scmp.eq.s32.totalorder %s37, 0
    %p295 = por %p293, %p294
    %s297 = sadd.s32 %s296, 1
    %p300 = scmp.eq.s32.totalorder %s31, 1
    %p301 = scmp.ne.s32.totalorder %s296, %s298
    %p302 = scmp.eq.s32.totalorder %s31, 0
    %p303 = por %p301, %p302
    %p304 = scmp.ne.s32.totalorder %s296, %s298
    %p305 = scmp.eq.s32.totalorder %s36, 1
    %p306 = por %p304, %p305
    %p307 = scmp.ne.s32.totalorder %s298, %s299
    %p308 = scmp.eq.s32.totalorder %s36, 0
    %p309 = por %p307, %p308
    %p310 = scmp.ne.s32.totalorder %s298, %s299
    %p311 = scmp.eq.s32.totalorder %s37, 1
    %p312 = por %p310, %p311
    %p314 = scmp.ne.s32.totalorder %s299, %s313
    %p315 = scmp.eq.s32.totalorder %s37, 0
    %p316 = por %p314, %p315
    %s318 = sadd.s32 %s317, 1
    %p321 = scmp.eq.s32.totalorder %s31, 1
    %p322 = scmp.ne.s32.totalorder %s317, %s319
    %p323 = scmp.eq.s32.totalorder %s31, 0
    %p324 = por %p322, %p323
    %p325 = scmp.ne.s32.totalorder %s317, %s319
    %p326 = scmp.eq.s32.totalorder %s36, 1
    %p327 = por %p325, %p326
    %p328 = scmp.ne.s32.totalorder %s319, %s320
    %p329 = scmp.eq.s32.totalorder %s36, 0
    %p330 = por %p328, %p329
    %p331 = scmp.ne.s32.totalorder %s319, %s320
    %p332 = scmp.eq.s32.totalorder %s37, 1
    %p333 = por %p331, %p332
    %p335 = scmp.ne.s32.totalorder %s320, %s334
    %p336 = scmp.eq.s32.totalorder %s37, 0
    %p337 = por %p335, %p336
    %s339 = sadd.s32 %s338, 1
    %p342 = scmp.eq.s32.totalorder %s31, 1
    %p343 = scmp.ne.s32.totalorder %s338, %s340
    %p344 = scmp.eq.s32.totalorder %s31, 0
    %p345 = por %p343, %p344
    %p346 = scmp.ne.s32.totalorder %s338, %s340
    %p347 = scmp.eq.s32.totalorder %s36, 1
    %p348 = por %p346, %p347
    %p349 = scmp.ne.s32.totalorder %s340, %s341
    %p350 = scmp.eq.s32.totalorder %s36, 0
    %p351 = por %p349, %p350
    %p352 = scmp.ne.s32.totalorder %s340, %s341
    %p353 = scmp.eq.s32.totalorder %s37, 1
    %p354 = por %p352, %p353
    %p356 = scmp.ne.s32.totalorder %s341, %s355
    %p357 = scmp.eq.s32.totalorder %s37, 0
    %p358 = por %p356, %p357
    %s360 = sadd.s32 %s359, 1
    %p363 = scmp.eq.s32.totalorder %s31, 1
    %p364 = scmp.ne.s32.totalorder %s359, %s361
    %p365 = scmp.eq.s32.totalorder %s31, 0
    %p366 = por %p364, %p365
    %p367 = scmp.ne.s32.totalorder %s359, %s361
    %p368 = scmp.eq.s32.totalorder %s36, 1
    %p369 = por %p367, %p368
    %p370 = scmp.ne.s32.totalorder %s361, %s362
    %p371 = scmp.eq.s32.totalorder %s36, 0
    %p372 = por %p370, %p371
    %p373 = scmp.ne.s32.totalorder %s361, %s362
    %p374 = scmp.eq.s32.totalorder %s37, 1
    %p375 = por %p373, %p374
    %p377 = scmp.ne.s32.totalorder %s362, %s376
    %p378 = scmp.eq.s32.totalorder %s37, 0
    %p379 = por %p377, %p378
    %s381 = sadd.s32 %s380, 1
    %p384 = scmp.eq.s32.totalorder %s31, 1
    %p385 = scmp.ne.s32.totalorder %s380, %s382
    %p386 = scmp.eq.s32.totalorder %s31, 0
    %p387 = por %p385, %p386
    %p388 = scmp.ne.s32.totalorder %s380, %s382
    %p389 = scmp.eq.s32.totalorder %s36, 1
    %p390 = por %p388, %p389
    %p391 = scmp.ne.s32.totalorder %s382, %s383
    %p392 = scmp.eq.s32.totalorder %s36, 0
    %p393 = por %p391, %p392
    %p394 = scmp.ne.s32.totalorder %s382, %s383
    %p395 = scmp.eq.s32.totalorder %s37, 1
    %p396 = por %p394, %p395
    %p398 = scmp.ne.s32.totalorder %s383, %s397
    %p399 = scmp.eq.s32.totalorder %s37, 0
    %p400 = por %p398, %p399
    %s402 = sadd.s32 %s401, 1
    %p405 = scmp.eq.s32.totalorder %s31, 1
    %p406 = scmp.ne.s32.totalorder %s401, %s403
    %p407 = scmp.eq.s32.totalorder %s31, 0
    %p408 = por %p406, %p407
    %p409 = scmp.ne.s32.totalorder %s401, %s403
    %p410 = scmp.eq.s32.totalorder %s36, 1
    %p411 = por %p409, %p410
    %p412 = scmp.ne.s32.totalorder %s403, %s404
    %p413 = scmp.eq.s32.totalorder %s36, 0
    %p414 = por %p412, %p413
    %p415 = scmp.ne.s32.totalorder %s403, %s404
    %p416 = scmp.eq.s32.totalorder %s37, 1
    %p417 = por %p415, %p416
    %p419 = scmp.ne.s32.totalorder %s404, %s418
    %p420 = scmp.eq.s32.totalorder %s37, 0
    %p421 = por %p419, %p420
    %s423 = sadd.s32 %s422, 1
    %p426 = scmp.eq.s32.totalorder %s31, 1
    %p427 = scmp.ne.s32.totalorder %s422, %s424
    %p428 = scmp.eq.s32.totalorder %s31, 0
    %p429 = por %p427, %p428
    %p430 = scmp.ne.s32.totalorder %s422, %s424
    %p431 = scmp.eq.s32.totalorder %s36, 1
    %p432 = por %p430, %p431
    %p433 = scmp.ne.s32.totalorder %s424, %s425
    %p434 = scmp.eq.s32.totalorder %s36, 0
    %p435 = por %p433, %p434
    %p436 = scmp.ne.s32.totalorder %s424, %s425
    %p437 = scmp.eq.s32.totalorder %s37, 1
    %p438 = por %p436, %p437
    %p440 = scmp.ne.s32.totalorder %s425, %s439
    %p441 = scmp.eq.s32.totalorder %s37, 0
    %p442 = por %p440, %p441
    %s444 = sadd.s32 %s443, 1
    %p447 = scmp.eq.s32.totalorder %s31, 1
    %p448 = scmp.ne.s32.totalorder %s443, %s445
    %p449 = scmp.eq.s32.totalorder %s31, 0
    %p450 = por %p448, %p449
    %p451 = scmp.ne.s32.totalorder %s443, %s445
    %p452 = scmp.eq.s32.totalorder %s36, 1
    %p453 = por %p451, %p452
    %p454 = scmp.ne.s32.totalorder %s445, %s446
    %p455 = scmp.eq.s32.totalorder %s36, 0
    %p456 = por %p454, %p455
    %p457 = scmp.ne.s32.totalorder %s445, %s446
    %p458 = scmp.eq.s32.totalorder %s37, 1
    %p459 = por %p457, %p458
    %p461 = scmp.ne.s32.totalorder %s446, %s460
    %p462 = scmp.eq.s32.totalorder %s37, 0
    %p463 = por %p461, %p462
    %s465 = sadd.s32 %s464, 1
    %p468 = scmp.eq.s32.totalorder %s31, 1
    %p469 = scmp.ne.s32.totalorder %s464, %s466
    %p470 = scmp.eq.s32.totalorder %s31, 0
    %p471 = por %p469, %p470
    %p472 = scmp.ne.s32.totalorder %s464, %s466
    %p473 = scmp.eq.s32.totalorder %s36, 1
    %p474 = por %p472, %p473
    %p475 = scmp.ne.s32.totalorder %s466, %s467
    %p476 = scmp.eq.s32.totalorder %s36, 0
    %p477 = por %p475, %p476
    %p478 = scmp.ne.s32.totalorder %s466, %s467
    %p479 = scmp.eq.s32.totalorder %s37, 1
    %p480 = por %p478, %p479
    %p482 = scmp.ne.s32.totalorder %s467, %s481
    %p483 = scmp.eq.s32.totalorder %s37, 0
    %p484 = por %p482, %p483
    %s486 = sadd.s32 %s485, 1
    %p489 = scmp.eq.s32.totalorder %s31, 1
    %p490 = scmp.ne.s32.totalorder %s485, %s487
    %p491 = scmp.eq.s32.totalorder %s31, 0
    %p492 = por %p490, %p491
    %p493 = scmp.ne.s32.totalorder %s485, %s487
    %p494 = scmp.eq.s32.totalorder %s36, 1
    %p495 = por %p493, %p494
    %p496 = scmp.ne.s32.totalorder %s487, %s488
    %p497 = scmp.eq.s32.totalorder %s36, 0
    %p498 = por %p496, %p497
    %p499 = scmp.ne.s32.totalorder %s487, %s488
    %p500 = scmp.eq.s32.totalorder %s37, 1
    %p501 = por %p499, %p500
    %p503 = scmp.ne.s32.totalorder %s488, %s502
    %p504 = scmp.eq.s32.totalorder %s37, 0
    %p505 = por %p503, %p504
    %s507 = sadd.s32 %s506, 1
    %p510 = scmp.eq.s32.totalorder %s31, 1
    %p511 = scmp.ne.s32.totalorder %s506, %s508
    %p512 = scmp.eq.s32.totalorder %s31, 0
    %p513 = por %p511, %p512
    %p514 = scmp.ne.s32.totalorder %s506, %s508
    %p515 = scmp.eq.s32.totalorder %s36, 1
    %p516 = por %p514, %p515
    %p517 = scmp.ne.s32.totalorder %s508, %s509
    %p518 = scmp.eq.s32.totalorder %s36, 0
    %p519 = por %p517, %p518
    %p520 = scmp.ne.s32.totalorder %s508, %s509
    %p521 = scmp.eq.s32.totalorder %s37, 1
    %p522 = por %p520, %p521
    %p524 = scmp.ne.s32.totalorder %s509, %s523
    %p525 = scmp.eq.s32.totalorder %s37, 0
    %p526 = por %p524, %p525
    %s528 = sadd.s32 %s527, 1
    %p531 = scmp.eq.s32.totalorder %s31, 1
    %p532 = scmp.ne.s32.totalorder %s527, %s529
    %p533 = scmp.eq.s32.totalorder %s31, 0
    %p534 = por %p532, %p533
    %p535 = scmp.ne.s32.totalorder %s527, %s529
    %p536 = scmp.eq.s32.totalorder %s36, 1
    %p537 = por %p535, %p536
    %p538 = scmp.ne.s32.totalorder %s529, %s530
    %p539 = scmp.eq.s32.totalorder %s36, 0
    %p540 = por %p538, %p539
    %p541 = scmp.ne.s32.totalorder %s529, %s530
    %p542 = scmp.eq.s32.totalorder %s37, 1
    %p543 = por %p541, %p542
    %p545 = scmp.ne.s32.totalorder %s530, %s544
    %p546 = scmp.eq.s32.totalorder %s37, 0
    %p547 = por %p545, %p546
    %s549 = sadd.s32 %s548, 1
    %p552 = scmp.eq.s32.totalorder %s31, 1
    %p553 = scmp.ne.s32.totalorder %s548, %s550
    %p554 = scmp.eq.s32.totalorder %s31, 0
    %p555 = por %p553, %p554
    %p556 = scmp.ne.s32.totalorder %s548, %s550
    %p557 = scmp.eq.s32.totalorder %s36, 1
    %p558 = por %p556, %p557
    %p559 = scmp.ne.s32.totalorder %s550, %s551
    %p560 = scmp.eq.s32.totalorder %s36, 0
    %p561 = por %p559, %p560
    %p562 = scmp.ne.s32.totalorder %s550, %s551
    %p563 = scmp.eq.s32.totalorder %s37, 1
    %p564 = por %p562, %p563
    %p566 = scmp.ne.s32.totalorder %s551, %s565
    %p567 = scmp.eq.s32.totalorder %s37, 0
    %p568 = por %p566, %p567
    %s569 = ssub.s32 %s31, %s38
    %p570 = scmp.eq.s32.totalorder %s569, 0
    %s572 = sadd.s32 %s571, 1
    %s573 = scalar_select %p570, %s571, %s572
    %p576 = pneg %p570
    %p577 = scmp.eq.s32.totalorder %s31, 1
    %p578 = por %p576, %p577
    %p579 = scmp.ne.s32.totalorder %s571, %s574
    %p580 = scmp.eq.s32.totalorder %s31, 0
    %p581 = por %p579, %p580
    %p582 = scmp.ne.s32.totalorder %s571, %s574
    %p583 = scmp.eq.s32.totalorder %s36, 1
    %p584 = por %p582, %p583
    %p585 = scmp.ne.s32.totalorder %s574, %s575
    %p586 = scmp.eq.s32.totalorder %s36, 0
    %p587 = por %p585, %p586
    %p588 = scmp.ne.s32.totalorder %s574, %s575
    %p589 = scmp.eq.s32.totalorder %s37, 1
    %p590 = por %p588, %p589
    %p592 = scmp.ne.s32.totalorder %s575, %s591
    %p593 = scmp.eq.s32.totalorder %s37, 0
    %p594 = por %p592, %p593
    %p595 = scmp.le.s32.totalorder 1, %s31
    %p596 = scmp.lt.s32.totalorder %s31, 3
    %p597 = pnand %p595, %p596
    %p598 = pneg %p597
    // Predicated region
    $region9: #{unet_forward.1} parent=5 // pred_check
      _
    $region10: #{unet_forward.1} parent=5 // pred_check_branch
      %600 = sbr.rel (%p597) target = $region12
    $region11: #{unet_forward.1} parent=5 // pred_region
      %s601 = ssub.s32 %s31, 1
      // Predicated region
      $region13: #{unet_forward.1} parent=11 // pred_check
        %p602 = pneg %p78
      $region14: #{unet_forward.1} parent=11 // pred_check_branch
        %604 = sbr.rel (%p602) target = $region16
      $region15: #{unet_forward.1} parent=11 // pred_region
        _
      $region16: #{unet_forward.1} parent=11 // pred_fallthru
        _
      // Predicated region
      $region17: #{unet_forward.1} parent=11 // pred_check
        %p605 = pneg %p99
      $region18: #{unet_forward.1} parent=11 // pred_check_branch
        %607 = sbr.rel (%p605) target = $region20
      $region19: #{unet_forward.1} parent=11 // pred_region
        _
      $region20: #{unet_forward.1} parent=11 // pred_fallthru
        _
      // Predicated region
      $region21: #{unet_forward.1} parent=11 // pred_check
        %p608 = pneg %p120
      $region22: #{unet_forward.1} parent=11 // pred_check_branch
        %610 = sbr.rel (%p608) target = $region24
      $region23: #{unet_forward.1} parent=11 // pred_region
        _
      $region24: #{unet_forward.1} parent=11 // pred_fallthru
        _
      // Predicated region
      $region25: #{unet_forward.1} parent=11 // pred_check
        %p611 = pneg %p141
      $region26: #{unet_forward.1} parent=11 // pred_check_branch
        %613 = sbr.rel (%p611) target = $region28
      $region27: #{unet_forward.1} parent=11 // pred_region
        _
      $region28: #{unet_forward.1} parent=11 // pred_fallthru
        _
      // Predicated region
      $region29: #{unet_forward.1} parent=11 // pred_check
        %p614 = pneg %p162
      $region30: #{unet_forward.1} parent=11 // pred_check_branch
        %616 = sbr.rel (%p614) target = $region32
      $region31: #{unet_forward.1} parent=11 // pred_region
        _
      $region32: #{unet_forward.1} parent=11 // pred_fallthru
        _
      // Predicated region
      $region33: #{unet_forward.1} parent=11 // pred_check
        %p617 = pneg %p183
      $region34: #{unet_forward.1} parent=11 // pred_check_branch
        %619 = sbr.rel (%p617) target = $region36
      $region35: #{unet_forward.1} parent=11 // pred_region
        _
      $region36: #{unet_forward.1} parent=11 // pred_fallthru
        _
      // Predicated region
      $region37: #{unet_forward.1} parent=11 // pred_check
        %p620 = pneg %p204
      $region38: #{unet_forward.1} parent=11 // pred_check_branch
        %622 = sbr.rel (%p620) target = $region40
      $region39: #{unet_forward.1} parent=11 // pred_region
        _
      $region40: #{unet_forward.1} parent=11 // pred_fallthru
        _
      // Predicated region
      $region41: #{unet_forward.1} parent=11 // pred_check
        %p623 = pneg %p225
      $region42: #{unet_forward.1} parent=11 // pred_check_branch
        %625 = sbr.rel (%p623) target = $region44
      $region43: #{unet_forward.1} parent=11 // pred_region
        _
      $region44: #{unet_forward.1} parent=11 // pred_fallthru
        _
      // Predicated region
      $region45: #{unet_forward.1} parent=11 // pred_check
        %p626 = pneg %p246
      $region46: #{unet_forward.1} parent=11 // pred_check_branch
        %628 = sbr.rel (%p626) target = $region48
      $region47: #{unet_forward.1} parent=11 // pred_region
        _
      $region48: #{unet_forward.1} parent=11 // pred_fallthru
        _
      // Predicated region
      $region49: #{unet_forward.1} parent=11 // pred_check
        %p629 = pneg %p267
      $region50: #{unet_forward.1} parent=11 // pred_check_branch
        %631 = sbr.rel (%p629) target = $region52
      $region51: #{unet_forward.1} parent=11 // pred_region
        _
      $region52: #{unet_forward.1} parent=11 // pred_fallthru
        _
      // Predicated region
      $region53: #{unet_forward.1} parent=11 // pred_check
        %p632 = pneg %p288
      $region54: #{unet_forward.1} parent=11 // pred_check_branch
        %634 = sbr.rel (%p632) target = $region56
      $region55: #{unet_forward.1} parent=11 // pred_region
        _
      $region56: #{unet_forward.1} parent=11 // pred_fallthru
        _
      // Predicated region
      $region57: #{unet_forward.1} parent=11 // pred_check
        %p635 = pneg %p309
      $region58: #{unet_forward.1} parent=11 // pred_check_branch
        %637 = sbr.rel (%p635) target = $region60
      $region59: #{unet_forward.1} parent=11 // pred_region
        _
      $region60: #{unet_forward.1} parent=11 // pred_fallthru
        _
      // Predicated region
      $region61: #{unet_forward.1} parent=11 // pred_check
        %p638 = pneg %p330
      $region62: #{unet_forward.1} parent=11 // pred_check_branch
        %640 = sbr.rel (%p638) target = $region64
      $region63: #{unet_forward.1} parent=11 // pred_region
        _
      $region64: #{unet_forward.1} parent=11 // pred_fallthru
        _
      // Predicated region
      $region65: #{unet_forward.1} parent=11 // pred_check
        %p641 = pneg %p351
      $region66: #{unet_forward.1} parent=11 // pred_check_branch
        %643 = sbr.rel (%p641) target = $region68
      $region67: #{unet_forward.1} parent=11 // pred_region
        _
      $region68: #{unet_forward.1} parent=11 // pred_fallthru
        _
      // Predicated region
      $region69: #{unet_forward.1} parent=11 // pred_check
        %p644 = pneg %p372
      $region70: #{unet_forward.1} parent=11 // pred_check_branch
        %646 = sbr.rel (%p644) target = $region72
      $region71: #{unet_forward.1} parent=11 // pred_region
        _
      $region72: #{unet_forward.1} parent=11 // pred_fallthru
        _
      // Predicated region
      $region73: #{unet_forward.1} parent=11 // pred_check
        %p647 = pneg %p393
      $region74: #{unet_forward.1} parent=11 // pred_check_branch
        %649 = sbr.rel (%p647) target = $region76
      $region75: #{unet_forward.1} parent=11 // pred_region
        _
      $region76: #{unet_forward.1} parent=11 // pred_fallthru
        _
      // Predicated region
      $region77: #{unet_forward.1} parent=11 // pred_check
        %p650 = pneg %p414
      $region78: #{unet_forward.1} parent=11 // pred_check_branch
        %652 = sbr.rel (%p650) target = $region80
      $region79: #{unet_forward.1} parent=11 // pred_region
        _
      $region80: #{unet_forward.1} parent=11 // pred_fallthru
        _
      // Predicated region
      $region81: #{unet_forward.1} parent=11 // pred_check
        %p653 = pneg %p435
      $region82: #{unet_forward.1} parent=11 // pred_check_branch
        %655 = sbr.rel (%p653) target = $region84
      $region83: #{unet_forward.1} parent=11 // pred_region
        _
      $region84: #{unet_forward.1} parent=11 // pred_fallthru
        _
      // Predicated region
      $region85: #{unet_forward.1} parent=11 // pred_check
        %p656 = pneg %p456
      $region86: #{unet_forward.1} parent=11 // pred_check_branch
        %658 = sbr.rel (%p656) target = $region88
      $region87: #{unet_forward.1} parent=11 // pred_region
        _
      $region88: #{unet_forward.1} parent=11 // pred_fallthru
        _
      // Predicated region
      $region89: #{unet_forward.1} parent=11 // pred_check
        %p659 = pneg %p477
      $region90: #{unet_forward.1} parent=11 // pred_check_branch
        %661 = sbr.rel (%p659) target = $region92
      $region91: #{unet_forward.1} parent=11 // pred_region
        _
      $region92: #{unet_forward.1} parent=11 // pred_fallthru
        _
      // Predicated region
      $region93: #{unet_forward.1} parent=11 // pred_check
        %p662 = pneg %p498
      $region94: #{unet_forward.1} parent=11 // pred_check_branch
        %664 = sbr.rel (%p662) target = $region96
      $region95: #{unet_forward.1} parent=11 // pred_region
        _
      $region96: #{unet_forward.1} parent=11 // pred_fallthru
        _
      // Predicated region
      $region97: #{unet_forward.1} parent=11 // pred_check
        %p665 = pneg %p519
      $region98: #{unet_forward.1} parent=11 // pred_check_branch
        %667 = sbr.rel (%p665) target = $region100
      $region99: #{unet_forward.1} parent=11 // pred_region
        _
      $region100: #{unet_forward.1} parent=11 // pred_fallthru
        _
      // Predicated region
      $region101: #{unet_forward.1} parent=11 // pred_check
        %p668 = pneg %p540
      $region102: #{unet_forward.1} parent=11 // pred_check_branch
        %670 = sbr.rel (%p668) target = $region104
      $region103: #{unet_forward.1} parent=11 // pred_region
        _
      $region104: #{unet_forward.1} parent=11 // pred_fallthru
        _
      // Predicated region
      $region105: #{unet_forward.1} parent=11 // pred_check
        %p671 = pneg %p561
      $region106: #{unet_forward.1} parent=11 // pred_check_branch
        %673 = sbr.rel (%p671) target = $region108
      $region107: #{unet_forward.1} parent=11 // pred_region
        _
      $region108: #{unet_forward.1} parent=11 // pred_fallthru
        _
    $region12: #{unet_forward.1} parent=5 // pred_fallthru
      _
    %p674 = scmp.lt.s32.totalorder %s31, 2
    // Predicated region
    $region109: #{unet_forward.1} parent=5 // pred_check
      %p675 = pneg %p674
    $region110: #{unet_forward.1} parent=5 // pred_check_branch
      %677 = sbr.rel (%p675) target = $region112
    $region111: #{unet_forward.1} parent=5 // pred_region
      // Predicated region
      $region113: #{unet_forward.1} parent=111 // pred_check
        %p678 = pneg %p51
      $region114: #{unet_forward.1} parent=111 // pred_check_branch
        %680 = sbr.rel (%p678) target = $region116
      $region115: #{unet_forward.1} parent=111 // pred_region
        %p681 = scmp.lt.s32.totalorder %s31, 1
        %s682 = scalar_select %p681, %s31, 1
        %s683 = smul.addr %s682, 8
        %s684 = smul.addr %s683, 8
        %s685 = scalar_lea.vmem %s0, %s684
      $region116: #{unet_forward.1} parent=111 // pred_fallthru
        _
    $region112: #{unet_forward.1} parent=5 // pred_fallthru
      _
    %p686 = scmp.le.s32.totalorder 1, %s31
    %p687 = scmp.lt.s32.totalorder %s31, 3
    %p688 = pnand %p686, %p687
    %p689 = pneg %p688
    // Predicated region
    $region117: #{unet_forward.1} parent=5 // pred_check
      _
    $region118: #{unet_forward.1} parent=5 // pred_check_branch
      %691 = sbr.rel (%p688) target = $region120
    $region119: #{unet_forward.1} parent=5 // pred_region
      %s692 = ssub.s32 %s31, 1
      %p693 = scmp.lt.s32.totalorder %s36, 1
      %s694 = scalar_select %p693, %s36, 1
      %s695 = smul.addr %s694, 8
      %s696 = smul.addr %s695, 8
      %s697 = scalar_lea.vmem %s0, %s696
      %p698 = pneg %p57
      %p699 = pneg %p54
      %p700 = pneg %p78
      %p701 = pneg %p75
      %p702 = pneg %p99
      %p703 = pneg %p96
      %p704 = pneg %p120
      %p705 = pneg %p117
      %p706 = pneg %p141
      %p707 = pneg %p138
      %p708 = pneg %p162
      %p709 = pneg %p159
      %p710 = pneg %p183
      %p711 = pneg %p180
      %p712 = pneg %p204
      %p713 = pneg %p201
      %p714 = pneg %p225
      %p715 = pneg %p222
      %p716 = pneg %p246
      %p717 = pneg %p243
      %p718 = pneg %p267
      %p719 = pneg %p264
      %p720 = pneg %p288
      %p721 = pneg %p285
      %p722 = pneg %p309
      %p723 = pneg %p306
      %p724 = pneg %p330
      %p725 = pneg %p327
      %p726 = pneg %p351
      %p727 = pneg %p348
      %p728 = pneg %p372
      %p729 = pneg %p369
      %p730 = pneg %p393
      %p731 = pneg %p390
      %p732 = pneg %p414
      %p733 = pneg %p411
      %p734 = pneg %p435
      %p735 = pneg %p432
      %p736 = pneg %p456
      %p737 = pneg %p453
      %p738 = pneg %p477
      %p739 = pneg %p474
      %p740 = pneg %p498
      %p741 = pneg %p495
      %p742 = pneg %p519
      %p743 = pneg %p516
      %p744 = pneg %p540
      %p745 = pneg %p537
      %p746 = pneg %p561
      %p747 = pneg %p558
      %p748 = pneg %p587
      %p749 = pneg %p584
      %p750 = scmp.lt.s32.totalorder %s36, 1
      %s751 = scalar_select %p750, %s36, 1
      %s752 = smul.addr %s751, 8
      %s753 = smul.addr %s752, 8
      %s754 = scalar_lea.vmem %s25, %s753
      %p755 = scmp.lt.s32.totalorder %s36, 1
      %s756 = scalar_select %p755, %s36, 1
      %s757 = smul.addr %s756, 8
      %s758 = smul.addr %s757, 8
      %s759 = scalar_lea.vmem %s0, %s758
      %p760 = scmp.lt.s32.totalorder %s36, 1
      %s761 = scalar_select %p760, %s36, 1
      %s762 = smul.addr %s761, 8
      %s763 = smul.addr %s762, 8
      %s764 = scalar_lea.vmem %s25, %s763
      %vm766 = vcmask 64512
      %767 = vst.msk [vmem:[#allocation2] sm:$0xff] %vm766, 0.0
      %768 = vst.msk [vmem:[#allocation2 + $0x8] sm:$0xff] %vm766, 0.0
      %769 = vst.msk [vmem:[#allocation2 + $0x10] sm:$0xff] %vm766, 0.0
      %770 = vst.msk [vmem:[#allocation2 + $0x18] sm:$0xff] %vm766, 0.0
      %771 = vst.msk [vmem:[#allocation2 + $0x20] sm:$0xff] %vm766, 0.0
      %772 = vst.msk [vmem:[#allocation2 + $0x28] sm:$0xff] %vm766, 0.0
      %773 = vst.msk [vmem:[#allocation2 + $0x30] sm:$0xff] %vm766, 0.0
      %774 = vst.msk [vmem:[#allocation2 + $0x38] sm:$0xff] %vm766, 0.0
      %vm775 = vcmask 60416
      %776 = vst.msk [vmem:[#allocation2 + $0x40] sm:$0xf] %vm775, 0.0
      %777 = vst.msk [vmem:[#allocation3] sm:$0xff] %vm766, 0.0
      %778 = vst.msk [vmem:[#allocation3 + $0x8] sm:$0xff] %vm766, 0.0
      %779 = vst.msk [vmem:[#allocation3 + $0x10] sm:$0xff] %vm766, 0.0
      %780 = vst.msk [vmem:[#allocation3 + $0x18] sm:$0xff] %vm766, 0.0
      %781 = vst.msk [vmem:[#allocation3 + $0x20] sm:$0xf] %vm775, 0.0
      %vm782 = vcmask 130048
      %783 = vst.msk [vmem:[#allocation4] sm:$0xff] %vm782, 0.0
      %784 = vst.msk [vmem:[#allocation4 + $0x8] sm:$0xff] %vm782, 0.0
      %vm785 = vcmask 125952
      %786 = vst.msk [vmem:[#allocation4 + $0x10] sm:$0xf] %vm785, 0.0
      %787 = vst.msk [vmem:[#allocation5] sm:$0xff] %vm782, 0.0
      %788 = vst.msk [vmem:[#allocation5 + $0x8] sm:$0xf] %vm785, 0.0
      %vm789 = vcmask 261120
      %790 = vst.msk [vmem:[#allocation6] sm:$0xff] %vm789, 0.0
      %vm791 = vcmask 259072
      %792 = vst.msk [vmem:[#allocation7] sm:$0x3f] %vm791, 0.0
      %vm793 = vcmask 520192
      %794 = vst.msk [vmem:[#allocation8] sm:$0x1f] %vm793, 0.0
      %795 = vst.msk [vmem:[#allocation9] sm:$0x3f] %vm791, 0.0
      %796 = vst.msk [vmem:[#allocation10] sm:$0xff] %vm789, 0.0
      %797 = vst.msk [vmem:[#allocation11] sm:$0xff] %vm782, 0.0
      %798 = vst.msk [vmem:[#allocation11 + $0x8] sm:$0xf] %vm785, 0.0
      %799 = vst.msk [vmem:[#allocation12] sm:$0xff] %vm782, 0.0
      %800 = vst.msk [vmem:[#allocation12 + $0x8] sm:$0xff] %vm782, 0.0
      %801 = vst.msk [vmem:[#allocation12 + $0x10] sm:$0xf] %vm785, 0.0
      %802 = vst.msk [vmem:[#allocation13] sm:$0xff] %vm766, 0.0
      %803 = vst.msk [vmem:[#allocation13 + $0x8] sm:$0xff] %vm766, 0.0
      %804 = vst.msk [vmem:[#allocation13 + $0x10] sm:$0xff] %vm766, 0.0
      %805 = vst.msk [vmem:[#allocation13 + $0x18] sm:$0xff] %vm766, 0.0
      %806 = vst.msk [vmem:[#allocation13 + $0x20] sm:$0xf] %vm775, 0.0
      %807 = vst.msk [vmem:[#allocation14] sm:$0xff] %vm766, 0.0
      %808 = vst.msk [vmem:[#allocation14 + $0x8] sm:$0xff] %vm766, 0.0
      %809 = vst.msk [vmem:[#allocation14 + $0x10] sm:$0xff] %vm766, 0.0
      %810 = vst.msk [vmem:[#allocation14 + $0x18] sm:$0xff] %vm766, 0.0
      %811 = vst.msk [vmem:[#allocation14 + $0x20] sm:$0xff] %vm766, 0.0
      %812 = vst.msk [vmem:[#allocation14 + $0x28] sm:$0xff] %vm766, 0.0
      %813 = vst.msk [vmem:[#allocation14 + $0x30] sm:$0xff] %vm766, 0.0
      %814 = vst.msk [vmem:[#allocation14 + $0x38] sm:$0xff] %vm766, 0.0
      %815 = vst.msk [vmem:[#allocation14 + $0x40] sm:$0xf] %vm775, 0.0
      %v816 = vld [vmem:[%s759] sm:$0xff]
      %v817 = vld [vmem:[%s759 + $0x8] sm:$0xff]
      %v818 = vld [vmem:[%s759 + $0x10] sm:$0xff]
      %v819 = vld [vmem:[%s759 + $0x18] sm:$0xff]
      %v820 = vld [vmem:[%s759 + $0x20] sm:$0xff]
      %v821 = vld [vmem:[%s759 + $0x28] sm:$0xff]
      %v822 = vld [vmem:[%s759 + $0x30] sm:$0xff]
      %v823 = vld [vmem:[%s759 + $0x38] sm:$0xff]
      %824 = vst.msk [vmem:[#allocation2 + $0x2] sm:$0xff] %vm766, %v816
      %825 = vst.msk [vmem:[#allocation2 + $0xa] sm:$0xff] %vm766, %v817
      %826 = vst.msk [vmem:[#allocation2 + $0x12] sm:$0xff] %vm766, %v818
      %827 = vst.msk [vmem:[#allocation2 + $0x1a] sm:$0xff] %vm766, %v819
      %828 = vst.msk [vmem:[#allocation2 + $0x22] sm:$0xff] %vm766, %v820
      %829 = vst.msk [vmem:[#allocation2 + $0x2a] sm:$0xff] %vm766, %v821
      %830 = vst.msk [vmem:[#allocation2 + $0x32] sm:$0xff] %vm766, %v822
      %831 = vst.msk [vmem:[#allocation2 + $0x3a] sm:$0xff] %vm766, %v823
      %v832 = vld [vmem:[%s2] sm:$0x1]
      %v833 = vld [vmem:[#allocation2] ss:$2 sm:$0xff]
      %s834 = scalar_lea.vmem [#allocation2], 16
      %v835 = vld [vmem:[%s834] ss:$2 sm:$0xff]
      %s836 = scalar_lea.vmem [#allocation2], 32
      %v837 = vld [vmem:[%s836] ss:$2 sm:$0xff]
      %s838 = scalar_lea.vmem [#allocation2], 48
      %v839 = vld [vmem:[%s838] ss:$2 sm:$0xff]
      %v840 = vpack.c.bf16 %v835, %v833
      %v841 = vpack.c.bf16 %v839, %v837
      %v842 = vld [vmem:[%s1] sm:$0xf]
      %v844 = vsel %vm766, %v840, 0
      %v847 = vsel %vm766, %v841, 0
      %vm849 = vcmask 1043456
      %v851 = vsel %vm849, %v842, 0
      %853 = vmatprep.subr.bf16.mxu0 0
      %854 = vmatpush1.bf16.msra.mxu0 0
      %855 = vmatprep.subr.bf16.mxu0 0
      %856 = vmatpush1.bf16.msra.mxu0 0
      %857 = vmatprep.subr.bf16.mxu0 0
      %858 = vmatpush1.bf16.msra.mxu0 0
      %859 = vmatprep.subr.bf16.mxu0 0
      %860 = vmatpush1.bf16.msra.mxu0 0
      %861 = vmatprep.subr.bf16.mxu0 0
      %862 = vmatpush1.bf16.msra.mxu0 0
      %863 = vmatprep.subr.bf16.mxu0 0
      %864 = vmatpush1.bf16.msra.mxu0 0
      %865 = vmatprep.subr.bf16.mxu0 0
      %866 = vmatpush1.bf16.msra.mxu0 0
      %867 = vmatprep.subr.bf16.mxu0 0
      %868 = vmatpush1.bf16.msra.mxu0 %v851
      %869 = vmatprep.subr.bf16.mxu0 0
      %870 = vmatpush2.bf16.msra.mxu0 0
      %871 = vmatprep.subr.bf16.mxu0 0
      %872 = vmatpush2.bf16.msra.mxu0 0
      %873 = vmatprep.subr.bf16.mxu0 0
      %874 = vmatpush2.bf16.msra.mxu0 0
      %875 = vmatprep.subr.bf16.mxu0 0
      %876 = vmatpush2.bf16.msra.mxu0 0
      %877 = vmatprep.subr.bf16.mxu0 0
      %878 = vmatpush2.bf16.msra.mxu0 0
      %879 = vmatprep.subr.bf16.mxu0 0
      %880 = vmatpush2.bf16.msra.mxu0 0
      %881 = vmatprep.subr.bf16.mxu0 0
      %882 = vmatpush2.bf16.msra.mxu0 0
      %883 = vmatprep.subr.bf16.mxu0 0
      %884 = vmatpush2.bf16.msra.mxu0 0
      %885 = vmatprep.mubr.bf16.mxu0 0
      %886 = vmatmul.mubr.bf16.gmra.mxu0 %v844
      %v887 = vpop.f32.mrf.mxu0
      %v888 = vadd.f32 0.0, %v887
      %v889 = vpop.f32.mrf.mxu0
      %v890 = vpop.f32.mrf.mxu0
      %v891 = vadd.f32 0.0, %v890
      %v892 = vpop.f32.mrf.mxu0
      %893 = vmatprep.mubr.bf16.mxu0 0
      %894 = vmatmul.mubr.bf16.gmra.mxu0 %v847
      %v895 = vpop.f32.mrf.mxu0
      %v896 = vadd.f32 0.0, %v895
      %v897 = vpop.f32.mrf.mxu0
      %v898 = vpop.f32.mrf.mxu0
      %v899 = vadd.f32 0.0, %v898
      %v900 = vpop.f32.mrf.mxu0
      %901 = vdwg.mxu0
      %v903 = vlaneseq
      %v904 = vshrl.u32 %v903, 7
      %v905 = vsub.s32 0, %v904
      %v906 = vrot.slane %v832, %v905
      %v908 = vadd.f32 %v906, %v888
      %v909 = vadd.f32 %v906, %v891
      %v910 = vadd.f32 %v906, %v896
      %v911 = vadd.f32 %v906, %v899
      %s912 = scalar_lea.vmem [#allocation2], 1
      %v913 = vld [vmem:[%s912] ss:$2 sm:$0xff]
      %s914 = scalar_lea.vmem [#allocation2], 17
      %v915 = vld [vmem:[%s914] ss:$2 sm:$0xff]
      %s916 = scalar_lea.vmem [#allocation2], 33
      %v917 = vld [vmem:[%s916] ss:$2 sm:$0xff]
      %s918 = scalar_lea.vmem [#allocation2], 49
      %v919 = vld [vmem:[%s918] ss:$2 sm:$0xff]
      %v920 = vpack.c.bf16 %v915, %v913
      %v921 = vpack.c.bf16 %v919, %v917
      %s922 = scalar_lea.vmem %s1, 4
      %v923 = vld [vmem:[%s922] sm:$0xf]
      %v925 = vsel %vm766, %v920, 0
      %v928 = vsel %vm766, %v921, 0
      %v931 = vsel %vm849, %v923, 0
      %933 = vmatprep.subr.bf16.mxu0 0
      %934 = vmatpush1.bf16.msra.mxu0 0
      %935 = vmatprep.subr.bf16.mxu0 0
      %936 = vmatpush1.bf16.msra.mxu0 0
      %937 = vmatprep.subr.bf16.mxu0 0
      %938 = vmatpush1.bf16.msra.mxu0 0
      %939 = vmatprep.subr.bf16.mxu0 0
      %940 = vmatpush1.bf16.msra.mxu0 0
      %941 = vmatprep.subr.bf16.mxu0 0
      %942 = vmatpush1.bf16.msra.mxu0 0
      %943 = vmatprep.subr.bf16.mxu0 0
      %944 = vmatpush1.bf16.msra.mxu0 0
      %945 = vmatprep.subr.bf16.mxu0 0
      %946 = vmatpush1.bf16.msra.mxu0 0
      %947 = vmatprep.subr.bf16.mxu0 0
      %948 = vmatpush1.bf16.msra.mxu0 %v931
      %949 = vmatprep.subr.bf16.mxu0 0
      %950 = vmatpush2.bf16.msra.mxu0 0
      %951 = vmatprep.subr.bf16.mxu0 0
      %952 = vmatpush2.bf16.msra.mxu0 0
      %953 = vmatprep.subr.bf16.mxu0 0
      %954 = vmatpush2.bf16.msra.mxu0 0
      %955 = vmatprep.subr.bf16.mxu0 0
      %956 = vmatpush2.bf16.msra.mxu0 0
      %957 = vmatprep.subr.bf16.mxu0 0
      %958 = vmatpush2.bf16.msra.mxu0 0
      %959 = vmatprep.subr.bf16.mxu0 0
      %960 = vmatpush2.bf16.msra.mxu0 0
      %961 = vmatprep.subr.bf16.mxu0 0
      %962 = vmatpush2.bf16.msra.mxu0 0
      %963 = vmatprep.subr.bf16.mxu0 0
      %964 = vmatpush2.bf16.msra.mxu0 0
      %965 = vmatprep.mubr.bf16.mxu0 0
      %966 = vmatmul.mubr.bf16.gmra.mxu0 %v925
      %v967 = vpop.f32.mrf.mxu0
      %v968 = vadd.f32 0.0, %v967
      %v969 = vpop.f32.mrf.mxu0
      %v970 = vpop.f32.mrf.mxu0
      %v971 = vadd.f32 0.0, %v970
      %v972 = vpop.f32.mrf.mxu0
      %973 = vmatprep.mubr.bf16.mxu0 0
      %974 = vmatmul.mubr.bf16.gmra.mxu0 %v928
      %v975 = vpop.f32.mrf.mxu0
      %v976 = vadd.f32 0.0, %v975
      %v977 = vpop.f32.mrf.mxu0
      %v978 = vpop.f32.mrf.mxu0
      %v979 = vadd.f32 0.0, %v978
      %v980 = vpop.f32.mrf.mxu0
      %981 = vdwg.mxu0
      %v982 = vadd.f32 %v908, %v968
      %v983 = vadd.f32 %v909, %v971
      %v984 = vadd.f32 %v910, %v976
      %v985 = vadd.f32 %v911, %v979
      %s986 = scalar_lea.vmem [#allocation2], 2
      %v987 = vld [vmem:[%s986] ss:$2 sm:$0xff]
      %s988 = scalar_lea.vmem [#allocation2], 18
      %v989 = vld [vmem:[%s988] ss:$2 sm:$0xff]
      %s990 = scalar_lea.vmem [#allocation2], 34
      %v991 = vld [vmem:[%s990] ss:$2 sm:$0xff]
      %s992 = scalar_lea.vmem [#allocation2], 50
      %v993 = vld [vmem:[%s992] ss:$2 sm:$0xff]
      %v994 = vpack.c.bf16 %v989, %v987
      %v995 = vpack.c.bf16 %v993, %v991
      %s996 = scalar_lea.vmem %s1, 8
      %v997 = vld [vmem:[%s996] sm:$0xf]
      %v999 = vsel %vm766, %v994, 0
      %v1002 = vsel %vm766, %v995, 0
      %v1005 = vsel %vm849, %v997, 0
      %1007 = vmatprep.subr.bf16.mxu0 0
      %1008 = vmatpush1.bf16.msra.mxu0 0
      %1009 = vmatprep.subr.bf16.mxu0 0
      %1010 = vmatpush1.bf16.msra.mxu0 0
      %1011 = vmatprep.subr.bf16.mxu0 0
      %1012 = vmatpush1.bf16.msra.mxu0 0
      %1013 = vmatprep.subr.bf16.mxu0 0
      %1014 = vmatpush1.bf16.msra.mxu0 0
      %1015 = vmatprep.subr.bf16.mxu0 0
      %1016 = vmatpush1.bf16.msra.mxu0 0
      %1017 = vmatprep.subr.bf16.mxu0 0
      %1018 = vmatpush1.bf16.msra.mxu0 0
      %1019 = vmatprep.subr.bf16.mxu0 0
      %1020 = vmatpush1.bf16.msra.mxu0 0
      %1021 = vmatprep.subr.bf16.mxu0 0
      %1022 = vmatpush1.bf16.msra.mxu0 %v1005
      %1023 = vmatprep.subr.bf16.mxu0 0
      %1024 = vmatpush2.bf16.msra.mxu0 0
      %1025 = vmatprep.subr.bf16.mxu0 0
      %1026 = vmatpush2.bf16.msra.mxu0 0
      %1027 = vmatprep.subr.bf16.mxu0 0
      %1028 = vmatpush2.bf16.msra.mxu0 0
      %1029 = vmatprep.subr.bf16.mxu0 0
      %1030 = vmatpush2.bf16.msra.mxu0 0
      %1031 = vmatprep.subr.bf16.mxu0 0
      %1032 = vmatpush2.bf16.msra.mxu0 0
      %1033 = vmatprep.subr.bf16.mxu0 0
      %1034 = vmatpush2.bf16.msra.mxu0 0
      %1035 = vmatprep.subr.bf16.mxu0 0
      %1036 = vmatpush2.bf16.msra.mxu0 0
      %1037 = vmatprep.subr.bf16.mxu0 0
      %1038 = vmatpush2.bf16.msra.mxu0 0
      %1039 = vmatprep.mubr.bf16.mxu0 0
      %1040 = vmatmul.mubr.bf16.gmra.mxu0 %v999
      %v1041 = vpop.f32.mrf.mxu0
      %v1042 = vadd.f32 0.0, %v1041
      %v1043 = vpop.f32.mrf.mxu0
      %v1044 = vpop.f32.mrf.mxu0
      %v1045 = vadd.f32 0.0, %v1044
      %v1046 = vpop.f32.mrf.mxu0
      %1047 = vmatprep.mubr.bf16.mxu0 0
      %1048 = vmatmul.mubr.bf16.gmra.mxu0 %v1002
      %v1049 = vpop.f32.mrf.mxu0
      %v1050 = vadd.f32 0.0, %v1049
      %v1051 = vpop.f32.mrf.mxu0
      %v1052 = vpop.f32.mrf.mxu0
      %v1053 = vadd.f32 0.0, %v1052
      %v1054 = vpop.f32.mrf.mxu0
      %1055 = vdwg.mxu0
      %v1056 = vadd.f32 %v982, %v1042
      %v1057 = vadd.f32 %v983, %v1045
      %v1058 = vadd.f32 %v984, %v1050
      %v1059 = vadd.f32 %v985, %v1053
      %s1060 = scalar_lea.vmem [#allocation2], 3
      %v1061 = vld [vmem:[%s1060] ss:$2 sm:$0xff]
      %s1062 = scalar_lea.vmem [#allocation2], 19
      %v1063 = vld [vmem:[%s1062] ss:$2 sm:$0xff]
      %s1064 = scalar_lea.vmem [#allocation2], 35
      %v1065 = vld [vmem:[%s1064] ss:$2 sm:$0xff]
      %s1066 = scalar_lea.vmem [#allocation2], 51
      %v1067 = vld [vmem:[%s1066] ss:$2 sm:$0xff]
      %v1068 = vpack.c.bf16 %v1063, %v1061
      %v1069 = vpack.c.bf16 %v1067, %v1065
      %s1070 = scalar_lea.vmem %s1, 12
      %v1071 = vld [vmem:[%s1070] sm:$0xf]
      %v1073 = vsel %vm766, %v1068, 0
      %v1076 = vsel %vm766, %v1069, 0
      %v1079 = vsel %vm849, %v1071, 0
      %1081 = vmatprep.subr.bf16.mxu0 0
      %1082 = vmatpush1.bf16.msra.mxu0 0
      %1083 = vmatprep.subr.bf16.mxu0 0
      %1084 = vmatpush1.bf16.msra.mxu0 0
      %1085 = vmatprep.subr.bf16.mxu0 0
      %1086 = vmatpush1.bf16.msra.mxu0 0
      %1087 = vmatprep.subr.bf16.mxu0 0
      %1088 = vmatpush1.bf16.msra.mxu0 0
      %1089 = vmatprep.subr.bf16.mxu0 0
      %1090 = vmatpush1.bf16.msra.mxu0 0
      %1091 = vmatprep.subr.bf16.mxu0 0
      %1092 = vmatpush1.bf16.msra.mxu0 0
      %1093 = vmatprep.subr.bf16.mxu0 0
      %1094 = vmatpush1.bf16.msra.mxu0 0
      %1095 = vmatprep.subr.bf16.mxu0 0
      %1096 = vmatpush1.bf16.msra.mxu0 %v1079
      %1097 = vmatprep.subr.bf16.mxu0 0
      %1098 = vmatpush2.bf16.msra.mxu0 0
      %1099 = vmatprep.subr.bf16.mxu0 0
      %1100 = vmatpush2.bf16.msra.mxu0 0
      %1101 = vmatprep.subr.bf16.mxu0 0
      %1102 = vmatpush2.bf16.msra.mxu0 0
      %1103 = vmatprep.subr.bf16.mxu0 0
      %1104 = vmatpush2.bf16.msra.mxu0 0
      %1105 = vmatprep.subr.bf16.mxu0 0
      %1106 = vmatpush2.bf16.msra.mxu0 0
      %1107 = vmatprep.subr.bf16.mxu0 0
      %1108 = vmatpush2.bf16.msra.mxu0 0
      %1109 = vmatprep.subr.bf16.mxu0 0
      %1110 = vmatpush2.bf16.msra.mxu0 0
      %1111 = vmatprep.subr.bf16.mxu0 0
      %1112 = vmatpush2.bf16.msra.mxu0 0
      %1113 = vmatprep.mubr.bf16.mxu0 0
      %1114 = vmatmul.mubr.bf16.gmra.mxu0 %v1073
      %v1115 = vpop.f32.mrf.mxu0
      %v1116 = vadd.f32 0.0, %v1115
      %v1117 = vpop.f32.mrf.mxu0
      %v1118 = vpop.f32.mrf.mxu0
      %v1119 = vadd.f32 0.0, %v1118
      %v1120 = vpop.f32.mrf.mxu0
      %1121 = vmatprep.mubr.bf16.mxu0 0
      %1122 = vmatmul.mubr.bf16.gmra.mxu0 %v1076
      %v1123 = vpop.f32.mrf.mxu0
      %v1124 = vadd.f32 0.0, %v1123
      %v1125 = vpop.f32.mrf.mxu0
      %v1126 = vpop.f32.mrf.mxu0
      %v1127 = vadd.f32 0.0, %v1126
      %v1128 = vpop.f32.mrf.mxu0
      %1129 = vdwg.mxu0
      %v1130 = vadd.f32 %v1056, %v1116
      %v1131 = vadd.f32 %v1057, %v1119
      %v1132 = vadd.f32 %v1058, %v1124
      %v1133 = vadd.f32 %v1059, %v1127
      %s1134 = scalar_lea.vmem [#allocation2], 4
      %v1135 = vld [vmem:[%s1134] ss:$2 sm:$0xff]
      %s1136 = scalar_lea.vmem [#allocation2], 20
      %v1137 = vld [vmem:[%s1136] ss:$2 sm:$0xff]
      %s1138 = scalar_lea.vmem [#allocation2], 36
      %v1139 = vld [vmem:[%s1138] ss:$2 sm:$0xff]
      %s1140 = scalar_lea.vmem [#allocation2], 52
      %v1141 = vld [vmem:[%s1140] ss:$2 sm:$0xff]
      %v1142 = vpack.c.bf16 %v1137, %v1135
      %v1143 = vpack.c.bf16 %v1141, %v1139
      %s1144 = scalar_lea.vmem %s1, 16
      %v1145 = vld [vmem:[%s1144] sm:$0xf]
      %v1147 = vsel %vm766, %v1142, 0
      %v1150 = vsel %vm766, %v1143, 0
      %v1153 = vsel %vm849, %v1145, 0
      %1155 = vmatprep.subr.bf16.mxu0 0
      %1156 = vmatpush1.bf16.msra.mxu0 0
      %1157 = vmatprep.subr.bf16.mxu0 0
      %1158 = vmatpush1.bf16.msra.mxu0 0
      %1159 = vmatprep.subr.bf16.mxu0 0
      %1160 = vmatpush1.bf16.msra.mxu0 0
      %1161 = vmatprep.subr.bf16.mxu0 0
      %1162 = vmatpush1.bf16.msra.mxu0 0
      %1163 = vmatprep.subr.bf16.mxu0 0
      %1164 = vmatpush1.bf16.msra.mxu0 0
      %1165 = vmatprep.subr.bf16.mxu0 0
      %1166 = vmatpush1.bf16.msra.mxu0 0
      %1167 = vmatprep.subr.bf16.mxu0 0
      %1168 = vmatpush1.bf16.msra.mxu0 0
      %1169 = vmatprep.subr.bf16.mxu0 0
      %1170 = vmatpush1.bf16.msra.mxu0 %v1153
      %1171 = vmatprep.subr.bf16.mxu0 0
      %1172 = vmatpush2.bf16.msra.mxu0 0
      %1173 = vmatprep.subr.bf16.mxu0 0
      %1174 = vmatpush2.bf16.msra.mxu0 0
      %1175 = vmatprep.subr.bf16.mxu0 0
      %1176 = vmatpush2.bf16.msra.mxu0 0
      %1177 = vmatprep.subr.bf16.mxu0 0
      %1178 = vmatpush2.bf16.msra.mxu0 0
      %1179 = vmatprep.subr.bf16.mxu0 0
      %1180 = vmatpush2.bf16.msra.mxu0 0
      %1181 = vmatprep.subr.bf16.mxu0 0
      %1182 = vmatpush2.bf16.msra.mxu0 0
      %1183 = vmatprep.subr.bf16.mxu0 0
      %1184 = vmatpush2.bf16.msra.mxu0 0
      %1185 = vmatprep.subr.bf16.mxu0 0
      %1186 = vmatpush2.bf16.msra.mxu0 0
      %1187 = vmatprep.mubr.bf16.mxu0 0
      %1188 = vmatmul.mubr.bf16.gmra.mxu0 %v1147
      %v1189 = vpop.f32.mrf.mxu0
      %v1190 = vadd.f32 0.0, %v1189
      %v1191 = vpop.f32.mrf.mxu0
      %v1192 = vpop.f32.mrf.mxu0
      %v1193 = vadd.f32 0.0, %v1192
      %v1194 = vpop.f32.mrf.mxu0
      %1195 = vmatprep.mubr.bf16.mxu0 0
      %1196 = vmatmul.mubr.bf16.gmra.mxu0 %v1150
      %v1197 = vpop.f32.mrf.mxu0
      %v1198 = vadd.f32 0.0, %v1197
      %v1199 = vpop.f32.mrf.mxu0
      %v1200 = vpop.f32.mrf.mxu0
      %v1201 = vadd.f32 0.0, %v1200
      %v1202 = vpop.f32.mrf.mxu0
      %1203 = vdwg.mxu0
      %v1204 = vadd.f32 %v1130, %v1190
      %v1205 = vadd.f32 %v1131, %v1193
      %v1206 = vadd.f32 %v1132, %v1198
      %v1207 = vadd.f32 %v1133, %v1201
      %v1208 = vmax.f32 %v1204, 0.0
      %v1209 = vmax.f32 %v1205, 0.0
      %v1210 = vmax.f32 %v1206, 0.0
      %v1211 = vmax.f32 %v1207, 0.0
      %1212 = vst.msk [vmem:[#allocation3 + $0x2] sm:$0xff] %vm766, %v1208
      %1213 = vst.msk [vmem:[#allocation3 + $0xa] sm:$0xff] %vm766, %v1209
      %1214 = vst.msk [vmem:[#allocation3 + $0x12] sm:$0xff] %vm766, %v1210
      %1215 = vst.msk [vmem:[#allocation3 + $0x1a] sm:$0xff] %vm766, %v1211
      %v1216 = vld [vmem:[%s4] sm:$0x1]
      %v1217 = vld [vmem:[#allocation3] ss:$2 sm:$0xff]
      %s1218 = scalar_lea.vmem [#allocation3], 16
      %v1219 = vld [vmem:[%s1218] ss:$2 sm:$0xff]
      %v1220 = vpack.c.bf16 %v1219, %v1217
      %v1221 = vld [vmem:[%s3] sm:$0xf]
      %v1223 = vsel %vm766, %v1220, 0
      %v1226 = vsel %vm849, %v1221, 0
      %1228 = vmatprep.subr.bf16.mxu0 0
      %1229 = vmatpush1.bf16.msra.mxu0 0
      %1230 = vmatprep.subr.bf16.mxu0 0
      %1231 = vmatpush1.bf16.msra.mxu0 0
      %1232 = vmatprep.subr.bf16.mxu0 0
      %1233 = vmatpush1.bf16.msra.mxu0 0
      %1234 = vmatprep.subr.bf16.mxu0 0
      %1235 = vmatpush1.bf16.msra.mxu0 0
      %1236 = vmatprep.subr.bf16.mxu0 0
      %1237 = vmatpush1.bf16.msra.mxu0 0
      %1238 = vmatprep.subr.bf16.mxu0 0
      %1239 = vmatpush1.bf16.msra.mxu0 0
      %1240 = vmatprep.subr.bf16.mxu0 0
      %1241 = vmatpush1.bf16.msra.mxu0 0
      %1242 = vmatprep.subr.bf16.mxu0 0
      %1243 = vmatpush1.bf16.msra.mxu0 %v1226
      %1244 = vmatprep.subr.bf16.mxu0 0
      %1245 = vmatpush2.bf16.msra.mxu0 0
      %1246 = vmatprep.subr.bf16.mxu0 0
      %1247 = vmatpush2.bf16.msra.mxu0 0
      %1248 = vmatprep.subr.bf16.mxu0 0
      %1249 = vmatpush2.bf16.msra.mxu0 0
      %1250 = vmatprep.subr.bf16.mxu0 0
      %1251 = vmatpush2.bf16.msra.mxu0 0
      %1252 = vmatprep.subr.bf16.mxu0 0
      %1253 = vmatpush2.bf16.msra.mxu0 0
      %1254 = vmatprep.subr.bf16.mxu0 0
      %1255 = vmatpush2.bf16.msra.mxu0 0
      %1256 = vmatprep.subr.bf16.mxu0 0
      %1257 = vmatpush2.bf16.msra.mxu0 0
      %1258 = vmatprep.subr.bf16.mxu0 0
      %1259 = vmatpush2.bf16.msra.mxu0 0
      %1260 = vmatprep.mubr.bf16.mxu0 0
      %1261 = vmatmul.mubr.bf16.gmra.mxu0 %v1223
      %v1262 = vpop.f32.mrf.mxu0
      %v1263 = vadd.f32 0.0, %v1262
      %v1264 = vpop.f32.mrf.mxu0
      %v1265 = vpop.f32.mrf.mxu0
      %v1266 = vadd.f32 0.0, %v1265
      %v1267 = vpop.f32.mrf.mxu0
      %1268 = vdwg.mxu0
      %v1270 = vlaneseq
      %v1271 = vshrl.u32 %v1270, 7
      %v1272 = vsub.s32 0, %v1271
      %v1273 = vrot.slane %v1216, %v1272
      %v1275 = vadd.f32 %v1273, %v1263
      %v1276 = vadd.f32 %v1273, %v1266
      %s1277 = scalar_lea.vmem [#allocation3], 1
      %v1278 = vld [vmem:[%s1277] ss:$2 sm:$0xff]
      %s1279 = scalar_lea.vmem [#allocation3], 17
      %v1280 = vld [vmem:[%s1279] ss:$2 sm:$0xff]
      %v1281 = vpack.c.bf16 %v1280, %v1278
      %s1282 = scalar_lea.vmem %s3, 4
      %v1283 = vld [vmem:[%s1282] sm:$0xf]
      %v1285 = vsel %vm766, %v1281, 0
      %v1288 = vsel %vm849, %v1283, 0
      %1290 = vmatprep.subr.bf16.mxu0 0
      %1291 = vmatpush1.bf16.msra.mxu0 0
      %1292 = vmatprep.subr.bf16.mxu0 0
      %1293 = vmatpush1.bf16.msra.mxu0 0
      %1294 = vmatprep.subr.bf16.mxu0 0
      %1295 = vmatpush1.bf16.msra.mxu0 0
      %1296 = vmatprep.subr.bf16.mxu0 0
      %1297 = vmatpush1.bf16.msra.mxu0 0
      %1298 = vmatprep.subr.bf16.mxu0 0
      %1299 = vmatpush1.bf16.msra.mxu0 0
      %1300 = vmatprep.subr.bf16.mxu0 0
      %1301 = vmatpush1.bf16.msra.mxu0 0
      %1302 = vmatprep.subr.bf16.mxu0 0
      %1303 = vmatpush1.bf16.msra.mxu0 0
      %1304 = vmatprep.subr.bf16.mxu0 0
      %1305 = vmatpush1.bf16.msra.mxu0 %v1288
      %1306 = vmatprep.subr.bf16.mxu0 0
      %1307 = vmatpush2.bf16.msra.mxu0 0
      %1308 = vmatprep.subr.bf16.mxu0 0
      %1309 = vmatpush2.bf16.msra.mxu0 0
      %1310 = vmatprep.subr.bf16.mxu0 0
      %1311 = vmatpush2.bf16.msra.mxu0 0
      %1312 = vmatprep.subr.bf16.mxu0 0
      %1313 = vmatpush2.bf16.msra.mxu0 0
      %1314 = vmatprep.subr.bf16.mxu0 0
      %1315 = vmatpush2.bf16.msra.mxu0 0
      %1316 = vmatprep.subr.bf16.mxu0 0
      %1317 = vmatpush2.bf16.msra.mxu0 0
      %1318 = vmatprep.subr.bf16.mxu0 0
      %1319 = vmatpush2.bf16.msra.mxu0 0
      %1320 = vmatprep.subr.bf16.mxu0 0
      %1321 = vmatpush2.bf16.msra.mxu0 0
      %1322 = vmatprep.mubr.bf16.mxu0 0
      %1323 = vmatmul.mubr.bf16.gmra.mxu0 %v1285
      %v1324 = vpop.f32.mrf.mxu0
      %v1325 = vadd.f32 0.0, %v1324
      %v1326 = vpop.f32.mrf.mxu0
      %v1327 = vpop.f32.mrf.mxu0
      %v1328 = vadd.f32 0.0, %v1327
      %v1329 = vpop.f32.mrf.mxu0
      %1330 = vdwg.mxu0
      %v1331 = vadd.f32 %v1275, %v1325
      %v1332 = vadd.f32 %v1276, %v1328
      %s1333 = scalar_lea.vmem [#allocation3], 2
      %v1334 = vld [vmem:[%s1333] ss:$2 sm:$0xff]
      %s1335 = scalar_lea.vmem [#allocation3], 18
      %v1336 = vld [vmem:[%s1335] ss:$2 sm:$0xff]
      %v1337 = vpack.c.bf16 %v1336, %v1334
      %s1338 = scalar_lea.vmem %s3, 8
      %v1339 = vld [vmem:[%s1338] sm:$0xf]
      %v1341 = vsel %vm766, %v1337, 0
      %v1344 = vsel %vm849, %v1339, 0
      %1346 = vmatprep.subr.bf16.mxu0 0
      %1347 = vmatpush1.bf16.msra.mxu0 0
      %1348 = vmatprep.subr.bf16.mxu0 0
      %1349 = vmatpush1.bf16.msra.mxu0 0
      %1350 = vmatprep.subr.bf16.mxu0 0
      %1351 = vmatpush1.bf16.msra.mxu0 0
      %1352 = vmatprep.subr.bf16.mxu0 0
      %1353 = vmatpush1.bf16.msra.mxu0 0
      %1354 = vmatprep.subr.bf16.mxu0 0
      %1355 = vmatpush1.bf16.msra.mxu0 0
      %1356 = vmatprep.subr.bf16.mxu0 0
      %1357 = vmatpush1.bf16.msra.mxu0 0
      %1358 = vmatprep.subr.bf16.mxu0 0
      %1359 = vmatpush1.bf16.msra.mxu0 0
      %1360 = vmatprep.subr.bf16.mxu0 0
      %1361 = vmatpush1.bf16.msra.mxu0 %v1344
      %1362 = vmatprep.subr.bf16.mxu0 0
      %1363 = vmatpush2.bf16.msra.mxu0 0
      %1364 = vmatprep.subr.bf16.mxu0 0
      %1365 = vmatpush2.bf16.msra.mxu0 0
      %1366 = vmatprep.subr.bf16.mxu0 0
      %1367 = vmatpush2.bf16.msra.mxu0 0
      %1368 = vmatprep.subr.bf16.mxu0 0
      %1369 = vmatpush2.bf16.msra.mxu0 0
      %1370 = vmatprep.subr.bf16.mxu0 0
      %1371 = vmatpush2.bf16.msra.mxu0 0
      %1372 = vmatprep.subr.bf16.mxu0 0
      %1373 = vmatpush2.bf16.msra.mxu0 0
      %1374 = vmatprep.subr.bf16.mxu0 0
      %1375 = vmatpush2.bf16.msra.mxu0 0
      %1376 = vmatprep.subr.bf16.mxu0 0
      %1377 = vmatpush2.bf16.msra.mxu0 0
      %1378 = vmatprep.mubr.bf16.mxu0 0
      %1379 = vmatmul.mubr.bf16.gmra.mxu0 %v1341
      %v1380 = vpop.f32.mrf.mxu0
      %v1381 = vadd.f32 0.0, %v1380
      %v1382 = vpop.f32.mrf.mxu0
      %v1383 = vpop.f32.mrf.mxu0
      %v1384 = vadd.f32 0.0, %v1383
      %v1385 = vpop.f32.mrf.mxu0
      %1386 = vdwg.mxu0
      %v1387 = vadd.f32 %v1331, %v1381
      %v1388 = vadd.f32 %v1332, %v1384
      %s1389 = scalar_lea.vmem [#allocation3], 3
      %v1390 = vld [vmem:[%s1389] ss:$2 sm:$0xff]
      %s1391 = scalar_lea.vmem [#allocation3], 19
      %v1392 = vld [vmem:[%s1391] ss:$2 sm:$0xff]
      %v1393 = vpack.c.bf16 %v1392, %v1390
      %s1394 = scalar_lea.vmem %s3, 12
      %v1395 = vld [vmem:[%s1394] sm:$0xf]
      %v1397 = vsel %vm766, %v1393, 0
      %v1400 = vsel %vm849, %v1395, 0
      %1402 = vmatprep.subr.bf16.mxu0 0
      %1403 = vmatpush1.bf16.msra.mxu0 0
      %1404 = vmatprep.subr.bf16.mxu0 0
      %1405 = vmatpush1.bf16.msra.mxu0 0
      %1406 = vmatprep.subr.bf16.mxu0 0
      %1407 = vmatpush1.bf16.msra.mxu0 0
      %1408 = vmatprep.subr.bf16.mxu0 0
      %1409 = vmatpush1.bf16.msra.mxu0 0
      %1410 = vmatprep.subr.bf16.mxu0 0
      %1411 = vmatpush1.bf16.msra.mxu0 0
      %1412 = vmatprep.subr.bf16.mxu0 0
      %1413 = vmatpush1.bf16.msra.mxu0 0
      %1414 = vmatprep.subr.bf16.mxu0 0
      %1415 = vmatpush1.bf16.msra.mxu0 0
      %1416 = vmatprep.subr.bf16.mxu0 0
      %1417 = vmatpush1.bf16.msra.mxu0 %v1400
      %1418 = vmatprep.subr.bf16.mxu0 0
      %1419 = vmatpush2.bf16.msra.mxu0 0
      %1420 = vmatprep.subr.bf16.mxu0 0
      %1421 = vmatpush2.bf16.msra.mxu0 0
      %1422 = vmatprep.subr.bf16.mxu0 0
      %1423 = vmatpush2.bf16.msra.mxu0 0
      %1424 = vmatprep.subr.bf16.mxu0 0
      %1425 = vmatpush2.bf16.msra.mxu0 0
      %1426 = vmatprep.subr.bf16.mxu0 0
      %1427 = vmatpush2.bf16.msra.mxu0 0
      %1428 = vmatprep.subr.bf16.mxu0 0
      %1429 = vmatpush2.bf16.msra.mxu0 0
      %1430 = vmatprep.subr.bf16.mxu0 0
      %1431 = vmatpush2.bf16.msra.mxu0 0
      %1432 = vmatprep.subr.bf16.mxu0 0
      %1433 = vmatpush2.bf16.msra.mxu0 0
      %1434 = vmatprep.mubr.bf16.mxu0 0
      %1435 = vmatmul.mubr.bf16.gmra.mxu0 %v1397
      %v1436 = vpop.f32.mrf.mxu0
      %v1437 = vadd.f32 0.0, %v1436
      %v1438 = vpop.f32.mrf.mxu0
      %v1439 = vpop.f32.mrf.mxu0
      %v1440 = vadd.f32 0.0, %v1439
      %v1441 = vpop.f32.mrf.mxu0
      %1442 = vdwg.mxu0
      %v1443 = vadd.f32 %v1387, %v1437
      %v1444 = vadd.f32 %v1388, %v1440
      %s1445 = scalar_lea.vmem [#allocation3], 4
      %v1446 = vld [vmem:[%s1445] ss:$2 sm:$0xff]
      %s1447 = scalar_lea.vmem [#allocation3], 20
      %v1448 = vld [vmem:[%s1447] ss:$2 sm:$0xff]
      %v1449 = vpack.c.bf16 %v1448, %v1446
      %s1450 = scalar_lea.vmem %s3, 16
      %v1451 = vld [vmem:[%s1450] sm:$0xf]
      %v1453 = vsel %vm766, %v1449, 0
      %v1456 = vsel %vm849, %v1451, 0
      %1458 = vmatprep.subr.bf16.mxu0 0
      %1459 = vmatpush1.bf16.msra.mxu0 0
      %1460 = vmatprep.subr.bf16.mxu0 0
      %1461 = vmatpush1.bf16.msra.mxu0 0
      %1462 = vmatprep.subr.bf16.mxu0 0
      %1463 = vmatpush1.bf16.msra.mxu0 0
      %1464 = vmatprep.subr.bf16.mxu0 0
      %1465 = vmatpush1.bf16.msra.mxu0 0
      %1466 = vmatprep.subr.bf16.mxu0 0
      %1467 = vmatpush1.bf16.msra.mxu0 0
      %1468 = vmatprep.subr.bf16.mxu0 0
      %1469 = vmatpush1.bf16.msra.mxu0 0
      %1470 = vmatprep.subr.bf16.mxu0 0
      %1471 = vmatpush1.bf16.msra.mxu0 0
      %1472 = vmatprep.subr.bf16.mxu0 0
      %1473 = vmatpush1.bf16.msra.mxu0 %v1456
      %1474 = vmatprep.subr.bf16.mxu0 0
      %1475 = vmatpush2.bf16.msra.mxu0 0
      %1476 = vmatprep.subr.bf16.mxu0 0
      %1477 = vmatpush2.bf16.msra.mxu0 0
      %1478 = vmatprep.subr.bf16.mxu0 0
      %1479 = vmatpush2.bf16.msra.mxu0 0
      %1480 = vmatprep.subr.bf16.mxu0 0
      %1481 = vmatpush2.bf16.msra.mxu0 0
      %1482 = vmatprep.subr.bf16.mxu0 0
      %1483 = vmatpush2.bf16.msra.mxu0 0
      %1484 = vmatprep.subr.bf16.mxu0 0
      %1485 = vmatpush2.bf16.msra.mxu0 0
      %1486 = vmatprep.subr.bf16.mxu0 0
      %1487 = vmatpush2.bf16.msra.mxu0 0
      %1488 = vmatprep.subr.bf16.mxu0 0
      %1489 = vmatpush2.bf16.msra.mxu0 0
      %1490 = vmatprep.mubr.bf16.mxu0 0
      %1491 = vmatmul.mubr.bf16.gmra.mxu0 %v1453
      %v1492 = vpop.f32.mrf.mxu0
      %v1493 = vadd.f32 0.0, %v1492
      %v1494 = vpop.f32.mrf.mxu0
      %v1495 = vpop.f32.mrf.mxu0
      %v1496 = vadd.f32 0.0, %v1495
      %v1497 = vpop.f32.mrf.mxu0
      %1498 = vdwg.mxu0
      %v1499 = vadd.f32 %v1443, %v1493
      %v1500 = vadd.f32 %v1444, %v1496
      %v1501 = vmax.f32 %v1499, 0.0
      %v1502 = vmax.f32 %v1500, 0.0
      %1503 = vst.msk [vmem:[#allocation4 + $0x2] sm:$0xff] %vm782, %v1501
      %1504 = vst.msk [vmem:[#allocation4 + $0xa] sm:$0xff] %vm782, %v1502
      %v1505 = vld [vmem:[%s6] sm:$0x1]
      %v1506 = vld [vmem:[#allocation4] ss:$2 sm:$0xff]
      %v1507 = vpack.c.bf16 %v1506, %v1506
      %v1508 = vld [vmem:[%s5] sm:$0xf]
      %v1509 = vld [vmem:[%s5 + $0x4] sm:$0xf]
      %v1512 = vunpack.c.l.b16 %v1508
      %v1513 = vunpack.c.l.b16 %v1509
      %v1514 = vpack.c.b16 %v1513, %v1512
      %v1517 = vsel %vm782, %v1507, 0
      %1519 = vmatprep.subr.bf16.mxu0 0
      %1520 = vmatpush1.bf16.msra.mxu0 0
      %1521 = vmatprep.subr.bf16.mxu0 0
      %1522 = vmatpush1.bf16.msra.mxu0 0
      %1523 = vmatprep.subr.bf16.mxu0 0
      %1524 = vmatpush1.bf16.msra.mxu0 0
      %1525 = vmatprep.subr.bf16.mxu0 0
      %1526 = vmatpush1.bf16.msra.mxu0 0
      %1527 = vmatprep.subr.bf16.mxu0 0
      %1528 = vmatpush1.bf16.msra.mxu0 0
      %1529 = vmatprep.subr.bf16.mxu0 0
      %1530 = vmatpush1.bf16.msra.mxu0 0
      %1531 = vmatprep.subr.bf16.mxu0 0
      %1532 = vmatpush1.bf16.msra.mxu0 0
      %1533 = vmatprep.subr.bf16.mxu0 0
      %1534 = vmatpush1.bf16.msra.mxu0 %v1514
      %1535 = vmatprep.subr.bf16.mxu0 0
      %1536 = vmatpush2.bf16.msra.mxu0 0
      %1537 = vmatprep.subr.bf16.mxu0 0
      %1538 = vmatpush2.bf16.msra.mxu0 0
      %1539 = vmatprep.subr.bf16.mxu0 0
      %1540 = vmatpush2.bf16.msra.mxu0 0
      %1541 = vmatprep.subr.bf16.mxu0 0
      %1542 = vmatpush2.bf16.msra.mxu0 0
      %1543 = vmatprep.subr.bf16.mxu0 0
      %1544 = vmatpush2.bf16.msra.mxu0 0
      %1545 = vmatprep.subr.bf16.mxu0 0
      %1546 = vmatpush2.bf16.msra.mxu0 0
      %1547 = vmatprep.subr.bf16.mxu0 0
      %1548 = vmatpush2.bf16.msra.mxu0 0
      %1549 = vmatprep.subr.bf16.mxu0 0
      %1550 = vmatpush2.bf16.msra.mxu0 0
      %1551 = vmatprep.mubr.bf16.mxu0 0
      %1552 = vmatmul.mubr.bf16.gmra.mxu0 %v1517
      %v1553 = vpop.f32.mrf.mxu0
      %v1554 = vadd.f32 0.0, %v1553
      %v1555 = vpop.f32.mrf.mxu0
      %v1556 = vpop.f32.mrf.mxu0
      %v1557 = vpop.f32.mrf.mxu0
      %1558 = vdwg.mxu0
      %v1560 = vlaneseq
      %v1561 = vshrl.u32 %v1560, 7
      %v1562 = vsub.s32 0, %v1561
      %v1563 = vrot.slane %v1505, %v1562
      %v1565 = vadd.f32 %v1563, %v1554
      %s1566 = scalar_lea.vmem [#allocation4], 1
      %v1567 = vld [vmem:[%s1566] ss:$2 sm:$0xff]
      %v1568 = vpack.c.bf16 %v1567, %v1567
      %s1569 = scalar_lea.vmem %s5, 8
      %v1570 = vld [vmem:[%s1569] sm:$0xf]
      %v1571 = vld [vmem:[%s1569 + $0x4] sm:$0xf]
      %v1574 = vunpack.c.l.b16 %v1570
      %v1575 = vunpack.c.l.b16 %v1571
      %v1576 = vpack.c.b16 %v1575, %v1574
      %v1579 = vsel %vm782, %v1568, 0
      %1581 = vmatprep.subr.bf16.mxu0 0
      %1582 = vmatpush1.bf16.msra.mxu0 0
      %1583 = vmatprep.subr.bf16.mxu0 0
      %1584 = vmatpush1.bf16.msra.mxu0 0
      %1585 = vmatprep.subr.bf16.mxu0 0
      %1586 = vmatpush1.bf16.msra.mxu0 0
      %1587 = vmatprep.subr.bf16.mxu0 0
      %1588 = vmatpush1.bf16.msra.mxu0 0
      %1589 = vmatprep.subr.bf16.mxu0 0
      %1590 = vmatpush1.bf16.msra.mxu0 0
      %1591 = vmatprep.subr.bf16.mxu0 0
      %1592 = vmatpush1.bf16.msra.mxu0 0
      %1593 = vmatprep.subr.bf16.mxu0 0
      %1594 = vmatpush1.bf16.msra.mxu0 0
      %1595 = vmatprep.subr.bf16.mxu0 0
      %1596 = vmatpush1.bf16.msra.mxu0 %v1576
      %1597 = vmatprep.subr.bf16.mxu0 0
      %1598 = vmatpush2.bf16.msra.mxu0 0
      %1599 = vmatprep.subr.bf16.mxu0 0
      %1600 = vmatpush2.bf16.msra.mxu0 0
      %1601 = vmatprep.subr.bf16.mxu0 0
      %1602 = vmatpush2.bf16.msra.mxu0 0
      %1603 = vmatprep.subr.bf16.mxu0 0
      %1604 = vmatpush2.bf16.msra.mxu0 0
      %1605 = vmatprep.subr.bf16.mxu0 0
      %1606 = vmatpush2.bf16.msra.mxu0 0
      %1607 = vmatprep.subr.bf16.mxu0 0
      %1608 = vmatpush2.bf16.msra.mxu0 0
      %1609 = vmatprep.subr.bf16.mxu0 0
      %1610 = vmatpush2.bf16.msra.mxu0 0
      %1611 = vmatprep.subr.bf16.mxu0 0
      %1612 = vmatpush2.bf16.msra.mxu0 0
      %1613 = vmatprep.mubr.bf16.mxu0 0
      %1614 = vmatmul.mubr.bf16.gmra.mxu0 %v1579
      %v1615 = vpop.f32.mrf.mxu0
      %v1616 = vadd.f32 0.0, %v1615
      %v1617 = vpop.f32.mrf.mxu0
      %v1618 = vpop.f32.mrf.mxu0
      %v1619 = vpop.f32.mrf.mxu0
      %1620 = vdwg.mxu0
      %v1621 = vadd.f32 %v1565, %v1616
      %s1622 = scalar_lea.vmem [#allocation4], 2
      %v1623 = vld [vmem:[%s1622] ss:$2 sm:$0xff]
      %v1624 = vpack.c.bf16 %v1623, %v1623
      %s1625 = scalar_lea.vmem %s5, 16
      %v1626 = vld [vmem:[%s1625] sm:$0xf]
      %v1627 = vld [vmem:[%s1625 + $0x4] sm:$0xf]
      %v1630 = vunpack.c.l.b16 %v1626
      %v1631 = vunpack.c.l.b16 %v1627
      %v1632 = vpack.c.b16 %v1631, %v1630
      %v1635 = vsel %vm782, %v1624, 0
      %1637 = vmatprep.subr.bf16.mxu0 0
      %1638 = vmatpush1.bf16.msra.mxu0 0
      %1639 = vmatprep.subr.bf16.mxu0 0
      %1640 = vmatpush1.bf16.msra.mxu0 0
      %1641 = vmatprep.subr.bf16.mxu0 0
      %1642 = vmatpush1.bf16.msra.mxu0 0
      %1643 = vmatprep.subr.bf16.mxu0 0
      %1644 = vmatpush1.bf16.msra.mxu0 0
      %1645 = vmatprep.subr.bf16.mxu0 0
      %1646 = vmatpush1.bf16.msra.mxu0 0
      %1647 = vmatprep.subr.bf16.mxu0 0
      %1648 = vmatpush1.bf16.msra.mxu0 0
      %1649 = vmatprep.subr.bf16.mxu0 0
      %1650 = vmatpush1.bf16.msra.mxu0 0
      %1651 = vmatprep.subr.bf16.mxu0 0
      %1652 = vmatpush1.bf16.msra.mxu0 %v1632
      %1653 = vmatprep.subr.bf16.mxu0 0
      %1654 = vmatpush2.bf16.msra.mxu0 0
      %1655 = vmatprep.subr.bf16.mxu0 0
      %1656 = vmatpush2.bf16.msra.mxu0 0
      %1657 = vmatprep.subr.bf16.mxu0 0
      %1658 = vmatpush2.bf16.msra.mxu0 0
      %1659 = vmatprep.subr.bf16.mxu0 0
      %1660 = vmatpush2.bf16.msra.mxu0 0
      %1661 = vmatprep.subr.bf16.mxu0 0
      %1662 = vmatpush2.bf16.msra.mxu0 0
      %1663 = vmatprep.subr.bf16.mxu0 0
      %1664 = vmatpush2.bf16.msra.mxu0 0
      %1665 = vmatprep.subr.bf16.mxu0 0
      %1666 = vmatpush2.bf16.msra.mxu0 0
      %1667 = vmatprep.subr.bf16.mxu0 0
      %1668 = vmatpush2.bf16.msra.mxu0 0
      %1669 = vmatprep.mubr.bf16.mxu0 0
      %1670 = vmatmul.mubr.bf16.gmra.mxu0 %v1635
      %v1671 = vpop.f32.mrf.mxu0
      %v1672 = vadd.f32 0.0, %v1671
      %v1673 = vpop.f32.mrf.mxu0
      %v1674 = vpop.f32.mrf.mxu0
      %v1675 = vpop.f32.mrf.mxu0
      %1676 = vdwg.mxu0
      %v1677 = vadd.f32 %v1621, %v1672
      %s1678 = scalar_lea.vmem [#allocation4], 3
      %v1679 = vld [vmem:[%s1678] ss:$2 sm:$0xff]
      %v1680 = vpack.c.bf16 %v1679, %v1679
      %s1681 = scalar_lea.vmem %s5, 24
      %v1682 = vld [vmem:[%s1681] sm:$0xf]
      %v1683 = vld [vmem:[%s1681 + $0x4] sm:$0xf]
      %v1686 = vunpack.c.l.b16 %v1682
      %v1687 = vunpack.c.l.b16 %v1683
      %v1688 = vpack.c.b16 %v1687, %v1686
      %v1691 = vsel %vm782, %v1680, 0
      %1693 = vmatprep.subr.bf16.mxu0 0
      %1694 = vmatpush1.bf16.msra.mxu0 0
      %1695 = vmatprep.subr.bf16.mxu0 0
      %1696 = vmatpush1.bf16.msra.mxu0 0
      %1697 = vmatprep.subr.bf16.mxu0 0
      %1698 = vmatpush1.bf16.msra.mxu0 0
      %1699 = vmatprep.subr.bf16.mxu0 0
      %1700 = vmatpush1.bf16.msra.mxu0 0
      %1701 = vmatprep.subr.bf16.mxu0 0
      %1702 = vmatpush1.bf16.msra.mxu0 0
      %1703 = vmatprep.subr.bf16.mxu0 0
      %1704 = vmatpush1.bf16.msra.mxu0 0
      %1705 = vmatprep.subr.bf16.mxu0 0
      %1706 = vmatpush1.bf16.msra.mxu0 0
      %1707 = vmatprep.subr.bf16.mxu0 0
      %1708 = vmatpush1.bf16.msra.mxu0 %v1688
      %1709 = vmatprep.subr.bf16.mxu0 0
      %1710 = vmatpush2.bf16.msra.mxu0 0
      %1711 = vmatprep.subr.bf16.mxu0 0
      %1712 = vmatpush2.bf16.msra.mxu0 0
      %1713 = vmatprep.subr.bf16.mxu0 0
      %1714 = vmatpush2.bf16.msra.mxu0 0
      %1715 = vmatprep.subr.bf16.mxu0 0
      %1716 = vmatpush2.bf16.msra.mxu0 0
      %1717 = vmatprep.subr.bf16.mxu0 0
      %1718 = vmatpush2.bf16.msra.mxu0 0
      %1719 = vmatprep.subr.bf16.mxu0 0
      %1720 = vmatpush2.bf16.msra.mxu0 0
      %1721 = vmatprep.subr.bf16.mxu0 0
      %1722 = vmatpush2.bf16.msra.mxu0 0
      %1723 = vmatprep.subr.bf16.mxu0 0
      %1724 = vmatpush2.bf16.msra.mxu0 0
      %1725 = vmatprep.mubr.bf16.mxu0 0
      %1726 = vmatmul.mubr.bf16.gmra.mxu0 %v1691
      %v1727 = vpop.f32.mrf.mxu0
      %v1728 = vadd.f32 0.0, %v1727
      %v1729 = vpop.f32.mrf.mxu0
      %v1730 = vpop.f32.mrf.mxu0
      %v1731 = vpop.f32.mrf.mxu0
      %1732 = vdwg.mxu0
      %v1733 = vadd.f32 %v1677, %v1728
      %s1734 = scalar_lea.vmem [#allocation4], 4
      %v1735 = vld [vmem:[%s1734] ss:$2 sm:$0xff]
      %v1736 = vpack.c.bf16 %v1735, %v1735
      %s1737 = scalar_lea.vmem %s5, 32
      %v1738 = vld [vmem:[%s1737] sm:$0xf]
      %v1739 = vld [vmem:[%s1737 + $0x4] sm:$0xf]
      %v1742 = vunpack.c.l.b16 %v1738
      %v1743 = vunpack.c.l.b16 %v1739
      %v1744 = vpack.c.b16 %v1743, %v1742
      %v1747 = vsel %vm782, %v1736, 0
      %1749 = vmatprep.subr.bf16.mxu0 0
      %1750 = vmatpush1.bf16.msra.mxu0 0
      %1751 = vmatprep.subr.bf16.mxu0 0
      %1752 = vmatpush1.bf16.msra.mxu0 0
      %1753 = vmatprep.subr.bf16.mxu0 0
      %1754 = vmatpush1.bf16.msra.mxu0 0
      %1755 = vmatprep.subr.bf16.mxu0 0
      %1756 = vmatpush1.bf16.msra.mxu0 0
      %1757 = vmatprep.subr.bf16.mxu0 0
      %1758 = vmatpush1.bf16.msra.mxu0 0
      %1759 = vmatprep.subr.bf16.mxu0 0
      %1760 = vmatpush1.bf16.msra.mxu0 0
      %1761 = vmatprep.subr.bf16.mxu0 0
      %1762 = vmatpush1.bf16.msra.mxu0 0
      %1763 = vmatprep.subr.bf16.mxu0 0
      %1764 = vmatpush1.bf16.msra.mxu0 %v1744
      %1765 = vmatprep.subr.bf16.mxu0 0
      %1766 = vmatpush2.bf16.msra.mxu0 0
      %1767 = vmatprep.subr.bf16.mxu0 0
      %1768 = vmatpush2.bf16.msra.mxu0 0
      %1769 = vmatprep.subr.bf16.mxu0 0
      %1770 = vmatpush2.bf16.msra.mxu0 0
      %1771 = vmatprep.subr.bf16.mxu0 0
      %1772 = vmatpush2.bf16.msra.mxu0 0
      %1773 = vmatprep.subr.bf16.mxu0 0
      %1774 = vmatpush2.bf16.msra.mxu0 0
      %1775 = vmatprep.subr.bf16.mxu0 0
      %1776 = vmatpush2.bf16.msra.mxu0 0
      %1777 = vmatprep.subr.bf16.mxu0 0
      %1778 = vmatpush2.bf16.msra.mxu0 0
      %1779 = vmatprep.subr.bf16.mxu0 0
      %1780 = vmatpush2.bf16.msra.mxu0 0
      %1781 = vmatprep.mubr.bf16.mxu0 0
      %1782 = vmatmul.mubr.bf16.gmra.mxu0 %v1747
      %v1783 = vpop.f32.mrf.mxu0
      %v1784 = vadd.f32 0.0, %v1783
      %v1785 = vpop.f32.mrf.mxu0
      %v1786 = vpop.f32.mrf.mxu0
      %v1787 = vpop.f32.mrf.mxu0
      %1788 = vdwg.mxu0
      %v1789 = vadd.f32 %v1733, %v1784
      %v1790 = vmax.f32 %v1789, 0.0
      %1791 = vst.msk [vmem:[#allocation5 + $0x2] sm:$0xff] %vm782, %v1790
      %v1792 = vld [vmem:[%s8] sm:$0x1]
      %v1793 = vld [vmem:[#allocation5] ss:$2 sm:$0xf]
      %v1794 = vpack.c.bf16 %v1793, %v1793
      %v1795 = vld [vmem:[%s7] sm:$0xf]
      %v1796 = vld [vmem:[%s7 + $0x4] sm:$0xf]
      %v1799 = vunpack.c.l.b16 %v1795
      %v1800 = vunpack.c.l.b16 %v1796
      %v1801 = vpack.c.b16 %v1800, %v1799
      %v1804 = vsel %vm782, %v1794, 0
      %1806 = vmatprep.subr.bf16.mxu0 0
      %1807 = vmatpush1.bf16.msra.mxu0 0
      %1808 = vmatprep.subr.bf16.mxu0 0
      %1809 = vmatpush1.bf16.msra.mxu0 0
      %1810 = vmatprep.subr.bf16.mxu0 0
      %1811 = vmatpush1.bf16.msra.mxu0 0
      %1812 = vmatprep.subr.bf16.mxu0 0
      %1813 = vmatpush1.bf16.msra.mxu0 0
      %1814 = vmatprep.subr.bf16.mxu0 0
      %1815 = vmatpush1.bf16.msra.mxu0 0
      %1816 = vmatprep.subr.bf16.mxu0 0
      %1817 = vmatpush1.bf16.msra.mxu0 0
      %1818 = vmatprep.subr.bf16.mxu0 0
      %1819 = vmatpush1.bf16.msra.mxu0 0
      %1820 = vmatprep.subr.bf16.mxu0 0
      %1821 = vmatpush1.bf16.msra.mxu0 %v1801
      %1822 = vmatprep.subr.bf16.mxu0 0
      %1823 = vmatpush2.bf16.msra.mxu0 0
      %1824 = vmatprep.subr.bf16.mxu0 0
      %1825 = vmatpush2.bf16.msra.mxu0 0
      %1826 = vmatprep.subr.bf16.mxu0 0
      %1827 = vmatpush2.bf16.msra.mxu0 0
      %1828 = vmatprep.subr.bf16.mxu0 0
      %1829 = vmatpush2.bf16.msra.mxu0 0
      %1830 = vmatprep.subr.bf16.mxu0 0
      %1831 = vmatpush2.bf16.msra.mxu0 0
      %1832 = vmatprep.subr.bf16.mxu0 0
      %1833 = vmatpush2.bf16.msra.mxu0 0
      %1834 = vmatprep.subr.bf16.mxu0 0
      %1835 = vmatpush2.bf16.msra.mxu0 0
      %1836 = vmatprep.subr.bf16.mxu0 0
      %1837 = vmatpush2.bf16.msra.mxu0 0
      %1838 = vmatprep.mubr.bf16.mxu0 0
      %1839 = vmatmul.mubr.bf16.gmra.mxu0 %v1804
      %v1840 = vpop.f32.mrf.mxu0
      %v1841 = vadd.f32 0.0, %v1840
      %v1842 = vpop.f32.mrf.mxu0
      %v1843 = vpop.f32.mrf.mxu0
      %v1844 = vpop.f32.mrf.mxu0
      %1845 = vdwg.mxu0
      %v1847 = vlaneseq
      %v1848 = vshrl.u32 %v1847, 7
      %v1849 = vsub.s32 0, %v1848
      %v1850 = vrot.slane %v1792, %v1849
      %v1852 = vadd.f32 %v1850, %v1841
      %s1853 = scalar_lea.vmem [#allocation5], 1
      %v1854 = vld [vmem:[%s1853] ss:$2 sm:$0xf]
      %v1855 = vpack.c.bf16 %v1854, %v1854
      %s1856 = scalar_lea.vmem %s7, 8
      %v1857 = vld [vmem:[%s1856] sm:$0xf]
      %v1858 = vld [vmem:[%s1856 + $0x4] sm:$0xf]
      %v1861 = vunpack.c.l.b16 %v1857
      %v1862 = vunpack.c.l.b16 %v1858
      %v1863 = vpack.c.b16 %v1862, %v1861
      %v1866 = vsel %vm782, %v1855, 0
      %1868 = vmatprep.subr.bf16.mxu0 0
      %1869 = vmatpush1.bf16.msra.mxu0 0
      %1870 = vmatprep.subr.bf16.mxu0 0
      %1871 = vmatpush1.bf16.msra.mxu0 0
      %1872 = vmatprep.subr.bf16.mxu0 0
      %1873 = vmatpush1.bf16.msra.mxu0 0
      %1874 = vmatprep.subr.bf16.mxu0 0
      %1875 = vmatpush1.bf16.msra.mxu0 0
      %1876 = vmatprep.subr.bf16.mxu0 0
      %1877 = vmatpush1.bf16.msra.mxu0 0
      %1878 = vmatprep.subr.bf16.mxu0 0
      %1879 = vmatpush1.bf16.msra.mxu0 0
      %1880 = vmatprep.subr.bf16.mxu0 0
      %1881 = vmatpush1.bf16.msra.mxu0 0
      %1882 = vmatprep.subr.bf16.mxu0 0
      %1883 = vmatpush1.bf16.msra.mxu0 %v1863
      %1884 = vmatprep.subr.bf16.mxu0 0
      %1885 = vmatpush2.bf16.msra.mxu0 0
      %1886 = vmatprep.subr.bf16.mxu0 0
      %1887 = vmatpush2.bf16.msra.mxu0 0
      %1888 = vmatprep.subr.bf16.mxu0 0
      %1889 = vmatpush2.bf16.msra.mxu0 0
      %1890 = vmatprep.subr.bf16.mxu0 0
      %1891 = vmatpush2.bf16.msra.mxu0 0
      %1892 = vmatprep.subr.bf16.mxu0 0
      %1893 = vmatpush2.bf16.msra.mxu0 0
      %1894 = vmatprep.subr.bf16.mxu0 0
      %1895 = vmatpush2.bf16.msra.mxu0 0
      %1896 = vmatprep.subr.bf16.mxu0 0
      %1897 = vmatpush2.bf16.msra.mxu0 0
      %1898 = vmatprep.subr.bf16.mxu0 0
      %1899 = vmatpush2.bf16.msra.mxu0 0
      %1900 = vmatprep.mubr.bf16.mxu0 0
      %1901 = vmatmul.mubr.bf16.gmra.mxu0 %v1866
      %v1902 = vpop.f32.mrf.mxu0
      %v1903 = vadd.f32 0.0, %v1902
      %v1904 = vpop.f32.mrf.mxu0
      %v1905 = vpop.f32.mrf.mxu0
      %v1906 = vpop.f32.mrf.mxu0
      %1907 = vdwg.mxu0
      %v1908 = vadd.f32 %v1852, %v1903
      %s1909 = scalar_lea.vmem [#allocation5], 2
      %v1910 = vld [vmem:[%s1909] ss:$2 sm:$0xf]
      %v1911 = vpack.c.bf16 %v1910, %v1910
      %s1912 = scalar_lea.vmem %s7, 16
      %v1913 = vld [vmem:[%s1912] sm:$0xf]
      %v1914 = vld [vmem:[%s1912 + $0x4] sm:$0xf]
      %v1917 = vunpack.c.l.b16 %v1913
      %v1918 = vunpack.c.l.b16 %v1914
      %v1919 = vpack.c.b16 %v1918, %v1917
      %v1922 = vsel %vm782, %v1911, 0
      %1924 = vmatprep.subr.bf16.mxu0 0
      %1925 = vmatpush1.bf16.msra.mxu0 0
      %1926 = vmatprep.subr.bf16.mxu0 0
      %1927 = vmatpush1.bf16.msra.mxu0 0
      %1928 = vmatprep.subr.bf16.mxu0 0
      %1929 = vmatpush1.bf16.msra.mxu0 0
      %1930 = vmatprep.subr.bf16.mxu0 0
      %1931 = vmatpush1.bf16.msra.mxu0 0
      %1932 = vmatprep.subr.bf16.mxu0 0
      %1933 = vmatpush1.bf16.msra.mxu0 0
      %1934 = vmatprep.subr.bf16.mxu0 0
      %1935 = vmatpush1.bf16.msra.mxu0 0
      %1936 = vmatprep.subr.bf16.mxu0 0
      %1937 = vmatpush1.bf16.msra.mxu0 0
      %1938 = vmatprep.subr.bf16.mxu0 0
      %1939 = vmatpush1.bf16.msra.mxu0 %v1919
      %1940 = vmatprep.subr.bf16.mxu0 0
      %1941 = vmatpush2.bf16.msra.mxu0 0
      %1942 = vmatprep.subr.bf16.mxu0 0
      %1943 = vmatpush2.bf16.msra.mxu0 0
      %1944 = vmatprep.subr.bf16.mxu0 0
      %1945 = vmatpush2.bf16.msra.mxu0 0
      %1946 = vmatprep.subr.bf16.mxu0 0
      %1947 = vmatpush2.bf16.msra.mxu0 0
      %1948 = vmatprep.subr.bf16.mxu0 0
      %1949 = vmatpush2.bf16.msra.mxu0 0
      %1950 = vmatprep.subr.bf16.mxu0 0
      %1951 = vmatpush2.bf16.msra.mxu0 0
      %1952 = vmatprep.subr.bf16.mxu0 0
      %1953 = vmatpush2.bf16.msra.mxu0 0
      %1954 = vmatprep.subr.bf16.mxu0 0
      %1955 = vmatpush2.bf16.msra.mxu0 0
      %1956 = vmatprep.mubr.bf16.mxu0 0
      %1957 = vmatmul.mubr.bf16.gmra.mxu0 %v1922
      %v1958 = vpop.f32.mrf.mxu0
      %v1959 = vadd.f32 0.0, %v1958
      %v1960 = vpop.f32.mrf.mxu0
      %v1961 = vpop.f32.mrf.mxu0
      %v1962 = vpop.f32.mrf.mxu0
      %1963 = vdwg.mxu0
      %v1964 = vadd.f32 %v1908, %v1959
      %s1965 = scalar_lea.vmem [#allocation5], 3
      %v1966 = vld [vmem:[%s1965] ss:$2 sm:$0xf]
      %v1967 = vpack.c.bf16 %v1966, %v1966
      %s1968 = scalar_lea.vmem %s7, 24
      %v1969 = vld [vmem:[%s1968] sm:$0xf]
      %v1970 = vld [vmem:[%s1968 + $0x4] sm:$0xf]
      %v1973 = vunpack.c.l.b16 %v1969
      %v1974 = vunpack.c.l.b16 %v1970
      %v1975 = vpack.c.b16 %v1974, %v1973
      %v1978 = vsel %vm782, %v1967, 0
      %1980 = vmatprep.subr.bf16.mxu0 0
      %1981 = vmatpush1.bf16.msra.mxu0 0
      %1982 = vmatprep.subr.bf16.mxu0 0
      %1983 = vmatpush1.bf16.msra.mxu0 0
      %1984 = vmatprep.subr.bf16.mxu0 0
      %1985 = vmatpush1.bf16.msra.mxu0 0
      %1986 = vmatprep.subr.bf16.mxu0 0
      %1987 = vmatpush1.bf16.msra.mxu0 0
      %1988 = vmatprep.subr.bf16.mxu0 0
      %1989 = vmatpush1.bf16.msra.mxu0 0
      %1990 = vmatprep.subr.bf16.mxu0 0
      %1991 = vmatpush1.bf16.msra.mxu0 0
      %1992 = vmatprep.subr.bf16.mxu0 0
      %1993 = vmatpush1.bf16.msra.mxu0 0
      %1994 = vmatprep.subr.bf16.mxu0 0
      %1995 = vmatpush1.bf16.msra.mxu0 %v1975
      %1996 = vmatprep.subr.bf16.mxu0 0
      %1997 = vmatpush2.bf16.msra.mxu0 0
      %1998 = vmatprep.subr.bf16.mxu0 0
      %1999 = vmatpush2.bf16.msra.mxu0 0
      %2000 = vmatprep.subr.bf16.mxu0 0
      %2001 = vmatpush2.bf16.msra.mxu0 0
      %2002 = vmatprep.subr.bf16.mxu0 0
      %2003 = vmatpush2.bf16.msra.mxu0 0
      %2004 = vmatprep.subr.bf16.mxu0 0
      %2005 = vmatpush2.bf16.msra.mxu0 0
      %2006 = vmatprep.subr.bf16.mxu0 0
      %2007 = vmatpush2.bf16.msra.mxu0 0
      %2008 = vmatprep.subr.bf16.mxu0 0
      %2009 = vmatpush2.bf16.msra.mxu0 0
      %2010 = vmatprep.subr.bf16.mxu0 0
      %2011 = vmatpush2.bf16.msra.mxu0 0
      %2012 = vmatprep.mubr.bf16.mxu0 0
      %2013 = vmatmul.mubr.bf16.gmra.mxu0 %v1978
      %v2014 = vpop.f32.mrf.mxu0
      %v2015 = vadd.f32 0.0, %v2014
      %v2016 = vpop.f32.mrf.mxu0
      %v2017 = vpop.f32.mrf.mxu0
      %v2018 = vpop.f32.mrf.mxu0
      %2019 = vdwg.mxu0
      %v2020 = vadd.f32 %v1964, %v2015
      %s2021 = scalar_lea.vmem [#allocation5], 4
      %v2022 = vld [vmem:[%s2021] ss:$2 sm:$0xf]
      %v2023 = vpack.c.bf16 %v2022, %v2022
      %s2024 = scalar_lea.vmem %s7, 32
      %v2025 = vld [vmem:[%s2024] sm:$0xf]
      %v2026 = vld [vmem:[%s2024 + $0x4] sm:$0xf]
      %v2029 = vunpack.c.l.b16 %v2025
      %v2030 = vunpack.c.l.b16 %v2026
      %v2031 = vpack.c.b16 %v2030, %v2029
      %v2034 = vsel %vm782, %v2023, 0
      %2036 = vmatprep.subr.bf16.mxu0 0
      %2037 = vmatpush1.bf16.msra.mxu0 0
      %2038 = vmatprep.subr.bf16.mxu0 0
      %2039 = vmatpush1.bf16.msra.mxu0 0
      %2040 = vmatprep.subr.bf16.mxu0 0
      %2041 = vmatpush1.bf16.msra.mxu0 0
      %2042 = vmatprep.subr.bf16.mxu0 0
      %2043 = vmatpush1.bf16.msra.mxu0 0
      %2044 = vmatprep.subr.bf16.mxu0 0
      %2045 = vmatpush1.bf16.msra.mxu0 0
      %2046 = vmatprep.subr.bf16.mxu0 0
      %2047 = vmatpush1.bf16.msra.mxu0 0
      %2048 = vmatprep.subr.bf16.mxu0 0
      %2049 = vmatpush1.bf16.msra.mxu0 0
      %2050 = vmatprep.subr.bf16.mxu0 0
      %2051 = vmatpush1.bf16.msra.mxu0 %v2031
      %2052 = vmatprep.subr.bf16.mxu0 0
      %2053 = vmatpush2.bf16.msra.mxu0 0
      %2054 = vmatprep.subr.bf16.mxu0 0
      %2055 = vmatpush2.bf16.msra.mxu0 0
      %2056 = vmatprep.subr.bf16.mxu0 0
      %2057 = vmatpush2.bf16.msra.mxu0 0
      %2058 = vmatprep.subr.bf16.mxu0 0
      %2059 = vmatpush2.bf16.msra.mxu0 0
      %2060 = vmatprep.subr.bf16.mxu0 0
      %2061 = vmatpush2.bf16.msra.mxu0 0
      %2062 = vmatprep.subr.bf16.mxu0 0
      %2063 = vmatpush2.bf16.msra.mxu0 0
      %2064 = vmatprep.subr.bf16.mxu0 0
      %2065 = vmatpush2.bf16.msra.mxu0 0
      %2066 = vmatprep.subr.bf16.mxu0 0
      %2067 = vmatpush2.bf16.msra.mxu0 0
      %2068 = vmatprep.mubr.bf16.mxu0 0
      %2069 = vmatmul.mubr.bf16.gmra.mxu0 %v2034
      %v2070 = vpop.f32.mrf.mxu0
      %v2071 = vadd.f32 0.0, %v2070
      %v2072 = vpop.f32.mrf.mxu0
      %v2073 = vpop.f32.mrf.mxu0
      %v2074 = vpop.f32.mrf.mxu0
      %2075 = vdwg.mxu0
      %v2076 = vadd.f32 %v2020, %v2071
      %v2077 = vmax.f32 %v2076, 0.0
      %vm2078 = vcmask 257024
      %2079 = vst.msk [vmem:[#allocation6 + $0x2] sm:$0xf] %vm2078, %v2077
      %v2080 = vld [vmem:[%s10] sm:$0x1]
      %v2081 = vld [vmem:[#allocation6] ss:$2 sm:$0x3]
      %v2082 = vpack.c.bf16 %v2081, %v2081
      %v2083 = vld [vmem:[%s9] sm:$0xf]
      %v2084 = vld [vmem:[%s9 + $0x4] sm:$0xf]
      %v2085 = vld [vmem:[%s9 + $0x8] sm:$0xf]
      %v2086 = vld [vmem:[%s9 + $0xc] sm:$0xf]
      %v2091 = vunpack.c.l.b16 %v2083
      %v2092 = vunpack.c.l.b16 %v2084
      %v2093 = vunpack.c.l.b16 %v2085
      %v2094 = vunpack.c.l.b16 %v2086
      %v2095 = vpack.c.b16 %v2092, %v2091
      %v2096 = vpack.c.b16 %v2094, %v2093
      %v2100 = vsel %vm789, %v2082, 0
      %2102 = vmatprep.subr.bf16.mxu0 0
      %2103 = vmatpush1.bf16.msra.mxu0 0
      %2104 = vmatprep.subr.bf16.mxu0 0
      %2105 = vmatpush1.bf16.msra.mxu0 0
      %2106 = vmatprep.subr.bf16.mxu0 0
      %2107 = vmatpush1.bf16.msra.mxu0 0
      %2108 = vmatprep.subr.bf16.mxu0 0
      %2109 = vmatpush1.bf16.msra.mxu0 0
      %2110 = vmatprep.subr.bf16.mxu0 0
      %2111 = vmatpush1.bf16.msra.mxu0 0
      %2112 = vmatprep.subr.bf16.mxu0 0
      %2113 = vmatpush1.bf16.msra.mxu0 0
      %2114 = vmatprep.subr.bf16.mxu0 0
      %2115 = vmatpush1.bf16.msra.mxu0 %v2096
      %2116 = vmatprep.subr.bf16.mxu0 0
      %2117 = vmatpush1.bf16.msra.mxu0 %v2095
      %2118 = vmatprep.subr.bf16.mxu0 0
      %2119 = vmatpush2.bf16.msra.mxu0 0
      %2120 = vmatprep.subr.bf16.mxu0 0
      %2121 = vmatpush2.bf16.msra.mxu0 0
      %2122 = vmatprep.subr.bf16.mxu0 0
      %2123 = vmatpush2.bf16.msra.mxu0 0
      %2124 = vmatprep.subr.bf16.mxu0 0
      %2125 = vmatpush2.bf16.msra.mxu0 0
      %2126 = vmatprep.subr.bf16.mxu0 0
      %2127 = vmatpush2.bf16.msra.mxu0 0
      %2128 = vmatprep.subr.bf16.mxu0 0
      %2129 = vmatpush2.bf16.msra.mxu0 0
      %2130 = vmatprep.subr.bf16.mxu0 0
      %2131 = vmatpush2.bf16.msra.mxu0 0
      %2132 = vmatprep.subr.bf16.mxu0 0
      %2133 = vmatpush2.bf16.msra.mxu0 0
      %2134 = vmatprep.mubr.bf16.mxu0 0
      %2135 = vmatmul.mubr.bf16.gmra.mxu0 %v2100
      %v2136 = vpop.f32.mrf.mxu0
      %v2137 = vadd.f32 0.0, %v2136
      %v2138 = vpop.f32.mrf.mxu0
      %v2139 = vpop.f32.mrf.mxu0
      %v2140 = vpop.f32.mrf.mxu0
      %2141 = vdwg.mxu0
      %v2143 = vlaneseq
      %v2144 = vshrl.u32 %v2143, 7
      %v2145 = vsub.s32 0, %v2144
      %v2146 = vrot.slane %v2080, %v2145
      %v2148 = vadd.f32 %v2146, %v2137
      %s2149 = scalar_lea.vmem [#allocation6], 1
      %v2150 = vld [vmem:[%s2149] ss:$2 sm:$0x3]
      %v2151 = vpack.c.bf16 %v2150, %v2150
      %s2152 = scalar_lea.vmem %s9, 16
      %v2153 = vld [vmem:[%s2152] sm:$0xf]
      %v2154 = vld [vmem:[%s2152 + $0x4] sm:$0xf]
      %v2155 = vld [vmem:[%s2152 + $0x8] sm:$0xf]
      %v2156 = vld [vmem:[%s2152 + $0xc] sm:$0xf]
      %v2161 = vunpack.c.l.b16 %v2153
      %v2162 = vunpack.c.l.b16 %v2154
      %v2163 = vunpack.c.l.b16 %v2155
      %v2164 = vunpack.c.l.b16 %v2156
      %v2165 = vpack.c.b16 %v2162, %v2161
      %v2166 = vpack.c.b16 %v2164, %v2163
      %v2170 = vsel %vm789, %v2151, 0
      %2172 = vmatprep.subr.bf16.mxu0 0
      %2173 = vmatpush1.bf16.msra.mxu0 0
      %2174 = vmatprep.subr.bf16.mxu0 0
      %2175 = vmatpush1.bf16.msra.mxu0 0
      %2176 = vmatprep.subr.bf16.mxu0 0
      %2177 = vmatpush1.bf16.msra.mxu0 0
      %2178 = vmatprep.subr.bf16.mxu0 0
      %2179 = vmatpush1.bf16.msra.mxu0 0
      %2180 = vmatprep.subr.bf16.mxu0 0
      %2181 = vmatpush1.bf16.msra.mxu0 0
      %2182 = vmatprep.subr.bf16.mxu0 0
      %2183 = vmatpush1.bf16.msra.mxu0 0
      %2184 = vmatprep.subr.bf16.mxu0 0
      %2185 = vmatpush1.bf16.msra.mxu0 %v2166
      %2186 = vmatprep.subr.bf16.mxu0 0
      %2187 = vmatpush1.bf16.msra.mxu0 %v2165
      %2188 = vmatprep.subr.bf16.mxu0 0
      %2189 = vmatpush2.bf16.msra.mxu0 0
      %2190 = vmatprep.subr.bf16.mxu0 0
      %2191 = vmatpush2.bf16.msra.mxu0 0
      %2192 = vmatprep.subr.bf16.mxu0 0
      %2193 = vmatpush2.bf16.msra.mxu0 0
      %2194 = vmatprep.subr.bf16.mxu0 0
      %2195 = vmatpush2.bf16.msra.mxu0 0
      %2196 = vmatprep.subr.bf16.mxu0 0
      %2197 = vmatpush2.bf16.msra.mxu0 0
      %2198 = vmatprep.subr.bf16.mxu0 0
      %2199 = vmatpush2.bf16.msra.mxu0 0
      %2200 = vmatprep.subr.bf16.mxu0 0
      %2201 = vmatpush2.bf16.msra.mxu0 0
      %2202 = vmatprep.subr.bf16.mxu0 0
      %2203 = vmatpush2.bf16.msra.mxu0 0
      %2204 = vmatprep.mubr.bf16.mxu0 0
      %2205 = vmatmul.mubr.bf16.gmra.mxu0 %v2170
      %v2206 = vpop.f32.mrf.mxu0
      %v2207 = vadd.f32 0.0, %v2206
      %v2208 = vpop.f32.mrf.mxu0
      %v2209 = vpop.f32.mrf.mxu0
      %v2210 = vpop.f32.mrf.mxu0
      %2211 = vdwg.mxu0
      %v2212 = vadd.f32 %v2148, %v2207
      %s2213 = scalar_lea.vmem [#allocation6], 2
      %v2214 = vld [vmem:[%s2213] ss:$2 sm:$0x3]
      %v2215 = vpack.c.bf16 %v2214, %v2214
      %s2216 = scalar_lea.vmem %s9, 32
      %v2217 = vld [vmem:[%s2216] sm:$0xf]
      %v2218 = vld [vmem:[%s2216 + $0x4] sm:$0xf]
      %v2219 = vld [vmem:[%s2216 + $0x8] sm:$0xf]
      %v2220 = vld [vmem:[%s2216 + $0xc] sm:$0xf]
      %v2225 = vunpack.c.l.b16 %v2217
      %v2226 = vunpack.c.l.b16 %v2218
      %v2227 = vunpack.c.l.b16 %v2219
      %v2228 = vunpack.c.l.b16 %v2220
      %v2229 = vpack.c.b16 %v2226, %v2225
      %v2230 = vpack.c.b16 %v2228, %v2227
      %v2234 = vsel %vm789, %v2215, 0
      %2236 = vmatprep.subr.bf16.mxu0 0
      %2237 = vmatpush1.bf16.msra.mxu0 0
      %2238 = vmatprep.subr.bf16.mxu0 0
      %2239 = vmatpush1.bf16.msra.mxu0 0
      %2240 = vmatprep.subr.bf16.mxu0 0
      %2241 = vmatpush1.bf16.msra.mxu0 0
      %2242 = vmatprep.subr.bf16.mxu0 0
      %2243 = vmatpush1.bf16.msra.mxu0 0
      %2244 = vmatprep.subr.bf16.mxu0 0
      %2245 = vmatpush1.bf16.msra.mxu0 0
      %2246 = vmatprep.subr.bf16.mxu0 0
      %2247 = vmatpush1.bf16.msra.mxu0 0
      %2248 = vmatprep.subr.bf16.mxu0 0
      %2249 = vmatpush1.bf16.msra.mxu0 %v2230
      %2250 = vmatprep.subr.bf16.mxu0 0
      %2251 = vmatpush1.bf16.msra.mxu0 %v2229
      %2252 = vmatprep.subr.bf16.mxu0 0
      %2253 = vmatpush2.bf16.msra.mxu0 0
      %2254 = vmatprep.subr.bf16.mxu0 0
      %2255 = vmatpush2.bf16.msra.mxu0 0
      %2256 = vmatprep.subr.bf16.mxu0 0
      %2257 = vmatpush2.bf16.msra.mxu0 0
      %2258 = vmatprep.subr.bf16.mxu0 0
      %2259 = vmatpush2.bf16.msra.mxu0 0
      %2260 = vmatprep.subr.bf16.mxu0 0
      %2261 = vmatpush2.bf16.msra.mxu0 0
      %2262 = vmatprep.subr.bf16.mxu0 0
      %2263 = vmatpush2.bf16.msra.mxu0 0
      %2264 = vmatprep.subr.bf16.mxu0 0
      %2265 = vmatpush2.bf16.msra.mxu0 0
      %2266 = vmatprep.subr.bf16.mxu0 0
      %2267 = vmatpush2.bf16.msra.mxu0 0
      %2268 = vmatprep.mubr.bf16.mxu0 0
      %2269 = vmatmul.mubr.bf16.gmra.mxu0 %v2234
      %v2270 = vpop.f32.mrf.mxu0
      %v2271 = vadd.f32 0.0, %v2270
      %v2272 = vpop.f32.mrf.mxu0
      %v2273 = vpop.f32.mrf.mxu0
      %v2274 = vpop.f32.mrf.mxu0
      %2275 = vdwg.mxu0
      %v2276 = vadd.f32 %v2212, %v2271
      %s2277 = scalar_lea.vmem [#allocation6], 3
      %v2278 = vld [vmem:[%s2277] ss:$2 sm:$0x3]
      %v2279 = vpack.c.bf16 %v2278, %v2278
      %s2280 = scalar_lea.vmem %s9, 48
      %v2281 = vld [vmem:[%s2280] sm:$0xf]
      %v2282 = vld [vmem:[%s2280 + $0x4] sm:$0xf]
      %v2283 = vld [vmem:[%s2280 + $0x8] sm:$0xf]
      %v2284 = vld [vmem:[%s2280 + $0xc] sm:$0xf]
      %v2289 = vunpack.c.l.b16 %v2281
      %v2290 = vunpack.c.l.b16 %v2282
      %v2291 = vunpack.c.l.b16 %v2283
      %v2292 = vunpack.c.l.b16 %v2284
      %v2293 = vpack.c.b16 %v2290, %v2289
      %v2294 = vpack.c.b16 %v2292, %v2291
      %v2298 = vsel %vm789, %v2279, 0
      %2300 = vmatprep.subr.bf16.mxu0 0
      %2301 = vmatpush1.bf16.msra.mxu0 0
      %2302 = vmatprep.subr.bf16.mxu0 0
      %2303 = vmatpush1.bf16.msra.mxu0 0
      %2304 = vmatprep.subr.bf16.mxu0 0
      %2305 = vmatpush1.bf16.msra.mxu0 0
      %2306 = vmatprep.subr.bf16.mxu0 0
      %2307 = vmatpush1.bf16.msra.mxu0 0
      %2308 = vmatprep.subr.bf16.mxu0 0
      %2309 = vmatpush1.bf16.msra.mxu0 0
      %2310 = vmatprep.subr.bf16.mxu0 0
      %2311 = vmatpush1.bf16.msra.mxu0 0
      %2312 = vmatprep.subr.bf16.mxu0 0
      %2313 = vmatpush1.bf16.msra.mxu0 %v2294
      %2314 = vmatprep.subr.bf16.mxu0 0
      %2315 = vmatpush1.bf16.msra.mxu0 %v2293
      %2316 = vmatprep.subr.bf16.mxu0 0
      %2317 = vmatpush2.bf16.msra.mxu0 0
      %2318 = vmatprep.subr.bf16.mxu0 0
      %2319 = vmatpush2.bf16.msra.mxu0 0
      %2320 = vmatprep.subr.bf16.mxu0 0
      %2321 = vmatpush2.bf16.msra.mxu0 0
      %2322 = vmatprep.subr.bf16.mxu0 0
      %2323 = vmatpush2.bf16.msra.mxu0 0
      %2324 = vmatprep.subr.bf16.mxu0 0
      %2325 = vmatpush2.bf16.msra.mxu0 0
      %2326 = vmatprep.subr.bf16.mxu0 0
      %2327 = vmatpush2.bf16.msra.mxu0 0
      %2328 = vmatprep.subr.bf16.mxu0 0
      %2329 = vmatpush2.bf16.msra.mxu0 0
      %2330 = vmatprep.subr.bf16.mxu0 0
      %2331 = vmatpush2.bf16.msra.mxu0 0
      %2332 = vmatprep.mubr.bf16.mxu0 0
      %2333 = vmatmul.mubr.bf16.gmra.mxu0 %v2298
      %v2334 = vpop.f32.mrf.mxu0
      %v2335 = vadd.f32 0.0, %v2334
      %v2336 = vpop.f32.mrf.mxu0
      %v2337 = vpop.f32.mrf.mxu0
      %v2338 = vpop.f32.mrf.mxu0
      %2339 = vdwg.mxu0
      %v2340 = vadd.f32 %v2276, %v2335
      %s2341 = scalar_lea.vmem [#allocation6], 4
      %v2342 = vld [vmem:[%s2341] ss:$2 sm:$0x3]
      %v2343 = vpack.c.bf16 %v2342, %v2342
      %s2344 = scalar_lea.vmem %s9, 64
      %v2345 = vld [vmem:[%s2344] sm:$0xf]
      %v2346 = vld [vmem:[%s2344 + $0x4] sm:$0xf]
      %v2347 = vld [vmem:[%s2344 + $0x8] sm:$0xf]
      %v2348 = vld [vmem:[%s2344 + $0xc] sm:$0xf]
      %v2353 = vunpack.c.l.b16 %v2345
      %v2354 = vunpack.c.l.b16 %v2346
      %v2355 = vunpack.c.l.b16 %v2347
      %v2356 = vunpack.c.l.b16 %v2348
      %v2357 = vpack.c.b16 %v2354, %v2353
      %v2358 = vpack.c.b16 %v2356, %v2355
      %v2362 = vsel %vm789, %v2343, 0
      %2364 = vmatprep.subr.bf16.mxu0 0
      %2365 = vmatpush1.bf16.msra.mxu0 0
      %2366 = vmatprep.subr.bf16.mxu0 0
      %2367 = vmatpush1.bf16.msra.mxu0 0
      %2368 = vmatprep.subr.bf16.mxu0 0
      %2369 = vmatpush1.bf16.msra.mxu0 0
      %2370 = vmatprep.subr.bf16.mxu0 0
      %2371 = vmatpush1.bf16.msra.mxu0 0
      %2372 = vmatprep.subr.bf16.mxu0 0
      %2373 = vmatpush1.bf16.msra.mxu0 0
      %2374 = vmatprep.subr.bf16.mxu0 0
      %2375 = vmatpush1.bf16.msra.mxu0 0
      %2376 = vmatprep.subr.bf16.mxu0 0
      %2377 = vmatpush1.bf16.msra.mxu0 %v2358
      %2378 = vmatprep.subr.bf16.mxu0 0
      %2379 = vmatpush1.bf16.msra.mxu0 %v2357
      %2380 = vmatprep.subr.bf16.mxu0 0
      %2381 = vmatpush2.bf16.msra.mxu0 0
      %2382 = vmatprep.subr.bf16.mxu0 0
      %2383 = vmatpush2.bf16.msra.mxu0 0
      %2384 = vmatprep.subr.bf16.mxu0 0
      %2385 = vmatpush2.bf16.msra.mxu0 0
      %2386 = vmatprep.subr.bf16.mxu0 0
      %2387 = vmatpush2.bf16.msra.mxu0 0
      %2388 = vmatprep.subr.bf16.mxu0 0
      %2389 = vmatpush2.bf16.msra.mxu0 0
      %2390 = vmatprep.subr.bf16.mxu0 0
      %2391 = vmatpush2.bf16.msra.mxu0 0
      %2392 = vmatprep.subr.bf16.mxu0 0
      %2393 = vmatpush2.bf16.msra.mxu0 0
      %2394 = vmatprep.subr.bf16.mxu0 0
      %2395 = vmatpush2.bf16.msra.mxu0 0
      %2396 = vmatprep.mubr.bf16.mxu0 0
      %2397 = vmatmul.mubr.bf16.gmra.mxu0 %v2362
      %v2398 = vpop.f32.mrf.mxu0
      %v2399 = vadd.f32 0.0, %v2398
      %v2400 = vpop.f32.mrf.mxu0
      %v2401 = vpop.f32.mrf.mxu0
      %v2402 = vpop.f32.mrf.mxu0
      %2403 = vdwg.mxu0
      %v2404 = vadd.f32 %v2340, %v2399
      %v2405 = vmax.f32 %v2404, 0.0
      %vm2406 = vcmask 254976
      %2407 = vst.msk [vmem:[#allocation7 + $0x2] sm:$0x3] %vm2406, %v2405
      %v2408 = vld [vmem:[%s12] sm:$0x1]
      %v2409 = vld [vmem:[#allocation7] ss:$2 sm:$0x1]
      %v2410 = vpack.c.bf16 %v2409, %v2409
      %v2411 = vld [vmem:[%s11] sm:$0xf]
      %v2412 = vld [vmem:[%s11 + $0x4] sm:$0xf]
      %v2413 = vld [vmem:[%s11 + $0x8] sm:$0xf]
      %v2414 = vld [vmem:[%s11 + $0xc] sm:$0xf]
      %v2419 = vunpack.c.l.b16 %v2411
      %v2420 = vunpack.c.l.b16 %v2412
      %v2421 = vunpack.c.l.b16 %v2413
      %v2422 = vunpack.c.l.b16 %v2414
      %v2423 = vpack.c.b16 %v2420, %v2419
      %v2424 = vpack.c.b16 %v2422, %v2421
      %v2428 = vsel %vm789, %v2410, 0
      %2430 = vmatprep.subr.bf16.mxu0 0
      %2431 = vmatpush1.bf16.msra.mxu0 0
      %2432 = vmatprep.subr.bf16.mxu0 0
      %2433 = vmatpush1.bf16.msra.mxu0 0
      %2434 = vmatprep.subr.bf16.mxu0 0
      %2435 = vmatpush1.bf16.msra.mxu0 0
      %2436 = vmatprep.subr.bf16.mxu0 0
      %2437 = vmatpush1.bf16.msra.mxu0 0
      %2438 = vmatprep.subr.bf16.mxu0 0
      %2439 = vmatpush1.bf16.msra.mxu0 0
      %2440 = vmatprep.subr.bf16.mxu0 0
      %2441 = vmatpush1.bf16.msra.mxu0 0
      %2442 = vmatprep.subr.bf16.mxu0 0
      %2443 = vmatpush1.bf16.msra.mxu0 %v2424
      %2444 = vmatprep.subr.bf16.mxu0 0
      %2445 = vmatpush1.bf16.msra.mxu0 %v2423
      %2446 = vmatprep.subr.bf16.mxu0 0
      %2447 = vmatpush2.bf16.msra.mxu0 0
      %2448 = vmatprep.subr.bf16.mxu0 0
      %2449 = vmatpush2.bf16.msra.mxu0 0
      %2450 = vmatprep.subr.bf16.mxu0 0
      %2451 = vmatpush2.bf16.msra.mxu0 0
      %2452 = vmatprep.subr.bf16.mxu0 0
      %2453 = vmatpush2.bf16.msra.mxu0 0
      %2454 = vmatprep.subr.bf16.mxu0 0
      %2455 = vmatpush2.bf16.msra.mxu0 0
      %2456 = vmatprep.subr.bf16.mxu0 0
      %2457 = vmatpush2.bf16.msra.mxu0 0
      %2458 = vmatprep.subr.bf16.mxu0 0
      %2459 = vmatpush2.bf16.msra.mxu0 0
      %2460 = vmatprep.subr.bf16.mxu0 0
      %2461 = vmatpush2.bf16.msra.mxu0 0
      %2462 = vmatprep.mubr.bf16.mxu0 0
      %2463 = vmatmul.mubr.bf16.gmra.mxu0 %v2428
      %v2464 = vpop.f32.mrf.mxu0
      %v2465 = vadd.f32 0.0, %v2464
      %v2466 = vpop.f32.mrf.mxu0
      %v2467 = vpop.f32.mrf.mxu0
      %v2468 = vpop.f32.mrf.mxu0
      %2469 = vdwg.mxu0
      %v2470 = vadd.f32 %v2408, %v2465
      %s2471 = scalar_lea.vmem [#allocation7], 1
      %v2472 = vld [vmem:[%s2471] ss:$2 sm:$0x1]
      %v2473 = vpack.c.bf16 %v2472, %v2472
      %s2474 = scalar_lea.vmem %s11, 16
      %v2475 = vld [vmem:[%s2474] sm:$0xf]
      %v2476 = vld [vmem:[%s2474 + $0x4] sm:$0xf]
      %v2477 = vld [vmem:[%s2474 + $0x8] sm:$0xf]
      %v2478 = vld [vmem:[%s2474 + $0xc] sm:$0xf]
      %v2483 = vunpack.c.l.b16 %v2475
      %v2484 = vunpack.c.l.b16 %v2476
      %v2485 = vunpack.c.l.b16 %v2477
      %v2486 = vunpack.c.l.b16 %v2478
      %v2487 = vpack.c.b16 %v2484, %v2483
      %v2488 = vpack.c.b16 %v2486, %v2485
      %v2492 = vsel %vm789, %v2473, 0
      %2494 = vmatprep.subr.bf16.mxu0 0
      %2495 = vmatpush1.bf16.msra.mxu0 0
      %2496 = vmatprep.subr.bf16.mxu0 0
      %2497 = vmatpush1.bf16.msra.mxu0 0
      %2498 = vmatprep.subr.bf16.mxu0 0
      %2499 = vmatpush1.bf16.msra.mxu0 0
      %2500 = vmatprep.subr.bf16.mxu0 0
      %2501 = vmatpush1.bf16.msra.mxu0 0
      %2502 = vmatprep.subr.bf16.mxu0 0
      %2503 = vmatpush1.bf16.msra.mxu0 0
      %2504 = vmatprep.subr.bf16.mxu0 0
      %2505 = vmatpush1.bf16.msra.mxu0 0
      %2506 = vmatprep.subr.bf16.mxu0 0
      %2507 = vmatpush1.bf16.msra.mxu0 %v2488
      %2508 = vmatprep.subr.bf16.mxu0 0
      %2509 = vmatpush1.bf16.msra.mxu0 %v2487
      %2510 = vmatprep.subr.bf16.mxu0 0
      %2511 = vmatpush2.bf16.msra.mxu0 0
      %2512 = vmatprep.subr.bf16.mxu0 0
      %2513 = vmatpush2.bf16.msra.mxu0 0
      %2514 = vmatprep.subr.bf16.mxu0 0
      %2515 = vmatpush2.bf16.msra.mxu0 0
      %2516 = vmatprep.subr.bf16.mxu0 0
      %2517 = vmatpush2.bf16.msra.mxu0 0
      %2518 = vmatprep.subr.bf16.mxu0 0
      %2519 = vmatpush2.bf16.msra.mxu0 0
      %2520 = vmatprep.subr.bf16.mxu0 0
      %2521 = vmatpush2.bf16.msra.mxu0 0
      %2522 = vmatprep.subr.bf16.mxu0 0
      %2523 = vmatpush2.bf16.msra.mxu0 0
      %2524 = vmatprep.subr.bf16.mxu0 0
      %2525 = vmatpush2.bf16.msra.mxu0 0
      %2526 = vmatprep.mubr.bf16.mxu0 0
      %2527 = vmatmul.mubr.bf16.gmra.mxu0 %v2492
      %v2528 = vpop.f32.mrf.mxu0
      %v2529 = vadd.f32 0.0, %v2528
      %v2530 = vpop.f32.mrf.mxu0
      %v2531 = vpop.f32.mrf.mxu0
      %v2532 = vpop.f32.mrf.mxu0
      %2533 = vdwg.mxu0
      %v2534 = vadd.f32 %v2470, %v2529
      %s2535 = scalar_lea.vmem [#allocation7], 2
      %v2536 = vld [vmem:[%s2535] ss:$2 sm:$0x1]
      %v2537 = vpack.c.bf16 %v2536, %v2536
      %s2538 = scalar_lea.vmem %s11, 32
      %v2539 = vld [vmem:[%s2538] sm:$0xf]
      %v2540 = vld [vmem:[%s2538 + $0x4] sm:$0xf]
      %v2541 = vld [vmem:[%s2538 + $0x8] sm:$0xf]
      %v2542 = vld [vmem:[%s2538 + $0xc] sm:$0xf]
      %v2547 = vunpack.c.l.b16 %v2539
      %v2548 = vunpack.c.l.b16 %v2540
      %v2549 = vunpack.c.l.b16 %v2541
      %v2550 = vunpack.c.l.b16 %v2542
      %v2551 = vpack.c.b16 %v2548, %v2547
      %v2552 = vpack.c.b16 %v2550, %v2549
      %v2556 = vsel %vm789, %v2537, 0
      %2558 = vmatprep.subr.bf16.mxu0 0
      %2559 = vmatpush1.bf16.msra.mxu0 0
      %2560 = vmatprep.subr.bf16.mxu0 0
      %2561 = vmatpush1.bf16.msra.mxu0 0
      %2562 = vmatprep.subr.bf16.mxu0 0
      %2563 = vmatpush1.bf16.msra.mxu0 0
      %2564 = vmatprep.subr.bf16.mxu0 0
      %2565 = vmatpush1.bf16.msra.mxu0 0
      %2566 = vmatprep.subr.bf16.mxu0 0
      %2567 = vmatpush1.bf16.msra.mxu0 0
      %2568 = vmatprep.subr.bf16.mxu0 0
      %2569 = vmatpush1.bf16.msra.mxu0 0
      %2570 = vmatprep.subr.bf16.mxu0 0
      %2571 = vmatpush1.bf16.msra.mxu0 %v2552
      %2572 = vmatprep.subr.bf16.mxu0 0
      %2573 = vmatpush1.bf16.msra.mxu0 %v2551
      %2574 = vmatprep.subr.bf16.mxu0 0
      %2575 = vmatpush2.bf16.msra.mxu0 0
      %2576 = vmatprep.subr.bf16.mxu0 0
      %2577 = vmatpush2.bf16.msra.mxu0 0
      %2578 = vmatprep.subr.bf16.mxu0 0
      %2579 = vmatpush2.bf16.msra.mxu0 0
      %2580 = vmatprep.subr.bf16.mxu0 0
      %2581 = vmatpush2.bf16.msra.mxu0 0
      %2582 = vmatprep.subr.bf16.mxu0 0
      %2583 = vmatpush2.bf16.msra.mxu0 0
      %2584 = vmatprep.subr.bf16.mxu0 0
      %2585 = vmatpush2.bf16.msra.mxu0 0
      %2586 = vmatprep.subr.bf16.mxu0 0
      %2587 = vmatpush2.bf16.msra.mxu0 0
      %2588 = vmatprep.subr.bf16.mxu0 0
      %2589 = vmatpush2.bf16.msra.mxu0 0
      %2590 = vmatprep.mubr.bf16.mxu0 0
      %2591 = vmatmul.mubr.bf16.gmra.mxu0 %v2556
      %v2592 = vpop.f32.mrf.mxu0
      %v2593 = vadd.f32 0.0, %v2592
      %v2594 = vpop.f32.mrf.mxu0
      %v2595 = vpop.f32.mrf.mxu0
      %v2596 = vpop.f32.mrf.mxu0
      %2597 = vdwg.mxu0
      %v2598 = vadd.f32 %v2534, %v2593
      %s2599 = scalar_lea.vmem [#allocation7], 3
      %v2600 = vld [vmem:[%s2599] ss:$2 sm:$0x1]
      %v2601 = vpack.c.bf16 %v2600, %v2600
      %s2602 = scalar_lea.vmem %s11, 48
      %v2603 = vld [vmem:[%s2602] sm:$0xf]
      %v2604 = vld [vmem:[%s2602 + $0x4] sm:$0xf]
      %v2605 = vld [vmem:[%s2602 + $0x8] sm:$0xf]
      %v2606 = vld [vmem:[%s2602 + $0xc] sm:$0xf]
      %v2611 = vunpack.c.l.b16 %v2603
      %v2612 = vunpack.c.l.b16 %v2604
      %v2613 = vunpack.c.l.b16 %v2605
      %v2614 = vunpack.c.l.b16 %v2606
      %v2615 = vpack.c.b16 %v2612, %v2611
      %v2616 = vpack.c.b16 %v2614, %v2613
      %v2620 = vsel %vm789, %v2601, 0
      %2622 = vmatprep.subr.bf16.mxu0 0
      %2623 = vmatpush1.bf16.msra.mxu0 0
      %2624 = vmatprep.subr.bf16.mxu0 0
      %2625 = vmatpush1.bf16.msra.mxu0 0
      %2626 = vmatprep.subr.bf16.mxu0 0
      %2627 = vmatpush1.bf16.msra.mxu0 0
      %2628 = vmatprep.subr.bf16.mxu0 0
      %2629 = vmatpush1.bf16.msra.mxu0 0
      %2630 = vmatprep.subr.bf16.mxu0 0
      %2631 = vmatpush1.bf16.msra.mxu0 0
      %2632 = vmatprep.subr.bf16.mxu0 0
      %2633 = vmatpush1.bf16.msra.mxu0 0
      %2634 = vmatprep.subr.bf16.mxu0 0
      %2635 = vmatpush1.bf16.msra.mxu0 %v2616
      %2636 = vmatprep.subr.bf16.mxu0 0
      %2637 = vmatpush1.bf16.msra.mxu0 %v2615
      %2638 = vmatprep.subr.bf16.mxu0 0
      %2639 = vmatpush2.bf16.msra.mxu0 0
      %2640 = vmatprep.subr.bf16.mxu0 0
      %2641 = vmatpush2.bf16.msra.mxu0 0
      %2642 = vmatprep.subr.bf16.mxu0 0
      %2643 = vmatpush2.bf16.msra.mxu0 0
      %2644 = vmatprep.subr.bf16.mxu0 0
      %2645 = vmatpush2.bf16.msra.mxu0 0
      %2646 = vmatprep.subr.bf16.mxu0 0
      %2647 = vmatpush2.bf16.msra.mxu0 0
      %2648 = vmatprep.subr.bf16.mxu0 0
      %2649 = vmatpush2.bf16.msra.mxu0 0
      %2650 = vmatprep.subr.bf16.mxu0 0
      %2651 = vmatpush2.bf16.msra.mxu0 0
      %2652 = vmatprep.subr.bf16.mxu0 0
      %2653 = vmatpush2.bf16.msra.mxu0 0
      %2654 = vmatprep.mubr.bf16.mxu0 0
      %2655 = vmatmul.mubr.bf16.gmra.mxu0 %v2620
      %v2656 = vpop.f32.mrf.mxu0
      %v2657 = vadd.f32 0.0, %v2656
      %v2658 = vpop.f32.mrf.mxu0
      %v2659 = vpop.f32.mrf.mxu0
      %v2660 = vpop.f32.mrf.mxu0
      %2661 = vdwg.mxu0
      %v2662 = vadd.f32 %v2598, %v2657
      %s2663 = scalar_lea.vmem [#allocation7], 4
      %v2664 = vld [vmem:[%s2663] ss:$2 sm:$0x1]
      %v2665 = vpack.c.bf16 %v2664, %v2664
      %s2666 = scalar_lea.vmem %s11, 64
      %v2667 = vld [vmem:[%s2666] sm:$0xf]
      %v2668 = vld [vmem:[%s2666 + $0x4] sm:$0xf]
      %v2669 = vld [vmem:[%s2666 + $0x8] sm:$0xf]
      %v2670 = vld [vmem:[%s2666 + $0xc] sm:$0xf]
      %v2675 = vunpack.c.l.b16 %v2667
      %v2676 = vunpack.c.l.b16 %v2668
      %v2677 = vunpack.c.l.b16 %v2669
      %v2678 = vunpack.c.l.b16 %v2670
      %v2679 = vpack.c.b16 %v2676, %v2675
      %v2680 = vpack.c.b16 %v2678, %v2677
      %v2684 = vsel %vm789, %v2665, 0
      %2686 = vmatprep.subr.bf16.mxu0 0
      %2687 = vmatpush1.bf16.msra.mxu0 0
      %2688 = vmatprep.subr.bf16.mxu0 0
      %2689 = vmatpush1.bf16.msra.mxu0 0
      %2690 = vmatprep.subr.bf16.mxu0 0
      %2691 = vmatpush1.bf16.msra.mxu0 0
      %2692 = vmatprep.subr.bf16.mxu0 0
      %2693 = vmatpush1.bf16.msra.mxu0 0
      %2694 = vmatprep.subr.bf16.mxu0 0
      %2695 = vmatpush1.bf16.msra.mxu0 0
      %2696 = vmatprep.subr.bf16.mxu0 0
      %2697 = vmatpush1.bf16.msra.mxu0 0
      %2698 = vmatprep.subr.bf16.mxu0 0
      %2699 = vmatpush1.bf16.msra.mxu0 %v2680
      %2700 = vmatprep.subr.bf16.mxu0 0
      %2701 = vmatpush1.bf16.msra.mxu0 %v2679
      %2702 = vmatprep.subr.bf16.mxu0 0
      %2703 = vmatpush2.bf16.msra.mxu0 0
      %2704 = vmatprep.subr.bf16.mxu0 0
      %2705 = vmatpush2.bf16.msra.mxu0 0
      %2706 = vmatprep.subr.bf16.mxu0 0
      %2707 = vmatpush2.bf16.msra.mxu0 0
      %2708 = vmatprep.subr.bf16.mxu0 0
      %2709 = vmatpush2.bf16.msra.mxu0 0
      %2710 = vmatprep.subr.bf16.mxu0 0
      %2711 = vmatpush2.bf16.msra.mxu0 0
      %2712 = vmatprep.subr.bf16.mxu0 0
      %2713 = vmatpush2.bf16.msra.mxu0 0
      %2714 = vmatprep.subr.bf16.mxu0 0
      %2715 = vmatpush2.bf16.msra.mxu0 0
      %2716 = vmatprep.subr.bf16.mxu0 0
      %2717 = vmatpush2.bf16.msra.mxu0 0
      %2718 = vmatprep.mubr.bf16.mxu0 0
      %2719 = vmatmul.mubr.bf16.gmra.mxu0 %v2684
      %v2720 = vpop.f32.mrf.mxu0
      %v2721 = vadd.f32 0.0, %v2720
      %v2722 = vpop.f32.mrf.mxu0
      %v2723 = vpop.f32.mrf.mxu0
      %v2724 = vpop.f32.mrf.mxu0
      %2725 = vdwg.mxu0
      %v2726 = vadd.f32 %v2662, %v2721
      %v2727 = vmax.f32 %v2726, 0.0
      %vm2728 = vcmask 516096
      %2729 = vst.msk [vmem:[#allocation8 + $0x2] sm:$0x1] %vm2728, %v2727
      %v2730 = vld [vmem:[%s14] sm:$0x1]
      %v2731 = vld [vmem:[#allocation8 + $0x1] sm:$0x1]
      %v2732 = vpack.c.bf16 %v2731, %v2731
      %v2733 = vld [vmem:[#allocation8 + $0x2] sm:$0x1]
      %v2734 = vpack.c.bf16 %v2733, %v2733
      %v2735 = vld [vmem:[#allocation8 + $0x3] sm:$0x1]
      %v2736 = vpack.c.bf16 %v2735, %v2735
      %v2737 = vld [vmem:[%s13] sm:$0xf]
      %v2738 = vld [vmem:[%s13 + $0x4] sm:$0xf]
      %v2739 = vld [vmem:[%s13 + $0x8] sm:$0xf]
      %v2740 = vld [vmem:[%s13 + $0xc] sm:$0xf]
      %v2741 = vld [vmem:[%s13 + $0x10] sm:$0xf]
      %v2742 = vld [vmem:[%s13 + $0x14] sm:$0xf]
      %v2743 = vld [vmem:[%s13 + $0x18] sm:$0xf]
      %v2744 = vld [vmem:[%s13 + $0x1c] sm:$0xf]
      %s2745 = scalar_lea.vmem %s13, 32
      %v2746 = vld [vmem:[%s2745] sm:$0xf]
      %v2747 = vld [vmem:[%s2745 + $0x4] sm:$0xf]
      %v2748 = vld [vmem:[%s2745 + $0x8] sm:$0xf]
      %v2749 = vld [vmem:[%s2745 + $0xc] sm:$0xf]
      %v2750 = vld [vmem:[%s2745 + $0x10] sm:$0xf]
      %v2751 = vld [vmem:[%s2745 + $0x14] sm:$0xf]
      %v2752 = vld [vmem:[%s2745 + $0x18] sm:$0xf]
      %v2753 = vld [vmem:[%s2745 + $0x1c] sm:$0xf]
      %s2754 = scalar_lea.vmem %s13, 64
      %v2755 = vld [vmem:[%s2754] sm:$0xf]
      %v2756 = vld [vmem:[%s2754 + $0x4] sm:$0xf]
      %v2757 = vld [vmem:[%s2754 + $0x8] sm:$0xf]
      %v2758 = vld [vmem:[%s2754 + $0xc] sm:$0xf]
      %v2759 = vld [vmem:[%s2754 + $0x10] sm:$0xf]
      %v2760 = vld [vmem:[%s2754 + $0x14] sm:$0xf]
      %v2761 = vld [vmem:[%s2754 + $0x18] sm:$0xf]
      %v2762 = vld [vmem:[%s2754 + $0x1c] sm:$0xf]
      %s2763 = scalar_lea.vmem %s13, 96
      %v2764 = vld [vmem:[%s2763] sm:$0xf]
      %v2765 = vld [vmem:[%s2763 + $0x4] sm:$0xf]
      %v2766 = vld [vmem:[%s2763 + $0x8] sm:$0xf]
      %v2767 = vld [vmem:[%s2763 + $0xc] sm:$0xf]
      %v2768 = vld [vmem:[%s2763 + $0x10] sm:$0xf]
      %v2769 = vld [vmem:[%s2763 + $0x14] sm:$0xf]
      %v2770 = vld [vmem:[%s2763 + $0x18] sm:$0xf]
      %v2771 = vld [vmem:[%s2763 + $0x1c] sm:$0xf]
      %s2772 = scalar_lea.vmem %s13, 128
      %v2773 = vld [vmem:[%s2772] sm:$0xf]
      %v2774 = vld [vmem:[%s2772 + $0x4] sm:$0xf]
      %v2775 = vld [vmem:[%s2772 + $0x8] sm:$0xf]
      %v2776 = vld [vmem:[%s2772 + $0xc] sm:$0xf]
      %v2777 = vld [vmem:[%s2772 + $0x10] sm:$0xf]
      %v2778 = vld [vmem:[%s2772 + $0x14] sm:$0xf]
      %v2779 = vld [vmem:[%s2772 + $0x18] sm:$0xf]
      %v2780 = vld [vmem:[%s2772 + $0x1c] sm:$0xf]
      %v2789 = vunpack.c.l.b16 %v2773
      %v2790 = vunpack.c.l.b16 %v2774
      %v2791 = vunpack.c.l.b16 %v2775
      %v2792 = vunpack.c.l.b16 %v2776
      %v2793 = vunpack.c.l.b16 %v2777
      %v2794 = vunpack.c.l.b16 %v2778
      %v2795 = vunpack.c.l.b16 %v2779
      %v2796 = vunpack.c.l.b16 %v2780
      %v2797 = vpack.c.b16 %v2790, %v2789
      %v2798 = vpack.c.b16 %v2792, %v2791
      %v2799 = vpack.c.b16 %v2794, %v2793
      %v2800 = vpack.c.b16 %v2796, %v2795
      %vm2805 = vcmask 523264
      %v2807 = vsel %vm2805, %v2732, 0
      %2809 = vmatprep.subr.bf16.mxu0 0
      %2810 = vmatpush1.bf16.msra.mxu0 0
      %2811 = vmatprep.subr.bf16.mxu0 0
      %2812 = vmatpush1.bf16.msra.mxu0 0
      %2813 = vmatprep.subr.bf16.mxu0 0
      %2814 = vmatpush1.bf16.msra.mxu0 0
      %2815 = vmatprep.subr.bf16.mxu0 0
      %2816 = vmatpush1.bf16.msra.mxu0 0
      %2817 = vmatprep.subr.bf16.mxu0 0
      %2818 = vmatpush1.bf16.msra.mxu0 %v2800
      %2819 = vmatprep.subr.bf16.mxu0 0
      %2820 = vmatpush1.bf16.msra.mxu0 %v2799
      %2821 = vmatprep.subr.bf16.mxu0 0
      %2822 = vmatpush1.bf16.msra.mxu0 %v2798
      %2823 = vmatprep.subr.bf16.mxu0 0
      %2824 = vmatpush1.bf16.msra.mxu0 %v2797
      %2825 = vmatprep.subr.bf16.mxu0 0
      %2826 = vmatpush2.bf16.msra.mxu0 0
      %2827 = vmatprep.subr.bf16.mxu0 0
      %2828 = vmatpush2.bf16.msra.mxu0 0
      %2829 = vmatprep.subr.bf16.mxu0 0
      %2830 = vmatpush2.bf16.msra.mxu0 0
      %2831 = vmatprep.subr.bf16.mxu0 0
      %2832 = vmatpush2.bf16.msra.mxu0 0
      %2833 = vmatprep.subr.bf16.mxu0 0
      %2834 = vmatpush2.bf16.msra.mxu0 0
      %2835 = vmatprep.subr.bf16.mxu0 0
      %2836 = vmatpush2.bf16.msra.mxu0 0
      %2837 = vmatprep.subr.bf16.mxu0 0
      %2838 = vmatpush2.bf16.msra.mxu0 0
      %2839 = vmatprep.subr.bf16.mxu0 0
      %2840 = vmatpush2.bf16.msra.mxu0 0
      %2841 = vmatprep.mubr.bf16.mxu0 0
      %2842 = vmatmul.mubr.bf16.gmra.mxu0 %v2807
      %v2843 = vpop.f32.mrf.mxu0
      %v2844 = vadd.f32 0.0, %v2843
      %v2845 = vpop.f32.mrf.mxu0
      %v2846 = vpop.f32.mrf.mxu0
      %v2847 = vpop.f32.mrf.mxu0
      %2848 = vdwg.mxu0
      %v2849 = vadd.f32 %v2730, %v2844
      %v2858 = vunpack.c.l.b16 %v2755
      %v2859 = vunpack.c.l.b16 %v2756
      %v2860 = vunpack.c.l.b16 %v2757
      %v2861 = vunpack.c.l.b16 %v2758
      %v2862 = vunpack.c.l.b16 %v2759
      %v2863 = vunpack.c.l.b16 %v2760
      %v2864 = vunpack.c.l.b16 %v2761
      %v2865 = vunpack.c.l.b16 %v2762
      %v2866 = vpack.c.b16 %v2859, %v2858
      %v2867 = vpack.c.b16 %v2861, %v2860
      %v2868 = vpack.c.b16 %v2863, %v2862
      %v2869 = vpack.c.b16 %v2865, %v2864
      %v2875 = vsel %vm2805, %v2734, 0
      %2877 = vmatprep.subr.bf16.mxu0 0
      %2878 = vmatpush1.bf16.msra.mxu0 0
      %2879 = vmatprep.subr.bf16.mxu0 0
      %2880 = vmatpush1.bf16.msra.mxu0 0
      %2881 = vmatprep.subr.bf16.mxu0 0
      %2882 = vmatpush1.bf16.msra.mxu0 0
      %2883 = vmatprep.subr.bf16.mxu0 0
      %2884 = vmatpush1.bf16.msra.mxu0 0
      %2885 = vmatprep.subr.bf16.mxu0 0
      %2886 = vmatpush1.bf16.msra.mxu0 %v2869
      %2887 = vmatprep.subr.bf16.mxu0 0
      %2888 = vmatpush1.bf16.msra.mxu0 %v2868
      %2889 = vmatprep.subr.bf16.mxu0 0
      %2890 = vmatpush1.bf16.msra.mxu0 %v2867
      %2891 = vmatprep.subr.bf16.mxu0 0
      %2892 = vmatpush1.bf16.msra.mxu0 %v2866
      %2893 = vmatprep.subr.bf16.mxu0 0
      %2894 = vmatpush2.bf16.msra.mxu0 0
      %2895 = vmatprep.subr.bf16.mxu0 0
      %2896 = vmatpush2.bf16.msra.mxu0 0
      %2897 = vmatprep.subr.bf16.mxu0 0
      %2898 = vmatpush2.bf16.msra.mxu0 0
      %2899 = vmatprep.subr.bf16.mxu0 0
      %2900 = vmatpush2.bf16.msra.mxu0 0
      %2901 = vmatprep.subr.bf16.mxu0 0
      %2902 = vmatpush2.bf16.msra.mxu0 0
      %2903 = vmatprep.subr.bf16.mxu0 0
      %2904 = vmatpush2.bf16.msra.mxu0 0
      %2905 = vmatprep.subr.bf16.mxu0 0
      %2906 = vmatpush2.bf16.msra.mxu0 0
      %2907 = vmatprep.subr.bf16.mxu0 0
      %2908 = vmatpush2.bf16.msra.mxu0 0
      %2909 = vmatprep.mubr.bf16.mxu0 0
      %2910 = vmatmul.mubr.bf16.gmra.mxu0 %v2875
      %v2911 = vpop.f32.mrf.mxu0
      %v2912 = vadd.f32 0.0, %v2911
      %v2913 = vpop.f32.mrf.mxu0
      %v2914 = vpop.f32.mrf.mxu0
      %v2915 = vpop.f32.mrf.mxu0
      %2916 = vdwg.mxu0
      %v2917 = vadd.f32 %v2849, %v2912
      %v2926 = vunpack.c.l.b16 %v2737
      %v2927 = vunpack.c.l.b16 %v2738
      %v2928 = vunpack.c.l.b16 %v2739
      %v2929 = vunpack.c.l.b16 %v2740
      %v2930 = vunpack.c.l.b16 %v2741
      %v2931 = vunpack.c.l.b16 %v2742
      %v2932 = vunpack.c.l.b16 %v2743
      %v2933 = vunpack.c.l.b16 %v2744
      %v2934 = vpack.c.b16 %v2927, %v2926
      %v2935 = vpack.c.b16 %v2929, %v2928
      %v2936 = vpack.c.b16 %v2931, %v2930
      %v2937 = vpack.c.b16 %v2933, %v2932
      %v2943 = vsel %vm2805, %v2736, 0
      %2945 = vmatprep.subr.bf16.mxu0 0
      %2946 = vmatpush1.bf16.msra.mxu0 0
      %2947 = vmatprep.subr.bf16.mxu0 0
      %2948 = vmatpush1.bf16.msra.mxu0 0
      %2949 = vmatprep.subr.bf16.mxu0 0
      %2950 = vmatpush1.bf16.msra.mxu0 0
      %2951 = vmatprep.subr.bf16.mxu0 0
      %2952 = vmatpush1.bf16.msra.mxu0 0
      %2953 = vmatprep.subr.bf16.mxu0 0
      %2954 = vmatpush1.bf16.msra.mxu0 %v2937
      %2955 = vmatprep.subr.bf16.mxu0 0
      %2956 = vmatpush1.bf16.msra.mxu0 %v2936
      %2957 = vmatprep.subr.bf16.mxu0 0
      %2958 = vmatpush1.bf16.msra.mxu0 %v2935
      %2959 = vmatprep.subr.bf16.mxu0 0
      %2960 = vmatpush1.bf16.msra.mxu0 %v2934
      %2961 = vmatprep.subr.bf16.mxu0 0
      %2962 = vmatpush2.bf16.msra.mxu0 0
      %2963 = vmatprep.subr.bf16.mxu0 0
      %2964 = vmatpush2.bf16.msra.mxu0 0
      %2965 = vmatprep.subr.bf16.mxu0 0
      %2966 = vmatpush2.bf16.msra.mxu0 0
      %2967 = vmatprep.subr.bf16.mxu0 0
      %2968 = vmatpush2.bf16.msra.mxu0 0
      %2969 = vmatprep.subr.bf16.mxu0 0
      %2970 = vmatpush2.bf16.msra.mxu0 0
      %2971 = vmatprep.subr.bf16.mxu0 0
      %2972 = vmatpush2.bf16.msra.mxu0 0
      %2973 = vmatprep.subr.bf16.mxu0 0
      %2974 = vmatpush2.bf16.msra.mxu0 0
      %2975 = vmatprep.subr.bf16.mxu0 0
      %2976 = vmatpush2.bf16.msra.mxu0 0
      %2977 = vmatprep.mubr.bf16.mxu0 0
      %2978 = vmatmul.mubr.bf16.gmra.mxu0 %v2943
      %v2979 = vpop.f32.mrf.mxu0
      %v2980 = vadd.f32 0.0, %v2979
      %v2981 = vpop.f32.mrf.mxu0
      %v2982 = vpop.f32.mrf.mxu0
      %v2983 = vpop.f32.mrf.mxu0
      %2984 = vdwg.mxu0
      %v2985 = vadd.f32 %v2917, %v2980
      %v2994 = vunpack.c.l.b16 %v2764
      %v2995 = vunpack.c.l.b16 %v2765
      %v2996 = vunpack.c.l.b16 %v2766
      %v2997 = vunpack.c.l.b16 %v2767
      %v2998 = vunpack.c.l.b16 %v2768
      %v2999 = vunpack.c.l.b16 %v2769
      %v3000 = vunpack.c.l.b16 %v2770
      %v3001 = vunpack.c.l.b16 %v2771
      %v3002 = vpack.c.b16 %v2995, %v2994
      %v3003 = vpack.c.b16 %v2997, %v2996
      %v3004 = vpack.c.b16 %v2999, %v2998
      %v3005 = vpack.c.b16 %v3001, %v3000
      %3010 = vmatprep.subr.bf16.mxu0 0
      %3011 = vmatpush1.bf16.msra.mxu0 0
      %3012 = vmatprep.subr.bf16.mxu0 0
      %3013 = vmatpush1.bf16.msra.mxu0 0
      %3014 = vmatprep.subr.bf16.mxu0 0
      %3015 = vmatpush1.bf16.msra.mxu0 0
      %3016 = vmatprep.subr.bf16.mxu0 0
      %3017 = vmatpush1.bf16.msra.mxu0 0
      %3018 = vmatprep.subr.bf16.mxu0 0
      %3019 = vmatpush1.bf16.msra.mxu0 %v3005
      %3020 = vmatprep.subr.bf16.mxu0 0
      %3021 = vmatpush1.bf16.msra.mxu0 %v3004
      %3022 = vmatprep.subr.bf16.mxu0 0
      %3023 = vmatpush1.bf16.msra.mxu0 %v3003
      %3024 = vmatprep.subr.bf16.mxu0 0
      %3025 = vmatpush1.bf16.msra.mxu0 %v3002
      %3026 = vmatprep.subr.bf16.mxu0 0
      %3027 = vmatpush2.bf16.msra.mxu0 0
      %3028 = vmatprep.subr.bf16.mxu0 0
      %3029 = vmatpush2.bf16.msra.mxu0 0
      %3030 = vmatprep.subr.bf16.mxu0 0
      %3031 = vmatpush2.bf16.msra.mxu0 0
      %3032 = vmatprep.subr.bf16.mxu0 0
      %3033 = vmatpush2.bf16.msra.mxu0 0
      %3034 = vmatprep.subr.bf16.mxu0 0
      %3035 = vmatpush2.bf16.msra.mxu0 0
      %3036 = vmatprep.subr.bf16.mxu0 0
      %3037 = vmatpush2.bf16.msra.mxu0 0
      %3038 = vmatprep.subr.bf16.mxu0 0
      %3039 = vmatpush2.bf16.msra.mxu0 0
      %3040 = vmatprep.subr.bf16.mxu0 0
      %3041 = vmatpush2.bf16.msra.mxu0 0
      %3042 = vmatprep.mubr.bf16.mxu0 0
      %3043 = vmatmul.mubr.bf16.gmra.mxu0 %v2875
      %v3044 = vpop.f32.mrf.mxu0
      %v3045 = vadd.f32 0.0, %v3044
      %v3046 = vpop.f32.mrf.mxu0
      %v3047 = vpop.f32.mrf.mxu0
      %v3048 = vpop.f32.mrf.mxu0
      %3049 = vdwg.mxu0
      %v3050 = vadd.f32 %v2730, %v3045
      %v3059 = vunpack.c.l.b16 %v2746
      %v3060 = vunpack.c.l.b16 %v2747
      %v3061 = vunpack.c.l.b16 %v2748
      %v3062 = vunpack.c.l.b16 %v2749
      %v3063 = vunpack.c.l.b16 %v2750
      %v3064 = vunpack.c.l.b16 %v2751
      %v3065 = vunpack.c.l.b16 %v2752
      %v3066 = vunpack.c.l.b16 %v2753
      %v3067 = vpack.c.b16 %v3060, %v3059
      %v3068 = vpack.c.b16 %v3062, %v3061
      %v3069 = vpack.c.b16 %v3064, %v3063
      %v3070 = vpack.c.b16 %v3066, %v3065
      %3075 = vmatprep.subr.bf16.mxu0 0
      %3076 = vmatpush1.bf16.msra.mxu0 0
      %3077 = vmatprep.subr.bf16.mxu0 0
      %3078 = vmatpush1.bf16.msra.mxu0 0
      %3079 = vmatprep.subr.bf16.mxu0 0
      %3080 = vmatpush1.bf16.msra.mxu0 0
      %3081 = vmatprep.subr.bf16.mxu0 0
      %3082 = vmatpush1.bf16.msra.mxu0 0
      %3083 = vmatprep.subr.bf16.mxu0 0
      %3084 = vmatpush1.bf16.msra.mxu0 %v3070
      %3085 = vmatprep.subr.bf16.mxu0 0
      %3086 = vmatpush1.bf16.msra.mxu0 %v3069
      %3087 = vmatprep.subr.bf16.mxu0 0
      %3088 = vmatpush1.bf16.msra.mxu0 %v3068
      %3089 = vmatprep.subr.bf16.mxu0 0
      %3090 = vmatpush1.bf16.msra.mxu0 %v3067
      %3091 = vmatprep.subr.bf16.mxu0 0
      %3092 = vmatpush2.bf16.msra.mxu0 0
      %3093 = vmatprep.subr.bf16.mxu0 0
      %3094 = vmatpush2.bf16.msra.mxu0 0
      %3095 = vmatprep.subr.bf16.mxu0 0
      %3096 = vmatpush2.bf16.msra.mxu0 0
      %3097 = vmatprep.subr.bf16.mxu0 0
      %3098 = vmatpush2.bf16.msra.mxu0 0
      %3099 = vmatprep.subr.bf16.mxu0 0
      %3100 = vmatpush2.bf16.msra.mxu0 0
      %3101 = vmatprep.subr.bf16.mxu0 0
      %3102 = vmatpush2.bf16.msra.mxu0 0
      %3103 = vmatprep.subr.bf16.mxu0 0
      %3104 = vmatpush2.bf16.msra.mxu0 0
      %3105 = vmatprep.subr.bf16.mxu0 0
      %3106 = vmatpush2.bf16.msra.mxu0 0
      %3107 = vmatprep.mubr.bf16.mxu0 0
      %3108 = vmatmul.mubr.bf16.gmra.mxu0 %v2943
      %v3109 = vpop.f32.mrf.mxu0
      %v3110 = vadd.f32 0.0, %v3109
      %v3111 = vpop.f32.mrf.mxu0
      %v3112 = vpop.f32.mrf.mxu0
      %v3113 = vpop.f32.mrf.mxu0
      %3114 = vdwg.mxu0
      %v3115 = vadd.f32 %v3050, %v3110
      %v3116 = vmax.f32 %v2985, 0.0
      %s3117 = scalar_lea.vmem [#allocation9], 2
      %3118 = vst [vmem:[%s3117] ss:$2 sm:$0x1] %v3116
      %v3119 = vmax.f32 %v3115, 0.0
      %s3120 = scalar_lea.vmem [#allocation9], 3
      %3121 = vst [vmem:[%s3120] ss:$2 sm:$0x1] %v3119
      %v3122 = vld [vmem:[%s16] sm:$0x1]
      %v3123 = vld [vmem:[#allocation7 + $0x1] sm:$0x3]
      %v3124 = vpack.c.bf16 %v3123, %v3123
      %v3125 = vld [vmem:[#allocation7 + $0x2] sm:$0x3]
      %v3126 = vpack.c.bf16 %v3125, %v3125
      %v3127 = vld [vmem:[#allocation7 + $0x3] sm:$0x3]
      %v3128 = vpack.c.bf16 %v3127, %v3127
      %v3129 = vld [vmem:[%s15] sm:$0xf]
      %v3130 = vld [vmem:[%s15 + $0x4] sm:$0xf]
      %v3131 = vld [vmem:[%s15 + $0x8] sm:$0xf]
      %v3132 = vld [vmem:[%s15 + $0xc] sm:$0xf]
      %s3133 = scalar_lea.vmem %s15, 32
      %v3134 = vld [vmem:[%s3133] sm:$0xf]
      %v3135 = vld [vmem:[%s3133 + $0x4] sm:$0xf]
      %v3136 = vld [vmem:[%s3133 + $0x8] sm:$0xf]
      %v3137 = vld [vmem:[%s3133 + $0xc] sm:$0xf]
      %s3138 = scalar_lea.vmem %s15, 64
      %v3139 = vld [vmem:[%s3138] sm:$0xf]
      %v3140 = vld [vmem:[%s3138 + $0x4] sm:$0xf]
      %v3141 = vld [vmem:[%s3138 + $0x8] sm:$0xf]
      %v3142 = vld [vmem:[%s3138 + $0xc] sm:$0xf]
      %s3143 = scalar_lea.vmem %s15, 96
      %v3144 = vld [vmem:[%s3143] sm:$0xf]
      %v3145 = vld [vmem:[%s3143 + $0x4] sm:$0xf]
      %v3146 = vld [vmem:[%s3143 + $0x8] sm:$0xf]
      %v3147 = vld [vmem:[%s3143 + $0xc] sm:$0xf]
      %s3148 = scalar_lea.vmem %s15, 128
      %v3149 = vld [vmem:[%s3148] sm:$0xf]
      %v3150 = vld [vmem:[%s3148 + $0x4] sm:$0xf]
      %v3151 = vld [vmem:[%s3148 + $0x8] sm:$0xf]
      %v3152 = vld [vmem:[%s3148 + $0xc] sm:$0xf]
      %v3157 = vunpack.c.l.b16 %v3149
      %v3158 = vunpack.c.l.b16 %v3150
      %v3159 = vunpack.c.l.b16 %v3151
      %v3160 = vunpack.c.l.b16 %v3152
      %v3161 = vpack.c.b16 %v3158, %v3157
      %v3162 = vpack.c.b16 %v3160, %v3159
      %v3166 = vsel %vm789, %v3124, 0
      %3168 = vmatprep.subr.bf16.mxu0 0
      %3169 = vmatpush1.bf16.msra.mxu0 0
      %3170 = vmatprep.subr.bf16.mxu0 0
      %3171 = vmatpush1.bf16.msra.mxu0 0
      %3172 = vmatprep.subr.bf16.mxu0 0
      %3173 = vmatpush1.bf16.msra.mxu0 0
      %3174 = vmatprep.subr.bf16.mxu0 0
      %3175 = vmatpush1.bf16.msra.mxu0 0
      %3176 = vmatprep.subr.bf16.mxu0 0
      %3177 = vmatpush1.bf16.msra.mxu0 0
      %3178 = vmatprep.subr.bf16.mxu0 0
      %3179 = vmatpush1.bf16.msra.mxu0 0
      %3180 = vmatprep.subr.bf16.mxu0 0
      %3181 = vmatpush1.bf16.msra.mxu0 %v3162
      %3182 = vmatprep.subr.bf16.mxu0 0
      %3183 = vmatpush1.bf16.msra.mxu0 %v3161
      %3184 = vmatprep.subr.bf16.mxu0 0
      %3185 = vmatpush2.bf16.msra.mxu0 0
      %3186 = vmatprep.subr.bf16.mxu0 0
      %3187 = vmatpush2.bf16.msra.mxu0 0
      %3188 = vmatprep.subr.bf16.mxu0 0
      %3189 = vmatpush2.bf16.msra.mxu0 0
      %3190 = vmatprep.subr.bf16.mxu0 0
      %3191 = vmatpush2.bf16.msra.mxu0 0
      %3192 = vmatprep.subr.bf16.mxu0 0
      %3193 = vmatpush2.bf16.msra.mxu0 0
      %3194 = vmatprep.subr.bf16.mxu0 0
      %3195 = vmatpush2.bf16.msra.mxu0 0
      %3196 = vmatprep.subr.bf16.mxu0 0
      %3197 = vmatpush2.bf16.msra.mxu0 0
      %3198 = vmatprep.subr.bf16.mxu0 0
      %3199 = vmatpush2.bf16.msra.mxu0 0
      %3200 = vmatprep.mubr.bf16.mxu0 0
      %3201 = vmatmul.mubr.bf16.gmra.mxu0 %v3166
      %v3202 = vpop.f32.mrf.mxu0
      %v3203 = vadd.f32 0.0, %v3202
      %v3204 = vpop.f32.mrf.mxu0
      %v3205 = vpop.f32.mrf.mxu0
      %v3206 = vpop.f32.mrf.mxu0
      %3207 = vdwg.mxu0
      %v3209 = vlaneseq
      %v3210 = vshrl.u32 %v3209, 7
      %v3211 = vsub.s32 0, %v3210
      %v3212 = vrot.slane %v3122, %v3211
      %v3214 = vadd.f32 %v3212, %v3203
      %v3219 = vunpack.c.l.b16 %v3139
      %v3220 = vunpack.c.l.b16 %v3140
      %v3221 = vunpack.c.l.b16 %v3141
      %v3222 = vunpack.c.l.b16 %v3142
      %v3223 = vpack.c.b16 %v3220, %v3219
      %v3224 = vpack.c.b16 %v3222, %v3221
      %v3228 = vsel %vm789, %v3126, 0
      %3230 = vmatprep.subr.bf16.mxu0 0
      %3231 = vmatpush1.bf16.msra.mxu0 0
      %3232 = vmatprep.subr.bf16.mxu0 0
      %3233 = vmatpush1.bf16.msra.mxu0 0
      %3234 = vmatprep.subr.bf16.mxu0 0
      %3235 = vmatpush1.bf16.msra.mxu0 0
      %3236 = vmatprep.subr.bf16.mxu0 0
      %3237 = vmatpush1.bf16.msra.mxu0 0
      %3238 = vmatprep.subr.bf16.mxu0 0
      %3239 = vmatpush1.bf16.msra.mxu0 0
      %3240 = vmatprep.subr.bf16.mxu0 0
      %3241 = vmatpush1.bf16.msra.mxu0 0
      %3242 = vmatprep.subr.bf16.mxu0 0
      %3243 = vmatpush1.bf16.msra.mxu0 %v3224
      %3244 = vmatprep.subr.bf16.mxu0 0
      %3245 = vmatpush1.bf16.msra.mxu0 %v3223
      %3246 = vmatprep.subr.bf16.mxu0 0
      %3247 = vmatpush2.bf16.msra.mxu0 0
      %3248 = vmatprep.subr.bf16.mxu0 0
      %3249 = vmatpush2.bf16.msra.mxu0 0
      %3250 = vmatprep.subr.bf16.mxu0 0
      %3251 = vmatpush2.bf16.msra.mxu0 0
      %3252 = vmatprep.subr.bf16.mxu0 0
      %3253 = vmatpush2.bf16.msra.mxu0 0
      %3254 = vmatprep.subr.bf16.mxu0 0
      %3255 = vmatpush2.bf16.msra.mxu0 0
      %3256 = vmatprep.subr.bf16.mxu0 0
      %3257 = vmatpush2.bf16.msra.mxu0 0
      %3258 = vmatprep.subr.bf16.mxu0 0
      %3259 = vmatpush2.bf16.msra.mxu0 0
      %3260 = vmatprep.subr.bf16.mxu0 0
      %3261 = vmatpush2.bf16.msra.mxu0 0
      %3262 = vmatprep.mubr.bf16.mxu0 0
      %3263 = vmatmul.mubr.bf16.gmra.mxu0 %v3228
      %v3264 = vpop.f32.mrf.mxu0
      %v3265 = vadd.f32 0.0, %v3264
      %v3266 = vpop.f32.mrf.mxu0
      %v3267 = vpop.f32.mrf.mxu0
      %v3268 = vpop.f32.mrf.mxu0
      %3269 = vdwg.mxu0
      %v3270 = vadd.f32 %v3214, %v3265
      %v3275 = vunpack.c.l.b16 %v3129
      %v3276 = vunpack.c.l.b16 %v3130
      %v3277 = vunpack.c.l.b16 %v3131
      %v3278 = vunpack.c.l.b16 %v3132
      %v3279 = vpack.c.b16 %v3276, %v3275
      %v3280 = vpack.c.b16 %v3278, %v3277
      %v3284 = vsel %vm789, %v3128, 0
      %3286 = vmatprep.subr.bf16.mxu0 0
      %3287 = vmatpush1.bf16.msra.mxu0 0
      %3288 = vmatprep.subr.bf16.mxu0 0
      %3289 = vmatpush1.bf16.msra.mxu0 0
      %3290 = vmatprep.subr.bf16.mxu0 0
      %3291 = vmatpush1.bf16.msra.mxu0 0
      %3292 = vmatprep.subr.bf16.mxu0 0
      %3293 = vmatpush1.bf16.msra.mxu0 0
      %3294 = vmatprep.subr.bf16.mxu0 0
      %3295 = vmatpush1.bf16.msra.mxu0 0
      %3296 = vmatprep.subr.bf16.mxu0 0
      %3297 = vmatpush1.bf16.msra.mxu0 0
      %3298 = vmatprep.subr.bf16.mxu0 0
      %3299 = vmatpush1.bf16.msra.mxu0 %v3280
      %3300 = vmatprep.subr.bf16.mxu0 0
      %3301 = vmatpush1.bf16.msra.mxu0 %v3279
      %3302 = vmatprep.subr.bf16.mxu0 0
      %3303 = vmatpush2.bf16.msra.mxu0 0
      %3304 = vmatprep.subr.bf16.mxu0 0
      %3305 = vmatpush2.bf16.msra.mxu0 0
      %3306 = vmatprep.subr.bf16.mxu0 0
      %3307 = vmatpush2.bf16.msra.mxu0 0
      %3308 = vmatprep.subr.bf16.mxu0 0
      %3309 = vmatpush2.bf16.msra.mxu0 0
      %3310 = vmatprep.subr.bf16.mxu0 0
      %3311 = vmatpush2.bf16.msra.mxu0 0
      %3312 = vmatprep.subr.bf16.mxu0 0
      %3313 = vmatpush2.bf16.msra.mxu0 0
      %3314 = vmatprep.subr.bf16.mxu0 0
      %3315 = vmatpush2.bf16.msra.mxu0 0
      %3316 = vmatprep.subr.bf16.mxu0 0
      %3317 = vmatpush2.bf16.msra.mxu0 0
      %3318 = vmatprep.mubr.bf16.mxu0 0
      %3319 = vmatmul.mubr.bf16.gmra.mxu0 %v3284
      %v3320 = vpop.f32.mrf.mxu0
      %v3321 = vadd.f32 0.0, %v3320
      %v3322 = vpop.f32.mrf.mxu0
      %v3323 = vpop.f32.mrf.mxu0
      %v3324 = vpop.f32.mrf.mxu0
      %3325 = vdwg.mxu0
      %v3326 = vadd.f32 %v3270, %v3321
      %v3331 = vunpack.c.l.b16 %v3144
      %v3332 = vunpack.c.l.b16 %v3145
      %v3333 = vunpack.c.l.b16 %v3146
      %v3334 = vunpack.c.l.b16 %v3147
      %v3335 = vpack.c.b16 %v3332, %v3331
      %v3336 = vpack.c.b16 %v3334, %v3333
      %3339 = vmatprep.subr.bf16.mxu0 0
      %3340 = vmatpush1.bf16.msra.mxu0 0
      %3341 = vmatprep.subr.bf16.mxu0 0
      %3342 = vmatpush1.bf16.msra.mxu0 0
      %3343 = vmatprep.subr.bf16.mxu0 0
      %3344 = vmatpush1.bf16.msra.mxu0 0
      %3345 = vmatprep.subr.bf16.mxu0 0
      %3346 = vmatpush1.bf16.msra.mxu0 0
      %3347 = vmatprep.subr.bf16.mxu0 0
      %3348 = vmatpush1.bf16.msra.mxu0 0
      %3349 = vmatprep.subr.bf16.mxu0 0
      %3350 = vmatpush1.bf16.msra.mxu0 0
      %3351 = vmatprep.subr.bf16.mxu0 0
      %3352 = vmatpush1.bf16.msra.mxu0 %v3336
      %3353 = vmatprep.subr.bf16.mxu0 0
      %3354 = vmatpush1.bf16.msra.mxu0 %v3335
      %3355 = vmatprep.subr.bf16.mxu0 0
      %3356 = vmatpush2.bf16.msra.mxu0 0
      %3357 = vmatprep.subr.bf16.mxu0 0
      %3358 = vmatpush2.bf16.msra.mxu0 0
      %3359 = vmatprep.subr.bf16.mxu0 0
      %3360 = vmatpush2.bf16.msra.mxu0 0
      %3361 = vmatprep.subr.bf16.mxu0 0
      %3362 = vmatpush2.bf16.msra.mxu0 0
      %3363 = vmatprep.subr.bf16.mxu0 0
      %3364 = vmatpush2.bf16.msra.mxu0 0
      %3365 = vmatprep.subr.bf16.mxu0 0
      %3366 = vmatpush2.bf16.msra.mxu0 0
      %3367 = vmatprep.subr.bf16.mxu0 0
      %3368 = vmatpush2.bf16.msra.mxu0 0
      %3369 = vmatprep.subr.bf16.mxu0 0
      %3370 = vmatpush2.bf16.msra.mxu0 0
      %3371 = vmatprep.mubr.bf16.mxu0 0
      %3372 = vmatmul.mubr.bf16.gmra.mxu0 %v3228
      %v3373 = vpop.f32.mrf.mxu0
      %v3374 = vadd.f32 0.0, %v3373
      %v3375 = vpop.f32.mrf.mxu0
      %v3376 = vpop.f32.mrf.mxu0
      %v3377 = vpop.f32.mrf.mxu0
      %3378 = vdwg.mxu0
      %v3379 = vadd.f32 %v3212, %v3374
      %v3384 = vunpack.c.l.b16 %v3134
      %v3385 = vunpack.c.l.b16 %v3135
      %v3386 = vunpack.c.l.b16 %v3136
      %v3387 = vunpack.c.l.b16 %v3137
      %v3388 = vpack.c.b16 %v3385, %v3384
      %v3389 = vpack.c.b16 %v3387, %v3386
      %3392 = vmatprep.subr.bf16.mxu0 0
      %3393 = vmatpush1.bf16.msra.mxu0 0
      %3394 = vmatprep.subr.bf16.mxu0 0
      %3395 = vmatpush1.bf16.msra.mxu0 0
      %3396 = vmatprep.subr.bf16.mxu0 0
      %3397 = vmatpush1.bf16.msra.mxu0 0
      %3398 = vmatprep.subr.bf16.mxu0 0
      %3399 = vmatpush1.bf16.msra.mxu0 0
      %3400 = vmatprep.subr.bf16.mxu0 0
      %3401 = vmatpush1.bf16.msra.mxu0 0
      %3402 = vmatprep.subr.bf16.mxu0 0
      %3403 = vmatpush1.bf16.msra.mxu0 0
      %3404 = vmatprep.subr.bf16.mxu0 0
      %3405 = vmatpush1.bf16.msra.mxu0 %v3389
      %3406 = vmatprep.subr.bf16.mxu0 0
      %3407 = vmatpush1.bf16.msra.mxu0 %v3388
      %3408 = vmatprep.subr.bf16.mxu0 0
      %3409 = vmatpush2.bf16.msra.mxu0 0
      %3410 = vmatprep.subr.bf16.mxu0 0
      %3411 = vmatpush2.bf16.msra.mxu0 0
      %3412 = vmatprep.subr.bf16.mxu0 0
      %3413 = vmatpush2.bf16.msra.mxu0 0
      %3414 = vmatprep.subr.bf16.mxu0 0
      %3415 = vmatpush2.bf16.msra.mxu0 0
      %3416 = vmatprep.subr.bf16.mxu0 0
      %3417 = vmatpush2.bf16.msra.mxu0 0
      %3418 = vmatprep.subr.bf16.mxu0 0
      %3419 = vmatpush2.bf16.msra.mxu0 0
      %3420 = vmatprep.subr.bf16.mxu0 0
      %3421 = vmatpush2.bf16.msra.mxu0 0
      %3422 = vmatprep.subr.bf16.mxu0 0
      %3423 = vmatpush2.bf16.msra.mxu0 0
      %3424 = vmatprep.mubr.bf16.mxu0 0
      %3425 = vmatmul.mubr.bf16.gmra.mxu0 %v3284
      %v3426 = vpop.f32.mrf.mxu0
      %v3427 = vadd.f32 0.0, %v3426
      %v3428 = vpop.f32.mrf.mxu0
      %v3429 = vpop.f32.mrf.mxu0
      %v3430 = vpop.f32.mrf.mxu0
      %3431 = vdwg.mxu0
      %v3432 = vadd.f32 %v3379, %v3427
      %v3433 = vld [vmem:[#allocation9 + $0x1] sm:$0x3]
      %v3434 = vpack.c.bf16 %v3433, %v3433
      %v3435 = vld [vmem:[#allocation9 + $0x2] sm:$0x3]
      %v3436 = vpack.c.bf16 %v3435, %v3435
      %v3437 = vld [vmem:[#allocation9 + $0x3] sm:$0x3]
      %v3438 = vpack.c.bf16 %v3437, %v3437
      %v3439 = vld [vmem:[%s15 + $0x10] sm:$0xf]
      %v3440 = vld [vmem:[%s15 + $0x14] sm:$0xf]
      %v3441 = vld [vmem:[%s15 + $0x18] sm:$0xf]
      %v3442 = vld [vmem:[%s15 + $0x1c] sm:$0xf]
      %v3443 = vld [vmem:[%s3133 + $0x10] sm:$0xf]
      %v3444 = vld [vmem:[%s3133 + $0x14] sm:$0xf]
      %v3445 = vld [vmem:[%s3133 + $0x18] sm:$0xf]
      %v3446 = vld [vmem:[%s3133 + $0x1c] sm:$0xf]
      %v3447 = vld [vmem:[%s3138 + $0x10] sm:$0xf]
      %v3448 = vld [vmem:[%s3138 + $0x14] sm:$0xf]
      %v3449 = vld [vmem:[%s3138 + $0x18] sm:$0xf]
      %v3450 = vld [vmem:[%s3138 + $0x1c] sm:$0xf]
      %v3451 = vld [vmem:[%s3143 + $0x10] sm:$0xf]
      %v3452 = vld [vmem:[%s3143 + $0x14] sm:$0xf]
      %v3453 = vld [vmem:[%s3143 + $0x18] sm:$0xf]
      %v3454 = vld [vmem:[%s3143 + $0x1c] sm:$0xf]
      %v3455 = vld [vmem:[%s3148 + $0x10] sm:$0xf]
      %v3456 = vld [vmem:[%s3148 + $0x14] sm:$0xf]
      %v3457 = vld [vmem:[%s3148 + $0x18] sm:$0xf]
      %v3458 = vld [vmem:[%s3148 + $0x1c] sm:$0xf]
      %v3463 = vunpack.c.l.b16 %v3455
      %v3464 = vunpack.c.l.b16 %v3456
      %v3465 = vunpack.c.l.b16 %v3457
      %v3466 = vunpack.c.l.b16 %v3458
      %v3467 = vpack.c.b16 %v3464, %v3463
      %v3468 = vpack.c.b16 %v3466, %v3465
      %v3472 = vsel %vm789, %v3434, 0
      %3474 = vmatprep.subr.bf16.mxu0 0
      %3475 = vmatpush1.bf16.msra.mxu0 0
      %3476 = vmatprep.subr.bf16.mxu0 0
      %3477 = vmatpush1.bf16.msra.mxu0 0
      %3478 = vmatprep.subr.bf16.mxu0 0
      %3479 = vmatpush1.bf16.msra.mxu0 0
      %3480 = vmatprep.subr.bf16.mxu0 0
      %3481 = vmatpush1.bf16.msra.mxu0 0
      %3482 = vmatprep.subr.bf16.mxu0 0
      %3483 = vmatpush1.bf16.msra.mxu0 0
      %3484 = vmatprep.subr.bf16.mxu0 0
      %3485 = vmatpush1.bf16.msra.mxu0 0
      %3486 = vmatprep.subr.bf16.mxu0 0
      %3487 = vmatpush1.bf16.msra.mxu0 %v3468
      %3488 = vmatprep.subr.bf16.mxu0 0
      %3489 = vmatpush1.bf16.msra.mxu0 %v3467
      %3490 = vmatprep.subr.bf16.mxu0 0
      %3491 = vmatpush2.bf16.msra.mxu0 0
      %3492 = vmatprep.subr.bf16.mxu0 0
      %3493 = vmatpush2.bf16.msra.mxu0 0
      %3494 = vmatprep.subr.bf16.mxu0 0
      %3495 = vmatpush2.bf16.msra.mxu0 0
      %3496 = vmatprep.subr.bf16.mxu0 0
      %3497 = vmatpush2.bf16.msra.mxu0 0
      %3498 = vmatprep.subr.bf16.mxu0 0
      %3499 = vmatpush2.bf16.msra.mxu0 0
      %3500 = vmatprep.subr.bf16.mxu0 0
      %3501 = vmatpush2.bf16.msra.mxu0 0
      %3502 = vmatprep.subr.bf16.mxu0 0
      %3503 = vmatpush2.bf16.msra.mxu0 0
      %3504 = vmatprep.subr.bf16.mxu0 0
      %3505 = vmatpush2.bf16.msra.mxu0 0
      %3506 = vmatprep.mubr.bf16.mxu0 0
      %3507 = vmatmul.mubr.bf16.gmra.mxu0 %v3472
      %v3508 = vpop.f32.mrf.mxu0
      %v3509 = vadd.f32 0.0, %v3508
      %v3510 = vpop.f32.mrf.mxu0
      %v3511 = vpop.f32.mrf.mxu0
      %v3512 = vpop.f32.mrf.mxu0
      %3513 = vdwg.mxu0
      %v3514 = vadd.f32 %v3326, %v3509
      %v3519 = vunpack.c.l.b16 %v3447
      %v3520 = vunpack.c.l.b16 %v3448
      %v3521 = vunpack.c.l.b16 %v3449
      %v3522 = vunpack.c.l.b16 %v3450
      %v3523 = vpack.c.b16 %v3520, %v3519
      %v3524 = vpack.c.b16 %v3522, %v3521
      %v3528 = vsel %vm789, %v3436, 0
      %3530 = vmatprep.subr.bf16.mxu0 0
      %3531 = vmatpush1.bf16.msra.mxu0 0
      %3532 = vmatprep.subr.bf16.mxu0 0
      %3533 = vmatpush1.bf16.msra.mxu0 0
      %3534 = vmatprep.subr.bf16.mxu0 0
      %3535 = vmatpush1.bf16.msra.mxu0 0
      %3536 = vmatprep.subr.bf16.mxu0 0
      %3537 = vmatpush1.bf16.msra.mxu0 0
      %3538 = vmatprep.subr.bf16.mxu0 0
      %3539 = vmatpush1.bf16.msra.mxu0 0
      %3540 = vmatprep.subr.bf16.mxu0 0
      %3541 = vmatpush1.bf16.msra.mxu0 0
      %3542 = vmatprep.subr.bf16.mxu0 0
      %3543 = vmatpush1.bf16.msra.mxu0 %v3524
      %3544 = vmatprep.subr.bf16.mxu0 0
      %3545 = vmatpush1.bf16.msra.mxu0 %v3523
      %3546 = vmatprep.subr.bf16.mxu0 0
      %3547 = vmatpush2.bf16.msra.mxu0 0
      %3548 = vmatprep.subr.bf16.mxu0 0
      %3549 = vmatpush2.bf16.msra.mxu0 0
      %3550 = vmatprep.subr.bf16.mxu0 0
      %3551 = vmatpush2.bf16.msra.mxu0 0
      %3552 = vmatprep.subr.bf16.mxu0 0
      %3553 = vmatpush2.bf16.msra.mxu0 0
      %3554 = vmatprep.subr.bf16.mxu0 0
      %3555 = vmatpush2.bf16.msra.mxu0 0
      %3556 = vmatprep.subr.bf16.mxu0 0
      %3557 = vmatpush2.bf16.msra.mxu0 0
      %3558 = vmatprep.subr.bf16.mxu0 0
      %3559 = vmatpush2.bf16.msra.mxu0 0
      %3560 = vmatprep.subr.bf16.mxu0 0
      %3561 = vmatpush2.bf16.msra.mxu0 0
      %3562 = vmatprep.mubr.bf16.mxu0 0
      %3563 = vmatmul.mubr.bf16.gmra.mxu0 %v3528
      %v3564 = vpop.f32.mrf.mxu0
      %v3565 = vadd.f32 0.0, %v3564
      %v3566 = vpop.f32.mrf.mxu0
      %v3567 = vpop.f32.mrf.mxu0
      %v3568 = vpop.f32.mrf.mxu0
      %3569 = vdwg.mxu0
      %v3570 = vadd.f32 %v3514, %v3565
      %v3575 = vunpack.c.l.b16 %v3439
      %v3576 = vunpack.c.l.b16 %v3440
      %v3577 = vunpack.c.l.b16 %v3441
      %v3578 = vunpack.c.l.b16 %v3442
      %v3579 = vpack.c.b16 %v3576, %v3575
      %v3580 = vpack.c.b16 %v3578, %v3577
      %v3584 = vsel %vm789, %v3438, 0
      %3586 = vmatprep.subr.bf16.mxu0 0
      %3587 = vmatpush1.bf16.msra.mxu0 0
      %3588 = vmatprep.subr.bf16.mxu0 0
      %3589 = vmatpush1.bf16.msra.mxu0 0
      %3590 = vmatprep.subr.bf16.mxu0 0
      %3591 = vmatpush1.bf16.msra.mxu0 0
      %3592 = vmatprep.subr.bf16.mxu0 0
      %3593 = vmatpush1.bf16.msra.mxu0 0
      %3594 = vmatprep.subr.bf16.mxu0 0
      %3595 = vmatpush1.bf16.msra.mxu0 0
      %3596 = vmatprep.subr.bf16.mxu0 0
      %3597 = vmatpush1.bf16.msra.mxu0 0
      %3598 = vmatprep.subr.bf16.mxu0 0
      %3599 = vmatpush1.bf16.msra.mxu0 %v3580
      %3600 = vmatprep.subr.bf16.mxu0 0
      %3601 = vmatpush1.bf16.msra.mxu0 %v3579
      %3602 = vmatprep.subr.bf16.mxu0 0
      %3603 = vmatpush2.bf16.msra.mxu0 0
      %3604 = vmatprep.subr.bf16.mxu0 0
      %3605 = vmatpush2.bf16.msra.mxu0 0
      %3606 = vmatprep.subr.bf16.mxu0 0
      %3607 = vmatpush2.bf16.msra.mxu0 0
      %3608 = vmatprep.subr.bf16.mxu0 0
      %3609 = vmatpush2.bf16.msra.mxu0 0
      %3610 = vmatprep.subr.bf16.mxu0 0
      %3611 = vmatpush2.bf16.msra.mxu0 0
      %3612 = vmatprep.subr.bf16.mxu0 0
      %3613 = vmatpush2.bf16.msra.mxu0 0
      %3614 = vmatprep.subr.bf16.mxu0 0
      %3615 = vmatpush2.bf16.msra.mxu0 0
      %3616 = vmatprep.subr.bf16.mxu0 0
      %3617 = vmatpush2.bf16.msra.mxu0 0
      %3618 = vmatprep.mubr.bf16.mxu0 0
      %3619 = vmatmul.mubr.bf16.gmra.mxu0 %v3584
      %v3620 = vpop.f32.mrf.mxu0
      %v3621 = vadd.f32 0.0, %v3620
      %v3622 = vpop.f32.mrf.mxu0
      %v3623 = vpop.f32.mrf.mxu0
      %v3624 = vpop.f32.mrf.mxu0
      %3625 = vdwg.mxu0
      %v3626 = vadd.f32 %v3570, %v3621
      %v3631 = vunpack.c.l.b16 %v3451
      %v3632 = vunpack.c.l.b16 %v3452
      %v3633 = vunpack.c.l.b16 %v3453
      %v3634 = vunpack.c.l.b16 %v3454
      %v3635 = vpack.c.b16 %v3632, %v3631
      %v3636 = vpack.c.b16 %v3634, %v3633
      %3639 = vmatprep.subr.bf16.mxu0 0
      %3640 = vmatpush1.bf16.msra.mxu0 0
      %3641 = vmatprep.subr.bf16.mxu0 0
      %3642 = vmatpush1.bf16.msra.mxu0 0
      %3643 = vmatprep.subr.bf16.mxu0 0
      %3644 = vmatpush1.bf16.msra.mxu0 0
      %3645 = vmatprep.subr.bf16.mxu0 0
      %3646 = vmatpush1.bf16.msra.mxu0 0
      %3647 = vmatprep.subr.bf16.mxu0 0
      %3648 = vmatpush1.bf16.msra.mxu0 0
      %3649 = vmatprep.subr.bf16.mxu0 0
      %3650 = vmatpush1.bf16.msra.mxu0 0
      %3651 = vmatprep.subr.bf16.mxu0 0
      %3652 = vmatpush1.bf16.msra.mxu0 %v3636
      %3653 = vmatprep.subr.bf16.mxu0 0
      %3654 = vmatpush1.bf16.msra.mxu0 %v3635
      %3655 = vmatprep.subr.bf16.mxu0 0
      %3656 = vmatpush2.bf16.msra.mxu0 0
      %3657 = vmatprep.subr.bf16.mxu0 0
      %3658 = vmatpush2.bf16.msra.mxu0 0
      %3659 = vmatprep.subr.bf16.mxu0 0
      %3660 = vmatpush2.bf16.msra.mxu0 0
      %3661 = vmatprep.subr.bf16.mxu0 0
      %3662 = vmatpush2.bf16.msra.mxu0 0
      %3663 = vmatprep.subr.bf16.mxu0 0
      %3664 = vmatpush2.bf16.msra.mxu0 0
      %3665 = vmatprep.subr.bf16.mxu0 0
      %3666 = vmatpush2.bf16.msra.mxu0 0
      %3667 = vmatprep.subr.bf16.mxu0 0
      %3668 = vmatpush2.bf16.msra.mxu0 0
      %3669 = vmatprep.subr.bf16.mxu0 0
      %3670 = vmatpush2.bf16.msra.mxu0 0
      %3671 = vmatprep.mubr.bf16.mxu0 0
      %3672 = vmatmul.mubr.bf16.gmra.mxu0 %v3528
      %v3673 = vpop.f32.mrf.mxu0
      %v3674 = vadd.f32 0.0, %v3673
      %v3675 = vpop.f32.mrf.mxu0
      %v3676 = vpop.f32.mrf.mxu0
      %v3677 = vpop.f32.mrf.mxu0
      %3678 = vdwg.mxu0
      %v3679 = vadd.f32 %v3432, %v3674
      %v3684 = vunpack.c.l.b16 %v3443
      %v3685 = vunpack.c.l.b16 %v3444
      %v3686 = vunpack.c.l.b16 %v3445
      %v3687 = vunpack.c.l.b16 %v3446
      %v3688 = vpack.c.b16 %v3685, %v3684
      %v3689 = vpack.c.b16 %v3687, %v3686
      %3692 = vmatprep.subr.bf16.mxu0 0
      %3693 = vmatpush1.bf16.msra.mxu0 0
      %3694 = vmatprep.subr.bf16.mxu0 0
      %3695 = vmatpush1.bf16.msra.mxu0 0
      %3696 = vmatprep.subr.bf16.mxu0 0
      %3697 = vmatpush1.bf16.msra.mxu0 0
      %3698 = vmatprep.subr.bf16.mxu0 0
      %3699 = vmatpush1.bf16.msra.mxu0 0
      %3700 = vmatprep.subr.bf16.mxu0 0
      %3701 = vmatpush1.bf16.msra.mxu0 0
      %3702 = vmatprep.subr.bf16.mxu0 0
      %3703 = vmatpush1.bf16.msra.mxu0 0
      %3704 = vmatprep.subr.bf16.mxu0 0
      %3705 = vmatpush1.bf16.msra.mxu0 %v3689
      %3706 = vmatprep.subr.bf16.mxu0 0
      %3707 = vmatpush1.bf16.msra.mxu0 %v3688
      %3708 = vmatprep.subr.bf16.mxu0 0
      %3709 = vmatpush2.bf16.msra.mxu0 0
      %3710 = vmatprep.subr.bf16.mxu0 0
      %3711 = vmatpush2.bf16.msra.mxu0 0
      %3712 = vmatprep.subr.bf16.mxu0 0
      %3713 = vmatpush2.bf16.msra.mxu0 0
      %3714 = vmatprep.subr.bf16.mxu0 0
      %3715 = vmatpush2.bf16.msra.mxu0 0
      %3716 = vmatprep.subr.bf16.mxu0 0
      %3717 = vmatpush2.bf16.msra.mxu0 0
      %3718 = vmatprep.subr.bf16.mxu0 0
      %3719 = vmatpush2.bf16.msra.mxu0 0
      %3720 = vmatprep.subr.bf16.mxu0 0
      %3721 = vmatpush2.bf16.msra.mxu0 0
      %3722 = vmatprep.subr.bf16.mxu0 0
      %3723 = vmatpush2.bf16.msra.mxu0 0
      %3724 = vmatprep.mubr.bf16.mxu0 0
      %3725 = vmatmul.mubr.bf16.gmra.mxu0 %v3584
      %v3726 = vpop.f32.mrf.mxu0
      %v3727 = vadd.f32 0.0, %v3726
      %v3728 = vpop.f32.mrf.mxu0
      %v3729 = vpop.f32.mrf.mxu0
      %v3730 = vpop.f32.mrf.mxu0
      %3731 = vdwg.mxu0
      %v3732 = vadd.f32 %v3679, %v3727
      %v3733 = vmax.f32 %v3626, 0.0
      %s3734 = scalar_lea.vmem [#allocation10], 2
      %3735 = vst [vmem:[%s3734] ss:$2 sm:$0x3] %v3733
      %v3736 = vmax.f32 %v3732, 0.0
      %s3737 = scalar_lea.vmem [#allocation10], 3
      %3738 = vst [vmem:[%s3737] ss:$2 sm:$0x3] %v3736
      %v3739 = vld [vmem:[%s18] sm:$0x1]
      %v3740 = vld [vmem:[#allocation6 + $0x1] sm:$0xf]
      %v3741 = vpack.c.bf16 %v3740, %v3740
      %v3742 = vld [vmem:[#allocation6 + $0x2] sm:$0xf]
      %v3743 = vpack.c.bf16 %v3742, %v3742
      %v3744 = vld [vmem:[#allocation6 + $0x3] sm:$0xf]
      %v3745 = vpack.c.bf16 %v3744, %v3744
      %v3746 = vld [vmem:[%s17] sm:$0xf]
      %v3747 = vld [vmem:[%s17 + $0x4] sm:$0xf]
      %v3748 = vld [vmem:[%s17 + $0x8] sm:$0xf]
      %v3749 = vld [vmem:[%s17 + $0xc] sm:$0xf]
      %s3750 = scalar_lea.vmem %s17, 32
      %v3751 = vld [vmem:[%s3750] sm:$0xf]
      %v3752 = vld [vmem:[%s3750 + $0x4] sm:$0xf]
      %v3753 = vld [vmem:[%s3750 + $0x8] sm:$0xf]
      %v3754 = vld [vmem:[%s3750 + $0xc] sm:$0xf]
      %s3755 = scalar_lea.vmem %s17, 64
      %v3756 = vld [vmem:[%s3755] sm:$0xf]
      %v3757 = vld [vmem:[%s3755 + $0x4] sm:$0xf]
      %v3758 = vld [vmem:[%s3755 + $0x8] sm:$0xf]
      %v3759 = vld [vmem:[%s3755 + $0xc] sm:$0xf]
      %s3760 = scalar_lea.vmem %s17, 96
      %v3761 = vld [vmem:[%s3760] sm:$0xf]
      %v3762 = vld [vmem:[%s3760 + $0x4] sm:$0xf]
      %v3763 = vld [vmem:[%s3760 + $0x8] sm:$0xf]
      %v3764 = vld [vmem:[%s3760 + $0xc] sm:$0xf]
      %s3765 = scalar_lea.vmem %s17, 128
      %v3766 = vld [vmem:[%s3765] sm:$0xf]
      %v3767 = vld [vmem:[%s3765 + $0x4] sm:$0xf]
      %v3768 = vld [vmem:[%s3765 + $0x8] sm:$0xf]
      %v3769 = vld [vmem:[%s3765 + $0xc] sm:$0xf]
      %v3774 = vunpack.c.l.b16 %v3766
      %v3775 = vunpack.c.l.b16 %v3767
      %v3776 = vunpack.c.l.b16 %v3768
      %v3777 = vunpack.c.l.b16 %v3769
      %v3778 = vpack.c.b16 %v3775, %v3774
      %v3779 = vpack.c.b16 %v3777, %v3776
      %v3783 = vsel %vm789, %v3741, 0
      %3785 = vmatprep.subr.bf16.mxu0 0
      %3786 = vmatpush1.bf16.msra.mxu0 0
      %3787 = vmatprep.subr.bf16.mxu0 0
      %3788 = vmatpush1.bf16.msra.mxu0 0
      %3789 = vmatprep.subr.bf16.mxu0 0
      %3790 = vmatpush1.bf16.msra.mxu0 0
      %3791 = vmatprep.subr.bf16.mxu0 0
      %3792 = vmatpush1.bf16.msra.mxu0 0
      %3793 = vmatprep.subr.bf16.mxu0 0
      %3794 = vmatpush1.bf16.msra.mxu0 0
      %3795 = vmatprep.subr.bf16.mxu0 0
      %3796 = vmatpush1.bf16.msra.mxu0 0
      %3797 = vmatprep.subr.bf16.mxu0 0
      %3798 = vmatpush1.bf16.msra.mxu0 %v3779
      %3799 = vmatprep.subr.bf16.mxu0 0
      %3800 = vmatpush1.bf16.msra.mxu0 %v3778
      %3801 = vmatprep.subr.bf16.mxu0 0
      %3802 = vmatpush2.bf16.msra.mxu0 0
      %3803 = vmatprep.subr.bf16.mxu0 0
      %3804 = vmatpush2.bf16.msra.mxu0 0
      %3805 = vmatprep.subr.bf16.mxu0 0
      %3806 = vmatpush2.bf16.msra.mxu0 0
      %3807 = vmatprep.subr.bf16.mxu0 0
      %3808 = vmatpush2.bf16.msra.mxu0 0
      %3809 = vmatprep.subr.bf16.mxu0 0
      %3810 = vmatpush2.bf16.msra.mxu0 0
      %3811 = vmatprep.subr.bf16.mxu0 0
      %3812 = vmatpush2.bf16.msra.mxu0 0
      %3813 = vmatprep.subr.bf16.mxu0 0
      %3814 = vmatpush2.bf16.msra.mxu0 0
      %3815 = vmatprep.subr.bf16.mxu0 0
      %3816 = vmatpush2.bf16.msra.mxu0 0
      %3817 = vmatprep.mubr.bf16.mxu0 0
      %3818 = vmatmul.mubr.bf16.gmra.mxu0 %v3783
      %v3819 = vpop.f32.mrf.mxu0
      %v3820 = vadd.f32 0.0, %v3819
      %v3821 = vpop.f32.mrf.mxu0
      %v3822 = vpop.f32.mrf.mxu0
      %v3823 = vpop.f32.mrf.mxu0
      %3824 = vdwg.mxu0
      %v3826 = vlaneseq
      %v3827 = vshrl.u32 %v3826, 7
      %v3828 = vsub.s32 0, %v3827
      %v3829 = vrot.slane %v3739, %v3828
      %v3831 = vadd.f32 %v3829, %v3820
      %v3836 = vunpack.c.l.b16 %v3756
      %v3837 = vunpack.c.l.b16 %v3757
      %v3838 = vunpack.c.l.b16 %v3758
      %v3839 = vunpack.c.l.b16 %v3759
      %v3840 = vpack.c.b16 %v3837, %v3836
      %v3841 = vpack.c.b16 %v3839, %v3838
      %v3845 = vsel %vm789, %v3743, 0
      %3847 = vmatprep.subr.bf16.mxu0 0
      %3848 = vmatpush1.bf16.msra.mxu0 0
      %3849 = vmatprep.subr.bf16.mxu0 0
      %3850 = vmatpush1.bf16.msra.mxu0 0
      %3851 = vmatprep.subr.bf16.mxu0 0
      %3852 = vmatpush1.bf16.msra.mxu0 0
      %3853 = vmatprep.subr.bf16.mxu0 0
      %3854 = vmatpush1.bf16.msra.mxu0 0
      %3855 = vmatprep.subr.bf16.mxu0 0
      %3856 = vmatpush1.bf16.msra.mxu0 0
      %3857 = vmatprep.subr.bf16.mxu0 0
      %3858 = vmatpush1.bf16.msra.mxu0 0
      %3859 = vmatprep.subr.bf16.mxu0 0
      %3860 = vmatpush1.bf16.msra.mxu0 %v3841
      %3861 = vmatprep.subr.bf16.mxu0 0
      %3862 = vmatpush1.bf16.msra.mxu0 %v3840
      %3863 = vmatprep.subr.bf16.mxu0 0
      %3864 = vmatpush2.bf16.msra.mxu0 0
      %3865 = vmatprep.subr.bf16.mxu0 0
      %3866 = vmatpush2.bf16.msra.mxu0 0
      %3867 = vmatprep.subr.bf16.mxu0 0
      %3868 = vmatpush2.bf16.msra.mxu0 0
      %3869 = vmatprep.subr.bf16.mxu0 0
      %3870 = vmatpush2.bf16.msra.mxu0 0
      %3871 = vmatprep.subr.bf16.mxu0 0
      %3872 = vmatpush2.bf16.msra.mxu0 0
      %3873 = vmatprep.subr.bf16.mxu0 0
      %3874 = vmatpush2.bf16.msra.mxu0 0
      %3875 = vmatprep.subr.bf16.mxu0 0
      %3876 = vmatpush2.bf16.msra.mxu0 0
      %3877 = vmatprep.subr.bf16.mxu0 0
      %3878 = vmatpush2.bf16.msra.mxu0 0
      %3879 = vmatprep.mubr.bf16.mxu0 0
      %3880 = vmatmul.mubr.bf16.gmra.mxu0 %v3845
      %v3881 = vpop.f32.mrf.mxu0
      %v3882 = vadd.f32 0.0, %v3881
      %v3883 = vpop.f32.mrf.mxu0
      %v3884 = vpop.f32.mrf.mxu0
      %v3885 = vpop.f32.mrf.mxu0
      %3886 = vdwg.mxu0
      %v3887 = vadd.f32 %v3831, %v3882
      %v3892 = vunpack.c.l.b16 %v3746
      %v3893 = vunpack.c.l.b16 %v3747
      %v3894 = vunpack.c.l.b16 %v3748
      %v3895 = vunpack.c.l.b16 %v3749
      %v3896 = vpack.c.b16 %v3893, %v3892
      %v3897 = vpack.c.b16 %v3895, %v3894
      %v3901 = vsel %vm789, %v3745, 0
      %3903 = vmatprep.subr.bf16.mxu0 0
      %3904 = vmatpush1.bf16.msra.mxu0 0
      %3905 = vmatprep.subr.bf16.mxu0 0
      %3906 = vmatpush1.bf16.msra.mxu0 0
      %3907 = vmatprep.subr.bf16.mxu0 0
      %3908 = vmatpush1.bf16.msra.mxu0 0
      %3909 = vmatprep.subr.bf16.mxu0 0
      %3910 = vmatpush1.bf16.msra.mxu0 0
      %3911 = vmatprep.subr.bf16.mxu0 0
      %3912 = vmatpush1.bf16.msra.mxu0 0
      %3913 = vmatprep.subr.bf16.mxu0 0
      %3914 = vmatpush1.bf16.msra.mxu0 0
      %3915 = vmatprep.subr.bf16.mxu0 0
      %3916 = vmatpush1.bf16.msra.mxu0 %v3897
      %3917 = vmatprep.subr.bf16.mxu0 0
      %3918 = vmatpush1.bf16.msra.mxu0 %v3896
      %3919 = vmatprep.subr.bf16.mxu0 0
      %3920 = vmatpush2.bf16.msra.mxu0 0
      %3921 = vmatprep.subr.bf16.mxu0 0
      %3922 = vmatpush2.bf16.msra.mxu0 0
      %3923 = vmatprep.subr.bf16.mxu0 0
      %3924 = vmatpush2.bf16.msra.mxu0 0
      %3925 = vmatprep.subr.bf16.mxu0 0
      %3926 = vmatpush2.bf16.msra.mxu0 0
      %3927 = vmatprep.subr.bf16.mxu0 0
      %3928 = vmatpush2.bf16.msra.mxu0 0
      %3929 = vmatprep.subr.bf16.mxu0 0
      %3930 = vmatpush2.bf16.msra.mxu0 0
      %3931 = vmatprep.subr.bf16.mxu0 0
      %3932 = vmatpush2.bf16.msra.mxu0 0
      %3933 = vmatprep.subr.bf16.mxu0 0
      %3934 = vmatpush2.bf16.msra.mxu0 0
      %3935 = vmatprep.mubr.bf16.mxu0 0
      %3936 = vmatmul.mubr.bf16.gmra.mxu0 %v3901
      %v3937 = vpop.f32.mrf.mxu0
      %v3938 = vadd.f32 0.0, %v3937
      %v3939 = vpop.f32.mrf.mxu0
      %v3940 = vpop.f32.mrf.mxu0
      %v3941 = vpop.f32.mrf.mxu0
      %3942 = vdwg.mxu0
      %v3943 = vadd.f32 %v3887, %v3938
      %v3948 = vunpack.c.l.b16 %v3761
      %v3949 = vunpack.c.l.b16 %v3762
      %v3950 = vunpack.c.l.b16 %v3763
      %v3951 = vunpack.c.l.b16 %v3764
      %v3952 = vpack.c.b16 %v3949, %v3948
      %v3953 = vpack.c.b16 %v3951, %v3950
      %3956 = vmatprep.subr.bf16.mxu0 0
      %3957 = vmatpush1.bf16.msra.mxu0 0
      %3958 = vmatprep.subr.bf16.mxu0 0
      %3959 = vmatpush1.bf16.msra.mxu0 0
      %3960 = vmatprep.subr.bf16.mxu0 0
      %3961 = vmatpush1.bf16.msra.mxu0 0
      %3962 = vmatprep.subr.bf16.mxu0 0
      %3963 = vmatpush1.bf16.msra.mxu0 0
      %3964 = vmatprep.subr.bf16.mxu0 0
      %3965 = vmatpush1.bf16.msra.mxu0 0
      %3966 = vmatprep.subr.bf16.mxu0 0
      %3967 = vmatpush1.bf16.msra.mxu0 0
      %3968 = vmatprep.subr.bf16.mxu0 0
      %3969 = vmatpush1.bf16.msra.mxu0 %v3953
      %3970 = vmatprep.subr.bf16.mxu0 0
      %3971 = vmatpush1.bf16.msra.mxu0 %v3952
      %3972 = vmatprep.subr.bf16.mxu0 0
      %3973 = vmatpush2.bf16.msra.mxu0 0
      %3974 = vmatprep.subr.bf16.mxu0 0
      %3975 = vmatpush2.bf16.msra.mxu0 0
      %3976 = vmatprep.subr.bf16.mxu0 0
      %3977 = vmatpush2.bf16.msra.mxu0 0
      %3978 = vmatprep.subr.bf16.mxu0 0
      %3979 = vmatpush2.bf16.msra.mxu0 0
      %3980 = vmatprep.subr.bf16.mxu0 0
      %3981 = vmatpush2.bf16.msra.mxu0 0
      %3982 = vmatprep.subr.bf16.mxu0 0
      %3983 = vmatpush2.bf16.msra.mxu0 0
      %3984 = vmatprep.subr.bf16.mxu0 0
      %3985 = vmatpush2.bf16.msra.mxu0 0
      %3986 = vmatprep.subr.bf16.mxu0 0
      %3987 = vmatpush2.bf16.msra.mxu0 0
      %3988 = vmatprep.mubr.bf16.mxu0 0
      %3989 = vmatmul.mubr.bf16.gmra.mxu0 %v3845
      %v3990 = vpop.f32.mrf.mxu0
      %v3991 = vadd.f32 0.0, %v3990
      %v3992 = vpop.f32.mrf.mxu0
      %v3993 = vpop.f32.mrf.mxu0
      %v3994 = vpop.f32.mrf.mxu0
      %3995 = vdwg.mxu0
      %v3996 = vadd.f32 %v3829, %v3991
      %v4001 = vunpack.c.l.b16 %v3751
      %v4002 = vunpack.c.l.b16 %v3752
      %v4003 = vunpack.c.l.b16 %v3753
      %v4004 = vunpack.c.l.b16 %v3754
      %v4005 = vpack.c.b16 %v4002, %v4001
      %v4006 = vpack.c.b16 %v4004, %v4003
      %4009 = vmatprep.subr.bf16.mxu0 0
      %4010 = vmatpush1.bf16.msra.mxu0 0
      %4011 = vmatprep.subr.bf16.mxu0 0
      %4012 = vmatpush1.bf16.msra.mxu0 0
      %4013 = vmatprep.subr.bf16.mxu0 0
      %4014 = vmatpush1.bf16.msra.mxu0 0
      %4015 = vmatprep.subr.bf16.mxu0 0
      %4016 = vmatpush1.bf16.msra.mxu0 0
      %4017 = vmatprep.subr.bf16.mxu0 0
      %4018 = vmatpush1.bf16.msra.mxu0 0
      %4019 = vmatprep.subr.bf16.mxu0 0
      %4020 = vmatpush1.bf16.msra.mxu0 0
      %4021 = vmatprep.subr.bf16.mxu0 0
      %4022 = vmatpush1.bf16.msra.mxu0 %v4006
      %4023 = vmatprep.subr.bf16.mxu0 0
      %4024 = vmatpush1.bf16.msra.mxu0 %v4005
      %4025 = vmatprep.subr.bf16.mxu0 0
      %4026 = vmatpush2.bf16.msra.mxu0 0
      %4027 = vmatprep.subr.bf16.mxu0 0
      %4028 = vmatpush2.bf16.msra.mxu0 0
      %4029 = vmatprep.subr.bf16.mxu0 0
      %4030 = vmatpush2.bf16.msra.mxu0 0
      %4031 = vmatprep.subr.bf16.mxu0 0
      %4032 = vmatpush2.bf16.msra.mxu0 0
      %4033 = vmatprep.subr.bf16.mxu0 0
      %4034 = vmatpush2.bf16.msra.mxu0 0
      %4035 = vmatprep.subr.bf16.mxu0 0
      %4036 = vmatpush2.bf16.msra.mxu0 0
      %4037 = vmatprep.subr.bf16.mxu0 0
      %4038 = vmatpush2.bf16.msra.mxu0 0
      %4039 = vmatprep.subr.bf16.mxu0 0
      %4040 = vmatpush2.bf16.msra.mxu0 0
      %4041 = vmatprep.mubr.bf16.mxu0 0
      %4042 = vmatmul.mubr.bf16.gmra.mxu0 %v3901
      %v4043 = vpop.f32.mrf.mxu0
      %v4044 = vadd.f32 0.0, %v4043
      %v4045 = vpop.f32.mrf.mxu0
      %v4046 = vpop.f32.mrf.mxu0
      %v4047 = vpop.f32.mrf.mxu0
      %4048 = vdwg.mxu0
      %v4049 = vadd.f32 %v3996, %v4044
      %v4050 = vld [vmem:[#allocation10 + $0x1] sm:$0xf]
      %v4051 = vpack.c.bf16 %v4050, %v4050
      %v4052 = vld [vmem:[#allocation10 + $0x2] sm:$0xf]
      %v4053 = vpack.c.bf16 %v4052, %v4052
      %v4054 = vld [vmem:[#allocation10 + $0x3] sm:$0xf]
      %v4055 = vpack.c.bf16 %v4054, %v4054
      %v4056 = vld [vmem:[%s17 + $0x10] sm:$0xf]
      %v4057 = vld [vmem:[%s17 + $0x14] sm:$0xf]
      %v4058 = vld [vmem:[%s17 + $0x18] sm:$0xf]
      %v4059 = vld [vmem:[%s17 + $0x1c] sm:$0xf]
      %v4060 = vld [vmem:[%s3750 + $0x10] sm:$0xf]
      %v4061 = vld [vmem:[%s3750 + $0x14] sm:$0xf]
      %v4062 = vld [vmem:[%s3750 + $0x18] sm:$0xf]
      %v4063 = vld [vmem:[%s3750 + $0x1c] sm:$0xf]
      %v4064 = vld [vmem:[%s3755 + $0x10] sm:$0xf]
      %v4065 = vld [vmem:[%s3755 + $0x14] sm:$0xf]
      %v4066 = vld [vmem:[%s3755 + $0x18] sm:$0xf]
      %v4067 = vld [vmem:[%s3755 + $0x1c] sm:$0xf]
      %v4068 = vld [vmem:[%s3760 + $0x10] sm:$0xf]
      %v4069 = vld [vmem:[%s3760 + $0x14] sm:$0xf]
      %v4070 = vld [vmem:[%s3760 + $0x18] sm:$0xf]
      %v4071 = vld [vmem:[%s3760 + $0x1c] sm:$0xf]
      %v4072 = vld [vmem:[%s3765 + $0x10] sm:$0xf]
      %v4073 = vld [vmem:[%s3765 + $0x14] sm:$0xf]
      %v4074 = vld [vmem:[%s3765 + $0x18] sm:$0xf]
      %v4075 = vld [vmem:[%s3765 + $0x1c] sm:$0xf]
      %v4080 = vunpack.c.l.b16 %v4072
      %v4081 = vunpack.c.l.b16 %v4073
      %v4082 = vunpack.c.l.b16 %v4074
      %v4083 = vunpack.c.l.b16 %v4075
      %v4084 = vpack.c.b16 %v4081, %v4080
      %v4085 = vpack.c.b16 %v4083, %v4082
      %v4089 = vsel %vm789, %v4051, 0
      %4091 = vmatprep.subr.bf16.mxu0 0
      %4092 = vmatpush1.bf16.msra.mxu0 0
      %4093 = vmatprep.subr.bf16.mxu0 0
      %4094 = vmatpush1.bf16.msra.mxu0 0
      %4095 = vmatprep.subr.bf16.mxu0 0
      %4096 = vmatpush1.bf16.msra.mxu0 0
      %4097 = vmatprep.subr.bf16.mxu0 0
      %4098 = vmatpush1.bf16.msra.mxu0 0
      %4099 = vmatprep.subr.bf16.mxu0 0
      %4100 = vmatpush1.bf16.msra.mxu0 0
      %4101 = vmatprep.subr.bf16.mxu0 0
      %4102 = vmatpush1.bf16.msra.mxu0 0
      %4103 = vmatprep.subr.bf16.mxu0 0
      %4104 = vmatpush1.bf16.msra.mxu0 %v4085
      %4105 = vmatprep.subr.bf16.mxu0 0
      %4106 = vmatpush1.bf16.msra.mxu0 %v4084
      %4107 = vmatprep.subr.bf16.mxu0 0
      %4108 = vmatpush2.bf16.msra.mxu0 0
      %4109 = vmatprep.subr.bf16.mxu0 0
      %4110 = vmatpush2.bf16.msra.mxu0 0
      %4111 = vmatprep.subr.bf16.mxu0 0
      %4112 = vmatpush2.bf16.msra.mxu0 0
      %4113 = vmatprep.subr.bf16.mxu0 0
      %4114 = vmatpush2.bf16.msra.mxu0 0
      %4115 = vmatprep.subr.bf16.mxu0 0
      %4116 = vmatpush2.bf16.msra.mxu0 0
      %4117 = vmatprep.subr.bf16.mxu0 0
      %4118 = vmatpush2.bf16.msra.mxu0 0
      %4119 = vmatprep.subr.bf16.mxu0 0
      %4120 = vmatpush2.bf16.msra.mxu0 0
      %4121 = vmatprep.subr.bf16.mxu0 0
      %4122 = vmatpush2.bf16.msra.mxu0 0
      %4123 = vmatprep.mubr.bf16.mxu0 0
      %4124 = vmatmul.mubr.bf16.gmra.mxu0 %v4089
      %v4125 = vpop.f32.mrf.mxu0
      %v4126 = vadd.f32 0.0, %v4125
      %v4127 = vpop.f32.mrf.mxu0
      %v4128 = vpop.f32.mrf.mxu0
      %v4129 = vpop.f32.mrf.mxu0
      %4130 = vdwg.mxu0
      %v4131 = vadd.f32 %v3943, %v4126
      %v4136 = vunpack.c.l.b16 %v4064
      %v4137 = vunpack.c.l.b16 %v4065
      %v4138 = vunpack.c.l.b16 %v4066
      %v4139 = vunpack.c.l.b16 %v4067
      %v4140 = vpack.c.b16 %v4137, %v4136
      %v4141 = vpack.c.b16 %v4139, %v4138
      %v4145 = vsel %vm789, %v4053, 0
      %4147 = vmatprep.subr.bf16.mxu0 0
      %4148 = vmatpush1.bf16.msra.mxu0 0
      %4149 = vmatprep.subr.bf16.mxu0 0
      %4150 = vmatpush1.bf16.msra.mxu0 0
      %4151 = vmatprep.subr.bf16.mxu0 0
      %4152 = vmatpush1.bf16.msra.mxu0 0
      %4153 = vmatprep.subr.bf16.mxu0 0
      %4154 = vmatpush1.bf16.msra.mxu0 0
      %4155 = vmatprep.subr.bf16.mxu0 0
      %4156 = vmatpush1.bf16.msra.mxu0 0
      %4157 = vmatprep.subr.bf16.mxu0 0
      %4158 = vmatpush1.bf16.msra.mxu0 0
      %4159 = vmatprep.subr.bf16.mxu0 0
      %4160 = vmatpush1.bf16.msra.mxu0 %v4141
      %4161 = vmatprep.subr.bf16.mxu0 0
      %4162 = vmatpush1.bf16.msra.mxu0 %v4140
      %4163 = vmatprep.subr.bf16.mxu0 0
      %4164 = vmatpush2.bf16.msra.mxu0 0
      %4165 = vmatprep.subr.bf16.mxu0 0
      %4166 = vmatpush2.bf16.msra.mxu0 0
      %4167 = vmatprep.subr.bf16.mxu0 0
      %4168 = vmatpush2.bf16.msra.mxu0 0
      %4169 = vmatprep.subr.bf16.mxu0 0
      %4170 = vmatpush2.bf16.msra.mxu0 0
      %4171 = vmatprep.subr.bf16.mxu0 0
      %4172 = vmatpush2.bf16.msra.mxu0 0
      %4173 = vmatprep.subr.bf16.mxu0 0
      %4174 = vmatpush2.bf16.msra.mxu0 0
      %4175 = vmatprep.subr.bf16.mxu0 0
      %4176 = vmatpush2.bf16.msra.mxu0 0
      %4177 = vmatprep.subr.bf16.mxu0 0
      %4178 = vmatpush2.bf16.msra.mxu0 0
      %4179 = vmatprep.mubr.bf16.mxu0 0
      %4180 = vmatmul.mubr.bf16.gmra.mxu0 %v4145
      %v4181 = vpop.f32.mrf.mxu0
      %v4182 = vadd.f32 0.0, %v4181
      %v4183 = vpop.f32.mrf.mxu0
      %v4184 = vpop.f32.mrf.mxu0
      %v4185 = vpop.f32.mrf.mxu0
      %4186 = vdwg.mxu0
      %v4187 = vadd.f32 %v4131, %v4182
      %v4192 = vunpack.c.l.b16 %v4056
      %v4193 = vunpack.c.l.b16 %v4057
      %v4194 = vunpack.c.l.b16 %v4058
      %v4195 = vunpack.c.l.b16 %v4059
      %v4196 = vpack.c.b16 %v4193, %v4192
      %v4197 = vpack.c.b16 %v4195, %v4194
      %v4201 = vsel %vm789, %v4055, 0
      %4203 = vmatprep.subr.bf16.mxu0 0
      %4204 = vmatpush1.bf16.msra.mxu0 0
      %4205 = vmatprep.subr.bf16.mxu0 0
      %4206 = vmatpush1.bf16.msra.mxu0 0
      %4207 = vmatprep.subr.bf16.mxu0 0
      %4208 = vmatpush1.bf16.msra.mxu0 0
      %4209 = vmatprep.subr.bf16.mxu0 0
      %4210 = vmatpush1.bf16.msra.mxu0 0
      %4211 = vmatprep.subr.bf16.mxu0 0
      %4212 = vmatpush1.bf16.msra.mxu0 0
      %4213 = vmatprep.subr.bf16.mxu0 0
      %4214 = vmatpush1.bf16.msra.mxu0 0
      %4215 = vmatprep.subr.bf16.mxu0 0
      %4216 = vmatpush1.bf16.msra.mxu0 %v4197
      %4217 = vmatprep.subr.bf16.mxu0 0
      %4218 = vmatpush1.bf16.msra.mxu0 %v4196
      %4219 = vmatprep.subr.bf16.mxu0 0
      %4220 = vmatpush2.bf16.msra.mxu0 0
      %4221 = vmatprep.subr.bf16.mxu0 0
      %4222 = vmatpush2.bf16.msra.mxu0 0
      %4223 = vmatprep.subr.bf16.mxu0 0
      %4224 = vmatpush2.bf16.msra.mxu0 0
      %4225 = vmatprep.subr.bf16.mxu0 0
      %4226 = vmatpush2.bf16.msra.mxu0 0
      %4227 = vmatprep.subr.bf16.mxu0 0
      %4228 = vmatpush2.bf16.msra.mxu0 0
      %4229 = vmatprep.subr.bf16.mxu0 0
      %4230 = vmatpush2.bf16.msra.mxu0 0
      %4231 = vmatprep.subr.bf16.mxu0 0
      %4232 = vmatpush2.bf16.msra.mxu0 0
      %4233 = vmatprep.subr.bf16.mxu0 0
      %4234 = vmatpush2.bf16.msra.mxu0 0
      %4235 = vmatprep.mubr.bf16.mxu0 0
      %4236 = vmatmul.mubr.bf16.gmra.mxu0 %v4201
      %v4237 = vpop.f32.mrf.mxu0
      %v4238 = vadd.f32 0.0, %v4237
      %v4239 = vpop.f32.mrf.mxu0
      %v4240 = vpop.f32.mrf.mxu0
      %v4241 = vpop.f32.mrf.mxu0
      %4242 = vdwg.mxu0
      %v4243 = vadd.f32 %v4187, %v4238
      %v4248 = vunpack.c.l.b16 %v4068
      %v4249 = vunpack.c.l.b16 %v4069
      %v4250 = vunpack.c.l.b16 %v4070
      %v4251 = vunpack.c.l.b16 %v4071
      %v4252 = vpack.c.b16 %v4249, %v4248
      %v4253 = vpack.c.b16 %v4251, %v4250
      %4256 = vmatprep.subr.bf16.mxu0 0
      %4257 = vmatpush1.bf16.msra.mxu0 0
      %4258 = vmatprep.subr.bf16.mxu0 0
      %4259 = vmatpush1.bf16.msra.mxu0 0
      %4260 = vmatprep.subr.bf16.mxu0 0
      %4261 = vmatpush1.bf16.msra.mxu0 0
      %4262 = vmatprep.subr.bf16.mxu0 0
      %4263 = vmatpush1.bf16.msra.mxu0 0
      %4264 = vmatprep.subr.bf16.mxu0 0
      %4265 = vmatpush1.bf16.msra.mxu0 0
      %4266 = vmatprep.subr.bf16.mxu0 0
      %4267 = vmatpush1.bf16.msra.mxu0 0
      %4268 = vmatprep.subr.bf16.mxu0 0
      %4269 = vmatpush1.bf16.msra.mxu0 %v4253
      %4270 = vmatprep.subr.bf16.mxu0 0
      %4271 = vmatpush1.bf16.msra.mxu0 %v4252
      %4272 = vmatprep.subr.bf16.mxu0 0
      %4273 = vmatpush2.bf16.msra.mxu0 0
      %4274 = vmatprep.subr.bf16.mxu0 0
      %4275 = vmatpush2.bf16.msra.mxu0 0
      %4276 = vmatprep.subr.bf16.mxu0 0
      %4277 = vmatpush2.bf16.msra.mxu0 0
      %4278 = vmatprep.subr.bf16.mxu0 0
      %4279 = vmatpush2.bf16.msra.mxu0 0
      %4280 = vmatprep.subr.bf16.mxu0 0
      %4281 = vmatpush2.bf16.msra.mxu0 0
      %4282 = vmatprep.subr.bf16.mxu0 0
      %4283 = vmatpush2.bf16.msra.mxu0 0
      %4284 = vmatprep.subr.bf16.mxu0 0
      %4285 = vmatpush2.bf16.msra.mxu0 0
      %4286 = vmatprep.subr.bf16.mxu0 0
      %4287 = vmatpush2.bf16.msra.mxu0 0
      %4288 = vmatprep.mubr.bf16.mxu0 0
      %4289 = vmatmul.mubr.bf16.gmra.mxu0 %v4145
      %v4290 = vpop.f32.mrf.mxu0
      %v4291 = vadd.f32 0.0, %v4290
      %v4292 = vpop.f32.mrf.mxu0
      %v4293 = vpop.f32.mrf.mxu0
      %v4294 = vpop.f32.mrf.mxu0
      %4295 = vdwg.mxu0
      %v4296 = vadd.f32 %v4049, %v4291
      %v4301 = vunpack.c.l.b16 %v4060
      %v4302 = vunpack.c.l.b16 %v4061
      %v4303 = vunpack.c.l.b16 %v4062
      %v4304 = vunpack.c.l.b16 %v4063
      %v4305 = vpack.c.b16 %v4302, %v4301
      %v4306 = vpack.c.b16 %v4304, %v4303
      %4309 = vmatprep.subr.bf16.mxu0 0
      %4310 = vmatpush1.bf16.msra.mxu0 0
      %4311 = vmatprep.subr.bf16.mxu0 0
      %4312 = vmatpush1.bf16.msra.mxu0 0
      %4313 = vmatprep.subr.bf16.mxu0 0
      %4314 = vmatpush1.bf16.msra.mxu0 0
      %4315 = vmatprep.subr.bf16.mxu0 0
      %4316 = vmatpush1.bf16.msra.mxu0 0
      %4317 = vmatprep.subr.bf16.mxu0 0
      %4318 = vmatpush1.bf16.msra.mxu0 0
      %4319 = vmatprep.subr.bf16.mxu0 0
      %4320 = vmatpush1.bf16.msra.mxu0 0
      %4321 = vmatprep.subr.bf16.mxu0 0
      %4322 = vmatpush1.bf16.msra.mxu0 %v4306
      %4323 = vmatprep.subr.bf16.mxu0 0
      %4324 = vmatpush1.bf16.msra.mxu0 %v4305
      %4325 = vmatprep.subr.bf16.mxu0 0
      %4326 = vmatpush2.bf16.msra.mxu0 0
      %4327 = vmatprep.subr.bf16.mxu0 0
      %4328 = vmatpush2.bf16.msra.mxu0 0
      %4329 = vmatprep.subr.bf16.mxu0 0
      %4330 = vmatpush2.bf16.msra.mxu0 0
      %4331 = vmatprep.subr.bf16.mxu0 0
      %4332 = vmatpush2.bf16.msra.mxu0 0
      %4333 = vmatprep.subr.bf16.mxu0 0
      %4334 = vmatpush2.bf16.msra.mxu0 0
      %4335 = vmatprep.subr.bf16.mxu0 0
      %4336 = vmatpush2.bf16.msra.mxu0 0
      %4337 = vmatprep.subr.bf16.mxu0 0
      %4338 = vmatpush2.bf16.msra.mxu0 0
      %4339 = vmatprep.subr.bf16.mxu0 0
      %4340 = vmatpush2.bf16.msra.mxu0 0
      %4341 = vmatprep.mubr.bf16.mxu0 0
      %4342 = vmatmul.mubr.bf16.gmra.mxu0 %v4201
      %v4343 = vpop.f32.mrf.mxu0
      %v4344 = vadd.f32 0.0, %v4343
      %v4345 = vpop.f32.mrf.mxu0
      %v4346 = vpop.f32.mrf.mxu0
      %v4347 = vpop.f32.mrf.mxu0
      %4348 = vdwg.mxu0
      %v4349 = vadd.f32 %v4296, %v4344
      %v4350 = vmax.f32 %v4243, 0.0
      %s4351 = scalar_lea.vmem [#allocation11], 2
      %4352 = vst [vmem:[%s4351] ss:$2 sm:$0xf] %v4350
      %v4353 = vmax.f32 %v4349, 0.0
      %s4354 = scalar_lea.vmem [#allocation11], 3
      %4355 = vst [vmem:[%s4354] ss:$2 sm:$0xf] %v4353
      %v4356 = vld [vmem:[%s20] sm:$0x1]
      %v4357 = vld [vmem:[#allocation5 + $0x1] sm:$0xff]
      %v4358 = vpack.c.bf16 %v4357, %v4357
      %v4359 = vld [vmem:[#allocation5 + $0x2] sm:$0xff]
      %v4360 = vpack.c.bf16 %v4359, %v4359
      %v4361 = vld [vmem:[#allocation5 + $0x3] sm:$0xff]
      %v4362 = vpack.c.bf16 %v4361, %v4361
      %v4363 = vld [vmem:[%s19] sm:$0xf]
      %v4364 = vld [vmem:[%s19 + $0x4] sm:$0xf]
      %s4365 = scalar_lea.vmem %s19, 16
      %v4366 = vld [vmem:[%s4365] sm:$0xf]
      %v4367 = vld [vmem:[%s4365 + $0x4] sm:$0xf]
      %s4368 = scalar_lea.vmem %s19, 32
      %v4369 = vld [vmem:[%s4368] sm:$0xf]
      %v4370 = vld [vmem:[%s4368 + $0x4] sm:$0xf]
      %s4371 = scalar_lea.vmem %s19, 48
      %v4372 = vld [vmem:[%s4371] sm:$0xf]
      %v4373 = vld [vmem:[%s4371 + $0x4] sm:$0xf]
      %s4374 = scalar_lea.vmem %s19, 64
      %v4375 = vld [vmem:[%s4374] sm:$0xf]
      %v4376 = vld [vmem:[%s4374 + $0x4] sm:$0xf]
      %v4379 = vunpack.c.l.b16 %v4375
      %v4380 = vunpack.c.l.b16 %v4376
      %v4381 = vpack.c.b16 %v4380, %v4379
      %v4384 = vsel %vm782, %v4358, 0
      %4386 = vmatprep.subr.bf16.mxu0 0
      %4387 = vmatpush1.bf16.msra.mxu0 0
      %4388 = vmatprep.subr.bf16.mxu0 0
      %4389 = vmatpush1.bf16.msra.mxu0 0
      %4390 = vmatprep.subr.bf16.mxu0 0
      %4391 = vmatpush1.bf16.msra.mxu0 0
      %4392 = vmatprep.subr.bf16.mxu0 0
      %4393 = vmatpush1.bf16.msra.mxu0 0
      %4394 = vmatprep.subr.bf16.mxu0 0
      %4395 = vmatpush1.bf16.msra.mxu0 0
      %4396 = vmatprep.subr.bf16.mxu0 0
      %4397 = vmatpush1.bf16.msra.mxu0 0
      %4398 = vmatprep.subr.bf16.mxu0 0
      %4399 = vmatpush1.bf16.msra.mxu0 0
      %4400 = vmatprep.subr.bf16.mxu0 0
      %4401 = vmatpush1.bf16.msra.mxu0 %v4381
      %4402 = vmatprep.subr.bf16.mxu0 0
      %4403 = vmatpush2.bf16.msra.mxu0 0
      %4404 = vmatprep.subr.bf16.mxu0 0
      %4405 = vmatpush2.bf16.msra.mxu0 0
      %4406 = vmatprep.subr.bf16.mxu0 0
      %4407 = vmatpush2.bf16.msra.mxu0 0
      %4408 = vmatprep.subr.bf16.mxu0 0
      %4409 = vmatpush2.bf16.msra.mxu0 0
      %4410 = vmatprep.subr.bf16.mxu0 0
      %4411 = vmatpush2.bf16.msra.mxu0 0
      %4412 = vmatprep.subr.bf16.mxu0 0
      %4413 = vmatpush2.bf16.msra.mxu0 0
      %4414 = vmatprep.subr.bf16.mxu0 0
      %4415 = vmatpush2.bf16.msra.mxu0 0
      %4416 = vmatprep.subr.bf16.mxu0 0
      %4417 = vmatpush2.bf16.msra.mxu0 0
      %4418 = vmatprep.mubr.bf16.mxu0 0
      %4419 = vmatmul.mubr.bf16.gmra.mxu0 %v4384
      %v4420 = vpop.f32.mrf.mxu0
      %v4421 = vadd.f32 0.0, %v4420
      %v4422 = vpop.f32.mrf.mxu0
      %v4423 = vpop.f32.mrf.mxu0
      %v4424 = vpop.f32.mrf.mxu0
      %4425 = vdwg.mxu0
      %v4427 = vlaneseq
      %v4428 = vshrl.u32 %v4427, 7
      %v4429 = vsub.s32 0, %v4428
      %v4430 = vrot.slane %v4356, %v4429
      %v4432 = vadd.f32 %v4430, %v4421
      %v4435 = vunpack.c.l.b16 %v4369
      %v4436 = vunpack.c.l.b16 %v4370
      %v4437 = vpack.c.b16 %v4436, %v4435
      %v4440 = vsel %vm782, %v4360, 0
      %4442 = vmatprep.subr.bf16.mxu0 0
      %4443 = vmatpush1.bf16.msra.mxu0 0
      %4444 = vmatprep.subr.bf16.mxu0 0
      %4445 = vmatpush1.bf16.msra.mxu0 0
      %4446 = vmatprep.subr.bf16.mxu0 0
      %4447 = vmatpush1.bf16.msra.mxu0 0
      %4448 = vmatprep.subr.bf16.mxu0 0
      %4449 = vmatpush1.bf16.msra.mxu0 0
      %4450 = vmatprep.subr.bf16.mxu0 0
      %4451 = vmatpush1.bf16.msra.mxu0 0
      %4452 = vmatprep.subr.bf16.mxu0 0
      %4453 = vmatpush1.bf16.msra.mxu0 0
      %4454 = vmatprep.subr.bf16.mxu0 0
      %4455 = vmatpush1.bf16.msra.mxu0 0
      %4456 = vmatprep.subr.bf16.mxu0 0
      %4457 = vmatpush1.bf16.msra.mxu0 %v4437
      %4458 = vmatprep.subr.bf16.mxu0 0
      %4459 = vmatpush2.bf16.msra.mxu0 0
      %4460 = vmatprep.subr.bf16.mxu0 0
      %4461 = vmatpush2.bf16.msra.mxu0 0
      %4462 = vmatprep.subr.bf16.mxu0 0
      %4463 = vmatpush2.bf16.msra.mxu0 0
      %4464 = vmatprep.subr.bf16.mxu0 0
      %4465 = vmatpush2.bf16.msra.mxu0 0
      %4466 = vmatprep.subr.bf16.mxu0 0
      %4467 = vmatpush2.bf16.msra.mxu0 0
      %4468 = vmatprep.subr.bf16.mxu0 0
      %4469 = vmatpush2.bf16.msra.mxu0 0
      %4470 = vmatprep.subr.bf16.mxu0 0
      %4471 = vmatpush2.bf16.msra.mxu0 0
      %4472 = vmatprep.subr.bf16.mxu0 0
      %4473 = vmatpush2.bf16.msra.mxu0 0
      %4474 = vmatprep.mubr.bf16.mxu0 0
      %4475 = vmatmul.mubr.bf16.gmra.mxu0 %v4440
      %v4476 = vpop.f32.mrf.mxu0
      %v4477 = vadd.f32 0.0, %v4476
      %v4478 = vpop.f32.mrf.mxu0
      %v4479 = vpop.f32.mrf.mxu0
      %v4480 = vpop.f32.mrf.mxu0
      %4481 = vdwg.mxu0
      %v4482 = vadd.f32 %v4432, %v4477
      %v4485 = vunpack.c.l.b16 %v4363
      %v4486 = vunpack.c.l.b16 %v4364
      %v4487 = vpack.c.b16 %v4486, %v4485
      %v4490 = vsel %vm782, %v4362, 0
      %4492 = vmatprep.subr.bf16.mxu0 0
      %4493 = vmatpush1.bf16.msra.mxu0 0
      %4494 = vmatprep.subr.bf16.mxu0 0
      %4495 = vmatpush1.bf16.msra.mxu0 0
      %4496 = vmatprep.subr.bf16.mxu0 0
      %4497 = vmatpush1.bf16.msra.mxu0 0
      %4498 = vmatprep.subr.bf16.mxu0 0
      %4499 = vmatpush1.bf16.msra.mxu0 0
      %4500 = vmatprep.subr.bf16.mxu0 0
      %4501 = vmatpush1.bf16.msra.mxu0 0
      %4502 = vmatprep.subr.bf16.mxu0 0
      %4503 = vmatpush1.bf16.msra.mxu0 0
      %4504 = vmatprep.subr.bf16.mxu0 0
      %4505 = vmatpush1.bf16.msra.mxu0 0
      %4506 = vmatprep.subr.bf16.mxu0 0
      %4507 = vmatpush1.bf16.msra.mxu0 %v4487
      %4508 = vmatprep.subr.bf16.mxu0 0
      %4509 = vmatpush2.bf16.msra.mxu0 0
      %4510 = vmatprep.subr.bf16.mxu0 0
      %4511 = vmatpush2.bf16.msra.mxu0 0
      %4512 = vmatprep.subr.bf16.mxu0 0
      %4513 = vmatpush2.bf16.msra.mxu0 0
      %4514 = vmatprep.subr.bf16.mxu0 0
      %4515 = vmatpush2.bf16.msra.mxu0 0
      %4516 = vmatprep.subr.bf16.mxu0 0
      %4517 = vmatpush2.bf16.msra.mxu0 0
      %4518 = vmatprep.subr.bf16.mxu0 0
      %4519 = vmatpush2.bf16.msra.mxu0 0
      %4520 = vmatprep.subr.bf16.mxu0 0
      %4521 = vmatpush2.bf16.msra.mxu0 0
      %4522 = vmatprep.subr.bf16.mxu0 0
      %4523 = vmatpush2.bf16.msra.mxu0 0
      %4524 = vmatprep.mubr.bf16.mxu0 0
      %4525 = vmatmul.mubr.bf16.gmra.mxu0 %v4490
      %v4526 = vpop.f32.mrf.mxu0
      %v4527 = vadd.f32 0.0, %v4526
      %v4528 = vpop.f32.mrf.mxu0
      %v4529 = vpop.f32.mrf.mxu0
      %v4530 = vpop.f32.mrf.mxu0
      %4531 = vdwg.mxu0
      %v4532 = vadd.f32 %v4482, %v4527
      %v4535 = vunpack.c.l.b16 %v4372
      %v4536 = vunpack.c.l.b16 %v4373
      %v4537 = vpack.c.b16 %v4536, %v4535
      %4539 = vmatprep.subr.bf16.mxu0 0
      %4540 = vmatpush1.bf16.msra.mxu0 0
      %4541 = vmatprep.subr.bf16.mxu0 0
      %4542 = vmatpush1.bf16.msra.mxu0 0
      %4543 = vmatprep.subr.bf16.mxu0 0
      %4544 = vmatpush1.bf16.msra.mxu0 0
      %4545 = vmatprep.subr.bf16.mxu0 0
      %4546 = vmatpush1.bf16.msra.mxu0 0
      %4547 = vmatprep.subr.bf16.mxu0 0
      %4548 = vmatpush1.bf16.msra.mxu0 0
      %4549 = vmatprep.subr.bf16.mxu0 0
      %4550 = vmatpush1.bf16.msra.mxu0 0
      %4551 = vmatprep.subr.bf16.mxu0 0
      %4552 = vmatpush1.bf16.msra.mxu0 0
      %4553 = vmatprep.subr.bf16.mxu0 0
      %4554 = vmatpush1.bf16.msra.mxu0 %v4537
      %4555 = vmatprep.subr.bf16.mxu0 0
      %4556 = vmatpush2.bf16.msra.mxu0 0
      %4557 = vmatprep.subr.bf16.mxu0 0
      %4558 = vmatpush2.bf16.msra.mxu0 0
      %4559 = vmatprep.subr.bf16.mxu0 0
      %4560 = vmatpush2.bf16.msra.mxu0 0
      %4561 = vmatprep.subr.bf16.mxu0 0
      %4562 = vmatpush2.bf16.msra.mxu0 0
      %4563 = vmatprep.subr.bf16.mxu0 0
      %4564 = vmatpush2.bf16.msra.mxu0 0
      %4565 = vmatprep.subr.bf16.mxu0 0
      %4566 = vmatpush2.bf16.msra.mxu0 0
      %4567 = vmatprep.subr.bf16.mxu0 0
      %4568 = vmatpush2.bf16.msra.mxu0 0
      %4569 = vmatprep.subr.bf16.mxu0 0
      %4570 = vmatpush2.bf16.msra.mxu0 0
      %4571 = vmatprep.mubr.bf16.mxu0 0
      %4572 = vmatmul.mubr.bf16.gmra.mxu0 %v4440
      %v4573 = vpop.f32.mrf.mxu0
      %v4574 = vadd.f32 0.0, %v4573
      %v4575 = vpop.f32.mrf.mxu0
      %v4576 = vpop.f32.mrf.mxu0
      %v4577 = vpop.f32.mrf.mxu0
      %4578 = vdwg.mxu0
      %v4579 = vadd.f32 %v4430, %v4574
      %v4582 = vunpack.c.l.b16 %v4366
      %v4583 = vunpack.c.l.b16 %v4367
      %v4584 = vpack.c.b16 %v4583, %v4582
      %4586 = vmatprep.subr.bf16.mxu0 0
      %4587 = vmatpush1.bf16.msra.mxu0 0
      %4588 = vmatprep.subr.bf16.mxu0 0
      %4589 = vmatpush1.bf16.msra.mxu0 0
      %4590 = vmatprep.subr.bf16.mxu0 0
      %4591 = vmatpush1.bf16.msra.mxu0 0
      %4592 = vmatprep.subr.bf16.mxu0 0
      %4593 = vmatpush1.bf16.msra.mxu0 0
      %4594 = vmatprep.subr.bf16.mxu0 0
      %4595 = vmatpush1.bf16.msra.mxu0 0
      %4596 = vmatprep.subr.bf16.mxu0 0
      %4597 = vmatpush1.bf16.msra.mxu0 0
      %4598 = vmatprep.subr.bf16.mxu0 0
      %4599 = vmatpush1.bf16.msra.mxu0 0
      %4600 = vmatprep.subr.bf16.mxu0 0
      %4601 = vmatpush1.bf16.msra.mxu0 %v4584
      %4602 = vmatprep.subr.bf16.mxu0 0
      %4603 = vmatpush2.bf16.msra.mxu0 0
      %4604 = vmatprep.subr.bf16.mxu0 0
      %4605 = vmatpush2.bf16.msra.mxu0 0
      %4606 = vmatprep.subr.bf16.mxu0 0
      %4607 = vmatpush2.bf16.msra.mxu0 0
      %4608 = vmatprep.subr.bf16.mxu0 0
      %4609 = vmatpush2.bf16.msra.mxu0 0
      %4610 = vmatprep.subr.bf16.mxu0 0
      %4611 = vmatpush2.bf16.msra.mxu0 0
      %4612 = vmatprep.subr.bf16.mxu0 0
      %4613 = vmatpush2.bf16.msra.mxu0 0
      %4614 = vmatprep.subr.bf16.mxu0 0
      %4615 = vmatpush2.bf16.msra.mxu0 0
      %4616 = vmatprep.subr.bf16.mxu0 0
      %4617 = vmatpush2.bf16.msra.mxu0 0
      %4618 = vmatprep.mubr.bf16.mxu0 0
      %4619 = vmatmul.mubr.bf16.gmra.mxu0 %v4490
      %v4620 = vpop.f32.mrf.mxu0
      %v4621 = vadd.f32 0.0, %v4620
      %v4622 = vpop.f32.mrf.mxu0
      %v4623 = vpop.f32.mrf.mxu0
      %v4624 = vpop.f32.mrf.mxu0
      %4625 = vdwg.mxu0
      %v4626 = vadd.f32 %v4579, %v4621
      %v4627 = vld [vmem:[#allocation11 + $0x1] sm:$0xff]
      %v4628 = vpack.c.bf16 %v4627, %v4627
      %v4629 = vld [vmem:[#allocation11 + $0x2] sm:$0xff]
      %v4630 = vpack.c.bf16 %v4629, %v4629
      %v4631 = vld [vmem:[#allocation11 + $0x3] sm:$0xff]
      %v4632 = vpack.c.bf16 %v4631, %v4631
      %v4633 = vld [vmem:[%s19 + $0x8] sm:$0xf]
      %v4634 = vld [vmem:[%s19 + $0xc] sm:$0xf]
      %v4635 = vld [vmem:[%s4365 + $0x8] sm:$0xf]
      %v4636 = vld [vmem:[%s4365 + $0xc] sm:$0xf]
      %v4637 = vld [vmem:[%s4368 + $0x8] sm:$0xf]
      %v4638 = vld [vmem:[%s4368 + $0xc] sm:$0xf]
      %v4639 = vld [vmem:[%s4371 + $0x8] sm:$0xf]
      %v4640 = vld [vmem:[%s4371 + $0xc] sm:$0xf]
      %v4641 = vld [vmem:[%s4374 + $0x8] sm:$0xf]
      %v4642 = vld [vmem:[%s4374 + $0xc] sm:$0xf]
      %v4645 = vunpack.c.l.b16 %v4641
      %v4646 = vunpack.c.l.b16 %v4642
      %v4647 = vpack.c.b16 %v4646, %v4645
      %v4650 = vsel %vm782, %v4628, 0
      %4652 = vmatprep.subr.bf16.mxu0 0
      %4653 = vmatpush1.bf16.msra.mxu0 0
      %4654 = vmatprep.subr.bf16.mxu0 0
      %4655 = vmatpush1.bf16.msra.mxu0 0
      %4656 = vmatprep.subr.bf16.mxu0 0
      %4657 = vmatpush1.bf16.msra.mxu0 0
      %4658 = vmatprep.subr.bf16.mxu0 0
      %4659 = vmatpush1.bf16.msra.mxu0 0
      %4660 = vmatprep.subr.bf16.mxu0 0
      %4661 = vmatpush1.bf16.msra.mxu0 0
      %4662 = vmatprep.subr.bf16.mxu0 0
      %4663 = vmatpush1.bf16.msra.mxu0 0
      %4664 = vmatprep.subr.bf16.mxu0 0
      %4665 = vmatpush1.bf16.msra.mxu0 0
      %4666 = vmatprep.subr.bf16.mxu0 0
      %4667 = vmatpush1.bf16.msra.mxu0 %v4647
      %4668 = vmatprep.subr.bf16.mxu0 0
      %4669 = vmatpush2.bf16.msra.mxu0 0
      %4670 = vmatprep.subr.bf16.mxu0 0
      %4671 = vmatpush2.bf16.msra.mxu0 0
      %4672 = vmatprep.subr.bf16.mxu0 0
      %4673 = vmatpush2.bf16.msra.mxu0 0
      %4674 = vmatprep.subr.bf16.mxu0 0
      %4675 = vmatpush2.bf16.msra.mxu0 0
      %4676 = vmatprep.subr.bf16.mxu0 0
      %4677 = vmatpush2.bf16.msra.mxu0 0
      %4678 = vmatprep.subr.bf16.mxu0 0
      %4679 = vmatpush2.bf16.msra.mxu0 0
      %4680 = vmatprep.subr.bf16.mxu0 0
      %4681 = vmatpush2.bf16.msra.mxu0 0
      %4682 = vmatprep.subr.bf16.mxu0 0
      %4683 = vmatpush2.bf16.msra.mxu0 0
      %4684 = vmatprep.mubr.bf16.mxu0 0
      %4685 = vmatmul.mubr.bf16.gmra.mxu0 %v4650
      %v4686 = vpop.f32.mrf.mxu0
      %v4687 = vadd.f32 0.0, %v4686
      %v4688 = vpop.f32.mrf.mxu0
      %v4689 = vpop.f32.mrf.mxu0
      %v4690 = vpop.f32.mrf.mxu0
      %4691 = vdwg.mxu0
      %v4692 = vadd.f32 %v4532, %v4687
      %v4695 = vunpack.c.l.b16 %v4637
      %v4696 = vunpack.c.l.b16 %v4638
      %v4697 = vpack.c.b16 %v4696, %v4695
      %v4700 = vsel %vm782, %v4630, 0
      %4702 = vmatprep.subr.bf16.mxu0 0
      %4703 = vmatpush1.bf16.msra.mxu0 0
      %4704 = vmatprep.subr.bf16.mxu0 0
      %4705 = vmatpush1.bf16.msra.mxu0 0
      %4706 = vmatprep.subr.bf16.mxu0 0
      %4707 = vmatpush1.bf16.msra.mxu0 0
      %4708 = vmatprep.subr.bf16.mxu0 0
      %4709 = vmatpush1.bf16.msra.mxu0 0
      %4710 = vmatprep.subr.bf16.mxu0 0
      %4711 = vmatpush1.bf16.msra.mxu0 0
      %4712 = vmatprep.subr.bf16.mxu0 0
      %4713 = vmatpush1.bf16.msra.mxu0 0
      %4714 = vmatprep.subr.bf16.mxu0 0
      %4715 = vmatpush1.bf16.msra.mxu0 0
      %4716 = vmatprep.subr.bf16.mxu0 0
      %4717 = vmatpush1.bf16.msra.mxu0 %v4697
      %4718 = vmatprep.subr.bf16.mxu0 0
      %4719 = vmatpush2.bf16.msra.mxu0 0
      %4720 = vmatprep.subr.bf16.mxu0 0
      %4721 = vmatpush2.bf16.msra.mxu0 0
      %4722 = vmatprep.subr.bf16.mxu0 0
      %4723 = vmatpush2.bf16.msra.mxu0 0
      %4724 = vmatprep.subr.bf16.mxu0 0
      %4725 = vmatpush2.bf16.msra.mxu0 0
      %4726 = vmatprep.subr.bf16.mxu0 0
      %4727 = vmatpush2.bf16.msra.mxu0 0
      %4728 = vmatprep.subr.bf16.mxu0 0
      %4729 = vmatpush2.bf16.msra.mxu0 0
      %4730 = vmatprep.subr.bf16.mxu0 0
      %4731 = vmatpush2.bf16.msra.mxu0 0
      %4732 = vmatprep.subr.bf16.mxu0 0
      %4733 = vmatpush2.bf16.msra.mxu0 0
      %4734 = vmatprep.mubr.bf16.mxu0 0
      %4735 = vmatmul.mubr.bf16.gmra.mxu0 %v4700
      %v4736 = vpop.f32.mrf.mxu0
      %v4737 = vadd.f32 0.0, %v4736
      %v4738 = vpop.f32.mrf.mxu0
      %v4739 = vpop.f32.mrf.mxu0
      %v4740 = vpop.f32.mrf.mxu0
      %4741 = vdwg.mxu0
      %v4742 = vadd.f32 %v4692, %v4737
      %v4745 = vunpack.c.l.b16 %v4633
      %v4746 = vunpack.c.l.b16 %v4634
      %v4747 = vpack.c.b16 %v4746, %v4745
      %v4750 = vsel %vm782, %v4632, 0
      %4752 = vmatprep.subr.bf16.mxu0 0
      %4753 = vmatpush1.bf16.msra.mxu0 0
      %4754 = vmatprep.subr.bf16.mxu0 0
      %4755 = vmatpush1.bf16.msra.mxu0 0
      %4756 = vmatprep.subr.bf16.mxu0 0
      %4757 = vmatpush1.bf16.msra.mxu0 0
      %4758 = vmatprep.subr.bf16.mxu0 0
      %4759 = vmatpush1.bf16.msra.mxu0 0
      %4760 = vmatprep.subr.bf16.mxu0 0
      %4761 = vmatpush1.bf16.msra.mxu0 0
      %4762 = vmatprep.subr.bf16.mxu0 0
      %4763 = vmatpush1.bf16.msra.mxu0 0
      %4764 = vmatprep.subr.bf16.mxu0 0
      %4765 = vmatpush1.bf16.msra.mxu0 0
      %4766 = vmatprep.subr.bf16.mxu0 0
      %4767 = vmatpush1.bf16.msra.mxu0 %v4747
      %4768 = vmatprep.subr.bf16.mxu0 0
      %4769 = vmatpush2.bf16.msra.mxu0 0
      %4770 = vmatprep.subr.bf16.mxu0 0
      %4771 = vmatpush2.bf16.msra.mxu0 0
      %4772 = vmatprep.subr.bf16.mxu0 0
      %4773 = vmatpush2.bf16.msra.mxu0 0
      %4774 = vmatprep.subr.bf16.mxu0 0
      %4775 = vmatpush2.bf16.msra.mxu0 0
      %4776 = vmatprep.subr.bf16.mxu0 0
      %4777 = vmatpush2.bf16.msra.mxu0 0
      %4778 = vmatprep.subr.bf16.mxu0 0
      %4779 = vmatpush2.bf16.msra.mxu0 0
      %4780 = vmatprep.subr.bf16.mxu0 0
      %4781 = vmatpush2.bf16.msra.mxu0 0
      %4782 = vmatprep.subr.bf16.mxu0 0
      %4783 = vmatpush2.bf16.msra.mxu0 0
      %4784 = vmatprep.mubr.bf16.mxu0 0
      %4785 = vmatmul.mubr.bf16.gmra.mxu0 %v4750
      %v4786 = vpop.f32.mrf.mxu0
      %v4787 = vadd.f32 0.0, %v4786
      %v4788 = vpop.f32.mrf.mxu0
      %v4789 = vpop.f32.mrf.mxu0
      %v4790 = vpop.f32.mrf.mxu0
      %4791 = vdwg.mxu0
      %v4792 = vadd.f32 %v4742, %v4787
      %v4795 = vunpack.c.l.b16 %v4639
      %v4796 = vunpack.c.l.b16 %v4640
      %v4797 = vpack.c.b16 %v4796, %v4795
      %4799 = vmatprep.subr.bf16.mxu0 0
      %4800 = vmatpush1.bf16.msra.mxu0 0
      %4801 = vmatprep.subr.bf16.mxu0 0
      %4802 = vmatpush1.bf16.msra.mxu0 0
      %4803 = vmatprep.subr.bf16.mxu0 0
      %4804 = vmatpush1.bf16.msra.mxu0 0
      %4805 = vmatprep.subr.bf16.mxu0 0
      %4806 = vmatpush1.bf16.msra.mxu0 0
      %4807 = vmatprep.subr.bf16.mxu0 0
      %4808 = vmatpush1.bf16.msra.mxu0 0
      %4809 = vmatprep.subr.bf16.mxu0 0
      %4810 = vmatpush1.bf16.msra.mxu0 0
      %4811 = vmatprep.subr.bf16.mxu0 0
      %4812 = vmatpush1.bf16.msra.mxu0 0
      %4813 = vmatprep.subr.bf16.mxu0 0
      %4814 = vmatpush1.bf16.msra.mxu0 %v4797
      %4815 = vmatprep.subr.bf16.mxu0 0
      %4816 = vmatpush2.bf16.msra.mxu0 0
      %4817 = vmatprep.subr.bf16.mxu0 0
      %4818 = vmatpush2.bf16.msra.mxu0 0
      %4819 = vmatprep.subr.bf16.mxu0 0
      %4820 = vmatpush2.bf16.msra.mxu0 0
      %4821 = vmatprep.subr.bf16.mxu0 0
      %4822 = vmatpush2.bf16.msra.mxu0 0
      %4823 = vmatprep.subr.bf16.mxu0 0
      %4824 = vmatpush2.bf16.msra.mxu0 0
      %4825 = vmatprep.subr.bf16.mxu0 0
      %4826 = vmatpush2.bf16.msra.mxu0 0
      %4827 = vmatprep.subr.bf16.mxu0 0
      %4828 = vmatpush2.bf16.msra.mxu0 0
      %4829 = vmatprep.subr.bf16.mxu0 0
      %4830 = vmatpush2.bf16.msra.mxu0 0
      %4831 = vmatprep.mubr.bf16.mxu0 0
      %4832 = vmatmul.mubr.bf16.gmra.mxu0 %v4700
      %v4833 = vpop.f32.mrf.mxu0
      %v4834 = vadd.f32 0.0, %v4833
      %v4835 = vpop.f32.mrf.mxu0
      %v4836 = vpop.f32.mrf.mxu0
      %v4837 = vpop.f32.mrf.mxu0
      %4838 = vdwg.mxu0
      %v4839 = vadd.f32 %v4626, %v4834
      %v4842 = vunpack.c.l.b16 %v4635
      %v4843 = vunpack.c.l.b16 %v4636
      %v4844 = vpack.c.b16 %v4843, %v4842
      %4846 = vmatprep.subr.bf16.mxu0 0
      %4847 = vmatpush1.bf16.msra.mxu0 0
      %4848 = vmatprep.subr.bf16.mxu0 0
      %4849 = vmatpush1.bf16.msra.mxu0 0
      %4850 = vmatprep.subr.bf16.mxu0 0
      %4851 = vmatpush1.bf16.msra.mxu0 0
      %4852 = vmatprep.subr.bf16.mxu0 0
      %4853 = vmatpush1.bf16.msra.mxu0 0
      %4854 = vmatprep.subr.bf16.mxu0 0
      %4855 = vmatpush1.bf16.msra.mxu0 0
      %4856 = vmatprep.subr.bf16.mxu0 0
      %4857 = vmatpush1.bf16.msra.mxu0 0
      %4858 = vmatprep.subr.bf16.mxu0 0
      %4859 = vmatpush1.bf16.msra.mxu0 0
      %4860 = vmatprep.subr.bf16.mxu0 0
      %4861 = vmatpush1.bf16.msra.mxu0 %v4844
      %4862 = vmatprep.subr.bf16.mxu0 0
      %4863 = vmatpush2.bf16.msra.mxu0 0
      %4864 = vmatprep.subr.bf16.mxu0 0
      %4865 = vmatpush2.bf16.msra.mxu0 0
      %4866 = vmatprep.subr.bf16.mxu0 0
      %4867 = vmatpush2.bf16.msra.mxu0 0
      %4868 = vmatprep.subr.bf16.mxu0 0
      %4869 = vmatpush2.bf16.msra.mxu0 0
      %4870 = vmatprep.subr.bf16.mxu0 0
      %4871 = vmatpush2.bf16.msra.mxu0 0
      %4872 = vmatprep.subr.bf16.mxu0 0
      %4873 = vmatpush2.bf16.msra.mxu0 0
      %4874 = vmatprep.subr.bf16.mxu0 0
      %4875 = vmatpush2.bf16.msra.mxu0 0
      %4876 = vmatprep.subr.bf16.mxu0 0
      %4877 = vmatpush2.bf16.msra.mxu0 0
      %4878 = vmatprep.mubr.bf16.mxu0 0
      %4879 = vmatmul.mubr.bf16.gmra.mxu0 %v4750
      %v4880 = vpop.f32.mrf.mxu0
      %v4881 = vadd.f32 0.0, %v4880
      %v4882 = vpop.f32.mrf.mxu0
      %v4883 = vpop.f32.mrf.mxu0
      %v4884 = vpop.f32.mrf.mxu0
      %4885 = vdwg.mxu0
      %v4886 = vadd.f32 %v4839, %v4881
      %v4887 = vmax.f32 %v4792, 0.0
      %s4888 = scalar_lea.vmem [#allocation12], 2
      %4889 = vst [vmem:[%s4888] ss:$2 sm:$0xff] %v4887
      %v4890 = vmax.f32 %v4886, 0.0
      %s4891 = scalar_lea.vmem [#allocation12], 3
      %4892 = vst [vmem:[%s4891] ss:$2 sm:$0xff] %v4890
      %v4893 = vld [vmem:[%s22] sm:$0x1]
      %v4894 = vld [vmem:[#allocation4 + $0x1] sm:$0xff]
      %v4895 = vld [vmem:[#allocation4 + $0x9] sm:$0xff]
      %v4896 = vpack.c.bf16 %v4895, %v4894
      %v4897 = vld [vmem:[#allocation4 + $0x2] sm:$0xff]
      %v4898 = vld [vmem:[#allocation4 + $0xa] sm:$0xff]
      %v4899 = vpack.c.bf16 %v4898, %v4897
      %v4900 = vld [vmem:[#allocation4 + $0x3] sm:$0xff]
      %v4901 = vld [vmem:[#allocation4 + $0xb] sm:$0xff]
      %v4902 = vpack.c.bf16 %v4901, %v4900
      %v4903 = vld [vmem:[%s21] sm:$0xf]
      %v4904 = vld [vmem:[%s21 + $0x4] sm:$0xf]
      %s4905 = scalar_lea.vmem %s21, 16
      %v4906 = vld [vmem:[%s4905] sm:$0xf]
      %v4907 = vld [vmem:[%s4905 + $0x4] sm:$0xf]
      %s4908 = scalar_lea.vmem %s21, 32
      %v4909 = vld [vmem:[%s4908] sm:$0xf]
      %v4910 = vld [vmem:[%s4908 + $0x4] sm:$0xf]
      %s4911 = scalar_lea.vmem %s21, 48
      %v4912 = vld [vmem:[%s4911] sm:$0xf]
      %v4913 = vld [vmem:[%s4911 + $0x4] sm:$0xf]
      %s4914 = scalar_lea.vmem %s21, 64
      %v4915 = vld [vmem:[%s4914] sm:$0xf]
      %v4916 = vld [vmem:[%s4914 + $0x4] sm:$0xf]
      %v4919 = vunpack.c.l.b16 %v4915
      %v4920 = vunpack.c.l.b16 %v4916
      %v4921 = vpack.c.b16 %v4920, %v4919
      %v4924 = vsel %vm782, %v4896, 0
      %4926 = vmatprep.subr.bf16.mxu0 0
      %4927 = vmatpush1.bf16.msra.mxu0 0
      %4928 = vmatprep.subr.bf16.mxu0 0
      %4929 = vmatpush1.bf16.msra.mxu0 0
      %4930 = vmatprep.subr.bf16.mxu0 0
      %4931 = vmatpush1.bf16.msra.mxu0 0
      %4932 = vmatprep.subr.bf16.mxu0 0
      %4933 = vmatpush1.bf16.msra.mxu0 0
      %4934 = vmatprep.subr.bf16.mxu0 0
      %4935 = vmatpush1.bf16.msra.mxu0 0
      %4936 = vmatprep.subr.bf16.mxu0 0
      %4937 = vmatpush1.bf16.msra.mxu0 0
      %4938 = vmatprep.subr.bf16.mxu0 0
      %4939 = vmatpush1.bf16.msra.mxu0 0
      %4940 = vmatprep.subr.bf16.mxu0 0
      %4941 = vmatpush1.bf16.msra.mxu0 %v4921
      %4942 = vmatprep.subr.bf16.mxu0 0
      %4943 = vmatpush2.bf16.msra.mxu0 0
      %4944 = vmatprep.subr.bf16.mxu0 0
      %4945 = vmatpush2.bf16.msra.mxu0 0
      %4946 = vmatprep.subr.bf16.mxu0 0
      %4947 = vmatpush2.bf16.msra.mxu0 0
      %4948 = vmatprep.subr.bf16.mxu0 0
      %4949 = vmatpush2.bf16.msra.mxu0 0
      %4950 = vmatprep.subr.bf16.mxu0 0
      %4951 = vmatpush2.bf16.msra.mxu0 0
      %4952 = vmatprep.subr.bf16.mxu0 0
      %4953 = vmatpush2.bf16.msra.mxu0 0
      %4954 = vmatprep.subr.bf16.mxu0 0
      %4955 = vmatpush2.bf16.msra.mxu0 0
      %4956 = vmatprep.subr.bf16.mxu0 0
      %4957 = vmatpush2.bf16.msra.mxu0 0
      %4958 = vmatprep.mubr.bf16.mxu0 0
      %4959 = vmatmul.mubr.bf16.gmra.mxu0 %v4924
      %v4960 = vpop.f32.mrf.mxu0
      %v4961 = vadd.f32 0.0, %v4960
      %v4962 = vpop.f32.mrf.mxu0
      %v4963 = vpop.f32.mrf.mxu0
      %v4964 = vadd.f32 0.0, %v4963
      %v4965 = vpop.f32.mrf.mxu0
      %4966 = vdwg.mxu0
      %v4968 = vlaneseq
      %v4969 = vshrl.u32 %v4968, 7
      %v4970 = vsub.s32 0, %v4969
      %v4971 = vrot.slane %v4893, %v4970
      %v4973 = vadd.f32 %v4971, %v4961
      %v4974 = vadd.f32 %v4971, %v4964
      %v4977 = vunpack.c.l.b16 %v4909
      %v4978 = vunpack.c.l.b16 %v4910
      %v4979 = vpack.c.b16 %v4978, %v4977
      %v4982 = vsel %vm782, %v4899, 0
      %4984 = vmatprep.subr.bf16.mxu0 0
      %4985 = vmatpush1.bf16.msra.mxu0 0
      %4986 = vmatprep.subr.bf16.mxu0 0
      %4987 = vmatpush1.bf16.msra.mxu0 0
      %4988 = vmatprep.subr.bf16.mxu0 0
      %4989 = vmatpush1.bf16.msra.mxu0 0
      %4990 = vmatprep.subr.bf16.mxu0 0
      %4991 = vmatpush1.bf16.msra.mxu0 0
      %4992 = vmatprep.subr.bf16.mxu0 0
      %4993 = vmatpush1.bf16.msra.mxu0 0
      %4994 = vmatprep.subr.bf16.mxu0 0
      %4995 = vmatpush1.bf16.msra.mxu0 0
      %4996 = vmatprep.subr.bf16.mxu0 0
      %4997 = vmatpush1.bf16.msra.mxu0 0
      %4998 = vmatprep.subr.bf16.mxu0 0
      %4999 = vmatpush1.bf16.msra.mxu0 %v4979
      %5000 = vmatprep.subr.bf16.mxu0 0
      %5001 = vmatpush2.bf16.msra.mxu0 0
      %5002 = vmatprep.subr.bf16.mxu0 0
      %5003 = vmatpush2.bf16.msra.mxu0 0
      %5004 = vmatprep.subr.bf16.mxu0 0
      %5005 = vmatpush2.bf16.msra.mxu0 0
      %5006 = vmatprep.subr.bf16.mxu0 0
      %5007 = vmatpush2.bf16.msra.mxu0 0
      %5008 = vmatprep.subr.bf16.mxu0 0
      %5009 = vmatpush2.bf16.msra.mxu0 0
      %5010 = vmatprep.subr.bf16.mxu0 0
      %5011 = vmatpush2.bf16.msra.mxu0 0
      %5012 = vmatprep.subr.bf16.mxu0 0
      %5013 = vmatpush2.bf16.msra.mxu0 0
      %5014 = vmatprep.subr.bf16.mxu0 0
      %5015 = vmatpush2.bf16.msra.mxu0 0
      %5016 = vmatprep.mubr.bf16.mxu0 0
      %5017 = vmatmul.mubr.bf16.gmra.mxu0 %v4982
      %v5018 = vpop.f32.mrf.mxu0
      %v5019 = vadd.f32 0.0, %v5018
      %v5020 = vpop.f32.mrf.mxu0
      %v5021 = vpop.f32.mrf.mxu0
      %v5022 = vadd.f32 0.0, %v5021
      %v5023 = vpop.f32.mrf.mxu0
      %5024 = vdwg.mxu0
      %v5025 = vadd.f32 %v4973, %v5019
      %v5026 = vadd.f32 %v4974, %v5022
      %v5029 = vunpack.c.l.b16 %v4903
      %v5030 = vunpack.c.l.b16 %v4904
      %v5031 = vpack.c.b16 %v5030, %v5029
      %v5034 = vsel %vm782, %v4902, 0
      %5036 = vmatprep.subr.bf16.mxu0 0
      %5037 = vmatpush1.bf16.msra.mxu0 0
      %5038 = vmatprep.subr.bf16.mxu0 0
      %5039 = vmatpush1.bf16.msra.mxu0 0
      %5040 = vmatprep.subr.bf16.mxu0 0
      %5041 = vmatpush1.bf16.msra.mxu0 0
      %5042 = vmatprep.subr.bf16.mxu0 0
      %5043 = vmatpush1.bf16.msra.mxu0 0
      %5044 = vmatprep.subr.bf16.mxu0 0
      %5045 = vmatpush1.bf16.msra.mxu0 0
      %5046 = vmatprep.subr.bf16.mxu0 0
      %5047 = vmatpush1.bf16.msra.mxu0 0
      %5048 = vmatprep.subr.bf16.mxu0 0
      %5049 = vmatpush1.bf16.msra.mxu0 0
      %5050 = vmatprep.subr.bf16.mxu0 0
      %5051 = vmatpush1.bf16.msra.mxu0 %v5031
      %5052 = vmatprep.subr.bf16.mxu0 0
      %5053 = vmatpush2.bf16.msra.mxu0 0
      %5054 = vmatprep.subr.bf16.mxu0 0
      %5055 = vmatpush2.bf16.msra.mxu0 0
      %5056 = vmatprep.subr.bf16.mxu0 0
      %5057 = vmatpush2.bf16.msra.mxu0 0
      %5058 = vmatprep.subr.bf16.mxu0 0
      %5059 = vmatpush2.bf16.msra.mxu0 0
      %5060 = vmatprep.subr.bf16.mxu0 0
      %5061 = vmatpush2.bf16.msra.mxu0 0
      %5062 = vmatprep.subr.bf16.mxu0 0
      %5063 = vmatpush2.bf16.msra.mxu0 0
      %5064 = vmatprep.subr.bf16.mxu0 0
      %5065 = vmatpush2.bf16.msra.mxu0 0
      %5066 = vmatprep.subr.bf16.mxu0 0
      %5067 = vmatpush2.bf16.msra.mxu0 0
      %5068 = vmatprep.mubr.bf16.mxu0 0
      %5069 = vmatmul.mubr.bf16.gmra.mxu0 %v5034
      %v5070 = vpop.f32.mrf.mxu0
      %v5071 = vadd.f32 0.0, %v5070
      %v5072 = vpop.f32.mrf.mxu0
      %v5073 = vpop.f32.mrf.mxu0
      %v5074 = vadd.f32 0.0, %v5073
      %v5075 = vpop.f32.mrf.mxu0
      %5076 = vdwg.mxu0
      %v5077 = vadd.f32 %v5025, %v5071
      %v5078 = vadd.f32 %v5026, %v5074
      %v5081 = vunpack.c.l.b16 %v4912
      %v5082 = vunpack.c.l.b16 %v4913
      %v5083 = vpack.c.b16 %v5082, %v5081
      %5085 = vmatprep.subr.bf16.mxu0 0
      %5086 = vmatpush1.bf16.msra.mxu0 0
      %5087 = vmatprep.subr.bf16.mxu0 0
      %5088 = vmatpush1.bf16.msra.mxu0 0
      %5089 = vmatprep.subr.bf16.mxu0 0
      %5090 = vmatpush1.bf16.msra.mxu0 0
      %5091 = vmatprep.subr.bf16.mxu0 0
      %5092 = vmatpush1.bf16.msra.mxu0 0
      %5093 = vmatprep.subr.bf16.mxu0 0
      %5094 = vmatpush1.bf16.msra.mxu0 0
      %5095 = vmatprep.subr.bf16.mxu0 0
      %5096 = vmatpush1.bf16.msra.mxu0 0
      %5097 = vmatprep.subr.bf16.mxu0 0
      %5098 = vmatpush1.bf16.msra.mxu0 0
      %5099 = vmatprep.subr.bf16.mxu0 0
      %5100 = vmatpush1.bf16.msra.mxu0 %v5083
      %5101 = vmatprep.subr.bf16.mxu0 0
      %5102 = vmatpush2.bf16.msra.mxu0 0
      %5103 = vmatprep.subr.bf16.mxu0 0
      %5104 = vmatpush2.bf16.msra.mxu0 0
      %5105 = vmatprep.subr.bf16.mxu0 0
      %5106 = vmatpush2.bf16.msra.mxu0 0
      %5107 = vmatprep.subr.bf16.mxu0 0
      %5108 = vmatpush2.bf16.msra.mxu0 0
      %5109 = vmatprep.subr.bf16.mxu0 0
      %5110 = vmatpush2.bf16.msra.mxu0 0
      %5111 = vmatprep.subr.bf16.mxu0 0
      %5112 = vmatpush2.bf16.msra.mxu0 0
      %5113 = vmatprep.subr.bf16.mxu0 0
      %5114 = vmatpush2.bf16.msra.mxu0 0
      %5115 = vmatprep.subr.bf16.mxu0 0
      %5116 = vmatpush2.bf16.msra.mxu0 0
      %5117 = vmatprep.mubr.bf16.mxu0 0
      %5118 = vmatmul.mubr.bf16.gmra.mxu0 %v4982
      %v5119 = vpop.f32.mrf.mxu0
      %v5120 = vadd.f32 0.0, %v5119
      %v5121 = vpop.f32.mrf.mxu0
      %v5122 = vpop.f32.mrf.mxu0
      %v5123 = vadd.f32 0.0, %v5122
      %v5124 = vpop.f32.mrf.mxu0
      %5125 = vdwg.mxu0
      %v5126 = vadd.f32 %v4971, %v5120
      %v5127 = vadd.f32 %v4971, %v5123
      %v5130 = vunpack.c.l.b16 %v4906
      %v5131 = vunpack.c.l.b16 %v4907
      %v5132 = vpack.c.b16 %v5131, %v5130
      %5134 = vmatprep.subr.bf16.mxu0 0
      %5135 = vmatpush1.bf16.msra.mxu0 0
      %5136 = vmatprep.subr.bf16.mxu0 0
      %5137 = vmatpush1.bf16.msra.mxu0 0
      %5138 = vmatprep.subr.bf16.mxu0 0
      %5139 = vmatpush1.bf16.msra.mxu0 0
      %5140 = vmatprep.subr.bf16.mxu0 0
      %5141 = vmatpush1.bf16.msra.mxu0 0
      %5142 = vmatprep.subr.bf16.mxu0 0
      %5143 = vmatpush1.bf16.msra.mxu0 0
      %5144 = vmatprep.subr.bf16.mxu0 0
      %5145 = vmatpush1.bf16.msra.mxu0 0
      %5146 = vmatprep.subr.bf16.mxu0 0
      %5147 = vmatpush1.bf16.msra.mxu0 0
      %5148 = vmatprep.subr.bf16.mxu0 0
      %5149 = vmatpush1.bf16.msra.mxu0 %v5132
      %5150 = vmatprep.subr.bf16.mxu0 0
      %5151 = vmatpush2.bf16.msra.mxu0 0
      %5152 = vmatprep.subr.bf16.mxu0 0
      %5153 = vmatpush2.bf16.msra.mxu0 0
      %5154 = vmatprep.subr.bf16.mxu0 0
      %5155 = vmatpush2.bf16.msra.mxu0 0
      %5156 = vmatprep.subr.bf16.mxu0 0
      %5157 = vmatpush2.bf16.msra.mxu0 0
      %5158 = vmatprep.subr.bf16.mxu0 0
      %5159 = vmatpush2.bf16.msra.mxu0 0
      %5160 = vmatprep.subr.bf16.mxu0 0
      %5161 = vmatpush2.bf16.msra.mxu0 0
      %5162 = vmatprep.subr.bf16.mxu0 0
      %5163 = vmatpush2.bf16.msra.mxu0 0
      %5164 = vmatprep.subr.bf16.mxu0 0
      %5165 = vmatpush2.bf16.msra.mxu0 0
      %5166 = vmatprep.mubr.bf16.mxu0 0
      %5167 = vmatmul.mubr.bf16.gmra.mxu0 %v5034
      %v5168 = vpop.f32.mrf.mxu0
      %v5169 = vadd.f32 0.0, %v5168
      %v5170 = vpop.f32.mrf.mxu0
      %v5171 = vpop.f32.mrf.mxu0
      %v5172 = vadd.f32 0.0, %v5171
      %v5173 = vpop.f32.mrf.mxu0
      %5174 = vdwg.mxu0
      %v5175 = vadd.f32 %v5126, %v5169
      %v5176 = vadd.f32 %v5127, %v5172
      %v5177 = vld [vmem:[#allocation12 + $0x1] sm:$0xff]
      %v5178 = vld [vmem:[#allocation12 + $0x9] sm:$0xff]
      %v5179 = vpack.c.bf16 %v5178, %v5177
      %v5180 = vld [vmem:[#allocation12 + $0x2] sm:$0xff]
      %v5181 = vld [vmem:[#allocation12 + $0xa] sm:$0xff]
      %v5182 = vpack.c.bf16 %v5181, %v5180
      %v5183 = vld [vmem:[#allocation12 + $0x3] sm:$0xff]
      %v5184 = vld [vmem:[#allocation12 + $0xb] sm:$0xff]
      %v5185 = vpack.c.bf16 %v5184, %v5183
      %v5186 = vld [vmem:[%s21 + $0x8] sm:$0xf]
      %v5187 = vld [vmem:[%s21 + $0xc] sm:$0xf]
      %v5188 = vld [vmem:[%s4905 + $0x8] sm:$0xf]
      %v5189 = vld [vmem:[%s4905 + $0xc] sm:$0xf]
      %v5190 = vld [vmem:[%s4908 + $0x8] sm:$0xf]
      %v5191 = vld [vmem:[%s4908 + $0xc] sm:$0xf]
      %v5192 = vld [vmem:[%s4911 + $0x8] sm:$0xf]
      %v5193 = vld [vmem:[%s4911 + $0xc] sm:$0xf]
      %v5194 = vld [vmem:[%s4914 + $0x8] sm:$0xf]
      %v5195 = vld [vmem:[%s4914 + $0xc] sm:$0xf]
      %v5198 = vunpack.c.l.b16 %v5194
      %v5199 = vunpack.c.l.b16 %v5195
      %v5200 = vpack.c.b16 %v5199, %v5198
      %v5203 = vsel %vm782, %v5179, 0
      %5205 = vmatprep.subr.bf16.mxu0 0
      %5206 = vmatpush1.bf16.msra.mxu0 0
      %5207 = vmatprep.subr.bf16.mxu0 0
      %5208 = vmatpush1.bf16.msra.mxu0 0
      %5209 = vmatprep.subr.bf16.mxu0 0
      %5210 = vmatpush1.bf16.msra.mxu0 0
      %5211 = vmatprep.subr.bf16.mxu0 0
      %5212 = vmatpush1.bf16.msra.mxu0 0
      %5213 = vmatprep.subr.bf16.mxu0 0
      %5214 = vmatpush1.bf16.msra.mxu0 0
      %5215 = vmatprep.subr.bf16.mxu0 0
      %5216 = vmatpush1.bf16.msra.mxu0 0
      %5217 = vmatprep.subr.bf16.mxu0 0
      %5218 = vmatpush1.bf16.msra.mxu0 0
      %5219 = vmatprep.subr.bf16.mxu0 0
      %5220 = vmatpush1.bf16.msra.mxu0 %v5200
      %5221 = vmatprep.subr.bf16.mxu0 0
      %5222 = vmatpush2.bf16.msra.mxu0 0
      %5223 = vmatprep.subr.bf16.mxu0 0
      %5224 = vmatpush2.bf16.msra.mxu0 0
      %5225 = vmatprep.subr.bf16.mxu0 0
      %5226 = vmatpush2.bf16.msra.mxu0 0
      %5227 = vmatprep.subr.bf16.mxu0 0
      %5228 = vmatpush2.bf16.msra.mxu0 0
      %5229 = vmatprep.subr.bf16.mxu0 0
      %5230 = vmatpush2.bf16.msra.mxu0 0
      %5231 = vmatprep.subr.bf16.mxu0 0
      %5232 = vmatpush2.bf16.msra.mxu0 0
      %5233 = vmatprep.subr.bf16.mxu0 0
      %5234 = vmatpush2.bf16.msra.mxu0 0
      %5235 = vmatprep.subr.bf16.mxu0 0
      %5236 = vmatpush2.bf16.msra.mxu0 0
      %5237 = vmatprep.mubr.bf16.mxu0 0
      %5238 = vmatmul.mubr.bf16.gmra.mxu0 %v5203
      %v5239 = vpop.f32.mrf.mxu0
      %v5240 = vadd.f32 0.0, %v5239
      %v5241 = vpop.f32.mrf.mxu0
      %v5242 = vpop.f32.mrf.mxu0
      %v5243 = vadd.f32 0.0, %v5242
      %v5244 = vpop.f32.mrf.mxu0
      %5245 = vdwg.mxu0
      %v5246 = vadd.f32 %v5077, %v5240
      %v5247 = vadd.f32 %v5078, %v5243
      %v5250 = vunpack.c.l.b16 %v5190
      %v5251 = vunpack.c.l.b16 %v5191
      %v5252 = vpack.c.b16 %v5251, %v5250
      %v5255 = vsel %vm782, %v5182, 0
      %5257 = vmatprep.subr.bf16.mxu0 0
      %5258 = vmatpush1.bf16.msra.mxu0 0
      %5259 = vmatprep.subr.bf16.mxu0 0
      %5260 = vmatpush1.bf16.msra.mxu0 0
      %5261 = vmatprep.subr.bf16.mxu0 0
      %5262 = vmatpush1.bf16.msra.mxu0 0
      %5263 = vmatprep.subr.bf16.mxu0 0
      %5264 = vmatpush1.bf16.msra.mxu0 0
      %5265 = vmatprep.subr.bf16.mxu0 0
      %5266 = vmatpush1.bf16.msra.mxu0 0
      %5267 = vmatprep.subr.bf16.mxu0 0
      %5268 = vmatpush1.bf16.msra.mxu0 0
      %5269 = vmatprep.subr.bf16.mxu0 0
      %5270 = vmatpush1.bf16.msra.mxu0 0
      %5271 = vmatprep.subr.bf16.mxu0 0
      %5272 = vmatpush1.bf16.msra.mxu0 %v5252
      %5273 = vmatprep.subr.bf16.mxu0 0
      %5274 = vmatpush2.bf16.msra.mxu0 0
      %5275 = vmatprep.subr.bf16.mxu0 0
      %5276 = vmatpush2.bf16.msra.mxu0 0
      %5277 = vmatprep.subr.bf16.mxu0 0
      %5278 = vmatpush2.bf16.msra.mxu0 0
      %5279 = vmatprep.subr.bf16.mxu0 0
      %5280 = vmatpush2.bf16.msra.mxu0 0
      %5281 = vmatprep.subr.bf16.mxu0 0
      %5282 = vmatpush2.bf16.msra.mxu0 0
      %5283 = vmatprep.subr.bf16.mxu0 0
      %5284 = vmatpush2.bf16.msra.mxu0 0
      %5285 = vmatprep.subr.bf16.mxu0 0
      %5286 = vmatpush2.bf16.msra.mxu0 0
      %5287 = vmatprep.subr.bf16.mxu0 0
      %5288 = vmatpush2.bf16.msra.mxu0 0
      %5289 = vmatprep.mubr.bf16.mxu0 0
      %5290 = vmatmul.mubr.bf16.gmra.mxu0 %v5255
      %v5291 = vpop.f32.mrf.mxu0
      %v5292 = vadd.f32 0.0, %v5291
      %v5293 = vpop.f32.mrf.mxu0
      %v5294 = vpop.f32.mrf.mxu0
      %v5295 = vadd.f32 0.0, %v5294
      %v5296 = vpop.f32.mrf.mxu0
      %5297 = vdwg.mxu0
      %v5298 = vadd.f32 %v5246, %v5292
      %v5299 = vadd.f32 %v5247, %v5295
      %v5302 = vunpack.c.l.b16 %v5186
      %v5303 = vunpack.c.l.b16 %v5187
      %v5304 = vpack.c.b16 %v5303, %v5302
      %v5307 = vsel %vm782, %v5185, 0
      %5309 = vmatprep.subr.bf16.mxu0 0
      %5310 = vmatpush1.bf16.msra.mxu0 0
      %5311 = vmatprep.subr.bf16.mxu0 0
      %5312 = vmatpush1.bf16.msra.mxu0 0
      %5313 = vmatprep.subr.bf16.mxu0 0
      %5314 = vmatpush1.bf16.msra.mxu0 0
      %5315 = vmatprep.subr.bf16.mxu0 0
      %5316 = vmatpush1.bf16.msra.mxu0 0
      %5317 = vmatprep.subr.bf16.mxu0 0
      %5318 = vmatpush1.bf16.msra.mxu0 0
      %5319 = vmatprep.subr.bf16.mxu0 0
      %5320 = vmatpush1.bf16.msra.mxu0 0
      %5321 = vmatprep.subr.bf16.mxu0 0
      %5322 = vmatpush1.bf16.msra.mxu0 0
      %5323 = vmatprep.subr.bf16.mxu0 0
      %5324 = vmatpush1.bf16.msra.mxu0 %v5304
      %5325 = vmatprep.subr.bf16.mxu0 0
      %5326 = vmatpush2.bf16.msra.mxu0 0
      %5327 = vmatprep.subr.bf16.mxu0 0
      %5328 = vmatpush2.bf16.msra.mxu0 0
      %5329 = vmatprep.subr.bf16.mxu0 0
      %5330 = vmatpush2.bf16.msra.mxu0 0
      %5331 = vmatprep.subr.bf16.mxu0 0
      %5332 = vmatpush2.bf16.msra.mxu0 0
      %5333 = vmatprep.subr.bf16.mxu0 0
      %5334 = vmatpush2.bf16.msra.mxu0 0
      %5335 = vmatprep.subr.bf16.mxu0 0
      %5336 = vmatpush2.bf16.msra.mxu0 0
      %5337 = vmatprep.subr.bf16.mxu0 0
      %5338 = vmatpush2.bf16.msra.mxu0 0
      %5339 = vmatprep.subr.bf16.mxu0 0
      %5340 = vmatpush2.bf16.msra.mxu0 0
      %5341 = vmatprep.mubr.bf16.mxu0 0
      %5342 = vmatmul.mubr.bf16.gmra.mxu0 %v5307
      %v5343 = vpop.f32.mrf.mxu0
      %v5344 = vadd.f32 0.0, %v5343
      %v5345 = vpop.f32.mrf.mxu0
      %v5346 = vpop.f32.mrf.mxu0
      %v5347 = vadd.f32 0.0, %v5346
      %v5348 = vpop.f32.mrf.mxu0
      %5349 = vdwg.mxu0
      %v5350 = vadd.f32 %v5298, %v5344
      %v5351 = vadd.f32 %v5299, %v5347
      %v5354 = vunpack.c.l.b16 %v5192
      %v5355 = vunpack.c.l.b16 %v5193
      %v5356 = vpack.c.b16 %v5355, %v5354
      %5358 = vmatprep.subr.bf16.mxu0 0
      %5359 = vmatpush1.bf16.msra.mxu0 0
      %5360 = vmatprep.subr.bf16.mxu0 0
      %5361 = vmatpush1.bf16.msra.mxu0 0
      %5362 = vmatprep.subr.bf16.mxu0 0
      %5363 = vmatpush1.bf16.msra.mxu0 0
      %5364 = vmatprep.subr.bf16.mxu0 0
      %5365 = vmatpush1.bf16.msra.mxu0 0
      %5366 = vmatprep.subr.bf16.mxu0 0
      %5367 = vmatpush1.bf16.msra.mxu0 0
      %5368 = vmatprep.subr.bf16.mxu0 0
      %5369 = vmatpush1.bf16.msra.mxu0 0
      %5370 = vmatprep.subr.bf16.mxu0 0
      %5371 = vmatpush1.bf16.msra.mxu0 0
      %5372 = vmatprep.subr.bf16.mxu0 0
      %5373 = vmatpush1.bf16.msra.mxu0 %v5356
      %5374 = vmatprep.subr.bf16.mxu0 0
      %5375 = vmatpush2.bf16.msra.mxu0 0
      %5376 = vmatprep.subr.bf16.mxu0 0
      %5377 = vmatpush2.bf16.msra.mxu0 0
      %5378 = vmatprep.subr.bf16.mxu0 0
      %5379 = vmatpush2.bf16.msra.mxu0 0
      %5380 = vmatprep.subr.bf16.mxu0 0
      %5381 = vmatpush2.bf16.msra.mxu0 0
      %5382 = vmatprep.subr.bf16.mxu0 0
      %5383 = vmatpush2.bf16.msra.mxu0 0
      %5384 = vmatprep.subr.bf16.mxu0 0
      %5385 = vmatpush2.bf16.msra.mxu0 0
      %5386 = vmatprep.subr.bf16.mxu0 0
      %5387 = vmatpush2.bf16.msra.mxu0 0
      %5388 = vmatprep.subr.bf16.mxu0 0
      %5389 = vmatpush2.bf16.msra.mxu0 0
      %5390 = vmatprep.mubr.bf16.mxu0 0
      %5391 = vmatmul.mubr.bf16.gmra.mxu0 %v5255
      %v5392 = vpop.f32.mrf.mxu0
      %v5393 = vadd.f32 0.0, %v5392
      %v5394 = vpop.f32.mrf.mxu0
      %v5395 = vpop.f32.mrf.mxu0
      %v5396 = vadd.f32 0.0, %v5395
      %v5397 = vpop.f32.mrf.mxu0
      %5398 = vdwg.mxu0
      %v5399 = vadd.f32 %v5175, %v5393
      %v5400 = vadd.f32 %v5176, %v5396
      %v5403 = vunpack.c.l.b16 %v5188
      %v5404 = vunpack.c.l.b16 %v5189
      %v5405 = vpack.c.b16 %v5404, %v5403
      %5407 = vmatprep.subr.bf16.mxu0 0
      %5408 = vmatpush1.bf16.msra.mxu0 0
      %5409 = vmatprep.subr.bf16.mxu0 0
      %5410 = vmatpush1.bf16.msra.mxu0 0
      %5411 = vmatprep.subr.bf16.mxu0 0
      %5412 = vmatpush1.bf16.msra.mxu0 0
      %5413 = vmatprep.subr.bf16.mxu0 0
      %5414 = vmatpush1.bf16.msra.mxu0 0
      %5415 = vmatprep.subr.bf16.mxu0 0
      %5416 = vmatpush1.bf16.msra.mxu0 0
      %5417 = vmatprep.subr.bf16.mxu0 0
      %5418 = vmatpush1.bf16.msra.mxu0 0
      %5419 = vmatprep.subr.bf16.mxu0 0
      %5420 = vmatpush1.bf16.msra.mxu0 0
      %5421 = vmatprep.subr.bf16.mxu0 0
      %5422 = vmatpush1.bf16.msra.mxu0 %v5405
      %5423 = vmatprep.subr.bf16.mxu0 0
      %5424 = vmatpush2.bf16.msra.mxu0 0
      %5425 = vmatprep.subr.bf16.mxu0 0
      %5426 = vmatpush2.bf16.msra.mxu0 0
      %5427 = vmatprep.subr.bf16.mxu0 0
      %5428 = vmatpush2.bf16.msra.mxu0 0
      %5429 = vmatprep.subr.bf16.mxu0 0
      %5430 = vmatpush2.bf16.msra.mxu0 0
      %5431 = vmatprep.subr.bf16.mxu0 0
      %5432 = vmatpush2.bf16.msra.mxu0 0
      %5433 = vmatprep.subr.bf16.mxu0 0
      %5434 = vmatpush2.bf16.msra.mxu0 0
      %5435 = vmatprep.subr.bf16.mxu0 0
      %5436 = vmatpush2.bf16.msra.mxu0 0
      %5437 = vmatprep.subr.bf16.mxu0 0
      %5438 = vmatpush2.bf16.msra.mxu0 0
      %5439 = vmatprep.mubr.bf16.mxu0 0
      %5440 = vmatmul.mubr.bf16.gmra.mxu0 %v5307
      %v5441 = vpop.f32.mrf.mxu0
      %v5442 = vadd.f32 0.0, %v5441
      %v5443 = vpop.f32.mrf.mxu0
      %v5444 = vpop.f32.mrf.mxu0
      %v5445 = vadd.f32 0.0, %v5444
      %v5446 = vpop.f32.mrf.mxu0
      %5447 = vdwg.mxu0
      %v5448 = vadd.f32 %v5399, %v5442
      %v5449 = vadd.f32 %v5400, %v5445
      %v5450 = vmax.f32 %v5350, 0.0
      %v5451 = vmax.f32 %v5351, 0.0
      %s5452 = scalar_lea.vmem [#allocation13], 2
      %5453 = vst [vmem:[%s5452] ss:$2 sm:$0xff] %v5450
      %s5454 = scalar_lea.vmem [#allocation13], 18
      %5455 = vst [vmem:[%s5454] ss:$2 sm:$0xff] %v5451
      %v5456 = vmax.f32 %v5448, 0.0
      %v5457 = vmax.f32 %v5449, 0.0
      %s5458 = scalar_lea.vmem [#allocation13], 3
      %5459 = vst [vmem:[%s5458] ss:$2 sm:$0xff] %v5456
      %s5460 = scalar_lea.vmem [#allocation13], 19
      %5461 = vst [vmem:[%s5460] ss:$2 sm:$0xff] %v5457
      %v5462 = vld [vmem:[%s24] sm:$0x1]
      %v5463 = vld [vmem:[#allocation3 + $0x1] sm:$0xff]
      %v5464 = vld [vmem:[#allocation3 + $0x9] sm:$0xff]
      %v5465 = vld [vmem:[#allocation3 + $0x11] sm:$0xff]
      %v5466 = vld [vmem:[#allocation3 + $0x19] sm:$0xff]
      %v5467 = vpack.c.bf16 %v5464, %v5463
      %v5468 = vpack.c.bf16 %v5466, %v5465
      %v5469 = vld [vmem:[#allocation3 + $0x2] sm:$0xff]
      %v5470 = vld [vmem:[#allocation3 + $0xa] sm:$0xff]
      %v5471 = vld [vmem:[#allocation3 + $0x12] sm:$0xff]
      %v5472 = vld [vmem:[#allocation3 + $0x1a] sm:$0xff]
      %v5473 = vpack.c.bf16 %v5470, %v5469
      %v5474 = vpack.c.bf16 %v5472, %v5471
      %v5475 = vld [vmem:[#allocation3 + $0x3] sm:$0xff]
      %v5476 = vld [vmem:[#allocation3 + $0xb] sm:$0xff]
      %v5477 = vld [vmem:[#allocation3 + $0x13] sm:$0xff]
      %v5478 = vld [vmem:[#allocation3 + $0x1b] sm:$0xff]
      %v5479 = vpack.c.bf16 %v5476, %v5475
      %v5480 = vpack.c.bf16 %v5478, %v5477
      %v5481 = vld [vmem:[%s23] sm:$0xf]
      %s5482 = scalar_lea.vmem %s23, 8
      %v5483 = vld [vmem:[%s5482] sm:$0xf]
      %s5484 = scalar_lea.vmem %s23, 16
      %v5485 = vld [vmem:[%s5484] sm:$0xf]
      %s5486 = scalar_lea.vmem %s23, 24
      %v5487 = vld [vmem:[%s5486] sm:$0xf]
      %s5488 = scalar_lea.vmem %s23, 32
      %v5489 = vld [vmem:[%s5488] sm:$0xf]
      %v5491 = vsel %vm766, %v5467, 0
      %v5494 = vsel %vm766, %v5468, 0
      %v5497 = vsel %vm849, %v5489, 0
      %5499 = vmatprep.subr.bf16.mxu0 0
      %5500 = vmatpush1.bf16.msra.mxu0 0
      %5501 = vmatprep.subr.bf16.mxu0 0
      %5502 = vmatpush1.bf16.msra.mxu0 0
      %5503 = vmatprep.subr.bf16.mxu0 0
      %5504 = vmatpush1.bf16.msra.mxu0 0
      %5505 = vmatprep.subr.bf16.mxu0 0
      %5506 = vmatpush1.bf16.msra.mxu0 0
      %5507 = vmatprep.subr.bf16.mxu0 0
      %5508 = vmatpush1.bf16.msra.mxu0 0
      %5509 = vmatprep.subr.bf16.mxu0 0
      %5510 = vmatpush1.bf16.msra.mxu0 0
      %5511 = vmatprep.subr.bf16.mxu0 0
      %5512 = vmatpush1.bf16.msra.mxu0 0
      %5513 = vmatprep.subr.bf16.mxu0 0
      %5514 = vmatpush1.bf16.msra.mxu0 %v5497
      %5515 = vmatprep.subr.bf16.mxu0 0
      %5516 = vmatpush2.bf16.msra.mxu0 0
      %5517 = vmatprep.subr.bf16.mxu0 0
      %5518 = vmatpush2.bf16.msra.mxu0 0
      %5519 = vmatprep.subr.bf16.mxu0 0
      %5520 = vmatpush2.bf16.msra.mxu0 0
      %5521 = vmatprep.subr.bf16.mxu0 0
      %5522 = vmatpush2.bf16.msra.mxu0 0
      %5523 = vmatprep.subr.bf16.mxu0 0
      %5524 = vmatpush2.bf16.msra.mxu0 0
      %5525 = vmatprep.subr.bf16.mxu0 0
      %5526 = vmatpush2.bf16.msra.mxu0 0
      %5527 = vmatprep.subr.bf16.mxu0 0
      %5528 = vmatpush2.bf16.msra.mxu0 0
      %5529 = vmatprep.subr.bf16.mxu0 0
      %5530 = vmatpush2.bf16.msra.mxu0 0
      %5531 = vmatprep.mubr.bf16.mxu0 0
      %5532 = vmatmul.mubr.bf16.gmra.mxu0 %v5491
      %v5533 = vpop.f32.mrf.mxu0
      %v5534 = vadd.f32 0.0, %v5533
      %v5535 = vpop.f32.mrf.mxu0
      %v5536 = vpop.f32.mrf.mxu0
      %v5537 = vadd.f32 0.0, %v5536
      %v5538 = vpop.f32.mrf.mxu0
      %5539 = vmatprep.mubr.bf16.mxu0 0
      %5540 = vmatmul.mubr.bf16.gmra.mxu0 %v5494
      %v5541 = vpop.f32.mrf.mxu0
      %v5542 = vadd.f32 0.0, %v5541
      %v5543 = vpop.f32.mrf.mxu0
      %v5544 = vpop.f32.mrf.mxu0
      %v5545 = vadd.f32 0.0, %v5544
      %v5546 = vpop.f32.mrf.mxu0
      %5547 = vdwg.mxu0
      %v5549 = vlaneseq
      %v5550 = vshrl.u32 %v5549, 7
      %v5551 = vsub.s32 0, %v5550
      %v5552 = vrot.slane %v5462, %v5551
      %v5554 = vadd.f32 %v5552, %v5534
      %v5555 = vadd.f32 %v5552, %v5537
      %v5556 = vadd.f32 %v5552, %v5542
      %v5557 = vadd.f32 %v5552, %v5545
      %v5559 = vsel %vm766, %v5473, 0
      %v5562 = vsel %vm766, %v5474, 0
      %v5565 = vsel %vm849, %v5485, 0
      %5567 = vmatprep.subr.bf16.mxu0 0
      %5568 = vmatpush1.bf16.msra.mxu0 0
      %5569 = vmatprep.subr.bf16.mxu0 0
      %5570 = vmatpush1.bf16.msra.mxu0 0
      %5571 = vmatprep.subr.bf16.mxu0 0
      %5572 = vmatpush1.bf16.msra.mxu0 0
      %5573 = vmatprep.subr.bf16.mxu0 0
      %5574 = vmatpush1.bf16.msra.mxu0 0
      %5575 = vmatprep.subr.bf16.mxu0 0
      %5576 = vmatpush1.bf16.msra.mxu0 0
      %5577 = vmatprep.subr.bf16.mxu0 0
      %5578 = vmatpush1.bf16.msra.mxu0 0
      %5579 = vmatprep.subr.bf16.mxu0 0
      %5580 = vmatpush1.bf16.msra.mxu0 0
      %5581 = vmatprep.subr.bf16.mxu0 0
      %5582 = vmatpush1.bf16.msra.mxu0 %v5565
      %5583 = vmatprep.subr.bf16.mxu0 0
      %5584 = vmatpush2.bf16.msra.mxu0 0
      %5585 = vmatprep.subr.bf16.mxu0 0
      %5586 = vmatpush2.bf16.msra.mxu0 0
      %5587 = vmatprep.subr.bf16.mxu0 0
      %5588 = vmatpush2.bf16.msra.mxu0 0
      %5589 = vmatprep.subr.bf16.mxu0 0
      %5590 = vmatpush2.bf16.msra.mxu0 0
      %5591 = vmatprep.subr.bf16.mxu0 0
      %5592 = vmatpush2.bf16.msra.mxu0 0
      %5593 = vmatprep.subr.bf16.mxu0 0
      %5594 = vmatpush2.bf16.msra.mxu0 0
      %5595 = vmatprep.subr.bf16.mxu0 0
      %5596 = vmatpush2.bf16.msra.mxu0 0
      %5597 = vmatprep.subr.bf16.mxu0 0
      %5598 = vmatpush2.bf16.msra.mxu0 0
      %5599 = vmatprep.mubr.bf16.mxu0 0
      %5600 = vmatmul.mubr.bf16.gmra.mxu0 %v5559
      %v5601 = vpop.f32.mrf.mxu0
      %v5602 = vadd.f32 0.0, %v5601
      %v5603 = vpop.f32.mrf.mxu0
      %v5604 = vpop.f32.mrf.mxu0
      %v5605 = vadd.f32 0.0, %v5604
      %v5606 = vpop.f32.mrf.mxu0
      %5607 = vmatprep.mubr.bf16.mxu0 0
      %5608 = vmatmul.mubr.bf16.gmra.mxu0 %v5562
      %v5609 = vpop.f32.mrf.mxu0
      %v5610 = vadd.f32 0.0, %v5609
      %v5611 = vpop.f32.mrf.mxu0
      %v5612 = vpop.f32.mrf.mxu0
      %v5613 = vadd.f32 0.0, %v5612
      %v5614 = vpop.f32.mrf.mxu0
      %5615 = vdwg.mxu0
      %v5616 = vadd.f32 %v5554, %v5602
      %v5617 = vadd.f32 %v5555, %v5605
      %v5618 = vadd.f32 %v5556, %v5610
      %v5619 = vadd.f32 %v5557, %v5613
      %v5621 = vsel %vm766, %v5479, 0
      %v5624 = vsel %vm766, %v5480, 0
      %v5627 = vsel %vm849, %v5481, 0
      %5629 = vmatprep.subr.bf16.mxu0 0
      %5630 = vmatpush1.bf16.msra.mxu0 0
      %5631 = vmatprep.subr.bf16.mxu0 0
      %5632 = vmatpush1.bf16.msra.mxu0 0
      %5633 = vmatprep.subr.bf16.mxu0 0
      %5634 = vmatpush1.bf16.msra.mxu0 0
      %5635 = vmatprep.subr.bf16.mxu0 0
      %5636 = vmatpush1.bf16.msra.mxu0 0
      %5637 = vmatprep.subr.bf16.mxu0 0
      %5638 = vmatpush1.bf16.msra.mxu0 0
      %5639 = vmatprep.subr.bf16.mxu0 0
      %5640 = vmatpush1.bf16.msra.mxu0 0
      %5641 = vmatprep.subr.bf16.mxu0 0
      %5642 = vmatpush1.bf16.msra.mxu0 0
      %5643 = vmatprep.subr.bf16.mxu0 0
      %5644 = vmatpush1.bf16.msra.mxu0 %v5627
      %5645 = vmatprep.subr.bf16.mxu0 0
      %5646 = vmatpush2.bf16.msra.mxu0 0
      %5647 = vmatprep.subr.bf16.mxu0 0
      %5648 = vmatpush2.bf16.msra.mxu0 0
      %5649 = vmatprep.subr.bf16.mxu0 0
      %5650 = vmatpush2.bf16.msra.mxu0 0
      %5651 = vmatprep.subr.bf16.mxu0 0
      %5652 = vmatpush2.bf16.msra.mxu0 0
      %5653 = vmatprep.subr.bf16.mxu0 0
      %5654 = vmatpush2.bf16.msra.mxu0 0
      %5655 = vmatprep.subr.bf16.mxu0 0
      %5656 = vmatpush2.bf16.msra.mxu0 0
      %5657 = vmatprep.subr.bf16.mxu0 0
      %5658 = vmatpush2.bf16.msra.mxu0 0
      %5659 = vmatprep.subr.bf16.mxu0 0
      %5660 = vmatpush2.bf16.msra.mxu0 0
      %5661 = vmatprep.mubr.bf16.mxu0 0
      %5662 = vmatmul.mubr.bf16.gmra.mxu0 %v5621
      %v5663 = vpop.f32.mrf.mxu0
      %v5664 = vadd.f32 0.0, %v5663
      %v5665 = vpop.f32.mrf.mxu0
      %v5666 = vpop.f32.mrf.mxu0
      %v5667 = vadd.f32 0.0, %v5666
      %v5668 = vpop.f32.mrf.mxu0
      %5669 = vmatprep.mubr.bf16.mxu0 0
      %5670 = vmatmul.mubr.bf16.gmra.mxu0 %v5624
      %v5671 = vpop.f32.mrf.mxu0
      %v5672 = vadd.f32 0.0, %v5671
      %v5673 = vpop.f32.mrf.mxu0
      %v5674 = vpop.f32.mrf.mxu0
      %v5675 = vadd.f32 0.0, %v5674
      %v5676 = vpop.f32.mrf.mxu0
      %5677 = vdwg.mxu0
      %v5678 = vadd.f32 %v5616, %v5664
      %v5679 = vadd.f32 %v5617, %v5667
      %v5680 = vadd.f32 %v5618, %v5672
      %v5681 = vadd.f32 %v5619, %v5675
      %v5683 = vsel %vm849, %v5487, 0
      %5685 = vmatprep.subr.bf16.mxu0 0
      %5686 = vmatpush1.bf16.msra.mxu0 0
      %5687 = vmatprep.subr.bf16.mxu0 0
      %5688 = vmatpush1.bf16.msra.mxu0 0
      %5689 = vmatprep.subr.bf16.mxu0 0
      %5690 = vmatpush1.bf16.msra.mxu0 0
      %5691 = vmatprep.subr.bf16.mxu0 0
      %5692 = vmatpush1.bf16.msra.mxu0 0
      %5693 = vmatprep.subr.bf16.mxu0 0
      %5694 = vmatpush1.bf16.msra.mxu0 0
      %5695 = vmatprep.subr.bf16.mxu0 0
      %5696 = vmatpush1.bf16.msra.mxu0 0
      %5697 = vmatprep.subr.bf16.mxu0 0
      %5698 = vmatpush1.bf16.msra.mxu0 0
      %5699 = vmatprep.subr.bf16.mxu0 0
      %5700 = vmatpush1.bf16.msra.mxu0 %v5683
      %5701 = vmatprep.subr.bf16.mxu0 0
      %5702 = vmatpush2.bf16.msra.mxu0 0
      %5703 = vmatprep.subr.bf16.mxu0 0
      %5704 = vmatpush2.bf16.msra.mxu0 0
      %5705 = vmatprep.subr.bf16.mxu0 0
      %5706 = vmatpush2.bf16.msra.mxu0 0
      %5707 = vmatprep.subr.bf16.mxu0 0
      %5708 = vmatpush2.bf16.msra.mxu0 0
      %5709 = vmatprep.subr.bf16.mxu0 0
      %5710 = vmatpush2.bf16.msra.mxu0 0
      %5711 = vmatprep.subr.bf16.mxu0 0
      %5712 = vmatpush2.bf16.msra.mxu0 0
      %5713 = vmatprep.subr.bf16.mxu0 0
      %5714 = vmatpush2.bf16.msra.mxu0 0
      %5715 = vmatprep.subr.bf16.mxu0 0
      %5716 = vmatpush2.bf16.msra.mxu0 0
      %5717 = vmatprep.mubr.bf16.mxu0 0
      %5718 = vmatmul.mubr.bf16.gmra.mxu0 %v5559
      %v5719 = vpop.f32.mrf.mxu0
      %v5720 = vadd.f32 0.0, %v5719
      %v5721 = vpop.f32.mrf.mxu0
      %v5722 = vpop.f32.mrf.mxu0
      %v5723 = vadd.f32 0.0, %v5722
      %v5724 = vpop.f32.mrf.mxu0
      %5725 = vmatprep.mubr.bf16.mxu0 0
      %5726 = vmatmul.mubr.bf16.gmra.mxu0 %v5562
      %v5727 = vpop.f32.mrf.mxu0
      %v5728 = vadd.f32 0.0, %v5727
      %v5729 = vpop.f32.mrf.mxu0
      %v5730 = vpop.f32.mrf.mxu0
      %v5731 = vadd.f32 0.0, %v5730
      %v5732 = vpop.f32.mrf.mxu0
      %5733 = vdwg.mxu0
      %v5734 = vadd.f32 %v5552, %v5720
      %v5735 = vadd.f32 %v5552, %v5723
      %v5736 = vadd.f32 %v5552, %v5728
      %v5737 = vadd.f32 %v5552, %v5731
      %v5739 = vsel %vm849, %v5483, 0
      %5741 = vmatprep.subr.bf16.mxu0 0
      %5742 = vmatpush1.bf16.msra.mxu0 0
      %5743 = vmatprep.subr.bf16.mxu0 0
      %5744 = vmatpush1.bf16.msra.mxu0 0
      %5745 = vmatprep.subr.bf16.mxu0 0
      %5746 = vmatpush1.bf16.msra.mxu0 0
      %5747 = vmatprep.subr.bf16.mxu0 0
      %5748 = vmatpush1.bf16.msra.mxu0 0
      %5749 = vmatprep.subr.bf16.mxu0 0
      %5750 = vmatpush1.bf16.msra.mxu0 0
      %5751 = vmatprep.subr.bf16.mxu0 0
      %5752 = vmatpush1.bf16.msra.mxu0 0
      %5753 = vmatprep.subr.bf16.mxu0 0
      %5754 = vmatpush1.bf16.msra.mxu0 0
      %5755 = vmatprep.subr.bf16.mxu0 0
      %5756 = vmatpush1.bf16.msra.mxu0 %v5739
      %5757 = vmatprep.subr.bf16.mxu0 0
      %5758 = vmatpush2.bf16.msra.mxu0 0
      %5759 = vmatprep.subr.bf16.mxu0 0
      %5760 = vmatpush2.bf16.msra.mxu0 0
      %5761 = vmatprep.subr.bf16.mxu0 0
      %5762 = vmatpush2.bf16.msra.mxu0 0
      %5763 = vmatprep.subr.bf16.mxu0 0
      %5764 = vmatpush2.bf16.msra.mxu0 0
      %5765 = vmatprep.subr.bf16.mxu0 0
      %5766 = vmatpush2.bf16.msra.mxu0 0
      %5767 = vmatprep.subr.bf16.mxu0 0
      %5768 = vmatpush2.bf16.msra.mxu0 0
      %5769 = vmatprep.subr.bf16.mxu0 0
      %5770 = vmatpush2.bf16.msra.mxu0 0
      %5771 = vmatprep.subr.bf16.mxu0 0
      %5772 = vmatpush2.bf16.msra.mxu0 0
      %5773 = vmatprep.mubr.bf16.mxu0 0
      %5774 = vmatmul.mubr.bf16.gmra.mxu0 %v5621
      %v5775 = vpop.f32.mrf.mxu0
      %v5776 = vadd.f32 0.0, %v5775
      %v5777 = vpop.f32.mrf.mxu0
      %v5778 = vpop.f32.mrf.mxu0
      %v5779 = vadd.f32 0.0, %v5778
      %v5780 = vpop.f32.mrf.mxu0
      %5781 = vmatprep.mubr.bf16.mxu0 0
      %5782 = vmatmul.mubr.bf16.gmra.mxu0 %v5624
      %v5783 = vpop.f32.mrf.mxu0
      %v5784 = vadd.f32 0.0, %v5783
      %v5785 = vpop.f32.mrf.mxu0
      %v5786 = vpop.f32.mrf.mxu0
      %v5787 = vadd.f32 0.0, %v5786
      %v5788 = vpop.f32.mrf.mxu0
      %5789 = vdwg.mxu0
      %v5790 = vadd.f32 %v5734, %v5776
      %v5791 = vadd.f32 %v5735, %v5779
      %v5792 = vadd.f32 %v5736, %v5784
      %v5793 = vadd.f32 %v5737, %v5787
      %v5794 = vld [vmem:[#allocation13 + $0x1] sm:$0xff]
      %v5795 = vld [vmem:[#allocation13 + $0x9] sm:$0xff]
      %v5796 = vld [vmem:[#allocation13 + $0x11] sm:$0xff]
      %v5797 = vld [vmem:[#allocation13 + $0x19] sm:$0xff]
      %v5798 = vpack.c.bf16 %v5795, %v5794
      %v5799 = vpack.c.bf16 %v5797, %v5796
      %v5800 = vld [vmem:[#allocation13 + $0x2] sm:$0xff]
      %v5801 = vld [vmem:[#allocation13 + $0xa] sm:$0xff]
      %v5802 = vld [vmem:[#allocation13 + $0x12] sm:$0xff]
      %v5803 = vld [vmem:[#allocation13 + $0x1a] sm:$0xff]
      %v5804 = vpack.c.bf16 %v5801, %v5800
      %v5805 = vpack.c.bf16 %v5803, %v5802
      %v5806 = vld [vmem:[#allocation13 + $0x3] sm:$0xff]
      %v5807 = vld [vmem:[#allocation13 + $0xb] sm:$0xff]
      %v5808 = vld [vmem:[#allocation13 + $0x13] sm:$0xff]
      %v5809 = vld [vmem:[#allocation13 + $0x1b] sm:$0xff]
      %v5810 = vpack.c.bf16 %v5807, %v5806
      %v5811 = vpack.c.bf16 %v5809, %v5808
      %v5812 = vld [vmem:[%s23 + $0x4] sm:$0xf]
      %v5813 = vld [vmem:[%s5482 + $0x4] sm:$0xf]
      %v5814 = vld [vmem:[%s5484 + $0x4] sm:$0xf]
      %v5815 = vld [vmem:[%s5486 + $0x4] sm:$0xf]
      %v5816 = vld [vmem:[%s5488 + $0x4] sm:$0xf]
      %v5818 = vsel %vm766, %v5798, 0
      %v5821 = vsel %vm766, %v5799, 0
      %v5824 = vsel %vm849, %v5816, 0
      %5826 = vmatprep.subr.bf16.mxu0 0
      %5827 = vmatpush1.bf16.msra.mxu0 0
      %5828 = vmatprep.subr.bf16.mxu0 0
      %5829 = vmatpush1.bf16.msra.mxu0 0
      %5830 = vmatprep.subr.bf16.mxu0 0
      %5831 = vmatpush1.bf16.msra.mxu0 0
      %5832 = vmatprep.subr.bf16.mxu0 0
      %5833 = vmatpush1.bf16.msra.mxu0 0
      %5834 = vmatprep.subr.bf16.mxu0 0
      %5835 = vmatpush1.bf16.msra.mxu0 0
      %5836 = vmatprep.subr.bf16.mxu0 0
      %5837 = vmatpush1.bf16.msra.mxu0 0
      %5838 = vmatprep.subr.bf16.mxu0 0
      %5839 = vmatpush1.bf16.msra.mxu0 0
      %5840 = vmatprep.subr.bf16.mxu0 0
      %5841 = vmatpush1.bf16.msra.mxu0 %v5824
      %5842 = vmatprep.subr.bf16.mxu0 0
      %5843 = vmatpush2.bf16.msra.mxu0 0
      %5844 = vmatprep.subr.bf16.mxu0 0
      %5845 = vmatpush2.bf16.msra.mxu0 0
      %5846 = vmatprep.subr.bf16.mxu0 0
      %5847 = vmatpush2.bf16.msra.mxu0 0
      %5848 = vmatprep.subr.bf16.mxu0 0
      %5849 = vmatpush2.bf16.msra.mxu0 0
      %5850 = vmatprep.subr.bf16.mxu0 0
      %5851 = vmatpush2.bf16.msra.mxu0 0
      %5852 = vmatprep.subr.bf16.mxu0 0
      %5853 = vmatpush2.bf16.msra.mxu0 0
      %5854 = vmatprep.subr.bf16.mxu0 0
      %5855 = vmatpush2.bf16.msra.mxu0 0
      %5856 = vmatprep.subr.bf16.mxu0 0
      %5857 = vmatpush2.bf16.msra.mxu0 0
      %5858 = vmatprep.mubr.bf16.mxu0 0
      %5859 = vmatmul.mubr.bf16.gmra.mxu0 %v5818
      %v5860 = vpop.f32.mrf.mxu0
      %v5861 = vadd.f32 0.0, %v5860
      %v5862 = vpop.f32.mrf.mxu0
      %v5863 = vpop.f32.mrf.mxu0
      %v5864 = vadd.f32 0.0, %v5863
      %v5865 = vpop.f32.mrf.mxu0
      %5866 = vmatprep.mubr.bf16.mxu0 0
      %5867 = vmatmul.mubr.bf16.gmra.mxu0 %v5821
      %v5868 = vpop.f32.mrf.mxu0
      %v5869 = vadd.f32 0.0, %v5868
      %v5870 = vpop.f32.mrf.mxu0
      %v5871 = vpop.f32.mrf.mxu0
      %v5872 = vadd.f32 0.0, %v5871
      %v5873 = vpop.f32.mrf.mxu0
      %5874 = vdwg.mxu0
      %v5875 = vadd.f32 %v5678, %v5861
      %v5876 = vadd.f32 %v5679, %v5864
      %v5877 = vadd.f32 %v5680, %v5869
      %v5878 = vadd.f32 %v5681, %v5872
      %v5880 = vsel %vm766, %v5804, 0
      %v5883 = vsel %vm766, %v5805, 0
      %v5886 = vsel %vm849, %v5814, 0
      %5888 = vmatprep.subr.bf16.mxu0 0
      %5889 = vmatpush1.bf16.msra.mxu0 0
      %5890 = vmatprep.subr.bf16.mxu0 0
      %5891 = vmatpush1.bf16.msra.mxu0 0
      %5892 = vmatprep.subr.bf16.mxu0 0
      %5893 = vmatpush1.bf16.msra.mxu0 0
      %5894 = vmatprep.subr.bf16.mxu0 0
      %5895 = vmatpush1.bf16.msra.mxu0 0
      %5896 = vmatprep.subr.bf16.mxu0 0
      %5897 = vmatpush1.bf16.msra.mxu0 0
      %5898 = vmatprep.subr.bf16.mxu0 0
      %5899 = vmatpush1.bf16.msra.mxu0 0
      %5900 = vmatprep.subr.bf16.mxu0 0
      %5901 = vmatpush1.bf16.msra.mxu0 0
      %5902 = vmatprep.subr.bf16.mxu0 0
      %5903 = vmatpush1.bf16.msra.mxu0 %v5886
      %5904 = vmatprep.subr.bf16.mxu0 0
      %5905 = vmatpush2.bf16.msra.mxu0 0
      %5906 = vmatprep.subr.bf16.mxu0 0
      %5907 = vmatpush2.bf16.msra.mxu0 0
      %5908 = vmatprep.subr.bf16.mxu0 0
      %5909 = vmatpush2.bf16.msra.mxu0 0
      %5910 = vmatprep.subr.bf16.mxu0 0
      %5911 = vmatpush2.bf16.msra.mxu0 0
      %5912 = vmatprep.subr.bf16.mxu0 0
      %5913 = vmatpush2.bf16.msra.mxu0 0
      %5914 = vmatprep.subr.bf16.mxu0 0
      %5915 = vmatpush2.bf16.msra.mxu0 0
      %5916 = vmatprep.subr.bf16.mxu0 0
      %5917 = vmatpush2.bf16.msra.mxu0 0
      %5918 = vmatprep.subr.bf16.mxu0 0
      %5919 = vmatpush2.bf16.msra.mxu0 0
      %5920 = vmatprep.mubr.bf16.mxu0 0
      %5921 = vmatmul.mubr.bf16.gmra.mxu0 %v5880
      %v5922 = vpop.f32.mrf.mxu0
      %v5923 = vadd.f32 0.0, %v5922
      %v5924 = vpop.f32.mrf.mxu0
      %v5925 = vpop.f32.mrf.mxu0
      %v5926 = vadd.f32 0.0, %v5925
      %v5927 = vpop.f32.mrf.mxu0
      %5928 = vmatprep.mubr.bf16.mxu0 0
      %5929 = vmatmul.mubr.bf16.gmra.mxu0 %v5883
      %v5930 = vpop.f32.mrf.mxu0
      %v5931 = vadd.f32 0.0, %v5930
      %v5932 = vpop.f32.mrf.mxu0
      %v5933 = vpop.f32.mrf.mxu0
      %v5934 = vadd.f32 0.0, %v5933
      %v5935 = vpop.f32.mrf.mxu0
      %5936 = vdwg.mxu0
      %v5937 = vadd.f32 %v5875, %v5923
      %v5938 = vadd.f32 %v5876, %v5926
      %v5939 = vadd.f32 %v5877, %v5931
      %v5940 = vadd.f32 %v5878, %v5934
      %v5942 = vsel %vm766, %v5810, 0
      %v5945 = vsel %vm766, %v5811, 0
      %v5948 = vsel %vm849, %v5812, 0
      %5950 = vmatprep.subr.bf16.mxu0 0
      %5951 = vmatpush1.bf16.msra.mxu0 0
      %5952 = vmatprep.subr.bf16.mxu0 0
      %5953 = vmatpush1.bf16.msra.mxu0 0
      %5954 = vmatprep.subr.bf16.mxu0 0
      %5955 = vmatpush1.bf16.msra.mxu0 0
      %5956 = vmatprep.subr.bf16.mxu0 0
      %5957 = vmatpush1.bf16.msra.mxu0 0
      %5958 = vmatprep.subr.bf16.mxu0 0
      %5959 = vmatpush1.bf16.msra.mxu0 0
      %5960 = vmatprep.subr.bf16.mxu0 0
      %5961 = vmatpush1.bf16.msra.mxu0 0
      %5962 = vmatprep.subr.bf16.mxu0 0
      %5963 = vmatpush1.bf16.msra.mxu0 0
      %5964 = vmatprep.subr.bf16.mxu0 0
      %5965 = vmatpush1.bf16.msra.mxu0 %v5948
      %5966 = vmatprep.subr.bf16.mxu0 0
      %5967 = vmatpush2.bf16.msra.mxu0 0
      %5968 = vmatprep.subr.bf16.mxu0 0
      %5969 = vmatpush2.bf16.msra.mxu0 0
      %5970 = vmatprep.subr.bf16.mxu0 0
      %5971 = vmatpush2.bf16.msra.mxu0 0
      %5972 = vmatprep.subr.bf16.mxu0 0
      %5973 = vmatpush2.bf16.msra.mxu0 0
      %5974 = vmatprep.subr.bf16.mxu0 0
      %5975 = vmatpush2.bf16.msra.mxu0 0
      %5976 = vmatprep.subr.bf16.mxu0 0
      %5977 = vmatpush2.bf16.msra.mxu0 0
      %5978 = vmatprep.subr.bf16.mxu0 0
      %5979 = vmatpush2.bf16.msra.mxu0 0
      %5980 = vmatprep.subr.bf16.mxu0 0
      %5981 = vmatpush2.bf16.msra.mxu0 0
      %5982 = vmatprep.mubr.bf16.mxu0 0
      %5983 = vmatmul.mubr.bf16.gmra.mxu0 %v5942
      %v5984 = vpop.f32.mrf.mxu0
      %v5985 = vadd.f32 0.0, %v5984
      %v5986 = vpop.f32.mrf.mxu0
      %v5987 = vpop.f32.mrf.mxu0
      %v5988 = vadd.f32 0.0, %v5987
      %v5989 = vpop.f32.mrf.mxu0
      %5990 = vmatprep.mubr.bf16.mxu0 0
      %5991 = vmatmul.mubr.bf16.gmra.mxu0 %v5945
      %v5992 = vpop.f32.mrf.mxu0
      %v5993 = vadd.f32 0.0, %v5992
      %v5994 = vpop.f32.mrf.mxu0
      %v5995 = vpop.f32.mrf.mxu0
      %v5996 = vadd.f32 0.0, %v5995
      %v5997 = vpop.f32.mrf.mxu0
      %5998 = vdwg.mxu0
      %v5999 = vadd.f32 %v5937, %v5985
      %v6000 = vadd.f32 %v5938, %v5988
      %v6001 = vadd.f32 %v5939, %v5993
      %v6002 = vadd.f32 %v5940, %v5996
      %v6004 = vsel %vm849, %v5815, 0
      %6006 = vmatprep.subr.bf16.mxu0 0
      %6007 = vmatpush1.bf16.msra.mxu0 0
      %6008 = vmatprep.subr.bf16.mxu0 0
      %6009 = vmatpush1.bf16.msra.mxu0 0
      %6010 = vmatprep.subr.bf16.mxu0 0
      %6011 = vmatpush1.bf16.msra.mxu0 0
      %6012 = vmatprep.subr.bf16.mxu0 0
      %6013 = vmatpush1.bf16.msra.mxu0 0
      %6014 = vmatprep.subr.bf16.mxu0 0
      %6015 = vmatpush1.bf16.msra.mxu0 0
      %6016 = vmatprep.subr.bf16.mxu0 0
      %6017 = vmatpush1.bf16.msra.mxu0 0
      %6018 = vmatprep.subr.bf16.mxu0 0
      %6019 = vmatpush1.bf16.msra.mxu0 0
      %6020 = vmatprep.subr.bf16.mxu0 0
      %6021 = vmatpush1.bf16.msra.mxu0 %v6004
      %6022 = vmatprep.subr.bf16.mxu0 0
      %6023 = vmatpush2.bf16.msra.mxu0 0
      %6024 = vmatprep.subr.bf16.mxu0 0
      %6025 = vmatpush2.bf16.msra.mxu0 0
      %6026 = vmatprep.subr.bf16.mxu0 0
      %6027 = vmatpush2.bf16.msra.mxu0 0
      %6028 = vmatprep.subr.bf16.mxu0 0
      %6029 = vmatpush2.bf16.msra.mxu0 0
      %6030 = vmatprep.subr.bf16.mxu0 0
      %6031 = vmatpush2.bf16.msra.mxu0 0
      %6032 = vmatprep.subr.bf16.mxu0 0
      %6033 = vmatpush2.bf16.msra.mxu0 0
      %6034 = vmatprep.subr.bf16.mxu0 0
      %6035 = vmatpush2.bf16.msra.mxu0 0
      %6036 = vmatprep.subr.bf16.mxu0 0
      %6037 = vmatpush2.bf16.msra.mxu0 0
      %6038 = vmatprep.mubr.bf16.mxu0 0
      %6039 = vmatmul.mubr.bf16.gmra.mxu0 %v5880
      %v6040 = vpop.f32.mrf.mxu0
      %v6041 = vadd.f32 0.0, %v6040
      %v6042 = vpop.f32.mrf.mxu0
      %v6043 = vpop.f32.mrf.mxu0
      %v6044 = vadd.f32 0.0, %v6043
      %v6045 = vpop.f32.mrf.mxu0
      %6046 = vmatprep.mubr.bf16.mxu0 0
      %6047 = vmatmul.mubr.bf16.gmra.mxu0 %v5883
      %v6048 = vpop.f32.mrf.mxu0
      %v6049 = vadd.f32 0.0, %v6048
      %v6050 = vpop.f32.mrf.mxu0
      %v6051 = vpop.f32.mrf.mxu0
      %v6052 = vadd.f32 0.0, %v6051
      %v6053 = vpop.f32.mrf.mxu0
      %6054 = vdwg.mxu0
      %v6055 = vadd.f32 %v5790, %v6041
      %v6056 = vadd.f32 %v5791, %v6044
      %v6057 = vadd.f32 %v5792, %v6049
      %v6058 = vadd.f32 %v5793, %v6052
      %v6060 = vsel %vm849, %v5813, 0
      %6062 = vmatprep.subr.bf16.mxu0 0
      %6063 = vmatpush1.bf16.msra.mxu0 0
      %6064 = vmatprep.subr.bf16.mxu0 0
      %6065 = vmatpush1.bf16.msra.mxu0 0
      %6066 = vmatprep.subr.bf16.mxu0 0
      %6067 = vmatpush1.bf16.msra.mxu0 0
      %6068 = vmatprep.subr.bf16.mxu0 0
      %6069 = vmatpush1.bf16.msra.mxu0 0
      %6070 = vmatprep.subr.bf16.mxu0 0
      %6071 = vmatpush1.bf16.msra.mxu0 0
      %6072 = vmatprep.subr.bf16.mxu0 0
      %6073 = vmatpush1.bf16.msra.mxu0 0
      %6074 = vmatprep.subr.bf16.mxu0 0
      %6075 = vmatpush1.bf16.msra.mxu0 0
      %6076 = vmatprep.subr.bf16.mxu0 0
      %6077 = vmatpush1.bf16.msra.mxu0 %v6060
      %6078 = vmatprep.subr.bf16.mxu0 0
      %6079 = vmatpush2.bf16.msra.mxu0 0
      %6080 = vmatprep.subr.bf16.mxu0 0
      %6081 = vmatpush2.bf16.msra.mxu0 0
      %6082 = vmatprep.subr.bf16.mxu0 0
      %6083 = vmatpush2.bf16.msra.mxu0 0
      %6084 = vmatprep.subr.bf16.mxu0 0
      %6085 = vmatpush2.bf16.msra.mxu0 0
      %6086 = vmatprep.subr.bf16.mxu0 0
      %6087 = vmatpush2.bf16.msra.mxu0 0
      %6088 = vmatprep.subr.bf16.mxu0 0
      %6089 = vmatpush2.bf16.msra.mxu0 0
      %6090 = vmatprep.subr.bf16.mxu0 0
      %6091 = vmatpush2.bf16.msra.mxu0 0
      %6092 = vmatprep.subr.bf16.mxu0 0
      %6093 = vmatpush2.bf16.msra.mxu0 0
      %6094 = vmatprep.mubr.bf16.mxu0 0
      %6095 = vmatmul.mubr.bf16.gmra.mxu0 %v5942
      %v6096 = vpop.f32.mrf.mxu0
      %v6097 = vadd.f32 0.0, %v6096
      %v6098 = vpop.f32.mrf.mxu0
      %v6099 = vpop.f32.mrf.mxu0
      %v6100 = vadd.f32 0.0, %v6099
      %v6101 = vpop.f32.mrf.mxu0
      %6102 = vmatprep.mubr.bf16.mxu0 0
      %6103 = vmatmul.mubr.bf16.gmra.mxu0 %v5945
      %v6104 = vpop.f32.mrf.mxu0
      %v6105 = vadd.f32 0.0, %v6104
      %v6106 = vpop.f32.mrf.mxu0
      %v6107 = vpop.f32.mrf.mxu0
      %v6108 = vadd.f32 0.0, %v6107
      %v6109 = vpop.f32.mrf.mxu0
      %6110 = vdwg.mxu0
      %v6111 = vadd.f32 %v6055, %v6097
      %v6112 = vadd.f32 %v6056, %v6100
      %v6113 = vadd.f32 %v6057, %v6105
      %v6114 = vadd.f32 %v6058, %v6108
      %v6115 = vmax.f32 %v5999, 0.0
      %v6116 = vmax.f32 %v6000, 0.0
      %v6117 = vmax.f32 %v6001, 0.0
      %v6118 = vmax.f32 %v6002, 0.0
      %s6119 = scalar_lea.vmem [#allocation14], 2
      %6120 = vst [vmem:[%s6119] ss:$2 sm:$0xff] %v6115
      %s6121 = scalar_lea.vmem [#allocation14], 18
      %6122 = vst [vmem:[%s6121] ss:$2 sm:$0xff] %v6116
      %s6123 = scalar_lea.vmem [#allocation14], 34
      %6124 = vst [vmem:[%s6123] ss:$2 sm:$0xff] %v6117
      %s6125 = scalar_lea.vmem [#allocation14], 50
      %6126 = vst [vmem:[%s6125] ss:$2 sm:$0xff] %v6118
      %v6127 = vmax.f32 %v6111, 0.0
      %v6128 = vmax.f32 %v6112, 0.0
      %v6129 = vmax.f32 %v6113, 0.0
      %v6130 = vmax.f32 %v6114, 0.0
      %s6131 = scalar_lea.vmem [#allocation14], 3
      %6132 = vst [vmem:[%s6131] ss:$2 sm:$0xff] %v6127
      %s6133 = scalar_lea.vmem [#allocation14], 19
      %6134 = vst [vmem:[%s6133] ss:$2 sm:$0xff] %v6128
      %s6135 = scalar_lea.vmem [#allocation14], 35
      %6136 = vst [vmem:[%s6135] ss:$2 sm:$0xff] %v6129
      %s6137 = scalar_lea.vmem [#allocation14], 51
      %6138 = vst [vmem:[%s6137] ss:$2 sm:$0xff] %v6130
      %v6139 = vld [vmem:[#allocation2 + $0x2] sm:$0xff]
      %v6140 = vld [vmem:[#allocation2 + $0xa] sm:$0xff]
      %v6141 = vld [vmem:[#allocation2 + $0x12] sm:$0xff]
      %v6142 = vld [vmem:[#allocation2 + $0x1a] sm:$0xff]
      %v6143 = vld [vmem:[#allocation2 + $0x22] sm:$0xff]
      %v6144 = vld [vmem:[#allocation2 + $0x2a] sm:$0xff]
      %v6145 = vld [vmem:[#allocation2 + $0x32] sm:$0xff]
      %v6146 = vld [vmem:[#allocation2 + $0x3a] sm:$0xff]
      %6147 = vst.msk [vmem:[%s764] sm:$0xff] %vm766, %v6139
      %6148 = vst.msk [vmem:[%s764 + $0x8] sm:$0xff] %vm766, %v6140
      %6149 = vst.msk [vmem:[%s764 + $0x10] sm:$0xff] %vm766, %v6141
      %6150 = vst.msk [vmem:[%s764 + $0x18] sm:$0xff] %vm766, %v6142
      %6151 = vst.msk [vmem:[%s764 + $0x20] sm:$0xff] %vm766, %v6143
      %6152 = vst.msk [vmem:[%s764 + $0x28] sm:$0xff] %vm766, %v6144
      %6153 = vst.msk [vmem:[%s764 + $0x30] sm:$0xff] %vm766, %v6145
      %6154 = vst.msk [vmem:[%s764 + $0x38] sm:$0xff] %vm766, %v6146
      %v6155 = vld [vmem:[#allocation14 + $0x2] sm:$0xff]
      %v6156 = vld [vmem:[#allocation14 + $0xa] sm:$0xff]
      %v6157 = vld [vmem:[#allocation14 + $0x12] sm:$0xff]
      %v6158 = vld [vmem:[#allocation14 + $0x1a] sm:$0xff]
      %v6159 = vld [vmem:[#allocation14 + $0x22] sm:$0xff]
      %v6160 = vld [vmem:[#allocation14 + $0x2a] sm:$0xff]
      %v6161 = vld [vmem:[#allocation14 + $0x32] sm:$0xff]
      %v6162 = vld [vmem:[#allocation14 + $0x3a] sm:$0xff]
      %6171 = vrot.lane.b32.xlu0 %v6155, 8
      %v6172 = vpop.permute.xlu0 %6171
      %6173 = vrot.lane.b32.xlu0 %v6156, 8
      %v6174 = vpop.permute.xlu0 %6173
      %6175 = vrot.lane.b32.xlu0 %v6157, 8
      %v6176 = vpop.permute.xlu0 %6175
      %6177 = vrot.lane.b32.xlu0 %v6158, 8
      %v6178 = vpop.permute.xlu0 %6177
      %6179 = vrot.lane.b32.xlu0 %v6159, 8
      %v6180 = vpop.permute.xlu0 %6179
      %6181 = vrot.lane.b32.xlu0 %v6160, 8
      %v6182 = vpop.permute.xlu0 %6181
      %6183 = vrot.lane.b32.xlu0 %v6161, 8
      %v6184 = vpop.permute.xlu0 %6183
      %6185 = vrot.lane.b32.xlu0 %v6162, 8
      %v6186 = vpop.permute.xlu0 %6185
      %vm6195 = vcmask 130112
      %6196 = vst.msk [vmem:[%s764] sm:$0xff] %vm6195, %v6172
      %6197 = vst.msk [vmem:[%s764 + $0x8] sm:$0xff] %vm6195, %v6174
      %6198 = vst.msk [vmem:[%s764 + $0x10] sm:$0xff] %vm6195, %v6176
      %6199 = vst.msk [vmem:[%s764 + $0x18] sm:$0xff] %vm6195, %v6178
      %6200 = vst.msk [vmem:[%s764 + $0x20] sm:$0xff] %vm6195, %v6180
      %6201 = vst.msk [vmem:[%s764 + $0x28] sm:$0xff] %vm6195, %v6182
      %6202 = vst.msk [vmem:[%s764 + $0x30] sm:$0xff] %vm6195, %v6184
      %6203 = vst.msk [vmem:[%s764 + $0x38] sm:$0xff] %vm6195, %v6186
      %p6204 = scmp.lt.s32.totalorder %s36, 1
      %s6205 = scalar_select %p6204, %s36, 1
      %s6206 = smul.addr %s6205, 8
      %s6207 = smul.addr %s6206, 8
      %s6208 = scalar_lea.vmem %s25, %s6207
      // Predicated region
      $region121: #{unet_forward.1} parent=119 // pred_check
        %p6209 = pneg %p584
      $region122: #{unet_forward.1} parent=119 // pred_check_branch
        %6211 = sbr.rel (%p6209) target = $region124
      $region123: #{unet_forward.1} parent=119 // pred_region
        _
      $region124: #{unet_forward.1} parent=119 // pred_fallthru
        _
    $region120: #{unet_forward.1} parent=5 // pred_fallthru
      _
    %p6212 = scmp.le.s32.totalorder 2, %s31
    // Predicated region
    $region125: #{unet_forward.1} parent=5 // pred_check
      %p6213 = pneg %p6212
    $region126: #{unet_forward.1} parent=5 // pred_check_branch
      %6215 = sbr.rel (%p6213) target = $region128
    $region127: #{unet_forward.1} parent=5 // pred_region
      %s6216 = ssub.s32 %s31, 2
      // Predicated region
      $region129: #{unet_forward.1} parent=127 // pred_check
        %p6217 = pneg %p590
      $region130: #{unet_forward.1} parent=127 // pred_check_branch
        %6219 = sbr.rel (%p6217) target = $region132
      $region131: #{unet_forward.1} parent=127 // pred_region
        %p6220 = scmp.lt.s32.totalorder %s37, 1
        %s6221 = scalar_select %p6220, %s37, 1
        %s6222 = smul.addr %s6221, 8
        %s6223 = smul.addr %s6222, 8
        %s6224 = scalar_lea.vmem %s25, %s6223
      $region132: #{unet_forward.1} parent=127 // pred_fallthru
        _
    $region128: #{unet_forward.1} parent=5 // pred_fallthru
      _
  $region6: #{unet_forward.1} parent=0 // loop_footer
    %s35 = sadd.s32 1, %s31
  $region7: #{unet_forward.1} parent=0 // loop_footer_branch
    %30 = sbr.rel target = $region3
  $region8: #{unet_forward.1} parent=0 // loop_exit
    _

</llo_original>
